<compile_context>
chip_gen: v6e
topology: v6e:2x2x1
jax: 0.10.0
libtpu: 0.0.40
codegen_flags: <defaults>
</compile_context>

<pallas_src>
import functools

import jax
import jax.numpy as jnp
from jax.experimental import pallas as pl
from jax.experimental.pallas import tpu as pltpu


def _round_up(v, m):
    return (v + m - 1) // m * m


def _pick_tm(m, tm_max):
    """M-tile: multiple of 8, <= tm_max, and <= ceil(M/2) so the parallel grid
    axis has >= 2 steps whenever M allows it (keeps both v7x TensorCores busy)."""
    half = _round_up(max(-(-m // 2), 1), 8)
    return max(8, min(tm_max, half, _round_up(m, 8)))


# ---------------------------------------------------------------------------
# Kernel 1: M-tiled fused  A @ W + b [+ ReLU]   (bf16 operands, f32 accumulate)
# ---------------------------------------------------------------------------
def _mm_bias_act_kernel(a_ref, w_ref, b_ref, o_ref, *, relu):
    acc = jnp.dot(a_ref[...], w_ref[...], preferred_element_type=jnp.float32)
    acc = acc + b_ref[...]                 # (1, N) f32 broadcasts over rows
    if relu:
        acc = jnp.maximum(acc, 0.0)
    o_ref[...] = acc.astype(o_ref.dtype)


def matmul_bias_act(a, w, b_row, *, relu=True, out_dtype=jnp.bfloat16,
                    tm_max=2048):
    """a:(M,K) bf16, w:(K,N) bf16, b_row:(1,N) f32 -> (M,N). No padding: the
    grid uses cdiv and the last ragged M block is masked by Pallas."""
    m, k = a.shape
    k2, n = w.shape
    assert k == k2
    tm = _pick_tm(m, tm_max)
    return pl.pallas_call(
        functools.partial(_mm_bias_act_kernel, relu=relu),
        out_shape=jax.ShapeDtypeStruct((m, n), out_dtype),
        grid=(pl.cdiv(m, tm),),
        in_specs=[
            pl.BlockSpec((tm, k), lambda i: (i, 0)),   # A tile, pipelined over M
            pl.BlockSpec((k, n), lambda i: (0, 0)),    # weight resident
            pl.BlockSpec((1, n), lambda i: (0, 0)),    # bias resident
        ],
        out_specs=pl.BlockSpec((tm, n), lambda i: (i, 0)),
        compiler_params=pltpu.CompilerParams(
            dimension_semantics=("parallel",)),
    )(a, w, b_row)


# ---------------------------------------------------------------------------
# Kernel 2: fused FC head  relu(x @ W4 + b4) @ W5 + b5   (weights resident)
# ---------------------------------------------------------------------------
def _fc_head_kernel(x_ref, w4_ref, b4_ref, w5_ref, b5_ref, o_ref):
    h = jnp.dot(x_ref[...], w4_ref[...], preferred_element_type=jnp.float32)
    h = jnp.maximum(h + b4_ref[...], 0.0)
    q = jnp.dot(h.astype(jnp.bfloat16), w5_ref[...],
                preferred_element_type=jnp.float32)
    o_ref[...] = q + b5_ref[...]


def fc_head(x, w4, b4, w5, b5, *, tm_max=256):
    """x:(M,3136) bf16 -> (M, Np) f32 (Np = n_actions padded to 128 lanes).
    tm_max=256 keeps live VMEM ~6.7 MiB (fits v5e's 16 MiB default scope)."""
    m, k = x.shape
    k2, h = w4.shape
    h2, np_ = w5.shape
    assert k == k2 and h == h2
    tm = _pick_tm(m, tm_max)
    return pl.pallas_call(
        _fc_head_kernel,
        out_shape=jax.ShapeDtypeStruct((m, np_), jnp.float32),
        grid=(pl.cdiv(m, tm),),
        in_specs=[
            pl.BlockSpec((tm, k), lambda i: (i, 0)),
            pl.BlockSpec((k, h), lambda i: (0, 0)),
            pl.BlockSpec((1, h), lambda i: (0, 0)),
            pl.BlockSpec((h, np_), lambda i: (0, 0)),
            pl.BlockSpec((1, np_), lambda i: (0, 0)),
        ],
        out_specs=pl.BlockSpec((tm, np_), lambda i: (i, 0)),
        compiler_params=pltpu.CompilerParams(
            dimension_semantics=("parallel",)),
    )(x, w4, b4, w5, b5)


# ---------------------------------------------------------------------------
# Conv layer = fused XLA patch gather (NHWC) + Pallas GEMM kernel
# ---------------------------------------------------------------------------
def conv_layer(x_nhwc, w_mat, b_row, *, stride, kh, kw, relu=True):
    """x_nhwc:(B,H,W,Cin) bf16 -> (B,OH,OW,Cout) bf16 (conv + bias + ReLU).
    Patch feature order is (Cin, KH, KW), matching PyTorch's weight reshape."""
    patches = jax.lax.conv_general_dilated_patches(
        x_nhwc, filter_shape=(kh, kw), window_strides=(stride, stride),
        padding="VALID", dimension_numbers=("NHWC", "HWIO", "NHWC"))
    b, oh, ow, kf = patches.shape
    cout = w_mat.shape[1]
    out = matmul_bias_act(patches.reshape(b * oh * ow, kf), w_mat, b_row,
                          relu=relu, out_dtype=jnp.bfloat16)
    return out.reshape(b, oh, ow, cout)


# ---------------------------------------------------------------------------
# QNetwork forward
# ---------------------------------------------------------------------------
def qnetwork_forward(p, x, *, n_actions):
    """x: (B, 4, 84, 84) f32 raw pixels (0..255). Returns (B, n_actions) f32."""
    # bf16 cast BEFORE the layout transpose (halves the transposed bytes);
    # the 1/255 input scale is folded into w1 at prepare_params time.
    x = x.astype(jnp.bfloat16).transpose(0, 2, 3, 1)           # NCHW -> NHWC
    h = conv_layer(x, p["w1"], p["b1"], stride=4, kh=8, kw=8)   # (B,20,20,32)
    h = conv_layer(h, p["w2"], p["b2"], stride=2, kh=4, kw=4)   # (B, 9, 9,64)
    h = conv_layer(h, p["w3"], p["b3"], stride=1, kh=3, kw=3)   # (B, 7, 7,64)
    b = h.shape[0]
    h = h.reshape(b, -1)        # NHWC flatten; w4 columns pre-permuted to match
    q = fc_head(h, p["w4"], p["b4"], p["w5"], p["b5"])
    return q[:, :n_actions]


# ---------------------------------------------------------------------------
# Parameter preparation (done once, outside the jitted forward)
# ---------------------------------------------------------------------------
def prepare_params(raw, *, conv_out_chw=(64, 7, 7)):
    """PyTorch-layout params -> kernel-ready (bf16, pre-transposed)."""
    def conv_w(w, scale=1.0):
        cout = w.shape[0]
        # (Cout, Cin, KH, KW) -> (Cin*KH*KW, Cout): matches the (Cin,KH,KW)
        # feature order produced by lax.conv_general_dilated_patches.
        wm = (w.astype(jnp.float32) * scale).reshape(cout, -1).T
        return wm.astype(jnp.bfloat16)

    def brow(b, pad_to=None):
        r = b.astype(jnp.float32).reshape(1, -1)
        if pad_to is not None and pad_to > r.shape[1]:
            r = jnp.pad(r, ((0, 0), (0, pad_to - r.shape[1])))
        return r

    c, hc, wc = conv_out_chw
    # fc1 acts on PyTorch's (C,H,W) flatten; permute its columns to the NHWC
    # (H,W,C) flatten we produce, lay out as (K, N). K stays exactly 3136.
    w4 = raw["w4"].astype(jnp.float32)
    w4 = w4.reshape(-1, c, hc, wc).transpose(2, 3, 1, 0).reshape(hc * wc * c, -1)
    w4 = w4.astype(jnp.bfloat16)                                  # (3136, 512)
    n_act = raw["b5"].shape[0]
    n_act_p = _round_up(n_act, 128)
    w5 = jnp.pad(raw["w5"].astype(jnp.float32).T,
                 ((0, 0), (0, n_act_p - n_act))).astype(jnp.bfloat16)  # (512,128)
    return {
        "w1": conv_w(raw["w1"], scale=1.0 / 255.0), "b1": brow(raw["b1"]),
        "w2": conv_w(raw["w2"]),                    "b2": brow(raw["b2"]),
        "w3": conv_w(raw["w3"]),                    "b3": brow(raw["b3"]),
        "w4": w4,                                   "b4": brow(raw["b4"]),
        "w5": w5,                                   "b5": brow(raw["b5"], n_act_p),
    }


def init_params(key, n_actions):
    ks = jax.random.split(key, 10)
    def w(k, shape, fan_in):
        return jax.random.normal(k, shape, jnp.float32) * (1.0 / jnp.sqrt(fan_in))
    return {
        "w1": w(ks[0], (32, 4, 8, 8), 4 * 8 * 8),
        "b1": w(ks[1], (32,), 4 * 8 * 8),
        "w2": w(ks[2], (64, 32, 4, 4), 32 * 4 * 4),
        "b2": w(ks[3], (64,), 32 * 4 * 4),
        "w3": w(ks[4], (64, 64, 3, 3), 64 * 3 * 3),
        "b3": w(ks[5], (64,), 64 * 3 * 3),
        "w4": w(ks[6], (512, 3136), 3136),
        "b4": w(ks[7], (512,), 3136),
        "w5": w(ks[8], (n_actions, 512), 512),
        "b5": w(ks[9], (n_actions,), 512),
    }


# ---------------------------------------------------------------------------
# Pure-XLA f32 reference (PyTorch semantics) for the correctness check
# ---------------------------------------------------------------------------
def reference_forward(raw, x):
    x = x / 255.0
    def conv(h, w, b, s):
        y = jax.lax.conv_general_dilated(
            h, w, (s, s), "VALID", dimension_numbers=("NCHW", "OIHW", "NCHW"))
        return jax.nn.relu(y + b.reshape(1, -1, 1, 1))
    h = conv(x, raw["w1"], raw["b1"], 4)
    h = conv(h, raw["w2"], raw["b2"], 2)
    h = conv(h, raw["w3"], raw["b3"], 1)
    h = h.reshape(h.shape[0], -1)                    # (C,H,W) flatten
    h = jax.nn.relu(h @ raw["w4"].T + raw["b4"])
    return h @ raw["w5"].T + raw["b5"]


if __name__ == "__main__":
    key = jax.random.PRNGKey(0)
    k_x, k_p = jax.random.split(key)

    n_actions = 6  # e.g. Atari Pong action space
    # 84x84 input is required by the module (flattened conv output = 3136).
    x = jax.random.uniform(k_x, (2, 4, 84, 84), jnp.float32) * 255.0

    raw_params = init_params(k_p, n_actions)
    params = prepare_params(raw_params)

    fwd = jax.jit(functools.partial(qnetwork_forward, n_actions=n_actions))
    q = jax.block_until_ready(fwd(params, x))

    assert q.shape == (2, n_actions), q.shape
    assert bool(jnp.all(jnp.isfinite(q)))

    # bf16 activations/weights (f32 accumulation) vs. the f32 reference:
    # documented tolerance ~1e-2 absolute on O(1) Q-values.
    q_ref = jax.jit(reference_forward)(raw_params, x)
    max_err = float(jnp.max(jnp.abs(q - q_ref)))
    assert bool(jnp.allclose(q, q_ref, atol=1e-1, rtol=1e-1)), max_err

    print("KERNEL_OK")
</pallas_src>

<mosaic_0001>
module attributes {stable_mosaic.version = 11 : i64} {
  func.func @_mm_bias_act_kernel(%arg0: i32, %arg1: memref<400x256xbf16, #tpu.memory_space<vmem>>, %arg2: memref<256x32xbf16, #tpu.memory_space<vmem>>, %arg3: memref<1x32xf32, #tpu.memory_space<vmem>>, %arg4: memref<400x32xbf16, #tpu.memory_space<vmem>>) attributes {dimension_semantics = [#tpu.dimension_semantics<parallel>], iteration_bounds = array<i64: 2>, scalar_prefetch = 0 : i64, scratch_operands = 0 : i64, tpu.core_type = #tpu.core_type<tc>, window_params = [{transform_indices = @transform_0, window_bounds = array<i64: 400, 256>}, {pipeline_mode = #tpu.pipeline_mode<synchronous>, transform_indices = @transform_1, window_bounds = array<i64: 256, 32>}, {pipeline_mode = #tpu.pipeline_mode<synchronous>, transform_indices = @transform_2, window_bounds = array<i64: 1, 32>}, {transform_indices = @transform_3, window_bounds = array<i64: 400, 32>}]} {
    %c0 = arith.constant 0 : index
    %c0_0 = arith.constant 0 : index
    %0 = vector.load %arg1[%c0, %c0_0] : memref<400x256xbf16, #tpu.memory_space<vmem>>, vector<400x256xbf16>
    %c0_1 = arith.constant 0 : index
    %c0_2 = arith.constant 0 : index
    %1 = vector.load %arg2[%c0_1, %c0_2] : memref<256x32xbf16, #tpu.memory_space<vmem>>, vector<256x32xbf16>
    %cst = arith.constant dense<0.000000e+00> : vector<400x32xf32>
    %2 = tpu.matmul %0, %1, %cst {dimension_numbers = #tpu.dot_dimension_numbers<[1], [0], [0], [1], [0, 0, 1, 1], [], []>} : vector<400x256xbf16>, vector<256x32xbf16>, vector<400x32xf32> -> vector<400x32xf32>
    %c0_3 = arith.constant 0 : index
    %c0_4 = arith.constant 0 : index
    %3 = vector.load %arg3[%c0_3, %c0_4] : memref<1x32xf32, #tpu.memory_space<vmem>>, vector<1x32xf32>
    %4 = vector.broadcast %3 : vector<1x32xf32> to vector<400x32xf32>
    %5 = arith.addf %2, %4 : vector<400x32xf32>
    %cst_5 = arith.constant 0.000000e+00 : f32
    %6 = vector.broadcast %cst_5 : f32 to vector<400x32xf32>
    %7 = arith.maximumf %5, %6 : vector<400x32xf32>
    %8 = arith.truncf %7 : vector<400x32xf32> to vector<400x32xbf16>
    %c0_6 = arith.constant 0 : index
    %c0_7 = arith.constant 0 : index
    %9 = vector.load %arg4[%c0_6, %c0_7] : memref<400x32xbf16, #tpu.memory_space<vmem>>, vector<400x32xbf16>
    tpu.vector_store %arg4[%c0_6, %c0_7], %8 {strides = array<i32>} : memref<400x32xbf16, #tpu.memory_space<vmem>>, vector<400x32xbf16>,
    return
  }
  func.func @transform_0(%arg0: i32) -> (i32, i32) {
    %c0_i32 = arith.constant 0 : i32
    %c0_i32_0 = arith.constant 0 : i32
    return %arg0, %c0_i32 : i32, i32
  }
  func.func @transform_1(%arg0: i32) -> (i32, i32) {
    %c0_i32 = arith.constant 0 : i32
    %c0_i32_0 = arith.constant 0 : i32
    %c0_i32_1 = arith.constant 0 : i32
    return %c0_i32, %c0_i32_0 : i32, i32
  }
  func.func @transform_2(%arg0: i32) -> (i32, i32) {
    %c0_i32 = arith.constant 0 : i32
    %c0_i32_0 = arith.constant 0 : i32
    %c0_i32_1 = arith.constant 0 : i32
    return %c0_i32, %c0_i32_0 : i32, i32
  }
  func.func @transform_3(%arg0: i32) -> (i32, i32) {
    %c0_i32 = arith.constant 0 : i32
    %c0_i32_0 = arith.constant 0 : i32
    return %arg0, %c0_i32 : i32, i32
  }
}

module attributes {stable_mosaic.version = 11 : i64} {
  func.func @_mm_bias_act_kernel(%arg0: i32, %arg1: memref<88x512xbf16, #tpu.memory_space<vmem>>, %arg2: memref<512x64xbf16, #tpu.memory_space<vmem>>, %arg3: memref<1x64xf32, #tpu.memory_space<vmem>>, %arg4: memref<88x64xbf16, #tpu.memory_space<vmem>>) attributes {dimension_semantics = [#tpu.dimension_semantics<parallel>], iteration_bounds = array<i64: 2>, scalar_prefetch = 0 : i64, scratch_operands = 0 : i64, tpu.core_type = #tpu.core_type<tc>, window_params = [{transform_indices = @transform_0, window_bounds = array<i64: 88, 512>}, {pipeline_mode = #tpu.pipeline_mode<synchronous>, transform_indices = @transform_1, window_bounds = array<i64: 512, 64>}, {pipeline_mode = #tpu.pipeline_mode<synchronous>, transform_indices = @transform_2, window_bounds = array<i64: 1, 64>}, {transform_indices = @transform_3, window_bounds = array<i64: 88, 64>}]} {
    %c0 = arith.constant 0 : index
    %c0_0 = arith.constant 0 : index
    %0 = vector.load %arg1[%c0, %c0_0] : memref<88x512xbf16, #tpu.memory_space<vmem>>, vector<88x512xbf16>
    %c0_1 = arith.constant 0 : index
    %c0_2 = arith.constant 0 : index
    %1 = vector.load %arg2[%c0_1, %c0_2] : memref<512x64xbf16, #tpu.memory_space<vmem>>, vector<512x64xbf16>
    %cst = arith.constant dense<0.000000e+00> : vector<88x64xf32>
    %2 = tpu.matmul %0, %1, %cst {dimension_numbers = #tpu.dot_dimension_numbers<[1], [0], [0], [1], [0, 0, 1, 1], [], []>} : vector<88x512xbf16>, vector<512x64xbf16>, vector<88x64xf32> -> vector<88x64xf32>
    %c0_3 = arith.constant 0 : index
    %c0_4 = arith.constant 0 : index
    %3 = vector.load %arg3[%c0_3, %c0_4] : memref<1x64xf32, #tpu.memory_space<vmem>>, vector<1x64xf32>
    %4 = vector.broadcast %3 : vector<1x64xf32> to vector<88x64xf32>
    %5 = arith.addf %2, %4 : vector<88x64xf32>
    %cst_5 = arith.constant 0.000000e+00 : f32
    %6 = vector.broadcast %cst_5 : f32 to vector<88x64xf32>
    %7 = arith.maximumf %5, %6 : vector<88x64xf32>
    %8 = arith.truncf %7 : vector<88x64xf32> to vector<88x64xbf16>
    %c0_6 = arith.constant 0 : index
    %c0_7 = arith.constant 0 : index
    %9 = vector.load %arg4[%c0_6, %c0_7] : memref<88x64xbf16, #tpu.memory_space<vmem>>, vector<88x64xbf16>
    tpu.vector_store %arg4[%c0_6, %c0_7], %8 {strides = array<i32>} : memref<88x64xbf16, #tpu.memory_space<vmem>>, vector<88x64xbf16>,
    return
  }
  func.func @transform_0(%arg0: i32) -> (i32, i32) {
    %c0_i32 = arith.constant 0 : i32
    %c0_i32_0 = arith.constant 0 : i32
    return %arg0, %c0_i32 : i32, i32
  }
  func.func @transform_1(%arg0: i32) -> (i32, i32) {
    %c0_i32 = arith.constant 0 : i32
    %c0_i32_0 = arith.constant 0 : i32
    %c0_i32_1 = arith.constant 0 : i32
    return %c0_i32, %c0_i32_0 : i32, i32
  }
  func.func @transform_2(%arg0: i32) -> (i32, i32) {
    %c0_i32 = arith.constant 0 : i32
    %c0_i32_0 = arith.constant 0 : i32
    %c0_i32_1 = arith.constant 0 : i32
    return %c0_i32, %c0_i32_0 : i32, i32
  }
  func.func @transform_3(%arg0: i32) -> (i32, i32) {
    %c0_i32 = arith.constant 0 : i32
    %c0_i32_0 = arith.constant 0 : i32
    return %arg0, %c0_i32 : i32, i32
  }
}

module attributes {stable_mosaic.version = 11 : i64} {
  func.func @_mm_bias_act_kernel(%arg0: i32, %arg1: memref<56x576xbf16, #tpu.memory_space<vmem>>, %arg2: memref<576x64xbf16, #tpu.memory_space<vmem>>, %arg3: memref<1x64xf32, #tpu.memory_space<vmem>>, %arg4: memref<56x64xbf16, #tpu.memory_space<vmem>>) attributes {dimension_semantics = [#tpu.dimension_semantics<parallel>], iteration_bounds = array<i64: 2>, scalar_prefetch = 0 : i64, scratch_operands = 0 : i64, tpu.core_type = #tpu.core_type<tc>, window_params = [{transform_indices = @transform_0, window_bounds = array<i64: 56, 576>}, {pipeline_mode = #tpu.pipeline_mode<synchronous>, transform_indices = @transform_1, window_bounds = array<i64: 576, 64>}, {pipeline_mode = #tpu.pipeline_mode<synchronous>, transform_indices = @transform_2, window_bounds = array<i64: 1, 64>}, {transform_indices = @transform_3, window_bounds = array<i64: 56, 64>}]} {
    %c0 = arith.constant 0 : index
    %c0_0 = arith.constant 0 : index
    %0 = vector.load %arg1[%c0, %c0_0] : memref<56x576xbf16, #tpu.memory_space<vmem>>, vector<56x576xbf16>
    %c0_1 = arith.constant 0 : index
    %c0_2 = arith.constant 0 : index
    %1 = vector.load %arg2[%c0_1, %c0_2] : memref<576x64xbf16, #tpu.memory_space<vmem>>, vector<576x64xbf16>
    %cst = arith.constant dense<0.000000e+00> : vector<56x64xf32>
    %2 = tpu.matmul %0, %1, %cst {dimension_numbers = #tpu.dot_dimension_numbers<[1], [0], [0], [1], [0, 0, 1, 1], [], []>} : vector<56x576xbf16>, vector<576x64xbf16>, vector<56x64xf32> -> vector<56x64xf32>
    %c0_3 = arith.constant 0 : index
    %c0_4 = arith.constant 0 : index
    %3 = vector.load %arg3[%c0_3, %c0_4] : memref<1x64xf32, #tpu.memory_space<vmem>>, vector<1x64xf32>
    %4 = vector.broadcast %3 : vector<1x64xf32> to vector<56x64xf32>
    %5 = arith.addf %2, %4 : vector<56x64xf32>
    %cst_5 = arith.constant 0.000000e+00 : f32
    %6 = vector.broadcast %cst_5 : f32 to vector<56x64xf32>
    %7 = arith.maximumf %5, %6 : vector<56x64xf32>
    %8 = arith.truncf %7 : vector<56x64xf32> to vector<56x64xbf16>
    %c0_6 = arith.constant 0 : index
    %c0_7 = arith.constant 0 : index
    %9 = vector.load %arg4[%c0_6, %c0_7] : memref<56x64xbf16, #tpu.memory_space<vmem>>, vector<56x64xbf16>
    tpu.vector_store %arg4[%c0_6, %c0_7], %8 {strides = array<i32>} : memref<56x64xbf16, #tpu.memory_space<vmem>>, vector<56x64xbf16>,
    return
  }
  func.func @transform_0(%arg0: i32) -> (i32, i32) {
    %c0_i32 = arith.constant 0 : i32
    %c0_i32_0 = arith.constant 0 : i32
    return %arg0, %c0_i32 : i32, i32
  }
  func.func @transform_1(%arg0: i32) -> (i32, i32) {
    %c0_i32 = arith.constant 0 : i32
    %c0_i32_0 = arith.constant 0 : i32
    %c0_i32_1 = arith.constant 0 : i32
    return %c0_i32, %c0_i32_0 : i32, i32
  }
  func.func @transform_2(%arg0: i32) -> (i32, i32) {
    %c0_i32 = arith.constant 0 : i32
    %c0_i32_0 = arith.constant 0 : i32
    %c0_i32_1 = arith.constant 0 : i32
    return %c0_i32, %c0_i32_0 : i32, i32
  }
  func.func @transform_3(%arg0: i32) -> (i32, i32) {
    %c0_i32 = arith.constant 0 : i32
    %c0_i32_0 = arith.constant 0 : i32
    return %arg0, %c0_i32 : i32, i32
  }
}

module attributes {stable_mosaic.version = 11 : i64} {
  func.func @_fc_head_kernel(%arg0: i32, %arg1: memref<8x3136xbf16, #tpu.memory_space<vmem>>, %arg2: memref<3136x512xbf16, #tpu.memory_space<vmem>>, %arg3: memref<1x512xf32, #tpu.memory_space<vmem>>, %arg4: memref<512x128xbf16, #tpu.memory_space<vmem>>, %arg5: memref<1x128xf32, #tpu.memory_space<vmem>>, %arg6: memref<8x128xf32, #tpu.memory_space<vmem>>) attributes {dimension_semantics = [#tpu.dimension_semantics<parallel>], iteration_bounds = array<i64: 1>, scalar_prefetch = 0 : i64, scratch_operands = 0 : i64, tpu.core_type = #tpu.core_type<tc>, window_params = [{transform_indices = @transform_0, window_bounds = array<i64: 8, 3136>}, {pipeline_mode = #tpu.pipeline_mode<synchronous>, transform_indices = @transform_1, window_bounds = array<i64: 3136, 512>}, {pipeline_mode = #tpu.pipeline_mode<synchronous>, transform_indices = @transform_2, window_bounds = array<i64: 1, 512>}, {pipeline_mode = #tpu.pipeline_mode<synchronous>, transform_indices = @transform_3, window_bounds = array<i64: 512, 128>}, {pipeline_mode = #tpu.pipeline_mode<synchronous>, transform_indices = @transform_4, window_bounds = array<i64: 1, 128>}, {transform_indices = @transform_5, window_bounds = array<i64: 8, 128>}]} {
    %c0 = arith.constant 0 : index
    %c0_0 = arith.constant 0 : index
    %0 = vector.load %arg1[%c0, %c0_0] : memref<8x3136xbf16, #tpu.memory_space<vmem>>, vector<8x3136xbf16>
    %c0_1 = arith.constant 0 : index
    %c0_2 = arith.constant 0 : index
    %1 = vector.load %arg2[%c0_1, %c0_2] : memref<3136x512xbf16, #tpu.memory_space<vmem>>, vector<3136x512xbf16>
    %cst = arith.constant dense<0.000000e+00> : vector<8x512xf32>
    %2 = tpu.matmul %0, %1, %cst {dimension_numbers = #tpu.dot_dimension_numbers<[1], [0], [0], [1], [0, 0, 1, 1], [], []>} : vector<8x3136xbf16>, vector<3136x512xbf16>, vector<8x512xf32> -> vector<8x512xf32>
    %c0_3 = arith.constant 0 : index
    %c0_4 = arith.constant 0 : index
    %3 = vector.load %arg3[%c0_3, %c0_4] : memref<1x512xf32, #tpu.memory_space<vmem>>, vector<1x512xf32>
    %4 = vector.broadcast %3 : vector<1x512xf32> to vector<8x512xf32>
    %5 = arith.addf %2, %4 : vector<8x512xf32>
    %cst_5 = arith.constant 0.000000e+00 : f32
    %6 = vector.broadcast %cst_5 : f32 to vector<8x512xf32>
    %7 = arith.maximumf %5, %6 : vector<8x512xf32>
    %8 = arith.truncf %7 : vector<8x512xf32> to vector<8x512xbf16>
    %c0_6 = arith.constant 0 : index
    %c0_7 = arith.constant 0 : index
    %9 = vector.load %arg4[%c0_6, %c0_7] : memref<512x128xbf16, #tpu.memory_space<vmem>>, vector<512x128xbf16>
    %cst_8 = arith.constant dense<0.000000e+00> : vector<8x128xf32>
    %10 = tpu.matmul %8, %9, %cst_8 {dimension_numbers = #tpu.dot_dimension_numbers<[1], [0], [0], [1], [0, 0, 1, 1], [], []>} : vector<8x512xbf16>, vector<512x128xbf16>, vector<8x128xf32> -> vector<8x128xf32>
    %c0_9 = arith.constant 0 : index
    %c0_10 = arith.constant 0 : index
    %11 = vector.load %arg5[%c0_9, %c0_10] : memref<1x128xf32, #tpu.memory_space<vmem>>, vector<1x128xf32>
    %12 = vector.broadcast %11 : vector<1x128xf32> to vector<8x128xf32>
    %13 = arith.addf %10, %12 : vector<8x128xf32>
    %c0_11 = arith.constant 0 : index
    %c0_12 = arith.constant 0 : index
    %14 = vector.load %arg6[%c0_11, %c0_12] : memref<8x128xf32, #tpu.memory_space<vmem>>, vector<8x128xf32>
    tpu.vector_store %arg6[%c0_11, %c0_12], %13 {strides = array<i32>} : memref<8x128xf32, #tpu.memory_space<vmem>>, vector<8x128xf32>,
    return
  }
  func.func @transform_0(%arg0: i32) -> (i32, i32) {
    %c0_i32 = arith.constant 0 : i32
    %c0_i32_0 = arith.constant 0 : i32
    return %arg0, %c0_i32 : i32, i32
  }
  func.func @transform_1(%arg0: i32) -> (i32, i32) {
    %c0_i32 = arith.constant 0 : i32
    %c0_i32_0 = arith.constant 0 : i32
    %c0_i32_1 = arith.constant 0 : i32
    return %c0_i32, %c0_i32_0 : i32, i32
  }
  func.func @transform_2(%arg0: i32) -> (i32, i32) {
    %c0_i32 = arith.constant 0 : i32
    %c0_i32_0 = arith.constant 0 : i32
    %c0_i32_1 = arith.constant 0 : i32
    return %c0_i32, %c0_i32_0 : i32, i32
  }
  func.func @transform_3(%arg0: i32) -> (i32, i32) {
    %c0_i32 = arith.constant 0 : i32
    %c0_i32_0 = arith.constant 0 : i32
    %c0_i32_1 = arith.constant 0 : i32
    return %c0_i32, %c0_i32_0 : i32, i32
  }
  func.func @transform_4(%arg0: i32) -> (i32, i32) {
    %c0_i32 = arith.constant 0 : i32
    %c0_i32_0 = arith.constant 0 : i32
    %c0_i32_1 = arith.constant 0 : i32
    return %c0_i32, %c0_i32_0 : i32, i32
  }
  func.func @transform_5(%arg0: i32) -> (i32, i32) {
    %c0_i32 = arith.constant 0 : i32
    %c0_i32_0 = arith.constant 0 : i32
    return %arg0, %c0_i32 : i32, i32
  }
}

</mosaic_0001>

<llo_original>
// kernel: qnetwork_forward.4
$region0: #{qnetwork_forward.4}
  #allocation0 [shape = 'u32[]', space=smem, size = 0x4, offset = 0x4, fixed_abs, tag = 'smem constant byte address 0x4 - core index']
  #allocation1 [shape = 'u32[144,128]{1,0:T(1,128)}', space=vmem, size = 0x12000, scoped, tag = 'internal scratch']
  %s0 = inlined_call_operand.vmem [shape: bf16[800,256], index: 0, kind: input, shape index: {}]
  %s1 = inlined_call_operand.vmem [shape: bf16[256,32], index: 1, kind: input, shape index: {}]
  %s2 = inlined_call_operand.vmem [shape: f32[1,32], index: 2, kind: input, shape index: {}]
  %s3 = inlined_call_operand.vmem [shape: bf16[800,32], index: 3, kind: output, shape index: {}]
  %s4 = sld [smem:[#allocation0]]
  $region45: #{qnetwork_forward.4} parent=0
    _
  %s6 = ssub.s32 1, %s4
  %s7 = scalar_select 0, %s6, %s4
  loop: start=0, step=1, limit=4
  $region2: #{qnetwork_forward.4} parent=0 // loop_pre_header
    _
  $region3: #{qnetwork_forward.4} parent=0 // loop_header
    %s9 = sphi 0, %s13
    %p10 = scmp.ge.s32.totalorder %s9, 4
    %s19 = sphi 0, %s21
    %s22 = sphi 0, %s19
    %s23 = sphi 0, %s22
    %s39 = sphi 0, %s23
    %s43 = sphi 0, %s43
    %s45 = sphi 0, %s43
    %s46 = sphi 0, %s45
    %s60 = sphi 0, %s46
    %s64 = sphi 0, %s64
    %s66 = sphi 0, %s64
    %s67 = sphi 0, %s66
    %s81 = sphi 0, %s67
    %s87 = sphi 0, %s89
    %s90 = sphi 0, %s87
    %s91 = sphi 0, %s90
    %s107 = sphi 0, %s91
  $region4: #{qnetwork_forward.4} parent=0 // loop_header_branch
    %12 = sbr.rel (%p10) target = $region8
  $region5: #{qnetwork_forward.4} parent=0 // loop_body
    %s14 = ssub.s32 %s9, 1
    %s15 = ssub.s32 %s9, 2
    %s16 = sadd.s32 %s9, 1
    %s17 = ssub.s32 %s9, %s16
    %p18 = scmp.eq.s32.totalorder %s17, 0
    %s20 = sadd.s32 %s19, 1
    %s21 = scalar_select %p18, %s19, %s20
    %p24 = pneg %p18
    %p25 = scmp.eq.s32.totalorder %s9, 1
    %p26 = por %p24, %p25
    %p27 = scmp.ne.s32.totalorder %s19, %s22
    %p28 = scmp.eq.s32.totalorder %s9, 0
    %p29 = por %p27, %p28
    %p30 = scmp.ne.s32.totalorder %s19, %s22
    %p31 = scmp.eq.s32.totalorder %s14, 1
    %p32 = por %p30, %p31
    %p33 = scmp.ne.s32.totalorder %s22, %s23
    %p34 = scmp.eq.s32.totalorder %s14, 0
    %p35 = por %p33, %p34
    %p36 = scmp.ne.s32.totalorder %s22, %s23
    %p37 = scmp.eq.s32.totalorder %s15, 1
    %p38 = por %p36, %p37
    %p40 = scmp.ne.s32.totalorder %s23, %s39
    %p41 = scmp.eq.s32.totalorder %s15, 0
    %p42 = por %p40, %p41
    %s44 = sadd.s32 %s43, 1
    %p47 = scmp.eq.s32.totalorder %s9, 1
    %p48 = scmp.ne.s32.totalorder %s43, %s45
    %p49 = scmp.eq.s32.totalorder %s9, 0
    %p50 = por %p48, %p49
    %p51 = scmp.ne.s32.totalorder %s43, %s45
    %p52 = scmp.eq.s32.totalorder %s14, 1
    %p53 = por %p51, %p52
    %p54 = scmp.ne.s32.totalorder %s45, %s46
    %p55 = scmp.eq.s32.totalorder %s14, 0
    %p56 = por %p54, %p55
    %p57 = scmp.ne.s32.totalorder %s45, %s46
    %p58 = scmp.eq.s32.totalorder %s15, 1
    %p59 = por %p57, %p58
    %p61 = scmp.ne.s32.totalorder %s46, %s60
    %p62 = scmp.eq.s32.totalorder %s15, 0
    %p63 = por %p61, %p62
    %s65 = sadd.s32 %s64, 1
    %p68 = scmp.eq.s32.totalorder %s9, 1
    %p69 = scmp.ne.s32.totalorder %s64, %s66
    %p70 = scmp.eq.s32.totalorder %s9, 0
    %p71 = por %p69, %p70
    %p72 = scmp.ne.s32.totalorder %s64, %s66
    %p73 = scmp.eq.s32.totalorder %s14, 1
    %p74 = por %p72, %p73
    %p75 = scmp.ne.s32.totalorder %s66, %s67
    %p76 = scmp.eq.s32.totalorder %s14, 0
    %p77 = por %p75, %p76
    %p78 = scmp.ne.s32.totalorder %s66, %s67
    %p79 = scmp.eq.s32.totalorder %s15, 1
    %p80 = por %p78, %p79
    %p82 = scmp.ne.s32.totalorder %s67, %s81
    %p83 = scmp.eq.s32.totalorder %s15, 0
    %p84 = por %p82, %p83
    %s85 = ssub.s32 %s9, %s16
    %p86 = scmp.eq.s32.totalorder %s85, 0
    %s88 = sadd.s32 %s87, 1
    %s89 = scalar_select %p86, %s87, %s88
    %p92 = pneg %p86
    %p93 = scmp.eq.s32.totalorder %s9, 1
    %p94 = por %p92, %p93
    %p95 = scmp.ne.s32.totalorder %s87, %s90
    %p96 = scmp.eq.s32.totalorder %s9, 0
    %p97 = por %p95, %p96
    %p98 = scmp.ne.s32.totalorder %s87, %s90
    %p99 = scmp.eq.s32.totalorder %s14, 1
    %p100 = por %p98, %p99
    %p101 = scmp.ne.s32.totalorder %s90, %s91
    %p102 = scmp.eq.s32.totalorder %s14, 0
    %p103 = por %p101, %p102
    %p104 = scmp.ne.s32.totalorder %s90, %s91
    %p105 = scmp.eq.s32.totalorder %s15, 1
    %p106 = por %p104, %p105
    %p108 = scmp.ne.s32.totalorder %s91, %s107
    %p109 = scmp.eq.s32.totalorder %s15, 0
    %p110 = por %p108, %p109
    %p111 = scmp.le.s32.totalorder 1, %s9
    %p112 = scmp.lt.s32.totalorder %s9, 3
    %p113 = pnand %p111, %p112
    %p114 = pneg %p113
    // Predicated region
    $region9: #{qnetwork_forward.4} parent=5 // pred_check
      _
    $region10: #{qnetwork_forward.4} parent=5 // pred_check_branch
      %116 = sbr.rel (%p113) target = $region12
    $region11: #{qnetwork_forward.4} parent=5 // pred_region
      %s117 = ssub.s32 %s9, 1
      // Predicated region
      $region13: #{qnetwork_forward.4} parent=11 // pred_check
        %p118 = pneg %p56
      $region14: #{qnetwork_forward.4} parent=11 // pred_check_branch
        %120 = sbr.rel (%p118) target = $region16
      $region15: #{qnetwork_forward.4} parent=11 // pred_region
        _
      $region16: #{qnetwork_forward.4} parent=11 // pred_fallthru
        _
      // Predicated region
      $region17: #{qnetwork_forward.4} parent=11 // pred_check
        %p121 = pneg %p77
      $region18: #{qnetwork_forward.4} parent=11 // pred_check_branch
        %123 = sbr.rel (%p121) target = $region20
      $region19: #{qnetwork_forward.4} parent=11 // pred_region
        _
      $region20: #{qnetwork_forward.4} parent=11 // pred_fallthru
        _
    $region12: #{qnetwork_forward.4} parent=5 // pred_fallthru
      _
    %p124 = scmp.lt.s32.totalorder %s9, 2
    // Predicated region
    $region21: #{qnetwork_forward.4} parent=5 // pred_check
      %p125 = pneg %p124
    $region22: #{qnetwork_forward.4} parent=5 // pred_check_branch
      %127 = sbr.rel (%p125) target = $region24
    $region23: #{qnetwork_forward.4} parent=5 // pred_region
      // Predicated region
      $region25: #{qnetwork_forward.4} parent=23 // pred_check
        %p128 = pneg %p29
      $region26: #{qnetwork_forward.4} parent=23 // pred_check_branch
        %130 = sbr.rel (%p128) target = $region28
      $region27: #{qnetwork_forward.4} parent=23 // pred_region
        %s131 = smul.u32 50, %s9
        %p132 = scmp.lt.s32.totalorder %s131, 99
        %s133 = scalar_select %p132, %s131, 99
        %s134 = smul.addr %s133, 2
        %s135 = smul.addr %s134, 4
        %s136 = scalar_lea.vmem %s0, %s135
        %s137 = smul.u32 50, %s9
      $region28: #{qnetwork_forward.4} parent=23 // pred_fallthru
        _
    $region24: #{qnetwork_forward.4} parent=5 // pred_fallthru
      _
    %p138 = scmp.le.s32.totalorder 1, %s9
    %p139 = scmp.lt.s32.totalorder %s9, 3
    %p140 = pnand %p138, %p139
    %p141 = pneg %p140
    // Predicated region
    $region29: #{qnetwork_forward.4} parent=5 // pred_check
      _
    $region30: #{qnetwork_forward.4} parent=5 // pred_check_branch
      %143 = sbr.rel (%p140) target = $region32
    $region31: #{qnetwork_forward.4} parent=5 // pred_region
      %s144 = ssub.s32 %s9, 1
      %s145 = smul.u32 50, %s14
      %p146 = scmp.lt.s32.totalorder %s145, 99
      %s147 = scalar_select %p146, %s145, 99
      %s148 = smul.addr %s147, 2
      %s149 = smul.addr %s148, 4
      %s150 = scalar_lea.vmem %s0, %s149
      %p151 = pneg %p35
      %p152 = pneg %p32
      %p153 = pneg %p56
      %p154 = pneg %p53
      %p155 = pneg %p77
      %p156 = pneg %p74
      %p157 = pneg %p103
      %p158 = pneg %p100
      %s159 = smul.u32 50, %s14
      %p160 = scmp.lt.s32.totalorder %s159, 99
      %s161 = scalar_select %p160, %s159, 99
      %s162 = smul.addr %s161, 4
      %s163 = scalar_lea.vmem %s3, %s162
      %s164 = smul.u32 50, %s14
      %p165 = scmp.lt.s32.totalorder %s164, 99
      %s166 = scalar_select %p165, %s164, 99
      %s167 = smul.addr %s166, 2
      %s168 = smul.addr %s167, 4
      %s169 = scalar_lea.vmem %s0, %s168
      %s170 = smul.u32 50, %s14
      %s171 = smul.u32 50, %s14
      %p172 = scmp.lt.s32.totalorder %s171, 99
      %s173 = scalar_select %p172, %s171, 99
      %s174 = smul.addr %s173, 4
      %s175 = scalar_lea.vmem %s3, %s174
      %s176 = smul.u32 50, %s14
      %v178 = vld [vmem:[%s169] sm:$0xff]
      %v179 = vld [vmem:[%s169 + $0x8] sm:$0xff]
      %v180 = vld [vmem:[%s169 + $0x10] sm:$0xff]
      %v181 = vld [vmem:[%s169 + $0x18] sm:$0xff]
      %v182 = vld [vmem:[%s169 + $0x20] sm:$0xff]
      %v183 = vld [vmem:[%s169 + $0x28] sm:$0xff]
      %v184 = vld [vmem:[%s169 + $0x30] sm:$0xff]
      %v185 = vld [vmem:[%s169 + $0x38] sm:$0xff]
      %v186 = vld [vmem:[%s169 + $0x40] sm:$0xff]
      %v187 = vld [vmem:[%s169 + $0x48] sm:$0xff]
      %v188 = vld [vmem:[%s169 + $0x50] sm:$0xff]
      %v189 = vld [vmem:[%s169 + $0x58] sm:$0xff]
      %v190 = vld [vmem:[%s169 + $0x60] sm:$0xff]
      %v191 = vld [vmem:[%s169 + $0x68] sm:$0xff]
      %v192 = vld [vmem:[%s169 + $0x70] sm:$0xff]
      %v193 = vld [vmem:[%s169 + $0x78] sm:$0xff]
      %v194 = vld [vmem:[%s169 + $0x80] sm:$0xff]
      %v195 = vld [vmem:[%s169 + $0x88] sm:$0xff]
      %v196 = vld [vmem:[%s169 + $0x90] sm:$0xff]
      %v197 = vld [vmem:[%s169 + $0x98] sm:$0xff]
      %v198 = vld [vmem:[%s169 + $0xa0] sm:$0xff]
      %v199 = vld [vmem:[%s169 + $0xa8] sm:$0xff]
      %v200 = vld [vmem:[%s169 + $0xb0] sm:$0xff]
      %v201 = vld [vmem:[%s169 + $0xb8] sm:$0xff]
      %v202 = vld [vmem:[%s169 + $0xc0] sm:$0xff]
      %v203 = vld [vmem:[%s169 + $0xc8] sm:$0xff]
      %v204 = vld [vmem:[%s169 + $0xd0] sm:$0xff]
      %v205 = vld [vmem:[%s169 + $0xd8] sm:$0xff]
      %v206 = vld [vmem:[%s169 + $0xe0] sm:$0xff]
      %v207 = vld [vmem:[%s169 + $0xe8] sm:$0xff]
      %v208 = vld [vmem:[%s169 + $0xf0] sm:$0xff]
      %v209 = vld [vmem:[%s169 + $0xf8] sm:$0xff]
      %v210 = vld [vmem:[%s169 + $0x100] sm:$0xff]
      %v211 = vld [vmem:[%s169 + $0x108] sm:$0xff]
      %v212 = vld [vmem:[%s169 + $0x110] sm:$0xff]
      %v213 = vld [vmem:[%s169 + $0x118] sm:$0xff]
      %v214 = vld [vmem:[%s169 + $0x120] sm:$0xff]
      %v215 = vld [vmem:[%s169 + $0x128] sm:$0xff]
      %v216 = vld [vmem:[%s169 + $0x130] sm:$0xff]
      %v217 = vld [vmem:[%s169 + $0x138] sm:$0xff]
      %v218 = vld [vmem:[%s169 + $0x140] sm:$0xff]
      %v219 = vld [vmem:[%s169 + $0x148] sm:$0xff]
      %v220 = vld [vmem:[%s169 + $0x150] sm:$0xff]
      %v221 = vld [vmem:[%s169 + $0x158] sm:$0xff]
      %v222 = vld [vmem:[%s169 + $0x160] sm:$0xff]
      %v223 = vld [vmem:[%s169 + $0x168] sm:$0xff]
      %v224 = vld [vmem:[%s169 + $0x170] sm:$0xff]
      %v225 = vld [vmem:[%s169 + $0x178] sm:$0xff]
      %v226 = vld [vmem:[%s169 + $0x180] sm:$0xff]
      %v227 = vld [vmem:[%s169 + $0x188] sm:$0xff]
      %v228 = vld [vmem:[%s1] sm:$0xf]
      %v229 = vld [vmem:[%s1 + $0x4] sm:$0xf]
      %v230 = vld [vmem:[%s1 + $0x8] sm:$0xf]
      %v231 = vld [vmem:[%s1 + $0xc] sm:$0xf]
      %v232 = vld [vmem:[%s1 + $0x10] sm:$0xf]
      %v233 = vld [vmem:[%s1 + $0x14] sm:$0xf]
      %v234 = vld [vmem:[%s1 + $0x18] sm:$0xf]
      %v235 = vld [vmem:[%s1 + $0x1c] sm:$0xf]
      %v236 = vld [vmem:[%s1 + $0x20] sm:$0xf]
      %v237 = vld [vmem:[%s1 + $0x24] sm:$0xf]
      %v238 = vld [vmem:[%s1 + $0x28] sm:$0xf]
      %v239 = vld [vmem:[%s1 + $0x2c] sm:$0xf]
      %v240 = vld [vmem:[%s1 + $0x30] sm:$0xf]
      %v241 = vld [vmem:[%s1 + $0x34] sm:$0xf]
      %v242 = vld [vmem:[%s1 + $0x38] sm:$0xf]
      %v243 = vld [vmem:[%s1 + $0x3c] sm:$0xf]
      %v244 = vld [vmem:[%s1 + $0x40] sm:$0xf]
      %v245 = vld [vmem:[%s1 + $0x44] sm:$0xf]
      %v246 = vld [vmem:[%s1 + $0x48] sm:$0xf]
      %v247 = vld [vmem:[%s1 + $0x4c] sm:$0xf]
      %v248 = vld [vmem:[%s1 + $0x50] sm:$0xf]
      %v249 = vld [vmem:[%s1 + $0x54] sm:$0xf]
      %v250 = vld [vmem:[%s1 + $0x58] sm:$0xf]
      %v251 = vld [vmem:[%s1 + $0x5c] sm:$0xf]
      %v252 = vld [vmem:[%s1 + $0x60] sm:$0xf]
      %v253 = vld [vmem:[%s1 + $0x64] sm:$0xf]
      %v254 = vld [vmem:[%s1 + $0x68] sm:$0xf]
      %v255 = vld [vmem:[%s1 + $0x6c] sm:$0xf]
      %v256 = vld [vmem:[%s1 + $0x70] sm:$0xf]
      %v257 = vld [vmem:[%s1 + $0x74] sm:$0xf]
      %v258 = vld [vmem:[%s1 + $0x78] sm:$0xf]
      %v259 = vld [vmem:[%s1 + $0x7c] sm:$0xf]
      %v260 = vld [vmem:[%s2] sm:$0x1]
      %v262 = vlaneseq
      %v263 = vshrl.u32 %v262, 7
      %v264 = vsub.s32 0, %v263
      %v265 = vrot.slane %v260, %v264
      %v317 = vunpack.c.l.b16 %v178
      %v318 = vunpack.c.h.b16 %v178
      %v319 = vunpack.c.l.b16 %v179
      %v320 = vunpack.c.h.b16 %v179
      %v321 = vunpack.c.l.b16 %v180
      %v322 = vunpack.c.h.b16 %v180
      %v323 = vunpack.c.l.b16 %v181
      %v324 = vunpack.c.h.b16 %v181
      %v325 = vunpack.c.l.b16 %v182
      %v326 = vunpack.c.h.b16 %v182
      %v327 = vunpack.c.l.b16 %v183
      %v328 = vunpack.c.h.b16 %v183
      %v329 = vunpack.c.l.b16 %v184
      %v330 = vunpack.c.h.b16 %v184
      %v331 = vunpack.c.l.b16 %v185
      %v332 = vunpack.c.h.b16 %v185
      %v333 = vunpack.c.l.b16 %v186
      %v334 = vunpack.c.h.b16 %v186
      %v335 = vunpack.c.l.b16 %v187
      %v336 = vunpack.c.h.b16 %v187
      %v337 = vunpack.c.l.b16 %v188
      %v338 = vunpack.c.h.b16 %v188
      %v339 = vunpack.c.l.b16 %v189
      %v340 = vunpack.c.h.b16 %v189
      %v341 = vunpack.c.l.b16 %v190
      %v342 = vunpack.c.h.b16 %v190
      %v343 = vunpack.c.l.b16 %v191
      %v344 = vunpack.c.h.b16 %v191
      %v345 = vunpack.c.l.b16 %v192
      %v346 = vunpack.c.h.b16 %v192
      %v347 = vunpack.c.l.b16 %v193
      %v348 = vunpack.c.h.b16 %v193
      %v349 = vunpack.c.l.b16 %v194
      %v350 = vunpack.c.h.b16 %v194
      %v351 = vunpack.c.l.b16 %v195
      %v352 = vunpack.c.h.b16 %v195
      %v353 = vunpack.c.l.b16 %v196
      %v354 = vunpack.c.h.b16 %v196
      %v355 = vunpack.c.l.b16 %v197
      %v356 = vunpack.c.h.b16 %v197
      %v357 = vunpack.c.l.b16 %v198
      %v358 = vunpack.c.h.b16 %v198
      %v359 = vunpack.c.l.b16 %v199
      %v360 = vunpack.c.h.b16 %v199
      %v361 = vunpack.c.l.b16 %v200
      %v362 = vunpack.c.h.b16 %v200
      %v363 = vunpack.c.l.b16 %v201
      %v364 = vunpack.c.h.b16 %v201
      %v365 = vunpack.c.l.b16 %v202
      %v366 = vunpack.c.h.b16 %v202
      %v367 = vunpack.c.l.b16 %v203
      %v368 = vunpack.c.h.b16 %v203
      %v369 = vunpack.c.l.b16 %v204
      %v370 = vunpack.c.h.b16 %v204
      %v371 = vunpack.c.l.b16 %v205
      %v372 = vunpack.c.h.b16 %v205
      %v373 = vunpack.c.l.b16 %v206
      %v374 = vunpack.c.h.b16 %v206
      %v375 = vunpack.c.l.b16 %v207
      %v376 = vunpack.c.h.b16 %v207
      %v377 = vunpack.c.l.b16 %v208
      %v378 = vunpack.c.h.b16 %v208
      %v379 = vunpack.c.l.b16 %v209
      %v380 = vunpack.c.h.b16 %v209
      %v381 = vunpack.c.l.b16 %v210
      %v382 = vunpack.c.h.b16 %v210
      %v383 = vunpack.c.l.b16 %v211
      %v384 = vunpack.c.h.b16 %v211
      %v385 = vunpack.c.l.b16 %v212
      %v386 = vunpack.c.h.b16 %v212
      %v387 = vunpack.c.l.b16 %v213
      %v388 = vunpack.c.h.b16 %v213
      %v389 = vunpack.c.l.b16 %v214
      %v390 = vunpack.c.h.b16 %v214
      %v391 = vunpack.c.l.b16 %v215
      %v392 = vunpack.c.h.b16 %v215
      %v393 = vunpack.c.l.b16 %v216
      %v394 = vunpack.c.h.b16 %v216
      %v395 = vunpack.c.l.b16 %v217
      %v396 = vunpack.c.h.b16 %v217
      %v397 = vunpack.c.l.b16 %v218
      %v398 = vunpack.c.h.b16 %v218
      %v399 = vunpack.c.l.b16 %v219
      %v400 = vunpack.c.h.b16 %v219
      %v401 = vunpack.c.l.b16 %v220
      %v402 = vunpack.c.h.b16 %v220
      %v403 = vunpack.c.l.b16 %v221
      %v404 = vunpack.c.h.b16 %v221
      %v405 = vunpack.c.l.b16 %v222
      %v406 = vunpack.c.h.b16 %v222
      %v407 = vunpack.c.l.b16 %v223
      %v408 = vunpack.c.h.b16 %v223
      %v409 = vunpack.c.l.b16 %v224
      %v410 = vunpack.c.h.b16 %v224
      %v411 = vunpack.c.l.b16 %v225
      %v412 = vunpack.c.h.b16 %v225
      %v413 = vunpack.c.l.b16 %v226
      %v414 = vunpack.c.h.b16 %v226
      %v415 = vunpack.c.l.b16 %v227
      %v416 = vunpack.c.h.b16 %v227
      %v417 = vpack.c.b16 %v319, %v317
      %v418 = vpack.c.b16 %v320, %v318
      %v419 = vpack.c.b16 %v323, %v321
      %v420 = vpack.c.b16 %v324, %v322
      %v421 = vpack.c.b16 %v327, %v325
      %v422 = vpack.c.b16 %v328, %v326
      %v423 = vpack.c.b16 %v331, %v329
      %v424 = vpack.c.b16 %v332, %v330
      %v425 = vpack.c.b16 %v335, %v333
      %v426 = vpack.c.b16 %v336, %v334
      %v427 = vpack.c.b16 %v339, %v337
      %v428 = vpack.c.b16 %v340, %v338
      %v429 = vpack.c.b16 %v343, %v341
      %v430 = vpack.c.b16 %v344, %v342
      %v431 = vpack.c.b16 %v347, %v345
      %v432 = vpack.c.b16 %v348, %v346
      %v433 = vpack.c.b16 %v351, %v349
      %v434 = vpack.c.b16 %v352, %v350
      %v435 = vpack.c.b16 %v355, %v353
      %v436 = vpack.c.b16 %v356, %v354
      %v437 = vpack.c.b16 %v359, %v357
      %v438 = vpack.c.b16 %v360, %v358
      %v439 = vpack.c.b16 %v363, %v361
      %v440 = vpack.c.b16 %v364, %v362
      %v441 = vpack.c.b16 %v367, %v365
      %v442 = vpack.c.b16 %v368, %v366
      %v443 = vpack.c.b16 %v371, %v369
      %v444 = vpack.c.b16 %v372, %v370
      %v445 = vpack.c.b16 %v375, %v373
      %v446 = vpack.c.b16 %v376, %v374
      %v447 = vpack.c.b16 %v379, %v377
      %v448 = vpack.c.b16 %v380, %v378
      %v449 = vpack.c.b16 %v383, %v381
      %v450 = vpack.c.b16 %v384, %v382
      %v451 = vpack.c.b16 %v387, %v385
      %v452 = vpack.c.b16 %v388, %v386
      %v453 = vpack.c.b16 %v391, %v389
      %v454 = vpack.c.b16 %v392, %v390
      %v455 = vpack.c.b16 %v395, %v393
      %v456 = vpack.c.b16 %v396, %v394
      %v457 = vpack.c.b16 %v399, %v397
      %v458 = vpack.c.b16 %v400, %v398
      %v459 = vpack.c.b16 %v403, %v401
      %v460 = vpack.c.b16 %v404, %v402
      %v461 = vpack.c.b16 %v407, %v405
      %v462 = vpack.c.b16 %v408, %v406
      %v463 = vpack.c.b16 %v411, %v409
      %v464 = vpack.c.b16 %v412, %v410
      %v465 = vpack.c.b16 %v415, %v413
      %v466 = vpack.c.b16 %v416, %v414
      %v549 = vunpack.c.l.b16 %v228
      %v550 = vunpack.c.l.b16 %v229
      %v551 = vunpack.c.l.b16 %v230
      %v552 = vunpack.c.l.b16 %v231
      %v553 = vunpack.c.l.b16 %v232
      %v554 = vunpack.c.l.b16 %v233
      %v555 = vunpack.c.l.b16 %v234
      %v556 = vunpack.c.l.b16 %v235
      %v557 = vunpack.c.l.b16 %v236
      %v558 = vunpack.c.l.b16 %v237
      %v559 = vunpack.c.l.b16 %v238
      %v560 = vunpack.c.l.b16 %v239
      %v561 = vunpack.c.l.b16 %v240
      %v562 = vunpack.c.l.b16 %v241
      %v563 = vunpack.c.l.b16 %v242
      %v564 = vunpack.c.l.b16 %v243
      %v565 = vunpack.c.l.b16 %v244
      %v566 = vunpack.c.l.b16 %v245
      %v567 = vunpack.c.l.b16 %v246
      %v568 = vunpack.c.l.b16 %v247
      %v569 = vunpack.c.l.b16 %v248
      %v570 = vunpack.c.l.b16 %v249
      %v571 = vunpack.c.l.b16 %v250
      %v572 = vunpack.c.l.b16 %v251
      %v573 = vunpack.c.l.b16 %v252
      %v574 = vunpack.c.l.b16 %v253
      %v575 = vunpack.c.l.b16 %v254
      %v576 = vunpack.c.l.b16 %v255
      %v577 = vunpack.c.l.b16 %v256
      %v578 = vunpack.c.l.b16 %v257
      %v579 = vunpack.c.l.b16 %v258
      %v580 = vunpack.c.l.b16 %v259
      %v581 = vpack.c.b16 %v550, %v549
      %v582 = vpack.c.b16 %v552, %v551
      %v583 = vpack.c.b16 %v554, %v553
      %v584 = vpack.c.b16 %v556, %v555
      %v585 = vpack.c.b16 %v558, %v557
      %v586 = vpack.c.b16 %v560, %v559
      %v587 = vpack.c.b16 %v562, %v561
      %v588 = vpack.c.b16 %v564, %v563
      %v589 = vpack.c.b16 %v566, %v565
      %v590 = vpack.c.b16 %v568, %v567
      %v591 = vpack.c.b16 %v570, %v569
      %v592 = vpack.c.b16 %v572, %v571
      %v593 = vpack.c.b16 %v574, %v573
      %v594 = vpack.c.b16 %v576, %v575
      %v595 = vpack.c.b16 %v578, %v577
      %v596 = vpack.c.b16 %v580, %v579
      %613 = vmatprep.subr.bf16.mxu0 0
      %614 = vmatpush1.bf16.msra.mxu0 %v588
      %615 = vmatprep.subr.bf16.mxu0 0
      %616 = vmatpush1.bf16.msra.mxu0 %v587
      %617 = vmatprep.subr.bf16.mxu0 0
      %618 = vmatpush1.bf16.msra.mxu0 %v586
      %619 = vmatprep.subr.bf16.mxu0 0
      %620 = vmatpush1.bf16.msra.mxu0 %v585
      %621 = vmatprep.subr.bf16.mxu0 0
      %622 = vmatpush1.bf16.msra.mxu0 %v584
      %623 = vmatprep.subr.bf16.mxu0 0
      %624 = vmatpush1.bf16.msra.mxu0 %v583
      %625 = vmatprep.subr.bf16.mxu0 0
      %626 = vmatpush1.bf16.msra.mxu0 %v582
      %627 = vmatprep.subr.bf16.mxu0 0
      %628 = vmatpush1.bf16.msra.mxu0 %v581
      %629 = vmatprep.subr.bf16.mxu0 0
      %630 = vmatpush2.bf16.msra.mxu0 %v596
      %631 = vmatprep.subr.bf16.mxu0 0
      %632 = vmatpush2.bf16.msra.mxu0 %v595
      %633 = vmatprep.subr.bf16.mxu0 0
      %634 = vmatpush2.bf16.msra.mxu0 %v594
      %635 = vmatprep.subr.bf16.mxu0 0
      %636 = vmatpush2.bf16.msra.mxu0 %v593
      %637 = vmatprep.subr.bf16.mxu0 0
      %638 = vmatpush2.bf16.msra.mxu0 %v592
      %639 = vmatprep.subr.bf16.mxu0 0
      %640 = vmatpush2.bf16.msra.mxu0 %v591
      %641 = vmatprep.subr.bf16.mxu0 0
      %642 = vmatpush2.bf16.msra.mxu0 %v590
      %643 = vmatprep.subr.bf16.mxu0 0
      %644 = vmatpush2.bf16.msra.mxu0 %v589
      %645 = vmatprep.mubr.bf16.mxu0 %v418
      %646 = vmatmul.mubr.bf16.gmra.mxu0 %v417
      %v647 = vpop.f32.mrf.mxu0
      %v648 = vadd.f32 %v265, %v647
      %v649 = vpop.f32.mrf.mxu0
      %v650 = vpop.f32.mrf.mxu0
      %v651 = vadd.f32 %v265, %v650
      %v652 = vpop.f32.mrf.mxu0
      %653 = vmatprep.mubr.bf16.mxu0 %v420
      %654 = vmatmul.mubr.bf16.gmra.mxu0 %v419
      %v655 = vpop.f32.mrf.mxu0
      %v656 = vadd.f32 %v265, %v655
      %v657 = vpop.f32.mrf.mxu0
      %v658 = vpop.f32.mrf.mxu0
      %v659 = vadd.f32 %v265, %v658
      %v660 = vpop.f32.mrf.mxu0
      %661 = vmatprep.mubr.bf16.mxu0 %v422
      %662 = vmatmul.mubr.bf16.gmra.mxu0 %v421
      %v663 = vpop.f32.mrf.mxu0
      %v664 = vadd.f32 %v265, %v663
      %v665 = vpop.f32.mrf.mxu0
      %v666 = vpop.f32.mrf.mxu0
      %v667 = vadd.f32 %v265, %v666
      %v668 = vpop.f32.mrf.mxu0
      %669 = vmatprep.mubr.bf16.mxu0 %v424
      %670 = vmatmul.mubr.bf16.gmra.mxu0 %v423
      %v671 = vpop.f32.mrf.mxu0
      %v672 = vadd.f32 %v265, %v671
      %v673 = vpop.f32.mrf.mxu0
      %v674 = vpop.f32.mrf.mxu0
      %v675 = vadd.f32 %v265, %v674
      %v676 = vpop.f32.mrf.mxu0
      %677 = vmatprep.mubr.bf16.mxu0 %v426
      %678 = vmatmul.mubr.bf16.gmra.mxu0 %v425
      %v679 = vpop.f32.mrf.mxu0
      %v680 = vadd.f32 %v265, %v679
      %v681 = vpop.f32.mrf.mxu0
      %v682 = vpop.f32.mrf.mxu0
      %v683 = vadd.f32 %v265, %v682
      %v684 = vpop.f32.mrf.mxu0
      %685 = vmatprep.mubr.bf16.mxu0 %v428
      %686 = vmatmul.mubr.bf16.gmra.mxu0 %v427
      %v687 = vpop.f32.mrf.mxu0
      %v688 = vadd.f32 %v265, %v687
      %v689 = vpop.f32.mrf.mxu0
      %v690 = vpop.f32.mrf.mxu0
      %v691 = vadd.f32 %v265, %v690
      %v692 = vpop.f32.mrf.mxu0
      %693 = vmatprep.mubr.bf16.mxu0 %v430
      %694 = vmatmul.mubr.bf16.gmra.mxu0 %v429
      %v695 = vpop.f32.mrf.mxu0
      %v696 = vadd.f32 %v265, %v695
      %v697 = vpop.f32.mrf.mxu0
      %v698 = vpop.f32.mrf.mxu0
      %v699 = vadd.f32 %v265, %v698
      %v700 = vpop.f32.mrf.mxu0
      %701 = vmatprep.mubr.bf16.mxu0 %v432
      %702 = vmatmul.mubr.bf16.gmra.mxu0 %v431
      %v703 = vpop.f32.mrf.mxu0
      %v704 = vadd.f32 %v265, %v703
      %v705 = vpop.f32.mrf.mxu0
      %v706 = vpop.f32.mrf.mxu0
      %v707 = vadd.f32 %v265, %v706
      %v708 = vpop.f32.mrf.mxu0
      %709 = vmatprep.mubr.bf16.mxu0 %v434
      %710 = vmatmul.mubr.bf16.gmra.mxu0 %v433
      %v711 = vpop.f32.mrf.mxu0
      %v712 = vadd.f32 %v265, %v711
      %v713 = vpop.f32.mrf.mxu0
      %v714 = vpop.f32.mrf.mxu0
      %v715 = vadd.f32 %v265, %v714
      %v716 = vpop.f32.mrf.mxu0
      %717 = vmatprep.mubr.bf16.mxu0 %v436
      %718 = vmatmul.mubr.bf16.gmra.mxu0 %v435
      %v719 = vpop.f32.mrf.mxu0
      %v720 = vadd.f32 %v265, %v719
      %v721 = vpop.f32.mrf.mxu0
      %v722 = vpop.f32.mrf.mxu0
      %v723 = vadd.f32 %v265, %v722
      %v724 = vpop.f32.mrf.mxu0
      %725 = vmatprep.mubr.bf16.mxu0 %v438
      %726 = vmatmul.mubr.bf16.gmra.mxu0 %v437
      %v727 = vpop.f32.mrf.mxu0
      %v728 = vadd.f32 %v265, %v727
      %v729 = vpop.f32.mrf.mxu0
      %v730 = vpop.f32.mrf.mxu0
      %v731 = vadd.f32 %v265, %v730
      %v732 = vpop.f32.mrf.mxu0
      %733 = vmatprep.mubr.bf16.mxu0 %v440
      %734 = vmatmul.mubr.bf16.gmra.mxu0 %v439
      %v735 = vpop.f32.mrf.mxu0
      %v736 = vadd.f32 %v265, %v735
      %v737 = vpop.f32.mrf.mxu0
      %v738 = vpop.f32.mrf.mxu0
      %v739 = vadd.f32 %v265, %v738
      %v740 = vpop.f32.mrf.mxu0
      %741 = vmatprep.mubr.bf16.mxu0 %v442
      %742 = vmatmul.mubr.bf16.gmra.mxu0 %v441
      %v743 = vpop.f32.mrf.mxu0
      %v744 = vadd.f32 %v265, %v743
      %v745 = vpop.f32.mrf.mxu0
      %v746 = vpop.f32.mrf.mxu0
      %v747 = vadd.f32 %v265, %v746
      %v748 = vpop.f32.mrf.mxu0
      %749 = vmatprep.mubr.bf16.mxu0 %v444
      %750 = vmatmul.mubr.bf16.gmra.mxu0 %v443
      %v751 = vpop.f32.mrf.mxu0
      %v752 = vadd.f32 %v265, %v751
      %v753 = vpop.f32.mrf.mxu0
      %v754 = vpop.f32.mrf.mxu0
      %v755 = vadd.f32 %v265, %v754
      %v756 = vpop.f32.mrf.mxu0
      %757 = vmatprep.mubr.bf16.mxu0 %v446
      %758 = vmatmul.mubr.bf16.gmra.mxu0 %v445
      %v759 = vpop.f32.mrf.mxu0
      %v760 = vadd.f32 %v265, %v759
      %v761 = vpop.f32.mrf.mxu0
      %v762 = vpop.f32.mrf.mxu0
      %v763 = vadd.f32 %v265, %v762
      %v764 = vpop.f32.mrf.mxu0
      %765 = vmatprep.mubr.bf16.mxu0 %v448
      %766 = vmatmul.mubr.bf16.gmra.mxu0 %v447
      %v767 = vpop.f32.mrf.mxu0
      %v768 = vadd.f32 %v265, %v767
      %v769 = vpop.f32.mrf.mxu0
      %v770 = vpop.f32.mrf.mxu0
      %v771 = vadd.f32 %v265, %v770
      %v772 = vpop.f32.mrf.mxu0
      %773 = vmatprep.mubr.bf16.mxu0 %v450
      %774 = vmatmul.mubr.bf16.gmra.mxu0 %v449
      %v775 = vpop.f32.mrf.mxu0
      %v776 = vadd.f32 %v265, %v775
      %v777 = vpop.f32.mrf.mxu0
      %v778 = vpop.f32.mrf.mxu0
      %v779 = vadd.f32 %v265, %v778
      %v780 = vpop.f32.mrf.mxu0
      %781 = vmatprep.mubr.bf16.mxu0 %v452
      %782 = vmatmul.mubr.bf16.gmra.mxu0 %v451
      %v783 = vpop.f32.mrf.mxu0
      %v784 = vadd.f32 %v265, %v783
      %v785 = vpop.f32.mrf.mxu0
      %v786 = vpop.f32.mrf.mxu0
      %v787 = vadd.f32 %v265, %v786
      %v788 = vpop.f32.mrf.mxu0
      %789 = vmatprep.mubr.bf16.mxu0 %v454
      %790 = vmatmul.mubr.bf16.gmra.mxu0 %v453
      %v791 = vpop.f32.mrf.mxu0
      %v792 = vadd.f32 %v265, %v791
      %v793 = vpop.f32.mrf.mxu0
      %v794 = vpop.f32.mrf.mxu0
      %v795 = vadd.f32 %v265, %v794
      %v796 = vpop.f32.mrf.mxu0
      %797 = vmatprep.mubr.bf16.mxu0 %v456
      %798 = vmatmul.mubr.bf16.gmra.mxu0 %v455
      %v799 = vpop.f32.mrf.mxu0
      %v800 = vadd.f32 %v265, %v799
      %v801 = vpop.f32.mrf.mxu0
      %v802 = vpop.f32.mrf.mxu0
      %v803 = vadd.f32 %v265, %v802
      %v804 = vpop.f32.mrf.mxu0
      %805 = vmatprep.mubr.bf16.mxu0 %v458
      %806 = vmatmul.mubr.bf16.gmra.mxu0 %v457
      %v807 = vpop.f32.mrf.mxu0
      %v808 = vadd.f32 %v265, %v807
      %v809 = vpop.f32.mrf.mxu0
      %v810 = vpop.f32.mrf.mxu0
      %v811 = vadd.f32 %v265, %v810
      %v812 = vpop.f32.mrf.mxu0
      %813 = vmatprep.mubr.bf16.mxu0 %v460
      %814 = vmatmul.mubr.bf16.gmra.mxu0 %v459
      %v815 = vpop.f32.mrf.mxu0
      %v816 = vadd.f32 %v265, %v815
      %v817 = vpop.f32.mrf.mxu0
      %v818 = vpop.f32.mrf.mxu0
      %v819 = vadd.f32 %v265, %v818
      %v820 = vpop.f32.mrf.mxu0
      %821 = vmatprep.mubr.bf16.mxu0 %v462
      %822 = vmatmul.mubr.bf16.gmra.mxu0 %v461
      %v823 = vpop.f32.mrf.mxu0
      %v824 = vadd.f32 %v265, %v823
      %v825 = vpop.f32.mrf.mxu0
      %v826 = vpop.f32.mrf.mxu0
      %v827 = vadd.f32 %v265, %v826
      %v828 = vpop.f32.mrf.mxu0
      %829 = vmatprep.mubr.bf16.mxu0 %v464
      %830 = vmatmul.mubr.bf16.gmra.mxu0 %v463
      %v831 = vpop.f32.mrf.mxu0
      %v832 = vadd.f32 %v265, %v831
      %v833 = vpop.f32.mrf.mxu0
      %v834 = vpop.f32.mrf.mxu0
      %v835 = vadd.f32 %v265, %v834
      %v836 = vpop.f32.mrf.mxu0
      %837 = vmatprep.mubr.bf16.mxu0 %v466
      %838 = vmatmul.mubr.bf16.gmra.mxu0 %v465
      %v839 = vpop.f32.mrf.mxu0
      %v840 = vadd.f32 %v265, %v839
      %v841 = vpop.f32.mrf.mxu0
      %v842 = vpop.f32.mrf.mxu0
      %v843 = vadd.f32 %v265, %v842
      %v844 = vpop.f32.mrf.mxu0
      %845 = vdwg.mxu0
      %v846 = vmax.f32 %v648, 0.0
      %v847 = vmax.f32 %v651, 0.0
      %v848 = vmax.f32 %v656, 0.0
      %v849 = vmax.f32 %v659, 0.0
      %v850 = vmax.f32 %v664, 0.0
      %v851 = vmax.f32 %v667, 0.0
      %v852 = vmax.f32 %v672, 0.0
      %v853 = vmax.f32 %v675, 0.0
      %v854 = vmax.f32 %v680, 0.0
      %v855 = vmax.f32 %v683, 0.0
      %v856 = vmax.f32 %v688, 0.0
      %v857 = vmax.f32 %v691, 0.0
      %v858 = vmax.f32 %v696, 0.0
      %v859 = vmax.f32 %v699, 0.0
      %v860 = vmax.f32 %v704, 0.0
      %v861 = vmax.f32 %v707, 0.0
      %v862 = vmax.f32 %v712, 0.0
      %v863 = vmax.f32 %v715, 0.0
      %v864 = vmax.f32 %v720, 0.0
      %v865 = vmax.f32 %v723, 0.0
      %v866 = vmax.f32 %v728, 0.0
      %v867 = vmax.f32 %v731, 0.0
      %v868 = vmax.f32 %v736, 0.0
      %v869 = vmax.f32 %v739, 0.0
      %v870 = vmax.f32 %v744, 0.0
      %v871 = vmax.f32 %v747, 0.0
      %v872 = vmax.f32 %v752, 0.0
      %v873 = vmax.f32 %v755, 0.0
      %v874 = vmax.f32 %v760, 0.0
      %v875 = vmax.f32 %v763, 0.0
      %v876 = vmax.f32 %v768, 0.0
      %v877 = vmax.f32 %v771, 0.0
      %v878 = vmax.f32 %v776, 0.0
      %v879 = vmax.f32 %v779, 0.0
      %v880 = vmax.f32 %v784, 0.0
      %v881 = vmax.f32 %v787, 0.0
      %v882 = vmax.f32 %v792, 0.0
      %v883 = vmax.f32 %v795, 0.0
      %v884 = vmax.f32 %v800, 0.0
      %v885 = vmax.f32 %v803, 0.0
      %v886 = vmax.f32 %v808, 0.0
      %v887 = vmax.f32 %v811, 0.0
      %v888 = vmax.f32 %v816, 0.0
      %v889 = vmax.f32 %v819, 0.0
      %v890 = vmax.f32 %v824, 0.0
      %v891 = vmax.f32 %v827, 0.0
      %v892 = vmax.f32 %v832, 0.0
      %v893 = vmax.f32 %v835, 0.0
      %v894 = vmax.f32 %v840, 0.0
      %v895 = vmax.f32 %v843, 0.0
      %v896 = vpack.c.bf16 %v847, %v846
      %v897 = vpack.c.bf16 %v849, %v848
      %v898 = vpack.c.bf16 %v851, %v850
      %v899 = vpack.c.bf16 %v853, %v852
      %v900 = vpack.c.bf16 %v855, %v854
      %v901 = vpack.c.bf16 %v857, %v856
      %v902 = vpack.c.bf16 %v859, %v858
      %v903 = vpack.c.bf16 %v861, %v860
      %v904 = vpack.c.bf16 %v863, %v862
      %v905 = vpack.c.bf16 %v865, %v864
      %v906 = vpack.c.bf16 %v867, %v866
      %v907 = vpack.c.bf16 %v869, %v868
      %v908 = vpack.c.bf16 %v871, %v870
      %v909 = vpack.c.bf16 %v873, %v872
      %v910 = vpack.c.bf16 %v875, %v874
      %v911 = vpack.c.bf16 %v877, %v876
      %v912 = vpack.c.bf16 %v879, %v878
      %v913 = vpack.c.bf16 %v881, %v880
      %v914 = vpack.c.bf16 %v883, %v882
      %v915 = vpack.c.bf16 %v885, %v884
      %v916 = vpack.c.bf16 %v887, %v886
      %v917 = vpack.c.bf16 %v889, %v888
      %v918 = vpack.c.bf16 %v891, %v890
      %v919 = vpack.c.bf16 %v893, %v892
      %v920 = vpack.c.bf16 %v895, %v894
      %v946 = vunpack.c.l.b16 %v896
      %v947 = vunpack.c.h.b16 %v896
      %v948 = vunpack.c.l.b16 %v897
      %v949 = vunpack.c.h.b16 %v897
      %v950 = vunpack.c.l.b16 %v898
      %v951 = vunpack.c.h.b16 %v898
      %v952 = vunpack.c.l.b16 %v899
      %v953 = vunpack.c.h.b16 %v899
      %v954 = vunpack.c.l.b16 %v900
      %v955 = vunpack.c.h.b16 %v900
      %v956 = vunpack.c.l.b16 %v901
      %v957 = vunpack.c.h.b16 %v901
      %v958 = vunpack.c.l.b16 %v902
      %v959 = vunpack.c.h.b16 %v902
      %v960 = vunpack.c.l.b16 %v903
      %v961 = vunpack.c.h.b16 %v903
      %v962 = vunpack.c.l.b16 %v904
      %v963 = vunpack.c.h.b16 %v904
      %v964 = vunpack.c.l.b16 %v905
      %v965 = vunpack.c.h.b16 %v905
      %v966 = vunpack.c.l.b16 %v906
      %v967 = vunpack.c.h.b16 %v906
      %v968 = vunpack.c.l.b16 %v907
      %v969 = vunpack.c.h.b16 %v907
      %v970 = vunpack.c.l.b16 %v908
      %v971 = vunpack.c.h.b16 %v908
      %v972 = vunpack.c.l.b16 %v909
      %v973 = vunpack.c.h.b16 %v909
      %v974 = vunpack.c.l.b16 %v910
      %v975 = vunpack.c.h.b16 %v910
      %v976 = vunpack.c.l.b16 %v911
      %v977 = vunpack.c.h.b16 %v911
      %v978 = vunpack.c.l.b16 %v912
      %v979 = vunpack.c.h.b16 %v912
      %v980 = vunpack.c.l.b16 %v913
      %v981 = vunpack.c.h.b16 %v913
      %v982 = vunpack.c.l.b16 %v914
      %v983 = vunpack.c.h.b16 %v914
      %v984 = vunpack.c.l.b16 %v915
      %v985 = vunpack.c.h.b16 %v915
      %v986 = vunpack.c.l.b16 %v916
      %v987 = vunpack.c.h.b16 %v916
      %v988 = vunpack.c.l.b16 %v917
      %v989 = vunpack.c.h.b16 %v917
      %v990 = vunpack.c.l.b16 %v918
      %v991 = vunpack.c.h.b16 %v918
      %v992 = vunpack.c.l.b16 %v919
      %v993 = vunpack.c.h.b16 %v919
      %v994 = vunpack.c.l.b16 %v920
      %v995 = vunpack.c.h.b16 %v920
      %v996 = vpack.c.b16 %v946, %v946
      %v997 = vpack.c.b16 %v947, %v947
      %v998 = vpack.c.b16 %v948, %v948
      %v999 = vpack.c.b16 %v949, %v949
      %v1000 = vpack.c.b16 %v950, %v950
      %v1001 = vpack.c.b16 %v951, %v951
      %v1002 = vpack.c.b16 %v952, %v952
      %v1003 = vpack.c.b16 %v953, %v953
      %v1004 = vpack.c.b16 %v954, %v954
      %v1005 = vpack.c.b16 %v955, %v955
      %v1006 = vpack.c.b16 %v956, %v956
      %v1007 = vpack.c.b16 %v957, %v957
      %v1008 = vpack.c.b16 %v958, %v958
      %v1009 = vpack.c.b16 %v959, %v959
      %v1010 = vpack.c.b16 %v960, %v960
      %v1011 = vpack.c.b16 %v961, %v961
      %v1012 = vpack.c.b16 %v962, %v962
      %v1013 = vpack.c.b16 %v963, %v963
      %v1014 = vpack.c.b16 %v964, %v964
      %v1015 = vpack.c.b16 %v965, %v965
      %v1016 = vpack.c.b16 %v966, %v966
      %v1017 = vpack.c.b16 %v967, %v967
      %v1018 = vpack.c.b16 %v968, %v968
      %v1019 = vpack.c.b16 %v969, %v969
      %v1020 = vpack.c.b16 %v970, %v970
      %v1021 = vpack.c.b16 %v971, %v971
      %v1022 = vpack.c.b16 %v972, %v972
      %v1023 = vpack.c.b16 %v973, %v973
      %v1024 = vpack.c.b16 %v974, %v974
      %v1025 = vpack.c.b16 %v975, %v975
      %v1026 = vpack.c.b16 %v976, %v976
      %v1027 = vpack.c.b16 %v977, %v977
      %v1028 = vpack.c.b16 %v978, %v978
      %v1029 = vpack.c.b16 %v979, %v979
      %v1030 = vpack.c.b16 %v980, %v980
      %v1031 = vpack.c.b16 %v981, %v981
      %v1032 = vpack.c.b16 %v982, %v982
      %v1033 = vpack.c.b16 %v983, %v983
      %v1034 = vpack.c.b16 %v984, %v984
      %v1035 = vpack.c.b16 %v985, %v985
      %v1036 = vpack.c.b16 %v986, %v986
      %v1037 = vpack.c.b16 %v987, %v987
      %v1038 = vpack.c.b16 %v988, %v988
      %v1039 = vpack.c.b16 %v989, %v989
      %v1040 = vpack.c.b16 %v990, %v990
      %v1041 = vpack.c.b16 %v991, %v991
      %v1042 = vpack.c.b16 %v992, %v992
      %v1043 = vpack.c.b16 %v993, %v993
      %v1044 = vpack.c.b16 %v994, %v994
      %v1045 = vpack.c.b16 %v995, %v995
      %vm1096 = vcmask 257024
      %1097 = vst.msk [vmem:[%s175] sm:$0xf] %vm1096, %v996
      %1098 = vst.msk [vmem:[%s175 + $0x4] sm:$0xf] %vm1096, %v997
      %1099 = vst.msk [vmem:[%s175 + $0x8] sm:$0xf] %vm1096, %v998
      %1100 = vst.msk [vmem:[%s175 + $0xc] sm:$0xf] %vm1096, %v999
      %1101 = vst.msk [vmem:[%s175 + $0x10] sm:$0xf] %vm1096, %v1000
      %1102 = vst.msk [vmem:[%s175 + $0x14] sm:$0xf] %vm1096, %v1001
      %1103 = vst.msk [vmem:[%s175 + $0x18] sm:$0xf] %vm1096, %v1002
      %1104 = vst.msk [vmem:[%s175 + $0x1c] sm:$0xf] %vm1096, %v1003
      %1105 = vst.msk [vmem:[%s175 + $0x20] sm:$0xf] %vm1096, %v1004
      %1106 = vst.msk [vmem:[%s175 + $0x24] sm:$0xf] %vm1096, %v1005
      %1107 = vst.msk [vmem:[%s175 + $0x28] sm:$0xf] %vm1096, %v1006
      %1108 = vst.msk [vmem:[%s175 + $0x2c] sm:$0xf] %vm1096, %v1007
      %1109 = vst.msk [vmem:[%s175 + $0x30] sm:$0xf] %vm1096, %v1008
      %1110 = vst.msk [vmem:[%s175 + $0x34] sm:$0xf] %vm1096, %v1009
      %1111 = vst.msk [vmem:[%s175 + $0x38] sm:$0xf] %vm1096, %v1010
      %1112 = vst.msk [vmem:[%s175 + $0x3c] sm:$0xf] %vm1096, %v1011
      %1113 = vst.msk [vmem:[%s175 + $0x40] sm:$0xf] %vm1096, %v1012
      %1114 = vst.msk [vmem:[%s175 + $0x44] sm:$0xf] %vm1096, %v1013
      %1115 = vst.msk [vmem:[%s175 + $0x48] sm:$0xf] %vm1096, %v1014
      %1116 = vst.msk [vmem:[%s175 + $0x4c] sm:$0xf] %vm1096, %v1015
      %1117 = vst.msk [vmem:[%s175 + $0x50] sm:$0xf] %vm1096, %v1016
      %1118 = vst.msk [vmem:[%s175 + $0x54] sm:$0xf] %vm1096, %v1017
      %1119 = vst.msk [vmem:[%s175 + $0x58] sm:$0xf] %vm1096, %v1018
      %1120 = vst.msk [vmem:[%s175 + $0x5c] sm:$0xf] %vm1096, %v1019
      %1121 = vst.msk [vmem:[%s175 + $0x60] sm:$0xf] %vm1096, %v1020
      %1122 = vst.msk [vmem:[%s175 + $0x64] sm:$0xf] %vm1096, %v1021
      %1123 = vst.msk [vmem:[%s175 + $0x68] sm:$0xf] %vm1096, %v1022
      %1124 = vst.msk [vmem:[%s175 + $0x6c] sm:$0xf] %vm1096, %v1023
      %1125 = vst.msk [vmem:[%s175 + $0x70] sm:$0xf] %vm1096, %v1024
      %1126 = vst.msk [vmem:[%s175 + $0x74] sm:$0xf] %vm1096, %v1025
      %1127 = vst.msk [vmem:[%s175 + $0x78] sm:$0xf] %vm1096, %v1026
      %1128 = vst.msk [vmem:[%s175 + $0x7c] sm:$0xf] %vm1096, %v1027
      %1129 = vst.msk [vmem:[%s175 + $0x80] sm:$0xf] %vm1096, %v1028
      %1130 = vst.msk [vmem:[%s175 + $0x84] sm:$0xf] %vm1096, %v1029
      %1131 = vst.msk [vmem:[%s175 + $0x88] sm:$0xf] %vm1096, %v1030
      %1132 = vst.msk [vmem:[%s175 + $0x8c] sm:$0xf] %vm1096, %v1031
      %1133 = vst.msk [vmem:[%s175 + $0x90] sm:$0xf] %vm1096, %v1032
      %1134 = vst.msk [vmem:[%s175 + $0x94] sm:$0xf] %vm1096, %v1033
      %1135 = vst.msk [vmem:[%s175 + $0x98] sm:$0xf] %vm1096, %v1034
      %1136 = vst.msk [vmem:[%s175 + $0x9c] sm:$0xf] %vm1096, %v1035
      %1137 = vst.msk [vmem:[%s175 + $0xa0] sm:$0xf] %vm1096, %v1036
      %1138 = vst.msk [vmem:[%s175 + $0xa4] sm:$0xf] %vm1096, %v1037
      %1139 = vst.msk [vmem:[%s175 + $0xa8] sm:$0xf] %vm1096, %v1038
      %1140 = vst.msk [vmem:[%s175 + $0xac] sm:$0xf] %vm1096, %v1039
      %1141 = vst.msk [vmem:[%s175 + $0xb0] sm:$0xf] %vm1096, %v1040
      %1142 = vst.msk [vmem:[%s175 + $0xb4] sm:$0xf] %vm1096, %v1041
      %1143 = vst.msk [vmem:[%s175 + $0xb8] sm:$0xf] %vm1096, %v1042
      %1144 = vst.msk [vmem:[%s175 + $0xbc] sm:$0xf] %vm1096, %v1043
      %1145 = vst.msk [vmem:[%s175 + $0xc0] sm:$0xf] %vm1096, %v1044
      %1146 = vst.msk [vmem:[%s175 + $0xc4] sm:$0xf] %vm1096, %v1045
      %s1147 = smul.u32 50, %s14
      %p1148 = scmp.lt.s32.totalorder %s1147, 99
      %s1149 = scalar_select %p1148, %s1147, 99
      %s1150 = smul.addr %s1149, 4
      %s1151 = scalar_lea.vmem %s3, %s1150
      // Predicated region
      $region33: #{qnetwork_forward.4} parent=31 // pred_check
        %p1152 = pneg %p100
      $region34: #{qnetwork_forward.4} parent=31 // pred_check_branch
        %1154 = sbr.rel (%p1152) target = $region36
      $region35: #{qnetwork_forward.4} parent=31 // pred_region
        %s1155 = smul.u32 50, %s14
      $region36: #{qnetwork_forward.4} parent=31 // pred_fallthru
        _
    $region32: #{qnetwork_forward.4} parent=5 // pred_fallthru
      _
    %p1156 = scmp.le.s32.totalorder 2, %s9
    // Predicated region
    $region37: #{qnetwork_forward.4} parent=5 // pred_check
      %p1157 = pneg %p1156
    $region38: #{qnetwork_forward.4} parent=5 // pred_check_branch
      %1159 = sbr.rel (%p1157) target = $region40
    $region39: #{qnetwork_forward.4} parent=5 // pred_region
      %s1160 = ssub.s32 %s9, 2
      // Predicated region
      $region41: #{qnetwork_forward.4} parent=39 // pred_check
        %p1161 = pneg %p106
      $region42: #{qnetwork_forward.4} parent=39 // pred_check_branch
        %1163 = sbr.rel (%p1161) target = $region44
      $region43: #{qnetwork_forward.4} parent=39 // pred_region
        %s1164 = smul.u32 50, %s15
        %p1165 = scmp.lt.s32.totalorder %s1164, 99
        %s1166 = scalar_select %p1165, %s1164, 99
        %s1167 = smul.addr %s1166, 4
        %s1168 = scalar_lea.vmem %s3, %s1167
      $region44: #{qnetwork_forward.4} parent=39 // pred_fallthru
        _
    $region40: #{qnetwork_forward.4} parent=5 // pred_fallthru
      _
  $region6: #{qnetwork_forward.4} parent=0 // loop_footer
    %s13 = sadd.s32 1, %s9
  $region7: #{qnetwork_forward.4} parent=0 // loop_footer_branch
    %8 = sbr.rel target = $region3
  $region8: #{qnetwork_forward.4} parent=0 // loop_exit
    _

// kernel: qnetwork_forward.5
$region0: #{qnetwork_forward.5}
  #allocation0 [shape = 'u32[]', space=smem, size = 0x4, offset = 0x4, fixed_abs, tag = 'smem constant byte address 0x4 - core index']
  #allocation1 [shape = 'u32[144,128]{1,0:T(1,128)}', space=vmem, size = 0x12000, scoped, tag = 'internal scratch']
  %s0 = inlined_call_operand.vmem [shape: bf16[162,512], index: 0, kind: input, shape index: {}]
  %s1 = inlined_call_operand.vmem [shape: bf16[512,64], index: 1, kind: input, shape index: {}]
  %s2 = inlined_call_operand.vmem [shape: f32[1,64], index: 2, kind: input, shape index: {}]
  %s3 = inlined_call_operand.vmem [shape: bf16[162,64], index: 3, kind: output, shape index: {}]
  %s4 = sld [smem:[#allocation0]]
  $region89: #{qnetwork_forward.5} parent=0
    _
  %s6 = ssub.s32 1, %s4
  %s7 = scalar_select 0, %s6, %s4
  $region1: #{qnetwork_forward.5} parent=0
    #allocation2 [shape = 'u8[45056]{0}', space=vmem, size = 0xb000, scoped, tag = 'output window, operand 0']
    loop: start=0, step=1, limit=4
    $region2: #{qnetwork_forward.5} parent=1 // loop_pre_header
      _
    $region3: #{qnetwork_forward.5} parent=1 // loop_header
      %s9 = sphi 0, %s13
      %p10 = scmp.ge.s32.totalorder %s9, 4
      %s19 = sphi 0, %s21
      %s22 = sphi 0, %s19
      %s23 = sphi 0, %s22
      %s39 = sphi 0, %s23
      %s43 = sphi 0, %s43
      %s45 = sphi 0, %s43
      %s46 = sphi 0, %s45
      %s60 = sphi 0, %s46
      %s64 = sphi 0, %s64
      %s66 = sphi 0, %s64
      %s67 = sphi 0, %s66
      %s81 = sphi 0, %s67
      %s87 = sphi 0, %s89
      %s90 = sphi 0, %s87
      %s91 = sphi 0, %s90
      %s107 = sphi 0, %s91
    $region4: #{qnetwork_forward.5} parent=1 // loop_header_branch
      %12 = sbr.rel (%p10) target = $region8
    $region5: #{qnetwork_forward.5} parent=1 // loop_body
      %s14 = ssub.s32 %s9, 1
      %s15 = ssub.s32 %s9, 2
      %s16 = sadd.s32 %s9, 1
      %s17 = ssub.s32 %s9, %s16
      %p18 = scmp.eq.s32.totalorder %s17, 0
      %s20 = sadd.s32 %s19, 1
      %s21 = scalar_select %p18, %s19, %s20
      %p24 = pneg %p18
      %p25 = scmp.eq.s32.totalorder %s9, 1
      %p26 = por %p24, %p25
      %p27 = scmp.ne.s32.totalorder %s19, %s22
      %p28 = scmp.eq.s32.totalorder %s9, 0
      %p29 = por %p27, %p28
      %p30 = scmp.ne.s32.totalorder %s19, %s22
      %p31 = scmp.eq.s32.totalorder %s14, 1
      %p32 = por %p30, %p31
      %p33 = scmp.ne.s32.totalorder %s22, %s23
      %p34 = scmp.eq.s32.totalorder %s14, 0
      %p35 = por %p33, %p34
      %p36 = scmp.ne.s32.totalorder %s22, %s23
      %p37 = scmp.eq.s32.totalorder %s15, 1
      %p38 = por %p36, %p37
      %p40 = scmp.ne.s32.totalorder %s23, %s39
      %p41 = scmp.eq.s32.totalorder %s15, 0
      %p42 = por %p40, %p41
      %s44 = sadd.s32 %s43, 1
      %p47 = scmp.eq.s32.totalorder %s9, 1
      %p48 = scmp.ne.s32.totalorder %s43, %s45
      %p49 = scmp.eq.s32.totalorder %s9, 0
      %p50 = por %p48, %p49
      %p51 = scmp.ne.s32.totalorder %s43, %s45
      %p52 = scmp.eq.s32.totalorder %s14, 1
      %p53 = por %p51, %p52
      %p54 = scmp.ne.s32.totalorder %s45, %s46
      %p55 = scmp.eq.s32.totalorder %s14, 0
      %p56 = por %p54, %p55
      %p57 = scmp.ne.s32.totalorder %s45, %s46
      %p58 = scmp.eq.s32.totalorder %s15, 1
      %p59 = por %p57, %p58
      %p61 = scmp.ne.s32.totalorder %s46, %s60
      %p62 = scmp.eq.s32.totalorder %s15, 0
      %p63 = por %p61, %p62
      %s65 = sadd.s32 %s64, 1
      %p68 = scmp.eq.s32.totalorder %s9, 1
      %p69 = scmp.ne.s32.totalorder %s64, %s66
      %p70 = scmp.eq.s32.totalorder %s9, 0
      %p71 = por %p69, %p70
      %p72 = scmp.ne.s32.totalorder %s64, %s66
      %p73 = scmp.eq.s32.totalorder %s14, 1
      %p74 = por %p72, %p73
      %p75 = scmp.ne.s32.totalorder %s66, %s67
      %p76 = scmp.eq.s32.totalorder %s14, 0
      %p77 = por %p75, %p76
      %p78 = scmp.ne.s32.totalorder %s66, %s67
      %p79 = scmp.eq.s32.totalorder %s15, 1
      %p80 = por %p78, %p79
      %p82 = scmp.ne.s32.totalorder %s67, %s81
      %p83 = scmp.eq.s32.totalorder %s15, 0
      %p84 = por %p82, %p83
      %s85 = ssub.s32 %s9, %s16
      %p86 = scmp.eq.s32.totalorder %s85, 0
      %s88 = sadd.s32 %s87, 1
      %s89 = scalar_select %p86, %s87, %s88
      %p92 = pneg %p86
      %p93 = scmp.eq.s32.totalorder %s9, 1
      %p94 = por %p92, %p93
      %p95 = scmp.ne.s32.totalorder %s87, %s90
      %p96 = scmp.eq.s32.totalorder %s9, 0
      %p97 = por %p95, %p96
      %p98 = scmp.ne.s32.totalorder %s87, %s90
      %p99 = scmp.eq.s32.totalorder %s14, 1
      %p100 = por %p98, %p99
      %p101 = scmp.ne.s32.totalorder %s90, %s91
      %p102 = scmp.eq.s32.totalorder %s14, 0
      %p103 = por %p101, %p102
      %p104 = scmp.ne.s32.totalorder %s90, %s91
      %p105 = scmp.eq.s32.totalorder %s15, 1
      %p106 = por %p104, %p105
      %p108 = scmp.ne.s32.totalorder %s91, %s107
      %p109 = scmp.eq.s32.totalorder %s15, 0
      %p110 = por %p108, %p109
      %p111 = scmp.le.s32.totalorder 1, %s9
      %p112 = scmp.lt.s32.totalorder %s9, 3
      %p113 = pnand %p111, %p112
      %p114 = pneg %p113
      // Predicated region
      $region9: #{qnetwork_forward.5} parent=5 // pred_check
        _
      $region10: #{qnetwork_forward.5} parent=5 // pred_check_branch
        %116 = sbr.rel (%p113) target = $region12
      $region11: #{qnetwork_forward.5} parent=5 // pred_region
        %s117 = ssub.s32 %s9, 1
        // Predicated region
        $region13: #{qnetwork_forward.5} parent=11 // pred_check
          %p118 = pneg %p56
        $region14: #{qnetwork_forward.5} parent=11 // pred_check_branch
          %120 = sbr.rel (%p118) target = $region16
        $region15: #{qnetwork_forward.5} parent=11 // pred_region
          _
        $region16: #{qnetwork_forward.5} parent=11 // pred_fallthru
          _
        // Predicated region
        $region17: #{qnetwork_forward.5} parent=11 // pred_check
          %p121 = pneg %p77
        $region18: #{qnetwork_forward.5} parent=11 // pred_check_branch
          %123 = sbr.rel (%p121) target = $region20
        $region19: #{qnetwork_forward.5} parent=11 // pred_region
          _
        $region20: #{qnetwork_forward.5} parent=11 // pred_fallthru
          _
      $region12: #{qnetwork_forward.5} parent=5 // pred_fallthru
        _
      %p124 = scmp.lt.s32.totalorder %s9, 2
      // Predicated region
      $region21: #{qnetwork_forward.5} parent=5 // pred_check
        %p125 = pneg %p124
      $region22: #{qnetwork_forward.5} parent=5 // pred_check_branch
        %127 = sbr.rel (%p125) target = $region24
      $region23: #{qnetwork_forward.5} parent=5 // pred_region
        // Predicated region
        $region25: #{qnetwork_forward.5} parent=23 // pred_check
          %p128 = pneg %p29
        $region26: #{qnetwork_forward.5} parent=23 // pred_check_branch
          %130 = sbr.rel (%p128) target = $region28
        $region27: #{qnetwork_forward.5} parent=23 // pred_region
          %s131 = smul.u32 11, %s9
          %s132 = ssub.s32 21, %s131
          %p133 = scmp.lt.s32.totalorder %s132, 11
          %s134 = scalar_select %p133, %s132, 11
          %s135 = smul.u32 64, %s134
          %s136 = smul.u32 %s135, 4
          %p137 = scmp.lt.s32.totalorder %s131, 20
          %s138 = scalar_select %p137, %s131, 20
          %s139 = smul.addr %s138, 4
          %s140 = smul.addr %s139, 4
          %s141 = scalar_lea.vmem %s0, %s140
          %s142 = smul.u32 11, %s9
          %s143 = ssub.s32 21, %s142
          %p144 = scmp.lt.s32.totalorder %s143, 11
          %s145 = scalar_select %p144, %s143, 11
          %s146 = smul.u32 64, %s145
          %s147 = smul.u32 %s146, 4
        $region28: #{qnetwork_forward.5} parent=23 // pred_fallthru
          _
      $region24: #{qnetwork_forward.5} parent=5 // pred_fallthru
        _
      %p148 = scmp.le.s32.totalorder 1, %s9
      %p149 = scmp.lt.s32.totalorder %s9, 3
      %p150 = pnand %p148, %p149
      %p151 = pneg %p150
      // Predicated region
      $region29: #{qnetwork_forward.5} parent=5 // pred_check
        _
      $region30: #{qnetwork_forward.5} parent=5 // pred_check_branch
        %153 = sbr.rel (%p150) target = $region32
      $region31: #{qnetwork_forward.5} parent=5 // pred_region
        %s154 = ssub.s32 %s9, 1
        %s155 = smul.u32 11, %s14
        %s156 = ssub.s32 21, %s155
        %p157 = scmp.lt.s32.totalorder %s156, 11
        %s158 = scalar_select %p157, %s156, 11
        %s159 = smul.u32 64, %s158
        %s160 = smul.u32 %s159, 4
        %p161 = scmp.lt.s32.totalorder %s155, 20
        %s162 = scalar_select %p161, %s155, 20
        %s163 = smul.addr %s162, 4
        %s164 = smul.addr %s163, 4
        %s165 = scalar_lea.vmem %s0, %s164
        %p166 = pneg %p35
        %p167 = pneg %p32
        %p168 = pneg %p56
        %p169 = pneg %p53
        %p170 = pneg %p77
        %p171 = pneg %p74
        %p172 = pneg %p103
        %p173 = pneg %p100
        %s174 = sand.u32 %s90, 1
        %s175 = sand.u32 %s90, 1
        %s176 = smul.addr %s175, 44
        %s177 = scalar_lea.vmem [#allocation2], %s176
        %s178 = smul.u32 11, %s14
        %s179 = ssub.s32 21, %s178
        %p180 = scmp.lt.s32.totalorder %s179, 11
        %s181 = scalar_select %p180, %s179, 11
        %s182 = smul.u32 64, %s181
        %s183 = smul.u32 %s182, 4
        %p184 = scmp.lt.s32.totalorder %s178, 20
        %s185 = scalar_select %p184, %s178, 20
        %s186 = smul.addr %s185, 4
        %s187 = smul.addr %s186, 4
        %s188 = scalar_lea.vmem %s0, %s187
        %s189 = smul.u32 11, %s14
        %s190 = ssub.s32 21, %s189
        %p191 = scmp.lt.s32.totalorder %s190, 11
        %s192 = scalar_select %p191, %s190, 11
        %s193 = smul.u32 64, %s192
        %s194 = smul.u32 %s193, 4
        %s195 = smul.u32 11, %s14
        %s196 = ssub.s32 21, %s195
        %p197 = scmp.lt.s32.totalorder %s196, 11
        %s198 = scalar_select %p197, %s196, 11
        %s199 = smul.u32 64, %s198
        %v201 = vld [vmem:[%s188] sm:$0xff]
        %v202 = vld [vmem:[%s188 + $0x8] sm:$0xff]
        %v203 = vld [vmem:[%s188 + $0x10] sm:$0xff]
        %v204 = vld [vmem:[%s188 + $0x18] sm:$0xff]
        %v205 = vld [vmem:[%s188 + $0x20] sm:$0xff]
        %v206 = vld [vmem:[%s188 + $0x28] sm:$0xff]
        %v207 = vld [vmem:[%s188 + $0x30] sm:$0xff]
        %v208 = vld [vmem:[%s188 + $0x38] sm:$0xff]
        %v209 = vld [vmem:[%s188 + $0x40] sm:$0xff]
        %v210 = vld [vmem:[%s188 + $0x48] sm:$0xff]
        %v211 = vld [vmem:[%s188 + $0x50] sm:$0xff]
        %v212 = vld [vmem:[%s188 + $0x58] sm:$0xff]
        %v213 = vld [vmem:[%s188 + $0x60] sm:$0xff]
        %v214 = vld [vmem:[%s188 + $0x68] sm:$0xff]
        %v215 = vld [vmem:[%s188 + $0x70] sm:$0xff]
        %v216 = vld [vmem:[%s188 + $0x78] sm:$0xff]
        %v217 = vld [vmem:[%s188 + $0x80] sm:$0xff]
        %v218 = vld [vmem:[%s188 + $0x88] sm:$0xff]
        %v219 = vld [vmem:[%s188 + $0x90] sm:$0xff]
        %v220 = vld [vmem:[%s188 + $0x98] sm:$0xff]
        %v221 = vld [vmem:[%s188 + $0xa0] sm:$0xff]
        %v222 = vld [vmem:[%s188 + $0xa8] sm:$0xff]
        %v223 = vld [vmem:[%s1] sm:$0xf]
        %v224 = vld [vmem:[%s1 + $0x4] sm:$0xf]
        %v225 = vld [vmem:[%s1 + $0x8] sm:$0xf]
        %v226 = vld [vmem:[%s1 + $0xc] sm:$0xf]
        %v227 = vld [vmem:[%s1 + $0x10] sm:$0xf]
        %v228 = vld [vmem:[%s1 + $0x14] sm:$0xf]
        %v229 = vld [vmem:[%s1 + $0x18] sm:$0xf]
        %v230 = vld [vmem:[%s1 + $0x1c] sm:$0xf]
        %v231 = vld [vmem:[%s1 + $0x20] sm:$0xf]
        %v232 = vld [vmem:[%s1 + $0x24] sm:$0xf]
        %v233 = vld [vmem:[%s1 + $0x28] sm:$0xf]
        %v234 = vld [vmem:[%s1 + $0x2c] sm:$0xf]
        %v235 = vld [vmem:[%s1 + $0x30] sm:$0xf]
        %v236 = vld [vmem:[%s1 + $0x34] sm:$0xf]
        %v237 = vld [vmem:[%s1 + $0x38] sm:$0xf]
        %v238 = vld [vmem:[%s1 + $0x3c] sm:$0xf]
        %v239 = vld [vmem:[%s1 + $0x40] sm:$0xf]
        %v240 = vld [vmem:[%s1 + $0x44] sm:$0xf]
        %v241 = vld [vmem:[%s1 + $0x48] sm:$0xf]
        %v242 = vld [vmem:[%s1 + $0x4c] sm:$0xf]
        %v243 = vld [vmem:[%s1 + $0x50] sm:$0xf]
        %v244 = vld [vmem:[%s1 + $0x54] sm:$0xf]
        %v245 = vld [vmem:[%s1 + $0x58] sm:$0xf]
        %v246 = vld [vmem:[%s1 + $0x5c] sm:$0xf]
        %v247 = vld [vmem:[%s1 + $0x60] sm:$0xf]
        %v248 = vld [vmem:[%s1 + $0x64] sm:$0xf]
        %v249 = vld [vmem:[%s1 + $0x68] sm:$0xf]
        %v250 = vld [vmem:[%s1 + $0x6c] sm:$0xf]
        %v251 = vld [vmem:[%s1 + $0x70] sm:$0xf]
        %v252 = vld [vmem:[%s1 + $0x74] sm:$0xf]
        %v253 = vld [vmem:[%s1 + $0x78] sm:$0xf]
        %v254 = vld [vmem:[%s1 + $0x7c] sm:$0xf]
        %v255 = vld [vmem:[%s1 + $0x80] sm:$0xf]
        %v256 = vld [vmem:[%s1 + $0x84] sm:$0xf]
        %v257 = vld [vmem:[%s1 + $0x88] sm:$0xf]
        %v258 = vld [vmem:[%s1 + $0x8c] sm:$0xf]
        %v259 = vld [vmem:[%s1 + $0x90] sm:$0xf]
        %v260 = vld [vmem:[%s1 + $0x94] sm:$0xf]
        %v261 = vld [vmem:[%s1 + $0x98] sm:$0xf]
        %v262 = vld [vmem:[%s1 + $0x9c] sm:$0xf]
        %v263 = vld [vmem:[%s1 + $0xa0] sm:$0xf]
        %v264 = vld [vmem:[%s1 + $0xa4] sm:$0xf]
        %v265 = vld [vmem:[%s1 + $0xa8] sm:$0xf]
        %v266 = vld [vmem:[%s1 + $0xac] sm:$0xf]
        %v267 = vld [vmem:[%s1 + $0xb0] sm:$0xf]
        %v268 = vld [vmem:[%s1 + $0xb4] sm:$0xf]
        %v269 = vld [vmem:[%s1 + $0xb8] sm:$0xf]
        %v270 = vld [vmem:[%s1 + $0xbc] sm:$0xf]
        %v271 = vld [vmem:[%s1 + $0xc0] sm:$0xf]
        %v272 = vld [vmem:[%s1 + $0xc4] sm:$0xf]
        %v273 = vld [vmem:[%s1 + $0xc8] sm:$0xf]
        %v274 = vld [vmem:[%s1 + $0xcc] sm:$0xf]
        %v275 = vld [vmem:[%s1 + $0xd0] sm:$0xf]
        %v276 = vld [vmem:[%s1 + $0xd4] sm:$0xf]
        %v277 = vld [vmem:[%s1 + $0xd8] sm:$0xf]
        %v278 = vld [vmem:[%s1 + $0xdc] sm:$0xf]
        %v279 = vld [vmem:[%s1 + $0xe0] sm:$0xf]
        %v280 = vld [vmem:[%s1 + $0xe4] sm:$0xf]
        %v281 = vld [vmem:[%s1 + $0xe8] sm:$0xf]
        %v282 = vld [vmem:[%s1 + $0xec] sm:$0xf]
        %v283 = vld [vmem:[%s1 + $0xf0] sm:$0xf]
        %v284 = vld [vmem:[%s1 + $0xf4] sm:$0xf]
        %v285 = vld [vmem:[%s1 + $0xf8] sm:$0xf]
        %v286 = vld [vmem:[%s1 + $0xfc] sm:$0xf]
        %v287 = vld [vmem:[%s2] sm:$0x1]
        %v289 = vlaneseq
        %v290 = vshrl.u32 %v289, 7
        %v291 = vsub.s32 0, %v290
        %v292 = vrot.slane %v287, %v291
        %v316 = vunpack.c.l.b16 %v201
        %v317 = vunpack.c.h.b16 %v201
        %v318 = vunpack.c.l.b16 %v202
        %v319 = vunpack.c.h.b16 %v202
        %v320 = vunpack.c.l.b16 %v203
        %v321 = vunpack.c.h.b16 %v203
        %v322 = vunpack.c.l.b16 %v204
        %v323 = vunpack.c.h.b16 %v204
        %v324 = vunpack.c.l.b16 %v205
        %v325 = vunpack.c.h.b16 %v205
        %v326 = vunpack.c.l.b16 %v206
        %v327 = vunpack.c.h.b16 %v206
        %v328 = vunpack.c.l.b16 %v207
        %v329 = vunpack.c.h.b16 %v207
        %v330 = vunpack.c.l.b16 %v208
        %v331 = vunpack.c.h.b16 %v208
        %v332 = vunpack.c.l.b16 %v209
        %v333 = vunpack.c.h.b16 %v209
        %v334 = vunpack.c.l.b16 %v210
        %v335 = vunpack.c.h.b16 %v210
        %v336 = vunpack.c.l.b16 %v211
        %v337 = vunpack.c.h.b16 %v211
        %v338 = vunpack.c.l.b16 %v212
        %v339 = vunpack.c.h.b16 %v212
        %v340 = vunpack.c.l.b16 %v213
        %v341 = vunpack.c.h.b16 %v213
        %v342 = vunpack.c.l.b16 %v214
        %v343 = vunpack.c.h.b16 %v214
        %v344 = vunpack.c.l.b16 %v215
        %v345 = vunpack.c.h.b16 %v215
        %v346 = vunpack.c.l.b16 %v216
        %v347 = vunpack.c.h.b16 %v216
        %v348 = vunpack.c.l.b16 %v217
        %v349 = vunpack.c.h.b16 %v217
        %v350 = vunpack.c.l.b16 %v218
        %v351 = vunpack.c.h.b16 %v218
        %v352 = vunpack.c.l.b16 %v219
        %v353 = vunpack.c.h.b16 %v219
        %v354 = vunpack.c.l.b16 %v220
        %v355 = vunpack.c.h.b16 %v220
        %v356 = vunpack.c.l.b16 %v221
        %v357 = vunpack.c.h.b16 %v221
        %v358 = vunpack.c.l.b16 %v222
        %v359 = vunpack.c.h.b16 %v222
        %v360 = vpack.c.b16 %v320, %v316
        %v361 = vpack.c.b16 %v321, %v317
        %v362 = vpack.c.b16 %v322, %v318
        %v363 = vpack.c.b16 %v323, %v319
        %v364 = vpack.c.b16 %v328, %v324
        %v365 = vpack.c.b16 %v329, %v325
        %v366 = vpack.c.b16 %v330, %v326
        %v367 = vpack.c.b16 %v331, %v327
        %v368 = vpack.c.b16 %v336, %v332
        %v369 = vpack.c.b16 %v337, %v333
        %v370 = vpack.c.b16 %v338, %v334
        %v371 = vpack.c.b16 %v339, %v335
        %v372 = vpack.c.b16 %v344, %v340
        %v373 = vpack.c.b16 %v345, %v341
        %v374 = vpack.c.b16 %v346, %v342
        %v375 = vpack.c.b16 %v347, %v343
        %v376 = vpack.c.b16 %v352, %v348
        %v377 = vpack.c.b16 %v353, %v349
        %v378 = vpack.c.b16 %v354, %v350
        %v379 = vpack.c.b16 %v355, %v351
        %v380 = vpack.c.b16 %v356, %v356
        %v381 = vpack.c.b16 %v357, %v357
        %v382 = vpack.c.b16 %v358, %v358
        %v383 = vpack.c.b16 %v359, %v359
        %v472 = vunpack.c.l.b16 %v223
        %v473 = vunpack.c.l.b16 %v224
        %v474 = vunpack.c.l.b16 %v225
        %v475 = vunpack.c.l.b16 %v226
        %v476 = vunpack.c.l.b16 %v227
        %v477 = vunpack.c.l.b16 %v228
        %v478 = vunpack.c.l.b16 %v229
        %v479 = vunpack.c.l.b16 %v230
        %v480 = vunpack.c.l.b16 %v231
        %v481 = vunpack.c.l.b16 %v232
        %v482 = vunpack.c.l.b16 %v233
        %v483 = vunpack.c.l.b16 %v234
        %v484 = vunpack.c.l.b16 %v235
        %v485 = vunpack.c.l.b16 %v236
        %v486 = vunpack.c.l.b16 %v237
        %v487 = vunpack.c.l.b16 %v238
        %v488 = vunpack.c.l.b16 %v239
        %v489 = vunpack.c.l.b16 %v240
        %v490 = vunpack.c.l.b16 %v241
        %v491 = vunpack.c.l.b16 %v242
        %v492 = vunpack.c.l.b16 %v243
        %v493 = vunpack.c.l.b16 %v244
        %v494 = vunpack.c.l.b16 %v245
        %v495 = vunpack.c.l.b16 %v246
        %v496 = vunpack.c.l.b16 %v247
        %v497 = vunpack.c.l.b16 %v248
        %v498 = vunpack.c.l.b16 %v249
        %v499 = vunpack.c.l.b16 %v250
        %v500 = vunpack.c.l.b16 %v251
        %v501 = vunpack.c.l.b16 %v252
        %v502 = vunpack.c.l.b16 %v253
        %v503 = vunpack.c.l.b16 %v254
        %v504 = vunpack.c.l.b16 %v255
        %v505 = vunpack.c.l.b16 %v256
        %v506 = vunpack.c.l.b16 %v257
        %v507 = vunpack.c.l.b16 %v258
        %v508 = vunpack.c.l.b16 %v259
        %v509 = vunpack.c.l.b16 %v260
        %v510 = vunpack.c.l.b16 %v261
        %v511 = vunpack.c.l.b16 %v262
        %v512 = vunpack.c.l.b16 %v263
        %v513 = vunpack.c.l.b16 %v264
        %v514 = vunpack.c.l.b16 %v265
        %v515 = vunpack.c.l.b16 %v266
        %v516 = vunpack.c.l.b16 %v267
        %v517 = vunpack.c.l.b16 %v268
        %v518 = vunpack.c.l.b16 %v269
        %v519 = vunpack.c.l.b16 %v270
        %v520 = vunpack.c.l.b16 %v271
        %v521 = vunpack.c.l.b16 %v272
        %v522 = vunpack.c.l.b16 %v273
        %v523 = vunpack.c.l.b16 %v274
        %v524 = vunpack.c.l.b16 %v275
        %v525 = vunpack.c.l.b16 %v276
        %v526 = vunpack.c.l.b16 %v277
        %v527 = vunpack.c.l.b16 %v278
        %v528 = vunpack.c.l.b16 %v279
        %v529 = vunpack.c.l.b16 %v280
        %v530 = vunpack.c.l.b16 %v281
        %v531 = vunpack.c.l.b16 %v282
        %v532 = vunpack.c.l.b16 %v283
        %v533 = vunpack.c.l.b16 %v284
        %v534 = vunpack.c.l.b16 %v285
        %v535 = vunpack.c.l.b16 %v286
        %v536 = vpack.c.b16 %v473, %v472
        %v537 = vpack.c.b16 %v475, %v474
        %v538 = vpack.c.b16 %v477, %v476
        %v539 = vpack.c.b16 %v479, %v478
        %v540 = vpack.c.b16 %v481, %v480
        %v541 = vpack.c.b16 %v483, %v482
        %v542 = vpack.c.b16 %v485, %v484
        %v543 = vpack.c.b16 %v487, %v486
        %v544 = vpack.c.b16 %v489, %v488
        %v545 = vpack.c.b16 %v491, %v490
        %v546 = vpack.c.b16 %v493, %v492
        %v547 = vpack.c.b16 %v495, %v494
        %v548 = vpack.c.b16 %v497, %v496
        %v549 = vpack.c.b16 %v499, %v498
        %v550 = vpack.c.b16 %v501, %v500
        %v551 = vpack.c.b16 %v503, %v502
        %v552 = vpack.c.b16 %v505, %v504
        %v553 = vpack.c.b16 %v507, %v506
        %v554 = vpack.c.b16 %v509, %v508
        %v555 = vpack.c.b16 %v511, %v510
        %v556 = vpack.c.b16 %v513, %v512
        %v557 = vpack.c.b16 %v515, %v514
        %v558 = vpack.c.b16 %v517, %v516
        %v559 = vpack.c.b16 %v519, %v518
        %v560 = vpack.c.b16 %v521, %v520
        %v561 = vpack.c.b16 %v523, %v522
        %v562 = vpack.c.b16 %v525, %v524
        %v563 = vpack.c.b16 %v527, %v526
        %v564 = vpack.c.b16 %v529, %v528
        %v565 = vpack.c.b16 %v531, %v530
        %v566 = vpack.c.b16 %v533, %v532
        %v567 = vpack.c.b16 %v535, %v534
        %600 = vmatprep.subr.bf16.mxu0 0
        %601 = vmatpush1.bf16.msra.mxu0 %v543
        %602 = vmatprep.subr.bf16.mxu0 0
        %603 = vmatpush1.bf16.msra.mxu0 %v542
        %604 = vmatprep.subr.bf16.mxu0 0
        %605 = vmatpush1.bf16.msra.mxu0 %v541
        %606 = vmatprep.subr.bf16.mxu0 0
        %607 = vmatpush1.bf16.msra.mxu0 %v540
        %608 = vmatprep.subr.bf16.mxu0 0
        %609 = vmatpush1.bf16.msra.mxu0 %v539
        %610 = vmatprep.subr.bf16.mxu0 0
        %611 = vmatpush1.bf16.msra.mxu0 %v538
        %612 = vmatprep.subr.bf16.mxu0 0
        %613 = vmatpush1.bf16.msra.mxu0 %v537
        %614 = vmatprep.subr.bf16.mxu0 0
        %615 = vmatpush1.bf16.msra.mxu0 %v536
        %616 = vmatprep.subr.bf16.mxu0 0
        %617 = vmatpush2.bf16.msra.mxu0 %v551
        %618 = vmatprep.subr.bf16.mxu0 0
        %619 = vmatpush2.bf16.msra.mxu0 %v550
        %620 = vmatprep.subr.bf16.mxu0 0
        %621 = vmatpush2.bf16.msra.mxu0 %v549
        %622 = vmatprep.subr.bf16.mxu0 0
        %623 = vmatpush2.bf16.msra.mxu0 %v548
        %624 = vmatprep.subr.bf16.mxu0 0
        %625 = vmatpush2.bf16.msra.mxu0 %v547
        %626 = vmatprep.subr.bf16.mxu0 0
        %627 = vmatpush2.bf16.msra.mxu0 %v546
        %628 = vmatprep.subr.bf16.mxu0 0
        %629 = vmatpush2.bf16.msra.mxu0 %v545
        %630 = vmatprep.subr.bf16.mxu0 0
        %631 = vmatpush2.bf16.msra.mxu0 %v544
        %632 = vmatprep.mubr.bf16.mxu0 %v361
        %633 = vmatmul.mubr.bf16.gmra.mxu0 %v360
        %v634 = vpop.f32.mrf.mxu0
        %v635 = vadd.f32 %v292, %v634
        %v636 = vpop.f32.mrf.mxu0
        %v637 = vpop.f32.mrf.mxu0
        %v638 = vadd.f32 %v292, %v637
        %v639 = vpop.f32.mrf.mxu0
        %640 = vmatprep.mubr.bf16.mxu0 %v365
        %641 = vmatmul.mubr.bf16.gmra.mxu0 %v364
        %v642 = vpop.f32.mrf.mxu0
        %v643 = vadd.f32 %v292, %v642
        %v644 = vpop.f32.mrf.mxu0
        %v645 = vpop.f32.mrf.mxu0
        %v646 = vadd.f32 %v292, %v645
        %v647 = vpop.f32.mrf.mxu0
        %648 = vmatprep.mubr.bf16.mxu0 %v369
        %649 = vmatmul.mubr.bf16.gmra.mxu0 %v368
        %v650 = vpop.f32.mrf.mxu0
        %v651 = vadd.f32 %v292, %v650
        %v652 = vpop.f32.mrf.mxu0
        %v653 = vpop.f32.mrf.mxu0
        %v654 = vadd.f32 %v292, %v653
        %v655 = vpop.f32.mrf.mxu0
        %656 = vmatprep.mubr.bf16.mxu0 %v373
        %657 = vmatmul.mubr.bf16.gmra.mxu0 %v372
        %v658 = vpop.f32.mrf.mxu0
        %v659 = vadd.f32 %v292, %v658
        %v660 = vpop.f32.mrf.mxu0
        %v661 = vpop.f32.mrf.mxu0
        %v662 = vadd.f32 %v292, %v661
        %v663 = vpop.f32.mrf.mxu0
        %664 = vmatprep.mubr.bf16.mxu0 %v377
        %665 = vmatmul.mubr.bf16.gmra.mxu0 %v376
        %v666 = vpop.f32.mrf.mxu0
        %v667 = vadd.f32 %v292, %v666
        %v668 = vpop.f32.mrf.mxu0
        %v669 = vpop.f32.mrf.mxu0
        %v670 = vadd.f32 %v292, %v669
        %v671 = vpop.f32.mrf.mxu0
        %672 = vmatprep.mubr.bf16.mxu0 %v381
        %673 = vmatmul.mubr.bf16.gmra.mxu0 %v380
        %v674 = vpop.f32.mrf.mxu0
        %v675 = vadd.f32 %v292, %v674
        %v676 = vpop.f32.mrf.mxu0
        %v677 = vpop.f32.mrf.mxu0
        %v678 = vpop.f32.mrf.mxu0
        %679 = vdwg.mxu0
        %680 = vmatprep.subr.bf16.mxu0 0
        %681 = vmatpush1.bf16.msra.mxu0 %v559
        %682 = vmatprep.subr.bf16.mxu0 0
        %683 = vmatpush1.bf16.msra.mxu0 %v558
        %684 = vmatprep.subr.bf16.mxu0 0
        %685 = vmatpush1.bf16.msra.mxu0 %v557
        %686 = vmatprep.subr.bf16.mxu0 0
        %687 = vmatpush1.bf16.msra.mxu0 %v556
        %688 = vmatprep.subr.bf16.mxu0 0
        %689 = vmatpush1.bf16.msra.mxu0 %v555
        %690 = vmatprep.subr.bf16.mxu0 0
        %691 = vmatpush1.bf16.msra.mxu0 %v554
        %692 = vmatprep.subr.bf16.mxu0 0
        %693 = vmatpush1.bf16.msra.mxu0 %v553
        %694 = vmatprep.subr.bf16.mxu0 0
        %695 = vmatpush1.bf16.msra.mxu0 %v552
        %696 = vmatprep.subr.bf16.mxu0 0
        %697 = vmatpush2.bf16.msra.mxu0 %v567
        %698 = vmatprep.subr.bf16.mxu0 0
        %699 = vmatpush2.bf16.msra.mxu0 %v566
        %700 = vmatprep.subr.bf16.mxu0 0
        %701 = vmatpush2.bf16.msra.mxu0 %v565
        %702 = vmatprep.subr.bf16.mxu0 0
        %703 = vmatpush2.bf16.msra.mxu0 %v564
        %704 = vmatprep.subr.bf16.mxu0 0
        %705 = vmatpush2.bf16.msra.mxu0 %v563
        %706 = vmatprep.subr.bf16.mxu0 0
        %707 = vmatpush2.bf16.msra.mxu0 %v562
        %708 = vmatprep.subr.bf16.mxu0 0
        %709 = vmatpush2.bf16.msra.mxu0 %v561
        %710 = vmatprep.subr.bf16.mxu0 0
        %711 = vmatpush2.bf16.msra.mxu0 %v560
        %712 = vmatprep.mubr.bf16.mxu0 %v363
        %713 = vmatmul.mubr.bf16.gmra.mxu0 %v362
        %v714 = vpop.f32.mrf.mxu0
        %v715 = vadd.f32 %v635, %v714
        %v716 = vpop.f32.mrf.mxu0
        %v717 = vpop.f32.mrf.mxu0
        %v718 = vadd.f32 %v638, %v717
        %v719 = vpop.f32.mrf.mxu0
        %720 = vmatprep.mubr.bf16.mxu0 %v367
        %721 = vmatmul.mubr.bf16.gmra.mxu0 %v366
        %v722 = vpop.f32.mrf.mxu0
        %v723 = vadd.f32 %v643, %v722
        %v724 = vpop.f32.mrf.mxu0
        %v725 = vpop.f32.mrf.mxu0
        %v726 = vadd.f32 %v646, %v725
        %v727 = vpop.f32.mrf.mxu0
        %728 = vmatprep.mubr.bf16.mxu0 %v371
        %729 = vmatmul.mubr.bf16.gmra.mxu0 %v370
        %v730 = vpop.f32.mrf.mxu0
        %v731 = vadd.f32 %v651, %v730
        %v732 = vpop.f32.mrf.mxu0
        %v733 = vpop.f32.mrf.mxu0
        %v734 = vadd.f32 %v654, %v733
        %v735 = vpop.f32.mrf.mxu0
        %736 = vmatprep.mubr.bf16.mxu0 %v375
        %737 = vmatmul.mubr.bf16.gmra.mxu0 %v374
        %v738 = vpop.f32.mrf.mxu0
        %v739 = vadd.f32 %v659, %v738
        %v740 = vpop.f32.mrf.mxu0
        %v741 = vpop.f32.mrf.mxu0
        %v742 = vadd.f32 %v662, %v741
        %v743 = vpop.f32.mrf.mxu0
        %744 = vmatprep.mubr.bf16.mxu0 %v379
        %745 = vmatmul.mubr.bf16.gmra.mxu0 %v378
        %v746 = vpop.f32.mrf.mxu0
        %v747 = vadd.f32 %v667, %v746
        %v748 = vpop.f32.mrf.mxu0
        %v749 = vpop.f32.mrf.mxu0
        %v750 = vadd.f32 %v670, %v749
        %v751 = vpop.f32.mrf.mxu0
        %752 = vmatprep.mubr.bf16.mxu0 %v383
        %753 = vmatmul.mubr.bf16.gmra.mxu0 %v382
        %v754 = vpop.f32.mrf.mxu0
        %v755 = vadd.f32 %v675, %v754
        %v756 = vpop.f32.mrf.mxu0
        %v757 = vpop.f32.mrf.mxu0
        %v758 = vpop.f32.mrf.mxu0
        %759 = vdwg.mxu0
        %v760 = vmax.f32 %v715, 0.0
        %v761 = vmax.f32 %v718, 0.0
        %v762 = vmax.f32 %v723, 0.0
        %v763 = vmax.f32 %v726, 0.0
        %v764 = vmax.f32 %v731, 0.0
        %v765 = vmax.f32 %v734, 0.0
        %v766 = vmax.f32 %v739, 0.0
        %v767 = vmax.f32 %v742, 0.0
        %v768 = vmax.f32 %v747, 0.0
        %v769 = vmax.f32 %v750, 0.0
        %v770 = vmax.f32 %v755, 0.0
        %v771 = vpack.c.bf16 %v761, %v760
        %v772 = vpack.c.bf16 %v763, %v762
        %v773 = vpack.c.bf16 %v765, %v764
        %v774 = vpack.c.bf16 %v767, %v766
        %v775 = vpack.c.bf16 %v769, %v768
        %v776 = vpack.c.bf16 %v770, %v770
        %v783 = vunpack.c.l.b16 %v771
        %v784 = vunpack.c.h.b16 %v771
        %v785 = vunpack.c.l.b16 %v772
        %v786 = vunpack.c.h.b16 %v772
        %v787 = vunpack.c.l.b16 %v773
        %v788 = vunpack.c.h.b16 %v773
        %v789 = vunpack.c.l.b16 %v774
        %v790 = vunpack.c.h.b16 %v774
        %v791 = vunpack.c.l.b16 %v775
        %v792 = vunpack.c.h.b16 %v775
        %v793 = vunpack.c.l.b16 %v776
        %v794 = vpack.c.b16 %v783, %v783
        %v795 = vpack.c.b16 %v784, %v784
        %v796 = vpack.c.b16 %v785, %v785
        %v797 = vpack.c.b16 %v786, %v786
        %v798 = vpack.c.b16 %v787, %v787
        %v799 = vpack.c.b16 %v788, %v788
        %v800 = vpack.c.b16 %v789, %v789
        %v801 = vpack.c.b16 %v790, %v790
        %v802 = vpack.c.b16 %v791, %v791
        %v803 = vpack.c.b16 %v792, %v792
        %v804 = vpack.c.b16 %v793, %v793
        %vm816 = vcmask 519168
        %817 = vst.msk [vmem:[%s177] sm:$0xf] %vm816, %v794
        %818 = vst.msk [vmem:[%s177 + $0x4] sm:$0xf] %vm816, %v795
        %819 = vst.msk [vmem:[%s177 + $0x8] sm:$0xf] %vm816, %v796
        %820 = vst.msk [vmem:[%s177 + $0xc] sm:$0xf] %vm816, %v797
        %821 = vst.msk [vmem:[%s177 + $0x10] sm:$0xf] %vm816, %v798
        %822 = vst.msk [vmem:[%s177 + $0x14] sm:$0xf] %vm816, %v799
        %823 = vst.msk [vmem:[%s177 + $0x18] sm:$0xf] %vm816, %v800
        %824 = vst.msk [vmem:[%s177 + $0x1c] sm:$0xf] %vm816, %v801
        %825 = vst.msk [vmem:[%s177 + $0x20] sm:$0xf] %vm816, %v802
        %826 = vst.msk [vmem:[%s177 + $0x24] sm:$0xf] %vm816, %v803
        %827 = vst.msk [vmem:[%s177 + $0x28] sm:$0xf] %vm816, %v804
        %s828 = sand.u32 %s90, 1
        %s829 = sand.u32 %s90, 1
        %s830 = smul.addr %s829, 44
        %s831 = scalar_lea.vmem [#allocation2], %s830
        // Predicated region
        $region33: #{qnetwork_forward.5} parent=31 // pred_check
          %p832 = pneg %p100
        $region34: #{qnetwork_forward.5} parent=31 // pred_check_branch
          %834 = sbr.rel (%p832) target = $region36
        $region35: #{qnetwork_forward.5} parent=31 // pred_region
          %s835 = smul.u32 11, %s14
          %s836 = ssub.s32 21, %s835
          %p837 = scmp.lt.s32.totalorder %s836, 11
          %s838 = scalar_select %p837, %s836, 11
          %s839 = smul.u32 64, %s838
          %p840 = scmp.ne.s32.totalorder 0, %s839
          %s841 = smul.addr %s835, 4
          %s842 = scalar_lea.vmem %s3, %s841
          // Predicated region
          $region37: #{qnetwork_forward.5} parent=35 // pred_check
            %p843 = pneg %p840
          $region38: #{qnetwork_forward.5} parent=35 // pred_check_branch
            %845 = sbr.rel (%p843) target = $region40
          $region39: #{qnetwork_forward.5} parent=35 // pred_region
            // Predicated region
            $region41: #{qnetwork_forward.5} parent=39 // pred_check
              _
            $region42: #{qnetwork_forward.5} parent=39 // pred_check_branch
              %847 = sbr.rel target = $region44
            $region43: #{qnetwork_forward.5} parent=39 // pred_region
              // Predicated region
              $region63: #{qnetwork_forward.5} parent=43 // pred_check
                _
              $region64: #{qnetwork_forward.5} parent=43 // pred_check_branch
                %918 = sbr.rel (0) target = $region66
              $region65: #{qnetwork_forward.5} parent=43 // pred_region
                %s920 = ssub.s32 16, 1
                %s921 = sdiv.u32.pop %s838, 11
                %s922 = srem.u32.pop %s838, 11
                // While loop
                $region67: #{qnetwork_forward.5} parent=65 // loop_pre_header
                  _
                $region68: #{qnetwork_forward.5} parent=65 // loop_header
                  %s924 = sphi 0, %s926
                  %p925 = scmp.ge.s32.totalorder %s924, %s921
                  %s929 = sphi 0, %s956
                  %s930 = sphi %s831, %s959
                  %s931 = sphi %s842, %s960
                $region69: #{qnetwork_forward.5} parent=65 // loop_header_branch
                  %928 = sbr.rel (%p925) target = $region73
                $region70: #{qnetwork_forward.5} parent=65 // loop_body
                  %v932 = vld [vmem:[%s930] sm:%s920]
                  %933 = vst [vmem:[%s931] sm:%s920] %v932
                  %v934 = vld [vmem:[%s930 + $0x4] sm:%s920]
                  %935 = vst [vmem:[%s931 + $0x4] sm:%s920] %v934
                  %v936 = vld [vmem:[%s930 + $0x8] sm:%s920]
                  %937 = vst [vmem:[%s931 + $0x8] sm:%s920] %v936
                  %v938 = vld [vmem:[%s930 + $0xc] sm:%s920]
                  %939 = vst [vmem:[%s931 + $0xc] sm:%s920] %v938
                  %v940 = vld [vmem:[%s930 + $0x10] sm:%s920]
                  %941 = vst [vmem:[%s931 + $0x10] sm:%s920] %v940
                  %v942 = vld [vmem:[%s930 + $0x14] sm:%s920]
                  %943 = vst [vmem:[%s931 + $0x14] sm:%s920] %v942
                  %v944 = vld [vmem:[%s930 + $0x18] sm:%s920]
                  %945 = vst [vmem:[%s931 + $0x18] sm:%s920] %v944
                  %v946 = vld [vmem:[%s930 + $0x1c] sm:%s920]
                  %947 = vst [vmem:[%s931 + $0x1c] sm:%s920] %v946
                  %v948 = vld [vmem:[%s930 + $0x20] sm:%s920]
                  %949 = vst [vmem:[%s931 + $0x20] sm:%s920] %v948
                  %v950 = vld [vmem:[%s930 + $0x24] sm:%s920]
                  %951 = vst [vmem:[%s931 + $0x24] sm:%s920] %v950
                  %v952 = vld [vmem:[%s930 + $0x28] sm:%s920]
                  %953 = vst [vmem:[%s931 + $0x28] sm:%s920] %v952
                  %s954 = sadd.s32 1, %s929
                  %p955 = scmp.ge.s32.totalorder %s954, %s921
                  %s956 = scalar_select %p955, 0, %s954
                  %s957 = smul.u32 %s956, 44
                  %s958 = smul.u32 %s956, 44
                  %s959 = scalar_lea.vmem %s831, %s957 [#allocation2]
                  %s960 = scalar_lea.vmem %s842, %s958
                $region71: #{qnetwork_forward.5} parent=65 // loop_footer
                  %s926 = sadd.s32 %s924, 1
                $region72: #{qnetwork_forward.5} parent=65 // loop_footer_branch
                  %923 = sbr.rel target = $region68
                $region73: #{qnetwork_forward.5} parent=65 // loop_exit
                  _
                %s961 = sdiv.u32.pop %s838, 11
                %s962 = srem.u32.pop %s838, 11
                %s963 = smul.u32 %s961, 11
                %s964 = smul.u32 4, %s963
                %s965 = scalar_lea.vmem %s831, %s964 [#allocation2]
                %s966 = smul.u32 4, %s963
                %s967 = scalar_lea.vmem %s842, %s966
                // While loop
                $region74: #{qnetwork_forward.5} parent=65 // loop_pre_header
                  _
                $region75: #{qnetwork_forward.5} parent=65 // loop_header
                  %s969 = sphi 0, %s971
                  %p970 = scmp.ge.s32.totalorder %s969, %s962
                  %s974 = sphi 0, %s981
                  %s975 = sphi %s965, %s984
                  %s976 = sphi %s967, %s985
                $region76: #{qnetwork_forward.5} parent=65 // loop_header_branch
                  %973 = sbr.rel (%p970) target = $region80
                $region77: #{qnetwork_forward.5} parent=65 // loop_body
                  %v977 = vld [vmem:[%s975] sm:%s920]
                  %978 = vst [vmem:[%s976] sm:%s920] %v977
                  %s979 = sadd.s32 1, %s974
                  %p980 = scmp.ge.s32.totalorder %s979, %s962
                  %s981 = scalar_select %p980, 0, %s979
                  %s982 = smul.u32 %s981, 4
                  %s983 = smul.u32 %s981, 4
                  %s984 = scalar_lea.vmem %s965, %s982 [#allocation2]
                  %s985 = scalar_lea.vmem %s967, %s983
                $region78: #{qnetwork_forward.5} parent=65 // loop_footer
                  %s971 = sadd.s32 %s969, 1
                $region79: #{qnetwork_forward.5} parent=65 // loop_footer_branch
                  %968 = sbr.rel target = $region75
                $region80: #{qnetwork_forward.5} parent=65 // loop_exit
                  _
              $region66: #{qnetwork_forward.5} parent=43 // pred_fallthru
                _
            $region44: #{qnetwork_forward.5} parent=39 // pred_fallthru
              _
            // Predicated region
            $region45: #{qnetwork_forward.5} parent=39 // pred_check
              _
            $region46: #{qnetwork_forward.5} parent=39 // pred_check_branch
              %849 = sbr.rel (0) target = $region48
            $region47: #{qnetwork_forward.5} parent=39 // pred_region
              %s851 = ssub.s32 16, 1
              %s852 = sdiv.u32.pop %s838, 11
              %s853 = srem.u32.pop %s838, 11
              // While loop
              $region49: #{qnetwork_forward.5} parent=47 // loop_pre_header
                _
              $region50: #{qnetwork_forward.5} parent=47 // loop_header
                %s855 = sphi 0, %s857
                %p856 = scmp.ge.s32.totalorder %s855, %s852
                %s860 = sphi 0, %s887
                %s861 = sphi %s831, %s890
                %s862 = sphi %s842, %s891
              $region51: #{qnetwork_forward.5} parent=47 // loop_header_branch
                %859 = sbr.rel (%p856) target = $region55
              $region52: #{qnetwork_forward.5} parent=47 // loop_body
                %v863 = vld [vmem:[%s861] sm:%s851]
                %864 = vst [vmem:[%s862] sm:%s851] %v863
                %v865 = vld [vmem:[%s861 + $0x4] sm:%s851]
                %866 = vst [vmem:[%s862 + $0x4] sm:%s851] %v865
                %v867 = vld [vmem:[%s861 + $0x8] sm:%s851]
                %868 = vst [vmem:[%s862 + $0x8] sm:%s851] %v867
                %v869 = vld [vmem:[%s861 + $0xc] sm:%s851]
                %870 = vst [vmem:[%s862 + $0xc] sm:%s851] %v869
                %v871 = vld [vmem:[%s861 + $0x10] sm:%s851]
                %872 = vst [vmem:[%s862 + $0x10] sm:%s851] %v871
                %v873 = vld [vmem:[%s861 + $0x14] sm:%s851]
                %874 = vst [vmem:[%s862 + $0x14] sm:%s851] %v873
                %v875 = vld [vmem:[%s861 + $0x18] sm:%s851]
                %876 = vst [vmem:[%s862 + $0x18] sm:%s851] %v875
                %v877 = vld [vmem:[%s861 + $0x1c] sm:%s851]
                %878 = vst [vmem:[%s862 + $0x1c] sm:%s851] %v877
                %v879 = vld [vmem:[%s861 + $0x20] sm:%s851]
                %880 = vst [vmem:[%s862 + $0x20] sm:%s851] %v879
                %v881 = vld [vmem:[%s861 + $0x24] sm:%s851]
                %882 = vst [vmem:[%s862 + $0x24] sm:%s851] %v881
                %v883 = vld [vmem:[%s861 + $0x28] sm:%s851]
                %884 = vst [vmem:[%s862 + $0x28] sm:%s851] %v883
                %s885 = sadd.s32 1, %s860
                %p886 = scmp.ge.s32.totalorder %s885, %s852
                %s887 = scalar_select %p886, 0, %s885
                %s888 = smul.u32 %s887, 44
                %s889 = smul.u32 %s887, 44
                %s890 = scalar_lea.vmem %s831, %s888 [#allocation2]
                %s891 = scalar_lea.vmem %s842, %s889
              $region53: #{qnetwork_forward.5} parent=47 // loop_footer
                %s857 = sadd.s32 %s855, 1
              $region54: #{qnetwork_forward.5} parent=47 // loop_footer_branch
                %854 = sbr.rel target = $region50
              $region55: #{qnetwork_forward.5} parent=47 // loop_exit
                _
              %s892 = sdiv.u32.pop %s838, 11
              %s893 = srem.u32.pop %s838, 11
              %s894 = smul.u32 %s892, 11
              %s895 = smul.u32 4, %s894
              %s896 = scalar_lea.vmem %s831, %s895 [#allocation2]
              %s897 = smul.u32 4, %s894
              %s898 = scalar_lea.vmem %s842, %s897
              // While loop
              $region56: #{qnetwork_forward.5} parent=47 // loop_pre_header
                _
              $region57: #{qnetwork_forward.5} parent=47 // loop_header
                %s900 = sphi 0, %s902
                %p901 = scmp.ge.s32.totalorder %s900, %s893
                %s905 = sphi 0, %s912
                %s906 = sphi %s896, %s915
                %s907 = sphi %s898, %s916
              $region58: #{qnetwork_forward.5} parent=47 // loop_header_branch
                %904 = sbr.rel (%p901) target = $region62
              $region59: #{qnetwork_forward.5} parent=47 // loop_body
                %v908 = vld [vmem:[%s906] sm:%s851]
                %909 = vst [vmem:[%s907] sm:%s851] %v908
                %s910 = sadd.s32 1, %s905
                %p911 = scmp.ge.s32.totalorder %s910, %s893
                %s912 = scalar_select %p911, 0, %s910
                %s913 = smul.u32 %s912, 4
                %s914 = smul.u32 %s912, 4
                %s915 = scalar_lea.vmem %s896, %s913 [#allocation2]
                %s916 = scalar_lea.vmem %s898, %s914
              $region60: #{qnetwork_forward.5} parent=47 // loop_footer
                %s902 = sadd.s32 %s900, 1
              $region61: #{qnetwork_forward.5} parent=47 // loop_footer_branch
                %899 = sbr.rel target = $region57
              $region62: #{qnetwork_forward.5} parent=47 // loop_exit
                _
            $region48: #{qnetwork_forward.5} parent=39 // pred_fallthru
              _
          $region40: #{qnetwork_forward.5} parent=35 // pred_fallthru
            _
          %986 = vnop
        $region36: #{qnetwork_forward.5} parent=31 // pred_fallthru
          _
      $region32: #{qnetwork_forward.5} parent=5 // pred_fallthru
        _
      %p987 = scmp.le.s32.totalorder 2, %s9
      // Predicated region
      $region81: #{qnetwork_forward.5} parent=5 // pred_check
        %p988 = pneg %p987
      $region82: #{qnetwork_forward.5} parent=5 // pred_check_branch
        %990 = sbr.rel (%p988) target = $region84
      $region83: #{qnetwork_forward.5} parent=5 // pred_region
        %s991 = ssub.s32 %s9, 2
        // Predicated region
        $region85: #{qnetwork_forward.5} parent=83 // pred_check
          %p992 = pneg %p106
        $region86: #{qnetwork_forward.5} parent=83 // pred_check_branch
          %994 = sbr.rel (%p992) target = $region88
        $region87: #{qnetwork_forward.5} parent=83 // pred_region
          %s995 = sand.u32 %s91, 1
          %s996 = sand.u32 %s91, 1
          %s997 = smul.addr %s996, 44
          %s998 = scalar_lea.vmem [#allocation2], %s997
        $region88: #{qnetwork_forward.5} parent=83 // pred_fallthru
          _
      $region84: #{qnetwork_forward.5} parent=5 // pred_fallthru
        _
    $region6: #{qnetwork_forward.5} parent=1 // loop_footer
      %s13 = sadd.s32 1, %s9
    $region7: #{qnetwork_forward.5} parent=1 // loop_footer_branch
      %8 = sbr.rel target = $region3
    $region8: #{qnetwork_forward.5} parent=1 // loop_exit
      _

// kernel: qnetwork_forward.6
$region0: #{qnetwork_forward.6}
  #allocation0 [shape = 'u32[]', space=smem, size = 0x4, offset = 0x4, fixed_abs, tag = 'smem constant byte address 0x4 - core index']
  #allocation1 [shape = 'u32[144,128]{1,0:T(1,128)}', space=vmem, size = 0x12000, scoped, tag = 'internal scratch']
  %s0 = inlined_call_operand.vmem [shape: bf16[98,576], index: 0, kind: input, shape index: {}]
  %s1 = inlined_call_operand.vmem [shape: bf16[576,64], index: 1, kind: input, shape index: {}]
  %s2 = inlined_call_operand.vmem [shape: f32[1,64], index: 2, kind: input, shape index: {}]
  %s3 = inlined_call_operand.vmem [shape: bf16[98,64], index: 3, kind: output, shape index: {}]
  %s4 = sld [smem:[#allocation0]]
  $region89: #{qnetwork_forward.6} parent=0
    _
  %s6 = ssub.s32 1, %s4
  %s7 = scalar_select 0, %s6, %s4
  $region1: #{qnetwork_forward.6} parent=0
    #allocation2 [shape = 'u8[28672]{0}', space=vmem, size = 0x7000, scoped, tag = 'output window, operand 0']
    loop: start=0, step=1, limit=4
    $region2: #{qnetwork_forward.6} parent=1 // loop_pre_header
      _
    $region3: #{qnetwork_forward.6} parent=1 // loop_header
      %s9 = sphi 0, %s13
      %p10 = scmp.ge.s32.totalorder %s9, 4
      %s19 = sphi 0, %s21
      %s22 = sphi 0, %s19
      %s23 = sphi 0, %s22
      %s39 = sphi 0, %s23
      %s43 = sphi 0, %s43
      %s45 = sphi 0, %s43
      %s46 = sphi 0, %s45
      %s60 = sphi 0, %s46
      %s64 = sphi 0, %s64
      %s66 = sphi 0, %s64
      %s67 = sphi 0, %s66
      %s81 = sphi 0, %s67
      %s87 = sphi 0, %s89
      %s90 = sphi 0, %s87
      %s91 = sphi 0, %s90
      %s107 = sphi 0, %s91
    $region4: #{qnetwork_forward.6} parent=1 // loop_header_branch
      %12 = sbr.rel (%p10) target = $region8
    $region5: #{qnetwork_forward.6} parent=1 // loop_body
      %s14 = ssub.s32 %s9, 1
      %s15 = ssub.s32 %s9, 2
      %s16 = sadd.s32 %s9, 1
      %s17 = ssub.s32 %s9, %s16
      %p18 = scmp.eq.s32.totalorder %s17, 0
      %s20 = sadd.s32 %s19, 1
      %s21 = scalar_select %p18, %s19, %s20
      %p24 = pneg %p18
      %p25 = scmp.eq.s32.totalorder %s9, 1
      %p26 = por %p24, %p25
      %p27 = scmp.ne.s32.totalorder %s19, %s22
      %p28 = scmp.eq.s32.totalorder %s9, 0
      %p29 = por %p27, %p28
      %p30 = scmp.ne.s32.totalorder %s19, %s22
      %p31 = scmp.eq.s32.totalorder %s14, 1
      %p32 = por %p30, %p31
      %p33 = scmp.ne.s32.totalorder %s22, %s23
      %p34 = scmp.eq.s32.totalorder %s14, 0
      %p35 = por %p33, %p34
      %p36 = scmp.ne.s32.totalorder %s22, %s23
      %p37 = scmp.eq.s32.totalorder %s15, 1
      %p38 = por %p36, %p37
      %p40 = scmp.ne.s32.totalorder %s23, %s39
      %p41 = scmp.eq.s32.totalorder %s15, 0
      %p42 = por %p40, %p41
      %s44 = sadd.s32 %s43, 1
      %p47 = scmp.eq.s32.totalorder %s9, 1
      %p48 = scmp.ne.s32.totalorder %s43, %s45
      %p49 = scmp.eq.s32.totalorder %s9, 0
      %p50 = por %p48, %p49
      %p51 = scmp.ne.s32.totalorder %s43, %s45
      %p52 = scmp.eq.s32.totalorder %s14, 1
      %p53 = por %p51, %p52
      %p54 = scmp.ne.s32.totalorder %s45, %s46
      %p55 = scmp.eq.s32.totalorder %s14, 0
      %p56 = por %p54, %p55
      %p57 = scmp.ne.s32.totalorder %s45, %s46
      %p58 = scmp.eq.s32.totalorder %s15, 1
      %p59 = por %p57, %p58
      %p61 = scmp.ne.s32.totalorder %s46, %s60
      %p62 = scmp.eq.s32.totalorder %s15, 0
      %p63 = por %p61, %p62
      %s65 = sadd.s32 %s64, 1
      %p68 = scmp.eq.s32.totalorder %s9, 1
      %p69 = scmp.ne.s32.totalorder %s64, %s66
      %p70 = scmp.eq.s32.totalorder %s9, 0
      %p71 = por %p69, %p70
      %p72 = scmp.ne.s32.totalorder %s64, %s66
      %p73 = scmp.eq.s32.totalorder %s14, 1
      %p74 = por %p72, %p73
      %p75 = scmp.ne.s32.totalorder %s66, %s67
      %p76 = scmp.eq.s32.totalorder %s14, 0
      %p77 = por %p75, %p76
      %p78 = scmp.ne.s32.totalorder %s66, %s67
      %p79 = scmp.eq.s32.totalorder %s15, 1
      %p80 = por %p78, %p79
      %p82 = scmp.ne.s32.totalorder %s67, %s81
      %p83 = scmp.eq.s32.totalorder %s15, 0
      %p84 = por %p82, %p83
      %s85 = ssub.s32 %s9, %s16
      %p86 = scmp.eq.s32.totalorder %s85, 0
      %s88 = sadd.s32 %s87, 1
      %s89 = scalar_select %p86, %s87, %s88
      %p92 = pneg %p86
      %p93 = scmp.eq.s32.totalorder %s9, 1
      %p94 = por %p92, %p93
      %p95 = scmp.ne.s32.totalorder %s87, %s90
      %p96 = scmp.eq.s32.totalorder %s9, 0
      %p97 = por %p95, %p96
      %p98 = scmp.ne.s32.totalorder %s87, %s90
      %p99 = scmp.eq.s32.totalorder %s14, 1
      %p100 = por %p98, %p99
      %p101 = scmp.ne.s32.totalorder %s90, %s91
      %p102 = scmp.eq.s32.totalorder %s14, 0
      %p103 = por %p101, %p102
      %p104 = scmp.ne.s32.totalorder %s90, %s91
      %p105 = scmp.eq.s32.totalorder %s15, 1
      %p106 = por %p104, %p105
      %p108 = scmp.ne.s32.totalorder %s91, %s107
      %p109 = scmp.eq.s32.totalorder %s15, 0
      %p110 = por %p108, %p109
      %p111 = scmp.le.s32.totalorder 1, %s9
      %p112 = scmp.lt.s32.totalorder %s9, 3
      %p113 = pnand %p111, %p112
      %p114 = pneg %p113
      // Predicated region
      $region9: #{qnetwork_forward.6} parent=5 // pred_check
        _
      $region10: #{qnetwork_forward.6} parent=5 // pred_check_branch
        %116 = sbr.rel (%p113) target = $region12
      $region11: #{qnetwork_forward.6} parent=5 // pred_region
        %s117 = ssub.s32 %s9, 1
        // Predicated region
        $region13: #{qnetwork_forward.6} parent=11 // pred_check
          %p118 = pneg %p56
        $region14: #{qnetwork_forward.6} parent=11 // pred_check_branch
          %120 = sbr.rel (%p118) target = $region16
        $region15: #{qnetwork_forward.6} parent=11 // pred_region
          _
        $region16: #{qnetwork_forward.6} parent=11 // pred_fallthru
          _
        // Predicated region
        $region17: #{qnetwork_forward.6} parent=11 // pred_check
          %p121 = pneg %p77
        $region18: #{qnetwork_forward.6} parent=11 // pred_check_branch
          %123 = sbr.rel (%p121) target = $region20
        $region19: #{qnetwork_forward.6} parent=11 // pred_region
          _
        $region20: #{qnetwork_forward.6} parent=11 // pred_fallthru
          _
      $region12: #{qnetwork_forward.6} parent=5 // pred_fallthru
        _
      %p124 = scmp.lt.s32.totalorder %s9, 2
      // Predicated region
      $region21: #{qnetwork_forward.6} parent=5 // pred_check
        %p125 = pneg %p124
      $region22: #{qnetwork_forward.6} parent=5 // pred_check_branch
        %127 = sbr.rel (%p125) target = $region24
      $region23: #{qnetwork_forward.6} parent=5 // pred_region
        // Predicated region
        $region25: #{qnetwork_forward.6} parent=23 // pred_check
          %p128 = pneg %p29
        $region26: #{qnetwork_forward.6} parent=23 // pred_check_branch
          %130 = sbr.rel (%p128) target = $region28
        $region27: #{qnetwork_forward.6} parent=23 // pred_region
          %s131 = smul.u32 7, %s9
          %s132 = ssub.s32 13, %s131
          %p133 = scmp.lt.s32.totalorder %s132, 7
          %s134 = scalar_select %p133, %s132, 7
          %s135 = smul.u32 64, %s134
          %s136 = smul.u32 %s135, 5
          %p137 = scmp.lt.s32.totalorder %s131, 12
          %s138 = scalar_select %p137, %s131, 12
          %s139 = smul.addr %s138, 5
          %s140 = smul.addr %s139, 4
          %s141 = scalar_lea.vmem %s0, %s140
          %s142 = smul.u32 7, %s9
          %s143 = ssub.s32 13, %s142
          %p144 = scmp.lt.s32.totalorder %s143, 7
          %s145 = scalar_select %p144, %s143, 7
          %s146 = smul.u32 64, %s145
          %s147 = smul.u32 %s146, 5
        $region28: #{qnetwork_forward.6} parent=23 // pred_fallthru
          _
      $region24: #{qnetwork_forward.6} parent=5 // pred_fallthru
        _
      %p148 = scmp.le.s32.totalorder 1, %s9
      %p149 = scmp.lt.s32.totalorder %s9, 3
      %p150 = pnand %p148, %p149
      %p151 = pneg %p150
      // Predicated region
      $region29: #{qnetwork_forward.6} parent=5 // pred_check
        _
      $region30: #{qnetwork_forward.6} parent=5 // pred_check_branch
        %153 = sbr.rel (%p150) target = $region32
      $region31: #{qnetwork_forward.6} parent=5 // pred_region
        %s154 = ssub.s32 %s9, 1
        %s155 = smul.u32 7, %s14
        %s156 = ssub.s32 13, %s155
        %p157 = scmp.lt.s32.totalorder %s156, 7
        %s158 = scalar_select %p157, %s156, 7
        %s159 = smul.u32 64, %s158
        %s160 = smul.u32 %s159, 5
        %p161 = scmp.lt.s32.totalorder %s155, 12
        %s162 = scalar_select %p161, %s155, 12
        %s163 = smul.addr %s162, 5
        %s164 = smul.addr %s163, 4
        %s165 = scalar_lea.vmem %s0, %s164
        %p166 = pneg %p35
        %p167 = pneg %p32
        %p168 = pneg %p56
        %p169 = pneg %p53
        %p170 = pneg %p77
        %p171 = pneg %p74
        %p172 = pneg %p103
        %p173 = pneg %p100
        %s174 = sand.u32 %s90, 1
        %s175 = sand.u32 %s90, 1
        %s176 = smul.addr %s175, 28
        %s177 = scalar_lea.vmem [#allocation2], %s176
        %s178 = smul.u32 7, %s14
        %s179 = ssub.s32 13, %s178
        %p180 = scmp.lt.s32.totalorder %s179, 7
        %s181 = scalar_select %p180, %s179, 7
        %s182 = smul.u32 64, %s181
        %s183 = smul.u32 %s182, 5
        %p184 = scmp.lt.s32.totalorder %s178, 12
        %s185 = scalar_select %p184, %s178, 12
        %s186 = smul.addr %s185, 5
        %s187 = smul.addr %s186, 4
        %s188 = scalar_lea.vmem %s0, %s187
        %s189 = smul.u32 7, %s14
        %s190 = ssub.s32 13, %s189
        %p191 = scmp.lt.s32.totalorder %s190, 7
        %s192 = scalar_select %p191, %s190, 7
        %s193 = smul.u32 64, %s192
        %s194 = smul.u32 %s193, 5
        %s195 = smul.u32 7, %s14
        %s196 = ssub.s32 13, %s195
        %p197 = scmp.lt.s32.totalorder %s196, 7
        %s198 = scalar_select %p197, %s196, 7
        %s199 = smul.u32 64, %s198
        %v201 = vld [vmem:[%s188] sm:$0xff]
        %v202 = vld [vmem:[%s188 + $0x8] sm:$0xff]
        %v203 = vld [vmem:[%s188 + $0x10] sm:$0xf]
        %v204 = vld [vmem:[%s188 + $0x14] sm:$0xff]
        %v205 = vld [vmem:[%s188 + $0x1c] sm:$0xff]
        %v206 = vld [vmem:[%s188 + $0x24] sm:$0xf]
        %v207 = vld [vmem:[%s188 + $0x28] sm:$0xff]
        %v208 = vld [vmem:[%s188 + $0x30] sm:$0xff]
        %v209 = vld [vmem:[%s188 + $0x38] sm:$0xf]
        %v210 = vld [vmem:[%s188 + $0x3c] sm:$0xff]
        %v211 = vld [vmem:[%s188 + $0x44] sm:$0xff]
        %v212 = vld [vmem:[%s188 + $0x4c] sm:$0xf]
        %v213 = vld [vmem:[%s188 + $0x50] sm:$0xff]
        %v214 = vld [vmem:[%s188 + $0x58] sm:$0xff]
        %v215 = vld [vmem:[%s188 + $0x60] sm:$0xf]
        %v216 = vld [vmem:[%s188 + $0x64] sm:$0xff]
        %v217 = vld [vmem:[%s188 + $0x6c] sm:$0xff]
        %v218 = vld [vmem:[%s188 + $0x74] sm:$0xf]
        %v219 = vld [vmem:[%s188 + $0x78] sm:$0xff]
        %v220 = vld [vmem:[%s188 + $0x80] sm:$0xff]
        %v221 = vld [vmem:[%s188 + $0x88] sm:$0xf]
        %v222 = vld [vmem:[%s1] sm:$0xf]
        %v223 = vld [vmem:[%s1 + $0x4] sm:$0xf]
        %v224 = vld [vmem:[%s1 + $0x8] sm:$0xf]
        %v225 = vld [vmem:[%s1 + $0xc] sm:$0xf]
        %v226 = vld [vmem:[%s1 + $0x10] sm:$0xf]
        %v227 = vld [vmem:[%s1 + $0x14] sm:$0xf]
        %v228 = vld [vmem:[%s1 + $0x18] sm:$0xf]
        %v229 = vld [vmem:[%s1 + $0x1c] sm:$0xf]
        %v230 = vld [vmem:[%s1 + $0x20] sm:$0xf]
        %v231 = vld [vmem:[%s1 + $0x24] sm:$0xf]
        %v232 = vld [vmem:[%s1 + $0x28] sm:$0xf]
        %v233 = vld [vmem:[%s1 + $0x2c] sm:$0xf]
        %v234 = vld [vmem:[%s1 + $0x30] sm:$0xf]
        %v235 = vld [vmem:[%s1 + $0x34] sm:$0xf]
        %v236 = vld [vmem:[%s1 + $0x38] sm:$0xf]
        %v237 = vld [vmem:[%s1 + $0x3c] sm:$0xf]
        %v238 = vld [vmem:[%s1 + $0x40] sm:$0xf]
        %v239 = vld [vmem:[%s1 + $0x44] sm:$0xf]
        %v240 = vld [vmem:[%s1 + $0x48] sm:$0xf]
        %v241 = vld [vmem:[%s1 + $0x4c] sm:$0xf]
        %v242 = vld [vmem:[%s1 + $0x50] sm:$0xf]
        %v243 = vld [vmem:[%s1 + $0x54] sm:$0xf]
        %v244 = vld [vmem:[%s1 + $0x58] sm:$0xf]
        %v245 = vld [vmem:[%s1 + $0x5c] sm:$0xf]
        %v246 = vld [vmem:[%s1 + $0x60] sm:$0xf]
        %v247 = vld [vmem:[%s1 + $0x64] sm:$0xf]
        %v248 = vld [vmem:[%s1 + $0x68] sm:$0xf]
        %v249 = vld [vmem:[%s1 + $0x6c] sm:$0xf]
        %v250 = vld [vmem:[%s1 + $0x70] sm:$0xf]
        %v251 = vld [vmem:[%s1 + $0x74] sm:$0xf]
        %v252 = vld [vmem:[%s1 + $0x78] sm:$0xf]
        %v253 = vld [vmem:[%s1 + $0x7c] sm:$0xf]
        %v254 = vld [vmem:[%s1 + $0x80] sm:$0xf]
        %v255 = vld [vmem:[%s1 + $0x84] sm:$0xf]
        %v256 = vld [vmem:[%s1 + $0x88] sm:$0xf]
        %v257 = vld [vmem:[%s1 + $0x8c] sm:$0xf]
        %v258 = vld [vmem:[%s1 + $0x90] sm:$0xf]
        %v259 = vld [vmem:[%s1 + $0x94] sm:$0xf]
        %v260 = vld [vmem:[%s1 + $0x98] sm:$0xf]
        %v261 = vld [vmem:[%s1 + $0x9c] sm:$0xf]
        %v262 = vld [vmem:[%s1 + $0xa0] sm:$0xf]
        %v263 = vld [vmem:[%s1 + $0xa4] sm:$0xf]
        %v264 = vld [vmem:[%s1 + $0xa8] sm:$0xf]
        %v265 = vld [vmem:[%s1 + $0xac] sm:$0xf]
        %v266 = vld [vmem:[%s1 + $0xb0] sm:$0xf]
        %v267 = vld [vmem:[%s1 + $0xb4] sm:$0xf]
        %v268 = vld [vmem:[%s1 + $0xb8] sm:$0xf]
        %v269 = vld [vmem:[%s1 + $0xbc] sm:$0xf]
        %v270 = vld [vmem:[%s1 + $0xc0] sm:$0xf]
        %v271 = vld [vmem:[%s1 + $0xc4] sm:$0xf]
        %v272 = vld [vmem:[%s1 + $0xc8] sm:$0xf]
        %v273 = vld [vmem:[%s1 + $0xcc] sm:$0xf]
        %v274 = vld [vmem:[%s1 + $0xd0] sm:$0xf]
        %v275 = vld [vmem:[%s1 + $0xd4] sm:$0xf]
        %v276 = vld [vmem:[%s1 + $0xd8] sm:$0xf]
        %v277 = vld [vmem:[%s1 + $0xdc] sm:$0xf]
        %v278 = vld [vmem:[%s1 + $0xe0] sm:$0xf]
        %v279 = vld [vmem:[%s1 + $0xe4] sm:$0xf]
        %v280 = vld [vmem:[%s1 + $0xe8] sm:$0xf]
        %v281 = vld [vmem:[%s1 + $0xec] sm:$0xf]
        %v282 = vld [vmem:[%s1 + $0xf0] sm:$0xf]
        %v283 = vld [vmem:[%s1 + $0xf4] sm:$0xf]
        %v284 = vld [vmem:[%s1 + $0xf8] sm:$0xf]
        %v285 = vld [vmem:[%s1 + $0xfc] sm:$0xf]
        %v286 = vld [vmem:[%s1 + $0x100] sm:$0xf]
        %v287 = vld [vmem:[%s1 + $0x104] sm:$0xf]
        %v288 = vld [vmem:[%s1 + $0x108] sm:$0xf]
        %v289 = vld [vmem:[%s1 + $0x10c] sm:$0xf]
        %v290 = vld [vmem:[%s1 + $0x110] sm:$0xf]
        %v291 = vld [vmem:[%s1 + $0x114] sm:$0xf]
        %v292 = vld [vmem:[%s1 + $0x118] sm:$0xf]
        %v293 = vld [vmem:[%s1 + $0x11c] sm:$0xf]
        %v294 = vld [vmem:[%s2] sm:$0x1]
        %v296 = vlaneseq
        %v297 = vshrl.u32 %v296, 7
        %v298 = vsub.s32 0, %v297
        %v299 = vrot.slane %v294, %v298
        %v322 = vunpack.c.l.b16 %v201
        %v323 = vunpack.c.h.b16 %v201
        %v324 = vunpack.c.l.b16 %v202
        %v325 = vunpack.c.h.b16 %v202
        %v326 = vunpack.c.l.b16 %v203
        %v327 = vunpack.c.l.b16 %v204
        %v328 = vunpack.c.h.b16 %v204
        %v329 = vunpack.c.l.b16 %v205
        %v330 = vunpack.c.h.b16 %v205
        %v331 = vunpack.c.l.b16 %v206
        %v332 = vunpack.c.l.b16 %v207
        %v333 = vunpack.c.h.b16 %v207
        %v334 = vunpack.c.l.b16 %v208
        %v335 = vunpack.c.h.b16 %v208
        %v336 = vunpack.c.l.b16 %v209
        %v337 = vunpack.c.l.b16 %v210
        %v338 = vunpack.c.h.b16 %v210
        %v339 = vunpack.c.l.b16 %v211
        %v340 = vunpack.c.h.b16 %v211
        %v341 = vunpack.c.l.b16 %v212
        %v342 = vunpack.c.l.b16 %v213
        %v343 = vunpack.c.h.b16 %v213
        %v344 = vunpack.c.l.b16 %v214
        %v345 = vunpack.c.h.b16 %v214
        %v346 = vunpack.c.l.b16 %v215
        %v347 = vunpack.c.l.b16 %v216
        %v348 = vunpack.c.h.b16 %v216
        %v349 = vunpack.c.l.b16 %v217
        %v350 = vunpack.c.h.b16 %v217
        %v351 = vunpack.c.l.b16 %v218
        %v352 = vunpack.c.l.b16 %v219
        %v353 = vunpack.c.h.b16 %v219
        %v354 = vunpack.c.l.b16 %v220
        %v355 = vunpack.c.h.b16 %v220
        %v356 = vunpack.c.l.b16 %v221
        %v357 = vpack.c.b16 %v327, %v322
        %v358 = vpack.c.b16 %v328, %v323
        %v359 = vpack.c.b16 %v329, %v324
        %v360 = vpack.c.b16 %v330, %v325
        %v361 = vpack.c.b16 %v331, %v326
        %v362 = vpack.c.b16 %v337, %v332
        %v363 = vpack.c.b16 %v338, %v333
        %v364 = vpack.c.b16 %v339, %v334
        %v365 = vpack.c.b16 %v340, %v335
        %v366 = vpack.c.b16 %v341, %v336
        %v367 = vpack.c.b16 %v347, %v342
        %v368 = vpack.c.b16 %v348, %v343
        %v369 = vpack.c.b16 %v349, %v344
        %v370 = vpack.c.b16 %v350, %v345
        %v371 = vpack.c.b16 %v351, %v346
        %v372 = vpack.c.b16 %v352, %v352
        %v373 = vpack.c.b16 %v353, %v353
        %v374 = vpack.c.b16 %v354, %v354
        %v375 = vpack.c.b16 %v355, %v355
        %v376 = vpack.c.b16 %v356, %v356
        %v465 = vunpack.c.l.b16 %v222
        %v466 = vunpack.c.l.b16 %v223
        %v467 = vunpack.c.l.b16 %v224
        %v468 = vunpack.c.l.b16 %v225
        %v469 = vunpack.c.l.b16 %v226
        %v470 = vunpack.c.l.b16 %v227
        %v471 = vunpack.c.l.b16 %v228
        %v472 = vunpack.c.l.b16 %v229
        %v473 = vunpack.c.l.b16 %v230
        %v474 = vunpack.c.l.b16 %v231
        %v475 = vunpack.c.l.b16 %v232
        %v476 = vunpack.c.l.b16 %v233
        %v477 = vunpack.c.l.b16 %v234
        %v478 = vunpack.c.l.b16 %v235
        %v479 = vunpack.c.l.b16 %v236
        %v480 = vunpack.c.l.b16 %v237
        %v481 = vunpack.c.l.b16 %v238
        %v482 = vunpack.c.l.b16 %v239
        %v483 = vunpack.c.l.b16 %v240
        %v484 = vunpack.c.l.b16 %v241
        %v485 = vunpack.c.l.b16 %v242
        %v486 = vunpack.c.l.b16 %v243
        %v487 = vunpack.c.l.b16 %v244
        %v488 = vunpack.c.l.b16 %v245
        %v489 = vunpack.c.l.b16 %v246
        %v490 = vunpack.c.l.b16 %v247
        %v491 = vunpack.c.l.b16 %v248
        %v492 = vunpack.c.l.b16 %v249
        %v493 = vunpack.c.l.b16 %v250
        %v494 = vunpack.c.l.b16 %v251
        %v495 = vunpack.c.l.b16 %v252
        %v496 = vunpack.c.l.b16 %v253
        %v497 = vunpack.c.l.b16 %v254
        %v498 = vunpack.c.l.b16 %v255
        %v499 = vunpack.c.l.b16 %v256
        %v500 = vunpack.c.l.b16 %v257
        %v501 = vunpack.c.l.b16 %v258
        %v502 = vunpack.c.l.b16 %v259
        %v503 = vunpack.c.l.b16 %v260
        %v504 = vunpack.c.l.b16 %v261
        %v505 = vunpack.c.l.b16 %v262
        %v506 = vunpack.c.l.b16 %v263
        %v507 = vunpack.c.l.b16 %v264
        %v508 = vunpack.c.l.b16 %v265
        %v509 = vunpack.c.l.b16 %v266
        %v510 = vunpack.c.l.b16 %v267
        %v511 = vunpack.c.l.b16 %v268
        %v512 = vunpack.c.l.b16 %v269
        %v513 = vunpack.c.l.b16 %v270
        %v514 = vunpack.c.l.b16 %v271
        %v515 = vunpack.c.l.b16 %v272
        %v516 = vunpack.c.l.b16 %v273
        %v517 = vunpack.c.l.b16 %v274
        %v518 = vunpack.c.l.b16 %v275
        %v519 = vunpack.c.l.b16 %v276
        %v520 = vunpack.c.l.b16 %v277
        %v521 = vunpack.c.l.b16 %v278
        %v522 = vunpack.c.l.b16 %v279
        %v523 = vunpack.c.l.b16 %v280
        %v524 = vunpack.c.l.b16 %v281
        %v525 = vunpack.c.l.b16 %v282
        %v526 = vunpack.c.l.b16 %v283
        %v527 = vunpack.c.l.b16 %v284
        %v528 = vunpack.c.l.b16 %v285
        %v529 = vunpack.c.l.b16 %v286
        %v530 = vunpack.c.l.b16 %v287
        %v531 = vunpack.c.l.b16 %v288
        %v532 = vunpack.c.l.b16 %v289
        %v533 = vunpack.c.l.b16 %v290
        %v534 = vunpack.c.l.b16 %v291
        %v535 = vunpack.c.l.b16 %v292
        %v536 = vunpack.c.l.b16 %v293
        %v537 = vpack.c.b16 %v466, %v465
        %v538 = vpack.c.b16 %v468, %v467
        %v539 = vpack.c.b16 %v470, %v469
        %v540 = vpack.c.b16 %v472, %v471
        %v541 = vpack.c.b16 %v474, %v473
        %v542 = vpack.c.b16 %v476, %v475
        %v543 = vpack.c.b16 %v478, %v477
        %v544 = vpack.c.b16 %v480, %v479
        %v545 = vpack.c.b16 %v482, %v481
        %v546 = vpack.c.b16 %v484, %v483
        %v547 = vpack.c.b16 %v486, %v485
        %v548 = vpack.c.b16 %v488, %v487
        %v549 = vpack.c.b16 %v490, %v489
        %v550 = vpack.c.b16 %v492, %v491
        %v551 = vpack.c.b16 %v494, %v493
        %v552 = vpack.c.b16 %v496, %v495
        %v553 = vpack.c.b16 %v498, %v497
        %v554 = vpack.c.b16 %v500, %v499
        %v555 = vpack.c.b16 %v502, %v501
        %v556 = vpack.c.b16 %v504, %v503
        %v557 = vpack.c.b16 %v506, %v505
        %v558 = vpack.c.b16 %v508, %v507
        %v559 = vpack.c.b16 %v510, %v509
        %v560 = vpack.c.b16 %v512, %v511
        %v561 = vpack.c.b16 %v514, %v513
        %v562 = vpack.c.b16 %v516, %v515
        %v563 = vpack.c.b16 %v518, %v517
        %v564 = vpack.c.b16 %v520, %v519
        %v565 = vpack.c.b16 %v522, %v521
        %v566 = vpack.c.b16 %v524, %v523
        %v567 = vpack.c.b16 %v526, %v525
        %v568 = vpack.c.b16 %v528, %v527
        %v569 = vpack.c.b16 %v530, %v529
        %v570 = vpack.c.b16 %v532, %v531
        %v571 = vpack.c.b16 %v534, %v533
        %v572 = vpack.c.b16 %v536, %v535
        %vm609 = vcmask 523264
        %v611 = vsel %vm609, %v361, 0
        %v614 = vsel %vm609, %v366, 0
        %v617 = vsel %vm609, %v371, 0
        %v620 = vsel %vm609, %v376, 0
        %622 = vmatprep.subr.bf16.mxu0 0
        %623 = vmatpush1.bf16.msra.mxu0 %v544
        %624 = vmatprep.subr.bf16.mxu0 0
        %625 = vmatpush1.bf16.msra.mxu0 %v543
        %626 = vmatprep.subr.bf16.mxu0 0
        %627 = vmatpush1.bf16.msra.mxu0 %v542
        %628 = vmatprep.subr.bf16.mxu0 0
        %629 = vmatpush1.bf16.msra.mxu0 %v541
        %630 = vmatprep.subr.bf16.mxu0 0
        %631 = vmatpush1.bf16.msra.mxu0 %v540
        %632 = vmatprep.subr.bf16.mxu0 0
        %633 = vmatpush1.bf16.msra.mxu0 %v539
        %634 = vmatprep.subr.bf16.mxu0 0
        %635 = vmatpush1.bf16.msra.mxu0 %v538
        %636 = vmatprep.subr.bf16.mxu0 0
        %637 = vmatpush1.bf16.msra.mxu0 %v537
        %638 = vmatprep.subr.bf16.mxu0 0
        %639 = vmatpush2.bf16.msra.mxu0 %v552
        %640 = vmatprep.subr.bf16.mxu0 0
        %641 = vmatpush2.bf16.msra.mxu0 %v551
        %642 = vmatprep.subr.bf16.mxu0 0
        %643 = vmatpush2.bf16.msra.mxu0 %v550
        %644 = vmatprep.subr.bf16.mxu0 0
        %645 = vmatpush2.bf16.msra.mxu0 %v549
        %646 = vmatprep.subr.bf16.mxu0 0
        %647 = vmatpush2.bf16.msra.mxu0 %v548
        %648 = vmatprep.subr.bf16.mxu0 0
        %649 = vmatpush2.bf16.msra.mxu0 %v547
        %650 = vmatprep.subr.bf16.mxu0 0
        %651 = vmatpush2.bf16.msra.mxu0 %v546
        %652 = vmatprep.subr.bf16.mxu0 0
        %653 = vmatpush2.bf16.msra.mxu0 %v545
        %654 = vmatprep.mubr.bf16.mxu0 %v358
        %655 = vmatmul.mubr.bf16.gmra.mxu0 %v357
        %v656 = vpop.f32.mrf.mxu0
        %v657 = vadd.f32 %v299, %v656
        %v658 = vpop.f32.mrf.mxu0
        %v659 = vpop.f32.mrf.mxu0
        %v660 = vadd.f32 %v299, %v659
        %v661 = vpop.f32.mrf.mxu0
        %662 = vmatprep.mubr.bf16.mxu0 %v363
        %663 = vmatmul.mubr.bf16.gmra.mxu0 %v362
        %v664 = vpop.f32.mrf.mxu0
        %v665 = vadd.f32 %v299, %v664
        %v666 = vpop.f32.mrf.mxu0
        %v667 = vpop.f32.mrf.mxu0
        %v668 = vadd.f32 %v299, %v667
        %v669 = vpop.f32.mrf.mxu0
        %670 = vmatprep.mubr.bf16.mxu0 %v368
        %671 = vmatmul.mubr.bf16.gmra.mxu0 %v367
        %v672 = vpop.f32.mrf.mxu0
        %v673 = vadd.f32 %v299, %v672
        %v674 = vpop.f32.mrf.mxu0
        %v675 = vpop.f32.mrf.mxu0
        %v676 = vadd.f32 %v299, %v675
        %v677 = vpop.f32.mrf.mxu0
        %678 = vmatprep.mubr.bf16.mxu0 %v373
        %679 = vmatmul.mubr.bf16.gmra.mxu0 %v372
        %v680 = vpop.f32.mrf.mxu0
        %v681 = vadd.f32 %v299, %v680
        %v682 = vpop.f32.mrf.mxu0
        %v683 = vpop.f32.mrf.mxu0
        %v684 = vpop.f32.mrf.mxu0
        %685 = vdwg.mxu0
        %686 = vmatprep.subr.bf16.mxu0 0
        %687 = vmatpush1.bf16.msra.mxu0 %v560
        %688 = vmatprep.subr.bf16.mxu0 0
        %689 = vmatpush1.bf16.msra.mxu0 %v559
        %690 = vmatprep.subr.bf16.mxu0 0
        %691 = vmatpush1.bf16.msra.mxu0 %v558
        %692 = vmatprep.subr.bf16.mxu0 0
        %693 = vmatpush1.bf16.msra.mxu0 %v557
        %694 = vmatprep.subr.bf16.mxu0 0
        %695 = vmatpush1.bf16.msra.mxu0 %v556
        %696 = vmatprep.subr.bf16.mxu0 0
        %697 = vmatpush1.bf16.msra.mxu0 %v555
        %698 = vmatprep.subr.bf16.mxu0 0
        %699 = vmatpush1.bf16.msra.mxu0 %v554
        %700 = vmatprep.subr.bf16.mxu0 0
        %701 = vmatpush1.bf16.msra.mxu0 %v553
        %702 = vmatprep.subr.bf16.mxu0 0
        %703 = vmatpush2.bf16.msra.mxu0 %v568
        %704 = vmatprep.subr.bf16.mxu0 0
        %705 = vmatpush2.bf16.msra.mxu0 %v567
        %706 = vmatprep.subr.bf16.mxu0 0
        %707 = vmatpush2.bf16.msra.mxu0 %v566
        %708 = vmatprep.subr.bf16.mxu0 0
        %709 = vmatpush2.bf16.msra.mxu0 %v565
        %710 = vmatprep.subr.bf16.mxu0 0
        %711 = vmatpush2.bf16.msra.mxu0 %v564
        %712 = vmatprep.subr.bf16.mxu0 0
        %713 = vmatpush2.bf16.msra.mxu0 %v563
        %714 = vmatprep.subr.bf16.mxu0 0
        %715 = vmatpush2.bf16.msra.mxu0 %v562
        %716 = vmatprep.subr.bf16.mxu0 0
        %717 = vmatpush2.bf16.msra.mxu0 %v561
        %718 = vmatprep.mubr.bf16.mxu0 %v360
        %719 = vmatmul.mubr.bf16.gmra.mxu0 %v359
        %v720 = vpop.f32.mrf.mxu0
        %v721 = vadd.f32 %v657, %v720
        %v722 = vpop.f32.mrf.mxu0
        %v723 = vpop.f32.mrf.mxu0
        %v724 = vadd.f32 %v660, %v723
        %v725 = vpop.f32.mrf.mxu0
        %726 = vmatprep.mubr.bf16.mxu0 %v365
        %727 = vmatmul.mubr.bf16.gmra.mxu0 %v364
        %v728 = vpop.f32.mrf.mxu0
        %v729 = vadd.f32 %v665, %v728
        %v730 = vpop.f32.mrf.mxu0
        %v731 = vpop.f32.mrf.mxu0
        %v732 = vadd.f32 %v668, %v731
        %v733 = vpop.f32.mrf.mxu0
        %734 = vmatprep.mubr.bf16.mxu0 %v370
        %735 = vmatmul.mubr.bf16.gmra.mxu0 %v369
        %v736 = vpop.f32.mrf.mxu0
        %v737 = vadd.f32 %v673, %v736
        %v738 = vpop.f32.mrf.mxu0
        %v739 = vpop.f32.mrf.mxu0
        %v740 = vadd.f32 %v676, %v739
        %v741 = vpop.f32.mrf.mxu0
        %742 = vmatprep.mubr.bf16.mxu0 %v375
        %743 = vmatmul.mubr.bf16.gmra.mxu0 %v374
        %v744 = vpop.f32.mrf.mxu0
        %v745 = vadd.f32 %v681, %v744
        %v746 = vpop.f32.mrf.mxu0
        %v747 = vpop.f32.mrf.mxu0
        %v748 = vpop.f32.mrf.mxu0
        %749 = vdwg.mxu0
        %750 = vmatprep.subr.bf16.mxu0 0
        %751 = vmatpush1.bf16.msra.mxu0 0
        %752 = vmatprep.subr.bf16.mxu0 0
        %753 = vmatpush1.bf16.msra.mxu0 0
        %754 = vmatprep.subr.bf16.mxu0 0
        %755 = vmatpush1.bf16.msra.mxu0 0
        %756 = vmatprep.subr.bf16.mxu0 0
        %757 = vmatpush1.bf16.msra.mxu0 0
        %758 = vmatprep.subr.bf16.mxu0 0
        %759 = vmatpush1.bf16.msra.mxu0 %v572
        %760 = vmatprep.subr.bf16.mxu0 0
        %761 = vmatpush1.bf16.msra.mxu0 %v571
        %762 = vmatprep.subr.bf16.mxu0 0
        %763 = vmatpush1.bf16.msra.mxu0 %v570
        %764 = vmatprep.subr.bf16.mxu0 0
        %765 = vmatpush1.bf16.msra.mxu0 %v569
        %766 = vmatprep.subr.bf16.mxu0 0
        %767 = vmatpush2.bf16.msra.mxu0 0
        %768 = vmatprep.subr.bf16.mxu0 0
        %769 = vmatpush2.bf16.msra.mxu0 0
        %770 = vmatprep.subr.bf16.mxu0 0
        %771 = vmatpush2.bf16.msra.mxu0 0
        %772 = vmatprep.subr.bf16.mxu0 0
        %773 = vmatpush2.bf16.msra.mxu0 0
        %774 = vmatprep.subr.bf16.mxu0 0
        %775 = vmatpush2.bf16.msra.mxu0 0
        %776 = vmatprep.subr.bf16.mxu0 0
        %777 = vmatpush2.bf16.msra.mxu0 0
        %778 = vmatprep.subr.bf16.mxu0 0
        %779 = vmatpush2.bf16.msra.mxu0 0
        %780 = vmatprep.subr.bf16.mxu0 0
        %781 = vmatpush2.bf16.msra.mxu0 0
        %782 = vmatprep.mubr.bf16.mxu0 0
        %783 = vmatmul.mubr.bf16.gmra.mxu0 %v611
        %v784 = vpop.f32.mrf.mxu0
        %v785 = vadd.f32 %v721, %v784
        %v786 = vpop.f32.mrf.mxu0
        %v787 = vpop.f32.mrf.mxu0
        %v788 = vadd.f32 %v724, %v787
        %v789 = vpop.f32.mrf.mxu0
        %790 = vmatprep.mubr.bf16.mxu0 0
        %791 = vmatmul.mubr.bf16.gmra.mxu0 %v614
        %v792 = vpop.f32.mrf.mxu0
        %v793 = vadd.f32 %v729, %v792
        %v794 = vpop.f32.mrf.mxu0
        %v795 = vpop.f32.mrf.mxu0
        %v796 = vadd.f32 %v732, %v795
        %v797 = vpop.f32.mrf.mxu0
        %798 = vmatprep.mubr.bf16.mxu0 0
        %799 = vmatmul.mubr.bf16.gmra.mxu0 %v617
        %v800 = vpop.f32.mrf.mxu0
        %v801 = vadd.f32 %v737, %v800
        %v802 = vpop.f32.mrf.mxu0
        %v803 = vpop.f32.mrf.mxu0
        %v804 = vadd.f32 %v740, %v803
        %v805 = vpop.f32.mrf.mxu0
        %806 = vmatprep.mubr.bf16.mxu0 0
        %807 = vmatmul.mubr.bf16.gmra.mxu0 %v620
        %v808 = vpop.f32.mrf.mxu0
        %v809 = vadd.f32 %v745, %v808
        %v810 = vpop.f32.mrf.mxu0
        %v811 = vpop.f32.mrf.mxu0
        %v812 = vpop.f32.mrf.mxu0
        %813 = vdwg.mxu0
        %v814 = vmax.f32 %v785, 0.0
        %v815 = vmax.f32 %v788, 0.0
        %v816 = vmax.f32 %v793, 0.0
        %v817 = vmax.f32 %v796, 0.0
        %v818 = vmax.f32 %v801, 0.0
        %v819 = vmax.f32 %v804, 0.0
        %v820 = vmax.f32 %v809, 0.0
        %v821 = vpack.c.bf16 %v815, %v814
        %v822 = vpack.c.bf16 %v817, %v816
        %v823 = vpack.c.bf16 %v819, %v818
        %v824 = vpack.c.bf16 %v820, %v820
        %v829 = vunpack.c.l.b16 %v821
        %v830 = vunpack.c.h.b16 %v821
        %v831 = vunpack.c.l.b16 %v822
        %v832 = vunpack.c.h.b16 %v822
        %v833 = vunpack.c.l.b16 %v823
        %v834 = vunpack.c.h.b16 %v823
        %v835 = vunpack.c.l.b16 %v824
        %v836 = vpack.c.b16 %v829, %v829
        %v837 = vpack.c.b16 %v830, %v830
        %v838 = vpack.c.b16 %v831, %v831
        %v839 = vpack.c.b16 %v832, %v832
        %v840 = vpack.c.b16 %v833, %v833
        %v841 = vpack.c.b16 %v834, %v834
        %v842 = vpack.c.b16 %v835, %v835
        %vm850 = vcmask 519168
        %851 = vst.msk [vmem:[%s177] sm:$0xf] %vm850, %v836
        %852 = vst.msk [vmem:[%s177 + $0x4] sm:$0xf] %vm850, %v837
        %853 = vst.msk [vmem:[%s177 + $0x8] sm:$0xf] %vm850, %v838
        %854 = vst.msk [vmem:[%s177 + $0xc] sm:$0xf] %vm850, %v839
        %855 = vst.msk [vmem:[%s177 + $0x10] sm:$0xf] %vm850, %v840
        %856 = vst.msk [vmem:[%s177 + $0x14] sm:$0xf] %vm850, %v841
        %857 = vst.msk [vmem:[%s177 + $0x18] sm:$0xf] %vm850, %v842
        %s858 = sand.u32 %s90, 1
        %s859 = sand.u32 %s90, 1
        %s860 = smul.addr %s859, 28
        %s861 = scalar_lea.vmem [#allocation2], %s860
        // Predicated region
        $region33: #{qnetwork_forward.6} parent=31 // pred_check
          %p862 = pneg %p100
        $region34: #{qnetwork_forward.6} parent=31 // pred_check_branch
          %864 = sbr.rel (%p862) target = $region36
        $region35: #{qnetwork_forward.6} parent=31 // pred_region
          %s865 = smul.u32 7, %s14
          %s866 = ssub.s32 13, %s865
          %p867 = scmp.lt.s32.totalorder %s866, 7
          %s868 = scalar_select %p867, %s866, 7
          %s869 = smul.u32 64, %s868
          %p870 = scmp.ne.s32.totalorder 0, %s869
          %s871 = smul.addr %s865, 4
          %s872 = scalar_lea.vmem %s3, %s871
          // Predicated region
          $region37: #{qnetwork_forward.6} parent=35 // pred_check
            %p873 = pneg %p870
          $region38: #{qnetwork_forward.6} parent=35 // pred_check_branch
            %875 = sbr.rel (%p873) target = $region40
          $region39: #{qnetwork_forward.6} parent=35 // pred_region
            // Predicated region
            $region41: #{qnetwork_forward.6} parent=39 // pred_check
              _
            $region42: #{qnetwork_forward.6} parent=39 // pred_check_branch
              %877 = sbr.rel target = $region44
            $region43: #{qnetwork_forward.6} parent=39 // pred_region
              // Predicated region
              $region63: #{qnetwork_forward.6} parent=43 // pred_check
                _
              $region64: #{qnetwork_forward.6} parent=43 // pred_check_branch
                %940 = sbr.rel (0) target = $region66
              $region65: #{qnetwork_forward.6} parent=43 // pred_region
                %s942 = ssub.s32 16, 1
                %s943 = sdiv.u32.pop %s868, 7
                %s944 = srem.u32.pop %s868, 7
                // While loop
                $region67: #{qnetwork_forward.6} parent=65 // loop_pre_header
                  _
                $region68: #{qnetwork_forward.6} parent=65 // loop_header
                  %s946 = sphi 0, %s948
                  %p947 = scmp.ge.s32.totalorder %s946, %s943
                  %s951 = sphi 0, %s970
                  %s952 = sphi %s861, %s973
                  %s953 = sphi %s872, %s974
                $region69: #{qnetwork_forward.6} parent=65 // loop_header_branch
                  %950 = sbr.rel (%p947) target = $region73
                $region70: #{qnetwork_forward.6} parent=65 // loop_body
                  %v954 = vld [vmem:[%s952] sm:%s942]
                  %955 = vst [vmem:[%s953] sm:%s942] %v954
                  %v956 = vld [vmem:[%s952 + $0x4] sm:%s942]
                  %957 = vst [vmem:[%s953 + $0x4] sm:%s942] %v956
                  %v958 = vld [vmem:[%s952 + $0x8] sm:%s942]
                  %959 = vst [vmem:[%s953 + $0x8] sm:%s942] %v958
                  %v960 = vld [vmem:[%s952 + $0xc] sm:%s942]
                  %961 = vst [vmem:[%s953 + $0xc] sm:%s942] %v960
                  %v962 = vld [vmem:[%s952 + $0x10] sm:%s942]
                  %963 = vst [vmem:[%s953 + $0x10] sm:%s942] %v962
                  %v964 = vld [vmem:[%s952 + $0x14] sm:%s942]
                  %965 = vst [vmem:[%s953 + $0x14] sm:%s942] %v964
                  %v966 = vld [vmem:[%s952 + $0x18] sm:%s942]
                  %967 = vst [vmem:[%s953 + $0x18] sm:%s942] %v966
                  %s968 = sadd.s32 1, %s951
                  %p969 = scmp.ge.s32.totalorder %s968, %s943
                  %s970 = scalar_select %p969, 0, %s968
                  %s971 = smul.u32 %s970, 28
                  %s972 = smul.u32 %s970, 28
                  %s973 = scalar_lea.vmem %s861, %s971 [#allocation2]
                  %s974 = scalar_lea.vmem %s872, %s972
                $region71: #{qnetwork_forward.6} parent=65 // loop_footer
                  %s948 = sadd.s32 %s946, 1
                $region72: #{qnetwork_forward.6} parent=65 // loop_footer_branch
                  %945 = sbr.rel target = $region68
                $region73: #{qnetwork_forward.6} parent=65 // loop_exit
                  _
                %s975 = sdiv.u32.pop %s868, 7
                %s976 = srem.u32.pop %s868, 7
                %s977 = smul.u32 %s975, 7
                %s978 = smul.u32 4, %s977
                %s979 = scalar_lea.vmem %s861, %s978 [#allocation2]
                %s980 = smul.u32 4, %s977
                %s981 = scalar_lea.vmem %s872, %s980
                // While loop
                $region74: #{qnetwork_forward.6} parent=65 // loop_pre_header
                  _
                $region75: #{qnetwork_forward.6} parent=65 // loop_header
                  %s983 = sphi 0, %s985
                  %p984 = scmp.ge.s32.totalorder %s983, %s976
                  %s988 = sphi 0, %s995
                  %s989 = sphi %s979, %s998
                  %s990 = sphi %s981, %s999
                $region76: #{qnetwork_forward.6} parent=65 // loop_header_branch
                  %987 = sbr.rel (%p984) target = $region80
                $region77: #{qnetwork_forward.6} parent=65 // loop_body
                  %v991 = vld [vmem:[%s989] sm:%s942]
                  %992 = vst [vmem:[%s990] sm:%s942] %v991
                  %s993 = sadd.s32 1, %s988
                  %p994 = scmp.ge.s32.totalorder %s993, %s976
                  %s995 = scalar_select %p994, 0, %s993
                  %s996 = smul.u32 %s995, 4
                  %s997 = smul.u32 %s995, 4
                  %s998 = scalar_lea.vmem %s979, %s996 [#allocation2]
                  %s999 = scalar_lea.vmem %s981, %s997
                $region78: #{qnetwork_forward.6} parent=65 // loop_footer
                  %s985 = sadd.s32 %s983, 1
                $region79: #{qnetwork_forward.6} parent=65 // loop_footer_branch
                  %982 = sbr.rel target = $region75
                $region80: #{qnetwork_forward.6} parent=65 // loop_exit
                  _
              $region66: #{qnetwork_forward.6} parent=43 // pred_fallthru
                _
            $region44: #{qnetwork_forward.6} parent=39 // pred_fallthru
              _
            // Predicated region
            $region45: #{qnetwork_forward.6} parent=39 // pred_check
              _
            $region46: #{qnetwork_forward.6} parent=39 // pred_check_branch
              %879 = sbr.rel (0) target = $region48
            $region47: #{qnetwork_forward.6} parent=39 // pred_region
              %s881 = ssub.s32 16, 1
              %s882 = sdiv.u32.pop %s868, 7
              %s883 = srem.u32.pop %s868, 7
              // While loop
              $region49: #{qnetwork_forward.6} parent=47 // loop_pre_header
                _
              $region50: #{qnetwork_forward.6} parent=47 // loop_header
                %s885 = sphi 0, %s887
                %p886 = scmp.ge.s32.totalorder %s885, %s882
                %s890 = sphi 0, %s909
                %s891 = sphi %s861, %s912
                %s892 = sphi %s872, %s913
              $region51: #{qnetwork_forward.6} parent=47 // loop_header_branch
                %889 = sbr.rel (%p886) target = $region55
              $region52: #{qnetwork_forward.6} parent=47 // loop_body
                %v893 = vld [vmem:[%s891] sm:%s881]
                %894 = vst [vmem:[%s892] sm:%s881] %v893
                %v895 = vld [vmem:[%s891 + $0x4] sm:%s881]
                %896 = vst [vmem:[%s892 + $0x4] sm:%s881] %v895
                %v897 = vld [vmem:[%s891 + $0x8] sm:%s881]
                %898 = vst [vmem:[%s892 + $0x8] sm:%s881] %v897
                %v899 = vld [vmem:[%s891 + $0xc] sm:%s881]
                %900 = vst [vmem:[%s892 + $0xc] sm:%s881] %v899
                %v901 = vld [vmem:[%s891 + $0x10] sm:%s881]
                %902 = vst [vmem:[%s892 + $0x10] sm:%s881] %v901
                %v903 = vld [vmem:[%s891 + $0x14] sm:%s881]
                %904 = vst [vmem:[%s892 + $0x14] sm:%s881] %v903
                %v905 = vld [vmem:[%s891 + $0x18] sm:%s881]
                %906 = vst [vmem:[%s892 + $0x18] sm:%s881] %v905
                %s907 = sadd.s32 1, %s890
                %p908 = scmp.ge.s32.totalorder %s907, %s882
                %s909 = scalar_select %p908, 0, %s907
                %s910 = smul.u32 %s909, 28
                %s911 = smul.u32 %s909, 28
                %s912 = scalar_lea.vmem %s861, %s910 [#allocation2]
                %s913 = scalar_lea.vmem %s872, %s911
              $region53: #{qnetwork_forward.6} parent=47 // loop_footer
                %s887 = sadd.s32 %s885, 1
              $region54: #{qnetwork_forward.6} parent=47 // loop_footer_branch
                %884 = sbr.rel target = $region50
              $region55: #{qnetwork_forward.6} parent=47 // loop_exit
                _
              %s914 = sdiv.u32.pop %s868, 7
              %s915 = srem.u32.pop %s868, 7
              %s916 = smul.u32 %s914, 7
              %s917 = smul.u32 4, %s916
              %s918 = scalar_lea.vmem %s861, %s917 [#allocation2]
              %s919 = smul.u32 4, %s916
              %s920 = scalar_lea.vmem %s872, %s919
              // While loop
              $region56: #{qnetwork_forward.6} parent=47 // loop_pre_header
                _
              $region57: #{qnetwork_forward.6} parent=47 // loop_header
                %s922 = sphi 0, %s924
                %p923 = scmp.ge.s32.totalorder %s922, %s915
                %s927 = sphi 0, %s934
                %s928 = sphi %s918, %s937
                %s929 = sphi %s920, %s938
              $region58: #{qnetwork_forward.6} parent=47 // loop_header_branch
                %926 = sbr.rel (%p923) target = $region62
              $region59: #{qnetwork_forward.6} parent=47 // loop_body
                %v930 = vld [vmem:[%s928] sm:%s881]
                %931 = vst [vmem:[%s929] sm:%s881] %v930
                %s932 = sadd.s32 1, %s927
                %p933 = scmp.ge.s32.totalorder %s932, %s915
                %s934 = scalar_select %p933, 0, %s932
                %s935 = smul.u32 %s934, 4
                %s936 = smul.u32 %s934, 4
                %s937 = scalar_lea.vmem %s918, %s935 [#allocation2]
                %s938 = scalar_lea.vmem %s920, %s936
              $region60: #{qnetwork_forward.6} parent=47 // loop_footer
                %s924 = sadd.s32 %s922, 1
              $region61: #{qnetwork_forward.6} parent=47 // loop_footer_branch
                %921 = sbr.rel target = $region57
              $region62: #{qnetwork_forward.6} parent=47 // loop_exit
                _
            $region48: #{qnetwork_forward.6} parent=39 // pred_fallthru
              _
          $region40: #{qnetwork_forward.6} parent=35 // pred_fallthru
            _
          %1000 = vnop
        $region36: #{qnetwork_forward.6} parent=31 // pred_fallthru
          _
      $region32: #{qnetwork_forward.6} parent=5 // pred_fallthru
        _
      %p1001 = scmp.le.s32.totalorder 2, %s9
      // Predicated region
      $region81: #{qnetwork_forward.6} parent=5 // pred_check
        %p1002 = pneg %p1001
      $region82: #{qnetwork_forward.6} parent=5 // pred_check_branch
        %1004 = sbr.rel (%p1002) target = $region84
      $region83: #{qnetwork_forward.6} parent=5 // pred_region
        %s1005 = ssub.s32 %s9, 2
        // Predicated region
        $region85: #{qnetwork_forward.6} parent=83 // pred_check
          %p1006 = pneg %p106
        $region86: #{qnetwork_forward.6} parent=83 // pred_check_branch
          %1008 = sbr.rel (%p1006) target = $region88
        $region87: #{qnetwork_forward.6} parent=83 // pred_region
          %s1009 = sand.u32 %s91, 1
          %s1010 = sand.u32 %s91, 1
          %s1011 = smul.addr %s1010, 28
          %s1012 = scalar_lea.vmem [#allocation2], %s1011
        $region88: #{qnetwork_forward.6} parent=83 // pred_fallthru
          _
      $region84: #{qnetwork_forward.6} parent=5 // pred_fallthru
        _
    $region6: #{qnetwork_forward.6} parent=1 // loop_footer
      %s13 = sadd.s32 1, %s9
    $region7: #{qnetwork_forward.6} parent=1 // loop_footer_branch
      %8 = sbr.rel target = $region3
    $region8: #{qnetwork_forward.6} parent=1 // loop_exit
      _

// kernel: qnetwork_forward.7
$region0: #{qnetwork_forward.7}
  #allocation0 [shape = 'u32[]', space=smem, size = 0x4, offset = 0x4, fixed_abs, tag = 'smem constant byte address 0x4 - core index']
  #allocation1 [shape = 'u32[144,128]{1,0:T(1,128)}', space=vmem, size = 0x12000, scoped, tag = 'internal scratch']
  %s0 = inlined_call_operand.vmem [shape: bf16[2,3136], index: 0, kind: input, shape index: {}]
  %s1 = inlined_call_operand.vmem [shape: bf16[3136,512], index: 1, kind: input, shape index: {}]
  %s2 = inlined_call_operand.vmem [shape: f32[1,512], index: 2, kind: input, shape index: {}]
  %s3 = inlined_call_operand.vmem [shape: bf16[512,128], index: 3, kind: input, shape index: {}]
  %s4 = inlined_call_operand.vmem [shape: f32[1,128], index: 4, kind: input, shape index: {}]
  %s5 = inlined_call_operand.hbm [shape: f32[2,128], index: 5, kind: output, shape index: {}]
  %s6 = sld [smem:[#allocation0]]
  $region30: #{qnetwork_forward.7} parent=0
    _
  %s8 = ssub.s32 1, %s6
  %s9 = scalar_select 0, %s8, %s6
  $region1: #{qnetwork_forward.7} parent=0
    #allocation2 [shape = 'u8[4096]{0}', space=vmem, size = 0x1000, scoped, tag = 'output window, operand 0, single buffered']
    #allocation3 [shape = 's32[1]{0}', space=sflag, size = 0x4, scoped, tag = 'scoped memory for qnetwork_forward.7']
    %10 = vsyncpa [#allocation3], 0
    // Predicated region
    $region2: #{qnetwork_forward.7} parent=1 // pred_check
      _
    $region3: #{qnetwork_forward.7} parent=1 // pred_check_branch
      %12 = sbr.rel (0) target = $region5
    $region4: #{qnetwork_forward.7} parent=1 // pred_region
      _
    $region5: #{qnetwork_forward.7} parent=1 // pred_fallthru
      _
    // Predicated region
    $region6: #{qnetwork_forward.7} parent=1 // pred_check
      _
    $region7: #{qnetwork_forward.7} parent=1 // pred_check_branch
      %14 = sbr.rel (0) target = $region9
    $region8: #{qnetwork_forward.7} parent=1 // pred_region
      _
    $region9: #{qnetwork_forward.7} parent=1 // pred_fallthru
      _
    // Predicated region
    $region10: #{qnetwork_forward.7} parent=1 // pred_check
      _
    $region11: #{qnetwork_forward.7} parent=1 // pred_check_branch
      %16 = sbr.rel (0) target = $region13
    $region12: #{qnetwork_forward.7} parent=1 // pred_region
      _
    $region13: #{qnetwork_forward.7} parent=1 // pred_fallthru
      _
    // Predicated region
    $region14: #{qnetwork_forward.7} parent=1 // pred_check
      _
    $region15: #{qnetwork_forward.7} parent=1 // pred_check_branch
      %18 = sbr.rel (0) target = $region17
    $region16: #{qnetwork_forward.7} parent=1 // pred_region
      _
    $region17: #{qnetwork_forward.7} parent=1 // pred_fallthru
      _
    // Predicated region
    $region18: #{qnetwork_forward.7} parent=1 // pred_check
      _
    $region19: #{qnetwork_forward.7} parent=1 // pred_check_branch
      %20 = sbr.rel (0) target = $region21
    $region20: #{qnetwork_forward.7} parent=1 // pred_region
      _
    $region21: #{qnetwork_forward.7} parent=1 // pred_fallthru
      _
    %v22 = vld [vmem:[%s0] sm:$0xff]
    %v23 = vld [vmem:[%s0 + $0x8] sm:$0xff]
    %v24 = vld [vmem:[%s0 + $0x10] sm:$0xff]
    %v25 = vld [vmem:[%s0 + $0x18] sm:$0x1]
    %v26 = vld [vmem:[%s0 + $0x19] sm:$0xff]
    %v27 = vld [vmem:[%s0 + $0x21] sm:$0xff]
    %v28 = vld [vmem:[%s0 + $0x29] sm:$0xff]
    %v29 = vld [vmem:[%s0 + $0x31] sm:$0x1]
    %v30 = vld [vmem:[%s0 + $0x32] sm:$0xff]
    %v31 = vld [vmem:[%s0 + $0x3a] sm:$0xff]
    %v32 = vld [vmem:[%s0 + $0x42] sm:$0xff]
    %v33 = vld [vmem:[%s0 + $0x4a] sm:$0x1]
    %v34 = vld [vmem:[%s0 + $0x4b] sm:$0xff]
    %v35 = vld [vmem:[%s0 + $0x53] sm:$0xff]
    %v36 = vld [vmem:[%s0 + $0x5b] sm:$0xff]
    %v37 = vld [vmem:[%s0 + $0x63] sm:$0x1]
    %v38 = vld [vmem:[%s1] sm:$0xff]
    %v39 = vld [vmem:[%s1 + $0x8] sm:$0xff]
    %v40 = vld [vmem:[%s1 + $0x10] sm:$0xff]
    %v41 = vld [vmem:[%s1 + $0x18] sm:$0xff]
    %v42 = vld [vmem:[%s1 + $0x20] sm:$0xff]
    %v43 = vld [vmem:[%s1 + $0x28] sm:$0xff]
    %v44 = vld [vmem:[%s1 + $0x30] sm:$0xff]
    %v45 = vld [vmem:[%s1 + $0x38] sm:$0xff]
    %v46 = vld [vmem:[%s1 + $0x40] sm:$0xff]
    %v47 = vld [vmem:[%s1 + $0x48] sm:$0xff]
    %v48 = vld [vmem:[%s1 + $0x50] sm:$0xff]
    %v49 = vld [vmem:[%s1 + $0x58] sm:$0xff]
    %v50 = vld [vmem:[%s1 + $0x60] sm:$0xff]
    %v51 = vld [vmem:[%s1 + $0x68] sm:$0xff]
    %v52 = vld [vmem:[%s1 + $0x70] sm:$0xff]
    %v53 = vld [vmem:[%s1 + $0x78] sm:$0xff]
    %v54 = vld [vmem:[%s1 + $0x80] sm:$0xff]
    %v55 = vld [vmem:[%s1 + $0x88] sm:$0xff]
    %v56 = vld [vmem:[%s1 + $0x90] sm:$0xff]
    %v57 = vld [vmem:[%s1 + $0x98] sm:$0xff]
    %v58 = vld [vmem:[%s1 + $0xa0] sm:$0xff]
    %v59 = vld [vmem:[%s1 + $0xa8] sm:$0xff]
    %v60 = vld [vmem:[%s1 + $0xb0] sm:$0xff]
    %v61 = vld [vmem:[%s1 + $0xb8] sm:$0xff]
    %v62 = vld [vmem:[%s1 + $0xc0] sm:$0xff]
    %v63 = vld [vmem:[%s1 + $0xc8] sm:$0xff]
    %v64 = vld [vmem:[%s1 + $0xd0] sm:$0xff]
    %v65 = vld [vmem:[%s1 + $0xd8] sm:$0xff]
    %v66 = vld [vmem:[%s1 + $0xe0] sm:$0xff]
    %v67 = vld [vmem:[%s1 + $0xe8] sm:$0xff]
    %v68 = vld [vmem:[%s1 + $0xf0] sm:$0xff]
    %v69 = vld [vmem:[%s1 + $0xf8] sm:$0xff]
    %v70 = vld [vmem:[%s1 + $0x100] sm:$0xff]
    %v71 = vld [vmem:[%s1 + $0x108] sm:$0xff]
    %v72 = vld [vmem:[%s1 + $0x110] sm:$0xff]
    %v73 = vld [vmem:[%s1 + $0x118] sm:$0xff]
    %v74 = vld [vmem:[%s1 + $0x120] sm:$0xff]
    %v75 = vld [vmem:[%s1 + $0x128] sm:$0xff]
    %v76 = vld [vmem:[%s1 + $0x130] sm:$0xff]
    %v77 = vld [vmem:[%s1 + $0x138] sm:$0xff]
    %v78 = vld [vmem:[%s1 + $0x140] sm:$0xff]
    %v79 = vld [vmem:[%s1 + $0x148] sm:$0xff]
    %v80 = vld [vmem:[%s1 + $0x150] sm:$0xff]
    %v81 = vld [vmem:[%s1 + $0x158] sm:$0xff]
    %v82 = vld [vmem:[%s1 + $0x160] sm:$0xff]
    %v83 = vld [vmem:[%s1 + $0x168] sm:$0xff]
    %v84 = vld [vmem:[%s1 + $0x170] sm:$0xff]
    %v85 = vld [vmem:[%s1 + $0x178] sm:$0xff]
    %v86 = vld [vmem:[%s1 + $0x180] sm:$0xff]
    %v87 = vld [vmem:[%s1 + $0x188] sm:$0xff]
    %v88 = vld [vmem:[%s1 + $0x190] sm:$0xff]
    %v89 = vld [vmem:[%s1 + $0x198] sm:$0xff]
    %v90 = vld [vmem:[%s1 + $0x1a0] sm:$0xff]
    %v91 = vld [vmem:[%s1 + $0x1a8] sm:$0xff]
    %v92 = vld [vmem:[%s1 + $0x1b0] sm:$0xff]
    %v93 = vld [vmem:[%s1 + $0x1b8] sm:$0xff]
    %v94 = vld [vmem:[%s1 + $0x1c0] sm:$0xff]
    %v95 = vld [vmem:[%s1 + $0x1c8] sm:$0xff]
    %v96 = vld [vmem:[%s1 + $0x1d0] sm:$0xff]
    %v97 = vld [vmem:[%s1 + $0x1d8] sm:$0xff]
    %v98 = vld [vmem:[%s1 + $0x1e0] sm:$0xff]
    %v99 = vld [vmem:[%s1 + $0x1e8] sm:$0xff]
    %v100 = vld [vmem:[%s1 + $0x1f0] sm:$0xff]
    %v101 = vld [vmem:[%s1 + $0x1f8] sm:$0xff]
    %v102 = vld [vmem:[%s1 + $0x200] sm:$0xff]
    %v103 = vld [vmem:[%s1 + $0x208] sm:$0xff]
    %v104 = vld [vmem:[%s1 + $0x210] sm:$0xff]
    %v105 = vld [vmem:[%s1 + $0x218] sm:$0xff]
    %v106 = vld [vmem:[%s1 + $0x220] sm:$0xff]
    %v107 = vld [vmem:[%s1 + $0x228] sm:$0xff]
    %v108 = vld [vmem:[%s1 + $0x230] sm:$0xff]
    %v109 = vld [vmem:[%s1 + $0x238] sm:$0xff]
    %v110 = vld [vmem:[%s1 + $0x240] sm:$0xff]
    %v111 = vld [vmem:[%s1 + $0x248] sm:$0xff]
    %v112 = vld [vmem:[%s1 + $0x250] sm:$0xff]
    %v113 = vld [vmem:[%s1 + $0x258] sm:$0xff]
    %v114 = vld [vmem:[%s1 + $0x260] sm:$0xff]
    %v115 = vld [vmem:[%s1 + $0x268] sm:$0xff]
    %v116 = vld [vmem:[%s1 + $0x270] sm:$0xff]
    %v117 = vld [vmem:[%s1 + $0x278] sm:$0xff]
    %v118 = vld [vmem:[%s1 + $0x280] sm:$0xff]
    %v119 = vld [vmem:[%s1 + $0x288] sm:$0xff]
    %v120 = vld [vmem:[%s1 + $0x290] sm:$0xff]
    %v121 = vld [vmem:[%s1 + $0x298] sm:$0xff]
    %v122 = vld [vmem:[%s1 + $0x2a0] sm:$0xff]
    %v123 = vld [vmem:[%s1 + $0x2a8] sm:$0xff]
    %v124 = vld [vmem:[%s1 + $0x2b0] sm:$0xff]
    %v125 = vld [vmem:[%s1 + $0x2b8] sm:$0xff]
    %v126 = vld [vmem:[%s1 + $0x2c0] sm:$0xff]
    %v127 = vld [vmem:[%s1 + $0x2c8] sm:$0xff]
    %v128 = vld [vmem:[%s1 + $0x2d0] sm:$0xff]
    %v129 = vld [vmem:[%s1 + $0x2d8] sm:$0xff]
    %v130 = vld [vmem:[%s1 + $0x2e0] sm:$0xff]
    %v131 = vld [vmem:[%s1 + $0x2e8] sm:$0xff]
    %v132 = vld [vmem:[%s1 + $0x2f0] sm:$0xff]
    %v133 = vld [vmem:[%s1 + $0x2f8] sm:$0xff]
    %v134 = vld [vmem:[%s1 + $0x300] sm:$0xff]
    %v135 = vld [vmem:[%s1 + $0x308] sm:$0xff]
    %v136 = vld [vmem:[%s1 + $0x310] sm:$0xff]
    %v137 = vld [vmem:[%s1 + $0x318] sm:$0xff]
    %v138 = vld [vmem:[%s1 + $0x320] sm:$0xff]
    %v139 = vld [vmem:[%s1 + $0x328] sm:$0xff]
    %v140 = vld [vmem:[%s1 + $0x330] sm:$0xff]
    %v141 = vld [vmem:[%s1 + $0x338] sm:$0xff]
    %v142 = vld [vmem:[%s1 + $0x340] sm:$0xff]
    %v143 = vld [vmem:[%s1 + $0x348] sm:$0xff]
    %v144 = vld [vmem:[%s1 + $0x350] sm:$0xff]
    %v145 = vld [vmem:[%s1 + $0x358] sm:$0xff]
    %v146 = vld [vmem:[%s1 + $0x360] sm:$0xff]
    %v147 = vld [vmem:[%s1 + $0x368] sm:$0xff]
    %v148 = vld [vmem:[%s1 + $0x370] sm:$0xff]
    %v149 = vld [vmem:[%s1 + $0x378] sm:$0xff]
    %v150 = vld [vmem:[%s1 + $0x380] sm:$0xff]
    %v151 = vld [vmem:[%s1 + $0x388] sm:$0xff]
    %v152 = vld [vmem:[%s1 + $0x390] sm:$0xff]
    %v153 = vld [vmem:[%s1 + $0x398] sm:$0xff]
    %v154 = vld [vmem:[%s1 + $0x3a0] sm:$0xff]
    %v155 = vld [vmem:[%s1 + $0x3a8] sm:$0xff]
    %v156 = vld [vmem:[%s1 + $0x3b0] sm:$0xff]
    %v157 = vld [vmem:[%s1 + $0x3b8] sm:$0xff]
    %v158 = vld [vmem:[%s1 + $0x3c0] sm:$0xff]
    %v159 = vld [vmem:[%s1 + $0x3c8] sm:$0xff]
    %v160 = vld [vmem:[%s1 + $0x3d0] sm:$0xff]
    %v161 = vld [vmem:[%s1 + $0x3d8] sm:$0xff]
    %v162 = vld [vmem:[%s1 + $0x3e0] sm:$0xff]
    %v163 = vld [vmem:[%s1 + $0x3e8] sm:$0xff]
    %v164 = vld [vmem:[%s1 + $0x3f0] sm:$0xff]
    %v165 = vld [vmem:[%s1 + $0x3f8] sm:$0xff]
    %v166 = vld [vmem:[%s1 + $0x400] sm:$0xff]
    %v167 = vld [vmem:[%s1 + $0x408] sm:$0xff]
    %v168 = vld [vmem:[%s1 + $0x410] sm:$0xff]
    %v169 = vld [vmem:[%s1 + $0x418] sm:$0xff]
    %v170 = vld [vmem:[%s1 + $0x420] sm:$0xff]
    %v171 = vld [vmem:[%s1 + $0x428] sm:$0xff]
    %v172 = vld [vmem:[%s1 + $0x430] sm:$0xff]
    %v173 = vld [vmem:[%s1 + $0x438] sm:$0xff]
    %v174 = vld [vmem:[%s1 + $0x440] sm:$0xff]
    %v175 = vld [vmem:[%s1 + $0x448] sm:$0xff]
    %v176 = vld [vmem:[%s1 + $0x450] sm:$0xff]
    %v177 = vld [vmem:[%s1 + $0x458] sm:$0xff]
    %v178 = vld [vmem:[%s1 + $0x460] sm:$0xff]
    %v179 = vld [vmem:[%s1 + $0x468] sm:$0xff]
    %v180 = vld [vmem:[%s1 + $0x470] sm:$0xff]
    %v181 = vld [vmem:[%s1 + $0x478] sm:$0xff]
    %v182 = vld [vmem:[%s1 + $0x480] sm:$0xff]
    %v183 = vld [vmem:[%s1 + $0x488] sm:$0xff]
    %v184 = vld [vmem:[%s1 + $0x490] sm:$0xff]
    %v185 = vld [vmem:[%s1 + $0x498] sm:$0xff]
    %v186 = vld [vmem:[%s1 + $0x4a0] sm:$0xff]
    %v187 = vld [vmem:[%s1 + $0x4a8] sm:$0xff]
    %v188 = vld [vmem:[%s1 + $0x4b0] sm:$0xff]
    %v189 = vld [vmem:[%s1 + $0x4b8] sm:$0xff]
    %v190 = vld [vmem:[%s1 + $0x4c0] sm:$0xff]
    %v191 = vld [vmem:[%s1 + $0x4c8] sm:$0xff]
    %v192 = vld [vmem:[%s1 + $0x4d0] sm:$0xff]
    %v193 = vld [vmem:[%s1 + $0x4d8] sm:$0xff]
    %v194 = vld [vmem:[%s1 + $0x4e0] sm:$0xff]
    %v195 = vld [vmem:[%s1 + $0x4e8] sm:$0xff]
    %v196 = vld [vmem:[%s1 + $0x4f0] sm:$0xff]
    %v197 = vld [vmem:[%s1 + $0x4f8] sm:$0xff]
    %v198 = vld [vmem:[%s1 + $0x500] sm:$0xff]
    %v199 = vld [vmem:[%s1 + $0x508] sm:$0xff]
    %v200 = vld [vmem:[%s1 + $0x510] sm:$0xff]
    %v201 = vld [vmem:[%s1 + $0x518] sm:$0xff]
    %v202 = vld [vmem:[%s1 + $0x520] sm:$0xff]
    %v203 = vld [vmem:[%s1 + $0x528] sm:$0xff]
    %v204 = vld [vmem:[%s1 + $0x530] sm:$0xff]
    %v205 = vld [vmem:[%s1 + $0x538] sm:$0xff]
    %v206 = vld [vmem:[%s1 + $0x540] sm:$0xff]
    %v207 = vld [vmem:[%s1 + $0x548] sm:$0xff]
    %v208 = vld [vmem:[%s1 + $0x550] sm:$0xff]
    %v209 = vld [vmem:[%s1 + $0x558] sm:$0xff]
    %v210 = vld [vmem:[%s1 + $0x560] sm:$0xff]
    %v211 = vld [vmem:[%s1 + $0x568] sm:$0xff]
    %v212 = vld [vmem:[%s1 + $0x570] sm:$0xff]
    %v213 = vld [vmem:[%s1 + $0x578] sm:$0xff]
    %v214 = vld [vmem:[%s1 + $0x580] sm:$0xff]
    %v215 = vld [vmem:[%s1 + $0x588] sm:$0xff]
    %v216 = vld [vmem:[%s1 + $0x590] sm:$0xff]
    %v217 = vld [vmem:[%s1 + $0x598] sm:$0xff]
    %v218 = vld [vmem:[%s1 + $0x5a0] sm:$0xff]
    %v219 = vld [vmem:[%s1 + $0x5a8] sm:$0xff]
    %v220 = vld [vmem:[%s1 + $0x5b0] sm:$0xff]
    %v221 = vld [vmem:[%s1 + $0x5b8] sm:$0xff]
    %v222 = vld [vmem:[%s1 + $0x5c0] sm:$0xff]
    %v223 = vld [vmem:[%s1 + $0x5c8] sm:$0xff]
    %v224 = vld [vmem:[%s1 + $0x5d0] sm:$0xff]
    %v225 = vld [vmem:[%s1 + $0x5d8] sm:$0xff]
    %v226 = vld [vmem:[%s1 + $0x5e0] sm:$0xff]
    %v227 = vld [vmem:[%s1 + $0x5e8] sm:$0xff]
    %v228 = vld [vmem:[%s1 + $0x5f0] sm:$0xff]
    %v229 = vld [vmem:[%s1 + $0x5f8] sm:$0xff]
    %v230 = vld [vmem:[%s1 + $0x600] sm:$0xff]
    %v231 = vld [vmem:[%s1 + $0x608] sm:$0xff]
    %v232 = vld [vmem:[%s1 + $0x610] sm:$0xff]
    %v233 = vld [vmem:[%s1 + $0x618] sm:$0xff]
    %v234 = vld [vmem:[%s1 + $0x620] sm:$0xff]
    %v235 = vld [vmem:[%s1 + $0x628] sm:$0xff]
    %v236 = vld [vmem:[%s1 + $0x630] sm:$0xff]
    %v237 = vld [vmem:[%s1 + $0x638] sm:$0xff]
    %v238 = vld [vmem:[%s1 + $0x640] sm:$0xff]
    %v239 = vld [vmem:[%s1 + $0x648] sm:$0xff]
    %v240 = vld [vmem:[%s1 + $0x650] sm:$0xff]
    %v241 = vld [vmem:[%s1 + $0x658] sm:$0xff]
    %v242 = vld [vmem:[%s1 + $0x660] sm:$0xff]
    %v243 = vld [vmem:[%s1 + $0x668] sm:$0xff]
    %v244 = vld [vmem:[%s1 + $0x670] sm:$0xff]
    %v245 = vld [vmem:[%s1 + $0x678] sm:$0xff]
    %v246 = vld [vmem:[%s1 + $0x680] sm:$0xff]
    %v247 = vld [vmem:[%s1 + $0x688] sm:$0xff]
    %v248 = vld [vmem:[%s1 + $0x690] sm:$0xff]
    %v249 = vld [vmem:[%s1 + $0x698] sm:$0xff]
    %v250 = vld [vmem:[%s1 + $0x6a0] sm:$0xff]
    %v251 = vld [vmem:[%s1 + $0x6a8] sm:$0xff]
    %v252 = vld [vmem:[%s1 + $0x6b0] sm:$0xff]
    %v253 = vld [vmem:[%s1 + $0x6b8] sm:$0xff]
    %v254 = vld [vmem:[%s1 + $0x6c0] sm:$0xff]
    %v255 = vld [vmem:[%s1 + $0x6c8] sm:$0xff]
    %v256 = vld [vmem:[%s1 + $0x6d0] sm:$0xff]
    %v257 = vld [vmem:[%s1 + $0x6d8] sm:$0xff]
    %v258 = vld [vmem:[%s1 + $0x6e0] sm:$0xff]
    %v259 = vld [vmem:[%s1 + $0x6e8] sm:$0xff]
    %v260 = vld [vmem:[%s1 + $0x6f0] sm:$0xff]
    %v261 = vld [vmem:[%s1 + $0x6f8] sm:$0xff]
    %v262 = vld [vmem:[%s1 + $0x700] sm:$0xff]
    %v263 = vld [vmem:[%s1 + $0x708] sm:$0xff]
    %v264 = vld [vmem:[%s1 + $0x710] sm:$0xff]
    %v265 = vld [vmem:[%s1 + $0x718] sm:$0xff]
    %v266 = vld [vmem:[%s1 + $0x720] sm:$0xff]
    %v267 = vld [vmem:[%s1 + $0x728] sm:$0xff]
    %v268 = vld [vmem:[%s1 + $0x730] sm:$0xff]
    %v269 = vld [vmem:[%s1 + $0x738] sm:$0xff]
    %v270 = vld [vmem:[%s1 + $0x740] sm:$0xff]
    %v271 = vld [vmem:[%s1 + $0x748] sm:$0xff]
    %v272 = vld [vmem:[%s1 + $0x750] sm:$0xff]
    %v273 = vld [vmem:[%s1 + $0x758] sm:$0xff]
    %v274 = vld [vmem:[%s1 + $0x760] sm:$0xff]
    %v275 = vld [vmem:[%s1 + $0x768] sm:$0xff]
    %v276 = vld [vmem:[%s1 + $0x770] sm:$0xff]
    %v277 = vld [vmem:[%s1 + $0x778] sm:$0xff]
    %v278 = vld [vmem:[%s1 + $0x780] sm:$0xff]
    %v279 = vld [vmem:[%s1 + $0x788] sm:$0xff]
    %v280 = vld [vmem:[%s1 + $0x790] sm:$0xff]
    %v281 = vld [vmem:[%s1 + $0x798] sm:$0xff]
    %v282 = vld [vmem:[%s1 + $0x7a0] sm:$0xff]
    %v283 = vld [vmem:[%s1 + $0x7a8] sm:$0xff]
    %v284 = vld [vmem:[%s1 + $0x7b0] sm:$0xff]
    %v285 = vld [vmem:[%s1 + $0x7b8] sm:$0xff]
    %v286 = vld [vmem:[%s1 + $0x7c0] sm:$0xff]
    %v287 = vld [vmem:[%s1 + $0x7c8] sm:$0xff]
    %v288 = vld [vmem:[%s1 + $0x7d0] sm:$0xff]
    %v289 = vld [vmem:[%s1 + $0x7d8] sm:$0xff]
    %v290 = vld [vmem:[%s1 + $0x7e0] sm:$0xff]
    %v291 = vld [vmem:[%s1 + $0x7e8] sm:$0xff]
    %v292 = vld [vmem:[%s1 + $0x7f0] sm:$0xff]
    %v293 = vld [vmem:[%s1 + $0x7f8] sm:$0xff]
    %v294 = vld [vmem:[%s1 + $0x800] sm:$0xff]
    %v295 = vld [vmem:[%s1 + $0x808] sm:$0xff]
    %v296 = vld [vmem:[%s1 + $0x810] sm:$0xff]
    %v297 = vld [vmem:[%s1 + $0x818] sm:$0xff]
    %v298 = vld [vmem:[%s1 + $0x820] sm:$0xff]
    %v299 = vld [vmem:[%s1 + $0x828] sm:$0xff]
    %v300 = vld [vmem:[%s1 + $0x830] sm:$0xff]
    %v301 = vld [vmem:[%s1 + $0x838] sm:$0xff]
    %v302 = vld [vmem:[%s1 + $0x840] sm:$0xff]
    %v303 = vld [vmem:[%s1 + $0x848] sm:$0xff]
    %v304 = vld [vmem:[%s1 + $0x850] sm:$0xff]
    %v305 = vld [vmem:[%s1 + $0x858] sm:$0xff]
    %v306 = vld [vmem:[%s1 + $0x860] sm:$0xff]
    %v307 = vld [vmem:[%s1 + $0x868] sm:$0xff]
    %v308 = vld [vmem:[%s1 + $0x870] sm:$0xff]
    %v309 = vld [vmem:[%s1 + $0x878] sm:$0xff]
    %v310 = vld [vmem:[%s1 + $0x880] sm:$0xff]
    %v311 = vld [vmem:[%s1 + $0x888] sm:$0xff]
    %v312 = vld [vmem:[%s1 + $0x890] sm:$0xff]
    %v313 = vld [vmem:[%s1 + $0x898] sm:$0xff]
    %v314 = vld [vmem:[%s1 + $0x8a0] sm:$0xff]
    %v315 = vld [vmem:[%s1 + $0x8a8] sm:$0xff]
    %v316 = vld [vmem:[%s1 + $0x8b0] sm:$0xff]
    %v317 = vld [vmem:[%s1 + $0x8b8] sm:$0xff]
    %v318 = vld [vmem:[%s1 + $0x8c0] sm:$0xff]
    %v319 = vld [vmem:[%s1 + $0x8c8] sm:$0xff]
    %v320 = vld [vmem:[%s1 + $0x8d0] sm:$0xff]
    %v321 = vld [vmem:[%s1 + $0x8d8] sm:$0xff]
    %v322 = vld [vmem:[%s1 + $0x8e0] sm:$0xff]
    %v323 = vld [vmem:[%s1 + $0x8e8] sm:$0xff]
    %v324 = vld [vmem:[%s1 + $0x8f0] sm:$0xff]
    %v325 = vld [vmem:[%s1 + $0x8f8] sm:$0xff]
    %v326 = vld [vmem:[%s1 + $0x900] sm:$0xff]
    %v327 = vld [vmem:[%s1 + $0x908] sm:$0xff]
    %v328 = vld [vmem:[%s1 + $0x910] sm:$0xff]
    %v329 = vld [vmem:[%s1 + $0x918] sm:$0xff]
    %v330 = vld [vmem:[%s1 + $0x920] sm:$0xff]
    %v331 = vld [vmem:[%s1 + $0x928] sm:$0xff]
    %v332 = vld [vmem:[%s1 + $0x930] sm:$0xff]
    %v333 = vld [vmem:[%s1 + $0x938] sm:$0xff]
    %v334 = vld [vmem:[%s1 + $0x940] sm:$0xff]
    %v335 = vld [vmem:[%s1 + $0x948] sm:$0xff]
    %v336 = vld [vmem:[%s1 + $0x950] sm:$0xff]
    %v337 = vld [vmem:[%s1 + $0x958] sm:$0xff]
    %v338 = vld [vmem:[%s1 + $0x960] sm:$0xff]
    %v339 = vld [vmem:[%s1 + $0x968] sm:$0xff]
    %v340 = vld [vmem:[%s1 + $0x970] sm:$0xff]
    %v341 = vld [vmem:[%s1 + $0x978] sm:$0xff]
    %v342 = vld [vmem:[%s1 + $0x980] sm:$0xff]
    %v343 = vld [vmem:[%s1 + $0x988] sm:$0xff]
    %v344 = vld [vmem:[%s1 + $0x990] sm:$0xff]
    %v345 = vld [vmem:[%s1 + $0x998] sm:$0xff]
    %v346 = vld [vmem:[%s1 + $0x9a0] sm:$0xff]
    %v347 = vld [vmem:[%s1 + $0x9a8] sm:$0xff]
    %v348 = vld [vmem:[%s1 + $0x9b0] sm:$0xff]
    %v349 = vld [vmem:[%s1 + $0x9b8] sm:$0xff]
    %v350 = vld [vmem:[%s1 + $0x9c0] sm:$0xff]
    %v351 = vld [vmem:[%s1 + $0x9c8] sm:$0xff]
    %v352 = vld [vmem:[%s1 + $0x9d0] sm:$0xff]
    %v353 = vld [vmem:[%s1 + $0x9d8] sm:$0xff]
    %v354 = vld [vmem:[%s1 + $0x9e0] sm:$0xff]
    %v355 = vld [vmem:[%s1 + $0x9e8] sm:$0xff]
    %v356 = vld [vmem:[%s1 + $0x9f0] sm:$0xff]
    %v357 = vld [vmem:[%s1 + $0x9f8] sm:$0xff]
    %v358 = vld [vmem:[%s1 + $0xa00] sm:$0xff]
    %v359 = vld [vmem:[%s1 + $0xa08] sm:$0xff]
    %v360 = vld [vmem:[%s1 + $0xa10] sm:$0xff]
    %v361 = vld [vmem:[%s1 + $0xa18] sm:$0xff]
    %v362 = vld [vmem:[%s1 + $0xa20] sm:$0xff]
    %v363 = vld [vmem:[%s1 + $0xa28] sm:$0xff]
    %v364 = vld [vmem:[%s1 + $0xa30] sm:$0xff]
    %v365 = vld [vmem:[%s1 + $0xa38] sm:$0xff]
    %v366 = vld [vmem:[%s1 + $0xa40] sm:$0xff]
    %v367 = vld [vmem:[%s1 + $0xa48] sm:$0xff]
    %v368 = vld [vmem:[%s1 + $0xa50] sm:$0xff]
    %v369 = vld [vmem:[%s1 + $0xa58] sm:$0xff]
    %v370 = vld [vmem:[%s1 + $0xa60] sm:$0xff]
    %v371 = vld [vmem:[%s1 + $0xa68] sm:$0xff]
    %v372 = vld [vmem:[%s1 + $0xa70] sm:$0xff]
    %v373 = vld [vmem:[%s1 + $0xa78] sm:$0xff]
    %v374 = vld [vmem:[%s1 + $0xa80] sm:$0xff]
    %v375 = vld [vmem:[%s1 + $0xa88] sm:$0xff]
    %v376 = vld [vmem:[%s1 + $0xa90] sm:$0xff]
    %v377 = vld [vmem:[%s1 + $0xa98] sm:$0xff]
    %v378 = vld [vmem:[%s1 + $0xaa0] sm:$0xff]
    %v379 = vld [vmem:[%s1 + $0xaa8] sm:$0xff]
    %v380 = vld [vmem:[%s1 + $0xab0] sm:$0xff]
    %v381 = vld [vmem:[%s1 + $0xab8] sm:$0xff]
    %v382 = vld [vmem:[%s1 + $0xac0] sm:$0xff]
    %v383 = vld [vmem:[%s1 + $0xac8] sm:$0xff]
    %v384 = vld [vmem:[%s1 + $0xad0] sm:$0xff]
    %v385 = vld [vmem:[%s1 + $0xad8] sm:$0xff]
    %v386 = vld [vmem:[%s1 + $0xae0] sm:$0xff]
    %v387 = vld [vmem:[%s1 + $0xae8] sm:$0xff]
    %v388 = vld [vmem:[%s1 + $0xaf0] sm:$0xff]
    %v389 = vld [vmem:[%s1 + $0xaf8] sm:$0xff]
    %v390 = vld [vmem:[%s1 + $0xb00] sm:$0xff]
    %v391 = vld [vmem:[%s1 + $0xb08] sm:$0xff]
    %v392 = vld [vmem:[%s1 + $0xb10] sm:$0xff]
    %v393 = vld [vmem:[%s1 + $0xb18] sm:$0xff]
    %v394 = vld [vmem:[%s1 + $0xb20] sm:$0xff]
    %v395 = vld [vmem:[%s1 + $0xb28] sm:$0xff]
    %v396 = vld [vmem:[%s1 + $0xb30] sm:$0xff]
    %v397 = vld [vmem:[%s1 + $0xb38] sm:$0xff]
    %v398 = vld [vmem:[%s1 + $0xb40] sm:$0xff]
    %v399 = vld [vmem:[%s1 + $0xb48] sm:$0xff]
    %v400 = vld [vmem:[%s1 + $0xb50] sm:$0xff]
    %v401 = vld [vmem:[%s1 + $0xb58] sm:$0xff]
    %v402 = vld [vmem:[%s1 + $0xb60] sm:$0xff]
    %v403 = vld [vmem:[%s1 + $0xb68] sm:$0xff]
    %v404 = vld [vmem:[%s1 + $0xb70] sm:$0xff]
    %v405 = vld [vmem:[%s1 + $0xb78] sm:$0xff]
    %v406 = vld [vmem:[%s1 + $0xb80] sm:$0xff]
    %v407 = vld [vmem:[%s1 + $0xb88] sm:$0xff]
    %v408 = vld [vmem:[%s1 + $0xb90] sm:$0xff]
    %v409 = vld [vmem:[%s1 + $0xb98] sm:$0xff]
    %v410 = vld [vmem:[%s1 + $0xba0] sm:$0xff]
    %v411 = vld [vmem:[%s1 + $0xba8] sm:$0xff]
    %v412 = vld [vmem:[%s1 + $0xbb0] sm:$0xff]
    %v413 = vld [vmem:[%s1 + $0xbb8] sm:$0xff]
    %v414 = vld [vmem:[%s1 + $0xbc0] sm:$0xff]
    %v415 = vld [vmem:[%s1 + $0xbc8] sm:$0xff]
    %v416 = vld [vmem:[%s1 + $0xbd0] sm:$0xff]
    %v417 = vld [vmem:[%s1 + $0xbd8] sm:$0xff]
    %v418 = vld [vmem:[%s1 + $0xbe0] sm:$0xff]
    %v419 = vld [vmem:[%s1 + $0xbe8] sm:$0xff]
    %v420 = vld [vmem:[%s1 + $0xbf0] sm:$0xff]
    %v421 = vld [vmem:[%s1 + $0xbf8] sm:$0xff]
    %v422 = vld [vmem:[%s1 + $0xc00] sm:$0xff]
    %v423 = vld [vmem:[%s1 + $0xc08] sm:$0xff]
    %v424 = vld [vmem:[%s1 + $0xc10] sm:$0xff]
    %v425 = vld [vmem:[%s1 + $0xc18] sm:$0xff]
    %v426 = vld [vmem:[%s1 + $0xc20] sm:$0xff]
    %v427 = vld [vmem:[%s1 + $0xc28] sm:$0xff]
    %v428 = vld [vmem:[%s1 + $0xc30] sm:$0xff]
    %v429 = vld [vmem:[%s1 + $0xc38] sm:$0xff]
    %v430 = vld [vmem:[%s1 + $0xc40] sm:$0xff]
    %v431 = vld [vmem:[%s1 + $0xc48] sm:$0xff]
    %v432 = vld [vmem:[%s1 + $0xc50] sm:$0xff]
    %v433 = vld [vmem:[%s1 + $0xc58] sm:$0xff]
    %v434 = vld [vmem:[%s1 + $0xc60] sm:$0xff]
    %v435 = vld [vmem:[%s1 + $0xc68] sm:$0xff]
    %v436 = vld [vmem:[%s1 + $0xc70] sm:$0xff]
    %v437 = vld [vmem:[%s1 + $0xc78] sm:$0xff]
    %v438 = vld [vmem:[%s1 + $0xc80] sm:$0xff]
    %v439 = vld [vmem:[%s1 + $0xc88] sm:$0xff]
    %v440 = vld [vmem:[%s1 + $0xc90] sm:$0xff]
    %v441 = vld [vmem:[%s1 + $0xc98] sm:$0xff]
    %v442 = vld [vmem:[%s1 + $0xca0] sm:$0xff]
    %v443 = vld [vmem:[%s1 + $0xca8] sm:$0xff]
    %v444 = vld [vmem:[%s1 + $0xcb0] sm:$0xff]
    %v445 = vld [vmem:[%s1 + $0xcb8] sm:$0xff]
    %v446 = vld [vmem:[%s1 + $0xcc0] sm:$0xff]
    %v447 = vld [vmem:[%s1 + $0xcc8] sm:$0xff]
    %v448 = vld [vmem:[%s1 + $0xcd0] sm:$0xff]
    %v449 = vld [vmem:[%s1 + $0xcd8] sm:$0xff]
    %v450 = vld [vmem:[%s1 + $0xce0] sm:$0xff]
    %v451 = vld [vmem:[%s1 + $0xce8] sm:$0xff]
    %v452 = vld [vmem:[%s1 + $0xcf0] sm:$0xff]
    %v453 = vld [vmem:[%s1 + $0xcf8] sm:$0xff]
    %v454 = vld [vmem:[%s1 + $0xd00] sm:$0xff]
    %v455 = vld [vmem:[%s1 + $0xd08] sm:$0xff]
    %v456 = vld [vmem:[%s1 + $0xd10] sm:$0xff]
    %v457 = vld [vmem:[%s1 + $0xd18] sm:$0xff]
    %v458 = vld [vmem:[%s1 + $0xd20] sm:$0xff]
    %v459 = vld [vmem:[%s1 + $0xd28] sm:$0xff]
    %v460 = vld [vmem:[%s1 + $0xd30] sm:$0xff]
    %v461 = vld [vmem:[%s1 + $0xd38] sm:$0xff]
    %v462 = vld [vmem:[%s1 + $0xd40] sm:$0xff]
    %v463 = vld [vmem:[%s1 + $0xd48] sm:$0xff]
    %v464 = vld [vmem:[%s1 + $0xd50] sm:$0xff]
    %v465 = vld [vmem:[%s1 + $0xd58] sm:$0xff]
    %v466 = vld [vmem:[%s1 + $0xd60] sm:$0xff]
    %v467 = vld [vmem:[%s1 + $0xd68] sm:$0xff]
    %v468 = vld [vmem:[%s1 + $0xd70] sm:$0xff]
    %v469 = vld [vmem:[%s1 + $0xd78] sm:$0xff]
    %v470 = vld [vmem:[%s1 + $0xd80] sm:$0xff]
    %v471 = vld [vmem:[%s1 + $0xd88] sm:$0xff]
    %v472 = vld [vmem:[%s1 + $0xd90] sm:$0xff]
    %v473 = vld [vmem:[%s1 + $0xd98] sm:$0xff]
    %v474 = vld [vmem:[%s1 + $0xda0] sm:$0xff]
    %v475 = vld [vmem:[%s1 + $0xda8] sm:$0xff]
    %v476 = vld [vmem:[%s1 + $0xdb0] sm:$0xff]
    %v477 = vld [vmem:[%s1 + $0xdb8] sm:$0xff]
    %v478 = vld [vmem:[%s1 + $0xdc0] sm:$0xff]
    %v479 = vld [vmem:[%s1 + $0xdc8] sm:$0xff]
    %v480 = vld [vmem:[%s1 + $0xdd0] sm:$0xff]
    %v481 = vld [vmem:[%s1 + $0xdd8] sm:$0xff]
    %v482 = vld [vmem:[%s1 + $0xde0] sm:$0xff]
    %v483 = vld [vmem:[%s1 + $0xde8] sm:$0xff]
    %v484 = vld [vmem:[%s1 + $0xdf0] sm:$0xff]
    %v485 = vld [vmem:[%s1 + $0xdf8] sm:$0xff]
    %v486 = vld [vmem:[%s1 + $0xe00] sm:$0xff]
    %v487 = vld [vmem:[%s1 + $0xe08] sm:$0xff]
    %v488 = vld [vmem:[%s1 + $0xe10] sm:$0xff]
    %v489 = vld [vmem:[%s1 + $0xe18] sm:$0xff]
    %v490 = vld [vmem:[%s1 + $0xe20] sm:$0xff]
    %v491 = vld [vmem:[%s1 + $0xe28] sm:$0xff]
    %v492 = vld [vmem:[%s1 + $0xe30] sm:$0xff]
    %v493 = vld [vmem:[%s1 + $0xe38] sm:$0xff]
    %v494 = vld [vmem:[%s1 + $0xe40] sm:$0xff]
    %v495 = vld [vmem:[%s1 + $0xe48] sm:$0xff]
    %v496 = vld [vmem:[%s1 + $0xe50] sm:$0xff]
    %v497 = vld [vmem:[%s1 + $0xe58] sm:$0xff]
    %v498 = vld [vmem:[%s1 + $0xe60] sm:$0xff]
    %v499 = vld [vmem:[%s1 + $0xe68] sm:$0xff]
    %v500 = vld [vmem:[%s1 + $0xe70] sm:$0xff]
    %v501 = vld [vmem:[%s1 + $0xe78] sm:$0xff]
    %v502 = vld [vmem:[%s1 + $0xe80] sm:$0xff]
    %v503 = vld [vmem:[%s1 + $0xe88] sm:$0xff]
    %v504 = vld [vmem:[%s1 + $0xe90] sm:$0xff]
    %v505 = vld [vmem:[%s1 + $0xe98] sm:$0xff]
    %v506 = vld [vmem:[%s1 + $0xea0] sm:$0xff]
    %v507 = vld [vmem:[%s1 + $0xea8] sm:$0xff]
    %v508 = vld [vmem:[%s1 + $0xeb0] sm:$0xff]
    %v509 = vld [vmem:[%s1 + $0xeb8] sm:$0xff]
    %v510 = vld [vmem:[%s1 + $0xec0] sm:$0xff]
    %v511 = vld [vmem:[%s1 + $0xec8] sm:$0xff]
    %v512 = vld [vmem:[%s1 + $0xed0] sm:$0xff]
    %v513 = vld [vmem:[%s1 + $0xed8] sm:$0xff]
    %v514 = vld [vmem:[%s1 + $0xee0] sm:$0xff]
    %v515 = vld [vmem:[%s1 + $0xee8] sm:$0xff]
    %v516 = vld [vmem:[%s1 + $0xef0] sm:$0xff]
    %v517 = vld [vmem:[%s1 + $0xef8] sm:$0xff]
    %v518 = vld [vmem:[%s1 + $0xf00] sm:$0xff]
    %v519 = vld [vmem:[%s1 + $0xf08] sm:$0xff]
    %v520 = vld [vmem:[%s1 + $0xf10] sm:$0xff]
    %v521 = vld [vmem:[%s1 + $0xf18] sm:$0xff]
    %v522 = vld [vmem:[%s1 + $0xf20] sm:$0xff]
    %v523 = vld [vmem:[%s1 + $0xf28] sm:$0xff]
    %v524 = vld [vmem:[%s1 + $0xf30] sm:$0xff]
    %v525 = vld [vmem:[%s1 + $0xf38] sm:$0xff]
    %v526 = vld [vmem:[%s1 + $0xf40] sm:$0xff]
    %v527 = vld [vmem:[%s1 + $0xf48] sm:$0xff]
    %v528 = vld [vmem:[%s1 + $0xf50] sm:$0xff]
    %v529 = vld [vmem:[%s1 + $0xf58] sm:$0xff]
    %v530 = vld [vmem:[%s1 + $0xf60] sm:$0xff]
    %v531 = vld [vmem:[%s1 + $0xf68] sm:$0xff]
    %v532 = vld [vmem:[%s1 + $0xf70] sm:$0xff]
    %v533 = vld [vmem:[%s1 + $0xf78] sm:$0xff]
    %v534 = vld [vmem:[%s1 + $0xf80] sm:$0xff]
    %v535 = vld [vmem:[%s1 + $0xf88] sm:$0xff]
    %v536 = vld [vmem:[%s1 + $0xf90] sm:$0xff]
    %v537 = vld [vmem:[%s1 + $0xf98] sm:$0xff]
    %v538 = vld [vmem:[%s1 + $0xfa0] sm:$0xff]
    %v539 = vld [vmem:[%s1 + $0xfa8] sm:$0xff]
    %v540 = vld [vmem:[%s1 + $0xfb0] sm:$0xff]
    %v541 = vld [vmem:[%s1 + $0xfb8] sm:$0xff]
    %v542 = vld [vmem:[%s1 + $0xfc0] sm:$0xff]
    %v543 = vld [vmem:[%s1 + $0xfc8] sm:$0xff]
    %v544 = vld [vmem:[%s1 + $0xfd0] sm:$0xff]
    %v545 = vld [vmem:[%s1 + $0xfd8] sm:$0xff]
    %v546 = vld [vmem:[%s1 + $0xfe0] sm:$0xff]
    %v547 = vld [vmem:[%s1 + $0xfe8] sm:$0xff]
    %v548 = vld [vmem:[%s1 + $0xff0] sm:$0xff]
    %v549 = vld [vmem:[%s1 + $0xff8] sm:$0xff]
    %v550 = vld [vmem:[%s1 + $0x1000] sm:$0xff]
    %v551 = vld [vmem:[%s1 + $0x1008] sm:$0xff]
    %v552 = vld [vmem:[%s1 + $0x1010] sm:$0xff]
    %v553 = vld [vmem:[%s1 + $0x1018] sm:$0xff]
    %v554 = vld [vmem:[%s1 + $0x1020] sm:$0xff]
    %v555 = vld [vmem:[%s1 + $0x1028] sm:$0xff]
    %v556 = vld [vmem:[%s1 + $0x1030] sm:$0xff]
    %v557 = vld [vmem:[%s1 + $0x1038] sm:$0xff]
    %v558 = vld [vmem:[%s1 + $0x1040] sm:$0xff]
    %v559 = vld [vmem:[%s1 + $0x1048] sm:$0xff]
    %v560 = vld [vmem:[%s1 + $0x1050] sm:$0xff]
    %v561 = vld [vmem:[%s1 + $0x1058] sm:$0xff]
    %v562 = vld [vmem:[%s1 + $0x1060] sm:$0xff]
    %v563 = vld [vmem:[%s1 + $0x1068] sm:$0xff]
    %v564 = vld [vmem:[%s1 + $0x1070] sm:$0xff]
    %v565 = vld [vmem:[%s1 + $0x1078] sm:$0xff]
    %v566 = vld [vmem:[%s1 + $0x1080] sm:$0xff]
    %v567 = vld [vmem:[%s1 + $0x1088] sm:$0xff]
    %v568 = vld [vmem:[%s1 + $0x1090] sm:$0xff]
    %v569 = vld [vmem:[%s1 + $0x1098] sm:$0xff]
    %v570 = vld [vmem:[%s1 + $0x10a0] sm:$0xff]
    %v571 = vld [vmem:[%s1 + $0x10a8] sm:$0xff]
    %v572 = vld [vmem:[%s1 + $0x10b0] sm:$0xff]
    %v573 = vld [vmem:[%s1 + $0x10b8] sm:$0xff]
    %v574 = vld [vmem:[%s1 + $0x10c0] sm:$0xff]
    %v575 = vld [vmem:[%s1 + $0x10c8] sm:$0xff]
    %v576 = vld [vmem:[%s1 + $0x10d0] sm:$0xff]
    %v577 = vld [vmem:[%s1 + $0x10d8] sm:$0xff]
    %v578 = vld [vmem:[%s1 + $0x10e0] sm:$0xff]
    %v579 = vld [vmem:[%s1 + $0x10e8] sm:$0xff]
    %v580 = vld [vmem:[%s1 + $0x10f0] sm:$0xff]
    %v581 = vld [vmem:[%s1 + $0x10f8] sm:$0xff]
    %v582 = vld [vmem:[%s1 + $0x1100] sm:$0xff]
    %v583 = vld [vmem:[%s1 + $0x1108] sm:$0xff]
    %v584 = vld [vmem:[%s1 + $0x1110] sm:$0xff]
    %v585 = vld [vmem:[%s1 + $0x1118] sm:$0xff]
    %v586 = vld [vmem:[%s1 + $0x1120] sm:$0xff]
    %v587 = vld [vmem:[%s1 + $0x1128] sm:$0xff]
    %v588 = vld [vmem:[%s1 + $0x1130] sm:$0xff]
    %v589 = vld [vmem:[%s1 + $0x1138] sm:$0xff]
    %v590 = vld [vmem:[%s1 + $0x1140] sm:$0xff]
    %v591 = vld [vmem:[%s1 + $0x1148] sm:$0xff]
    %v592 = vld [vmem:[%s1 + $0x1150] sm:$0xff]
    %v593 = vld [vmem:[%s1 + $0x1158] sm:$0xff]
    %v594 = vld [vmem:[%s1 + $0x1160] sm:$0xff]
    %v595 = vld [vmem:[%s1 + $0x1168] sm:$0xff]
    %v596 = vld [vmem:[%s1 + $0x1170] sm:$0xff]
    %v597 = vld [vmem:[%s1 + $0x1178] sm:$0xff]
    %v598 = vld [vmem:[%s1 + $0x1180] sm:$0xff]
    %v599 = vld [vmem:[%s1 + $0x1188] sm:$0xff]
    %v600 = vld [vmem:[%s1 + $0x1190] sm:$0xff]
    %v601 = vld [vmem:[%s1 + $0x1198] sm:$0xff]
    %v602 = vld [vmem:[%s1 + $0x11a0] sm:$0xff]
    %v603 = vld [vmem:[%s1 + $0x11a8] sm:$0xff]
    %v604 = vld [vmem:[%s1 + $0x11b0] sm:$0xff]
    %v605 = vld [vmem:[%s1 + $0x11b8] sm:$0xff]
    %v606 = vld [vmem:[%s1 + $0x11c0] sm:$0xff]
    %v607 = vld [vmem:[%s1 + $0x11c8] sm:$0xff]
    %v608 = vld [vmem:[%s1 + $0x11d0] sm:$0xff]
    %v609 = vld [vmem:[%s1 + $0x11d8] sm:$0xff]
    %v610 = vld [vmem:[%s1 + $0x11e0] sm:$0xff]
    %v611 = vld [vmem:[%s1 + $0x11e8] sm:$0xff]
    %v612 = vld [vmem:[%s1 + $0x11f0] sm:$0xff]
    %v613 = vld [vmem:[%s1 + $0x11f8] sm:$0xff]
    %v614 = vld [vmem:[%s1 + $0x1200] sm:$0xff]
    %v615 = vld [vmem:[%s1 + $0x1208] sm:$0xff]
    %v616 = vld [vmem:[%s1 + $0x1210] sm:$0xff]
    %v617 = vld [vmem:[%s1 + $0x1218] sm:$0xff]
    %v618 = vld [vmem:[%s1 + $0x1220] sm:$0xff]
    %v619 = vld [vmem:[%s1 + $0x1228] sm:$0xff]
    %v620 = vld [vmem:[%s1 + $0x1230] sm:$0xff]
    %v621 = vld [vmem:[%s1 + $0x1238] sm:$0xff]
    %v622 = vld [vmem:[%s1 + $0x1240] sm:$0xff]
    %v623 = vld [vmem:[%s1 + $0x1248] sm:$0xff]
    %v624 = vld [vmem:[%s1 + $0x1250] sm:$0xff]
    %v625 = vld [vmem:[%s1 + $0x1258] sm:$0xff]
    %v626 = vld [vmem:[%s1 + $0x1260] sm:$0xff]
    %v627 = vld [vmem:[%s1 + $0x1268] sm:$0xff]
    %v628 = vld [vmem:[%s1 + $0x1270] sm:$0xff]
    %v629 = vld [vmem:[%s1 + $0x1278] sm:$0xff]
    %v630 = vld [vmem:[%s1 + $0x1280] sm:$0xff]
    %v631 = vld [vmem:[%s1 + $0x1288] sm:$0xff]
    %v632 = vld [vmem:[%s1 + $0x1290] sm:$0xff]
    %v633 = vld [vmem:[%s1 + $0x1298] sm:$0xff]
    %v634 = vld [vmem:[%s1 + $0x12a0] sm:$0xff]
    %v635 = vld [vmem:[%s1 + $0x12a8] sm:$0xff]
    %v636 = vld [vmem:[%s1 + $0x12b0] sm:$0xff]
    %v637 = vld [vmem:[%s1 + $0x12b8] sm:$0xff]
    %v638 = vld [vmem:[%s1 + $0x12c0] sm:$0xff]
    %v639 = vld [vmem:[%s1 + $0x12c8] sm:$0xff]
    %v640 = vld [vmem:[%s1 + $0x12d0] sm:$0xff]
    %v641 = vld [vmem:[%s1 + $0x12d8] sm:$0xff]
    %v642 = vld [vmem:[%s1 + $0x12e0] sm:$0xff]
    %v643 = vld [vmem:[%s1 + $0x12e8] sm:$0xff]
    %v644 = vld [vmem:[%s1 + $0x12f0] sm:$0xff]
    %v645 = vld [vmem:[%s1 + $0x12f8] sm:$0xff]
    %v646 = vld [vmem:[%s1 + $0x1300] sm:$0xff]
    %v647 = vld [vmem:[%s1 + $0x1308] sm:$0xff]
    %v648 = vld [vmem:[%s1 + $0x1310] sm:$0xff]
    %v649 = vld [vmem:[%s1 + $0x1318] sm:$0xff]
    %v650 = vld [vmem:[%s1 + $0x1320] sm:$0xff]
    %v651 = vld [vmem:[%s1 + $0x1328] sm:$0xff]
    %v652 = vld [vmem:[%s1 + $0x1330] sm:$0xff]
    %v653 = vld [vmem:[%s1 + $0x1338] sm:$0xff]
    %v654 = vld [vmem:[%s1 + $0x1340] sm:$0xff]
    %v655 = vld [vmem:[%s1 + $0x1348] sm:$0xff]
    %v656 = vld [vmem:[%s1 + $0x1350] sm:$0xff]
    %v657 = vld [vmem:[%s1 + $0x1358] sm:$0xff]
    %v658 = vld [vmem:[%s1 + $0x1360] sm:$0xff]
    %v659 = vld [vmem:[%s1 + $0x1368] sm:$0xff]
    %v660 = vld [vmem:[%s1 + $0x1370] sm:$0xff]
    %v661 = vld [vmem:[%s1 + $0x1378] sm:$0xff]
    %v662 = vld [vmem:[%s1 + $0x1380] sm:$0xff]
    %v663 = vld [vmem:[%s1 + $0x1388] sm:$0xff]
    %v664 = vld [vmem:[%s1 + $0x1390] sm:$0xff]
    %v665 = vld [vmem:[%s1 + $0x1398] sm:$0xff]
    %v666 = vld [vmem:[%s1 + $0x13a0] sm:$0xff]
    %v667 = vld [vmem:[%s1 + $0x13a8] sm:$0xff]
    %v668 = vld [vmem:[%s1 + $0x13b0] sm:$0xff]
    %v669 = vld [vmem:[%s1 + $0x13b8] sm:$0xff]
    %v670 = vld [vmem:[%s1 + $0x13c0] sm:$0xff]
    %v671 = vld [vmem:[%s1 + $0x13c8] sm:$0xff]
    %v672 = vld [vmem:[%s1 + $0x13d0] sm:$0xff]
    %v673 = vld [vmem:[%s1 + $0x13d8] sm:$0xff]
    %v674 = vld [vmem:[%s1 + $0x13e0] sm:$0xff]
    %v675 = vld [vmem:[%s1 + $0x13e8] sm:$0xff]
    %v676 = vld [vmem:[%s1 + $0x13f0] sm:$0xff]
    %v677 = vld [vmem:[%s1 + $0x13f8] sm:$0xff]
    %v678 = vld [vmem:[%s1 + $0x1400] sm:$0xff]
    %v679 = vld [vmem:[%s1 + $0x1408] sm:$0xff]
    %v680 = vld [vmem:[%s1 + $0x1410] sm:$0xff]
    %v681 = vld [vmem:[%s1 + $0x1418] sm:$0xff]
    %v682 = vld [vmem:[%s1 + $0x1420] sm:$0xff]
    %v683 = vld [vmem:[%s1 + $0x1428] sm:$0xff]
    %v684 = vld [vmem:[%s1 + $0x1430] sm:$0xff]
    %v685 = vld [vmem:[%s1 + $0x1438] sm:$0xff]
    %v686 = vld [vmem:[%s1 + $0x1440] sm:$0xff]
    %v687 = vld [vmem:[%s1 + $0x1448] sm:$0xff]
    %v688 = vld [vmem:[%s1 + $0x1450] sm:$0xff]
    %v689 = vld [vmem:[%s1 + $0x1458] sm:$0xff]
    %v690 = vld [vmem:[%s1 + $0x1460] sm:$0xff]
    %v691 = vld [vmem:[%s1 + $0x1468] sm:$0xff]
    %v692 = vld [vmem:[%s1 + $0x1470] sm:$0xff]
    %v693 = vld [vmem:[%s1 + $0x1478] sm:$0xff]
    %v694 = vld [vmem:[%s1 + $0x1480] sm:$0xff]
    %v695 = vld [vmem:[%s1 + $0x1488] sm:$0xff]
    %v696 = vld [vmem:[%s1 + $0x1490] sm:$0xff]
    %v697 = vld [vmem:[%s1 + $0x1498] sm:$0xff]
    %v698 = vld [vmem:[%s1 + $0x14a0] sm:$0xff]
    %v699 = vld [vmem:[%s1 + $0x14a8] sm:$0xff]
    %v700 = vld [vmem:[%s1 + $0x14b0] sm:$0xff]
    %v701 = vld [vmem:[%s1 + $0x14b8] sm:$0xff]
    %v702 = vld [vmem:[%s1 + $0x14c0] sm:$0xff]
    %v703 = vld [vmem:[%s1 + $0x14c8] sm:$0xff]
    %v704 = vld [vmem:[%s1 + $0x14d0] sm:$0xff]
    %v705 = vld [vmem:[%s1 + $0x14d8] sm:$0xff]
    %v706 = vld [vmem:[%s1 + $0x14e0] sm:$0xff]
    %v707 = vld [vmem:[%s1 + $0x14e8] sm:$0xff]
    %v708 = vld [vmem:[%s1 + $0x14f0] sm:$0xff]
    %v709 = vld [vmem:[%s1 + $0x14f8] sm:$0xff]
    %v710 = vld [vmem:[%s1 + $0x1500] sm:$0xff]
    %v711 = vld [vmem:[%s1 + $0x1508] sm:$0xff]
    %v712 = vld [vmem:[%s1 + $0x1510] sm:$0xff]
    %v713 = vld [vmem:[%s1 + $0x1518] sm:$0xff]
    %v714 = vld [vmem:[%s1 + $0x1520] sm:$0xff]
    %v715 = vld [vmem:[%s1 + $0x1528] sm:$0xff]
    %v716 = vld [vmem:[%s1 + $0x1530] sm:$0xff]
    %v717 = vld [vmem:[%s1 + $0x1538] sm:$0xff]
    %v718 = vld [vmem:[%s1 + $0x1540] sm:$0xff]
    %v719 = vld [vmem:[%s1 + $0x1548] sm:$0xff]
    %v720 = vld [vmem:[%s1 + $0x1550] sm:$0xff]
    %v721 = vld [vmem:[%s1 + $0x1558] sm:$0xff]
    %v722 = vld [vmem:[%s1 + $0x1560] sm:$0xff]
    %v723 = vld [vmem:[%s1 + $0x1568] sm:$0xff]
    %v724 = vld [vmem:[%s1 + $0x1570] sm:$0xff]
    %v725 = vld [vmem:[%s1 + $0x1578] sm:$0xff]
    %v726 = vld [vmem:[%s1 + $0x1580] sm:$0xff]
    %v727 = vld [vmem:[%s1 + $0x1588] sm:$0xff]
    %v728 = vld [vmem:[%s1 + $0x1590] sm:$0xff]
    %v729 = vld [vmem:[%s1 + $0x1598] sm:$0xff]
    %v730 = vld [vmem:[%s1 + $0x15a0] sm:$0xff]
    %v731 = vld [vmem:[%s1 + $0x15a8] sm:$0xff]
    %v732 = vld [vmem:[%s1 + $0x15b0] sm:$0xff]
    %v733 = vld [vmem:[%s1 + $0x15b8] sm:$0xff]
    %v734 = vld [vmem:[%s1 + $0x15c0] sm:$0xff]
    %v735 = vld [vmem:[%s1 + $0x15c8] sm:$0xff]
    %v736 = vld [vmem:[%s1 + $0x15d0] sm:$0xff]
    %v737 = vld [vmem:[%s1 + $0x15d8] sm:$0xff]
    %v738 = vld [vmem:[%s1 + $0x15e0] sm:$0xff]
    %v739 = vld [vmem:[%s1 + $0x15e8] sm:$0xff]
    %v740 = vld [vmem:[%s1 + $0x15f0] sm:$0xff]
    %v741 = vld [vmem:[%s1 + $0x15f8] sm:$0xff]
    %v742 = vld [vmem:[%s1 + $0x1600] sm:$0xff]
    %v743 = vld [vmem:[%s1 + $0x1608] sm:$0xff]
    %v744 = vld [vmem:[%s1 + $0x1610] sm:$0xff]
    %v745 = vld [vmem:[%s1 + $0x1618] sm:$0xff]
    %v746 = vld [vmem:[%s1 + $0x1620] sm:$0xff]
    %v747 = vld [vmem:[%s1 + $0x1628] sm:$0xff]
    %v748 = vld [vmem:[%s1 + $0x1630] sm:$0xff]
    %v749 = vld [vmem:[%s1 + $0x1638] sm:$0xff]
    %v750 = vld [vmem:[%s1 + $0x1640] sm:$0xff]
    %v751 = vld [vmem:[%s1 + $0x1648] sm:$0xff]
    %v752 = vld [vmem:[%s1 + $0x1650] sm:$0xff]
    %v753 = vld [vmem:[%s1 + $0x1658] sm:$0xff]
    %v754 = vld [vmem:[%s1 + $0x1660] sm:$0xff]
    %v755 = vld [vmem:[%s1 + $0x1668] sm:$0xff]
    %v756 = vld [vmem:[%s1 + $0x1670] sm:$0xff]
    %v757 = vld [vmem:[%s1 + $0x1678] sm:$0xff]
    %v758 = vld [vmem:[%s1 + $0x1680] sm:$0xff]
    %v759 = vld [vmem:[%s1 + $0x1688] sm:$0xff]
    %v760 = vld [vmem:[%s1 + $0x1690] sm:$0xff]
    %v761 = vld [vmem:[%s1 + $0x1698] sm:$0xff]
    %v762 = vld [vmem:[%s1 + $0x16a0] sm:$0xff]
    %v763 = vld [vmem:[%s1 + $0x16a8] sm:$0xff]
    %v764 = vld [vmem:[%s1 + $0x16b0] sm:$0xff]
    %v765 = vld [vmem:[%s1 + $0x16b8] sm:$0xff]
    %v766 = vld [vmem:[%s1 + $0x16c0] sm:$0xff]
    %v767 = vld [vmem:[%s1 + $0x16c8] sm:$0xff]
    %v768 = vld [vmem:[%s1 + $0x16d0] sm:$0xff]
    %v769 = vld [vmem:[%s1 + $0x16d8] sm:$0xff]
    %v770 = vld [vmem:[%s1 + $0x16e0] sm:$0xff]
    %v771 = vld [vmem:[%s1 + $0x16e8] sm:$0xff]
    %v772 = vld [vmem:[%s1 + $0x16f0] sm:$0xff]
    %v773 = vld [vmem:[%s1 + $0x16f8] sm:$0xff]
    %v774 = vld [vmem:[%s1 + $0x1700] sm:$0xff]
    %v775 = vld [vmem:[%s1 + $0x1708] sm:$0xff]
    %v776 = vld [vmem:[%s1 + $0x1710] sm:$0xff]
    %v777 = vld [vmem:[%s1 + $0x1718] sm:$0xff]
    %v778 = vld [vmem:[%s1 + $0x1720] sm:$0xff]
    %v779 = vld [vmem:[%s1 + $0x1728] sm:$0xff]
    %v780 = vld [vmem:[%s1 + $0x1730] sm:$0xff]
    %v781 = vld [vmem:[%s1 + $0x1738] sm:$0xff]
    %v782 = vld [vmem:[%s1 + $0x1740] sm:$0xff]
    %v783 = vld [vmem:[%s1 + $0x1748] sm:$0xff]
    %v784 = vld [vmem:[%s1 + $0x1750] sm:$0xff]
    %v785 = vld [vmem:[%s1 + $0x1758] sm:$0xff]
    %v786 = vld [vmem:[%s1 + $0x1760] sm:$0xff]
    %v787 = vld [vmem:[%s1 + $0x1768] sm:$0xff]
    %v788 = vld [vmem:[%s1 + $0x1770] sm:$0xff]
    %v789 = vld [vmem:[%s1 + $0x1778] sm:$0xff]
    %v790 = vld [vmem:[%s1 + $0x1780] sm:$0xff]
    %v791 = vld [vmem:[%s1 + $0x1788] sm:$0xff]
    %v792 = vld [vmem:[%s1 + $0x1790] sm:$0xff]
    %v793 = vld [vmem:[%s1 + $0x1798] sm:$0xff]
    %v794 = vld [vmem:[%s1 + $0x17a0] sm:$0xff]
    %v795 = vld [vmem:[%s1 + $0x17a8] sm:$0xff]
    %v796 = vld [vmem:[%s1 + $0x17b0] sm:$0xff]
    %v797 = vld [vmem:[%s1 + $0x17b8] sm:$0xff]
    %v798 = vld [vmem:[%s1 + $0x17c0] sm:$0xff]
    %v799 = vld [vmem:[%s1 + $0x17c8] sm:$0xff]
    %v800 = vld [vmem:[%s1 + $0x17d0] sm:$0xff]
    %v801 = vld [vmem:[%s1 + $0x17d8] sm:$0xff]
    %v802 = vld [vmem:[%s1 + $0x17e0] sm:$0xff]
    %v803 = vld [vmem:[%s1 + $0x17e8] sm:$0xff]
    %v804 = vld [vmem:[%s1 + $0x17f0] sm:$0xff]
    %v805 = vld [vmem:[%s1 + $0x17f8] sm:$0xff]
    %v806 = vld [vmem:[%s1 + $0x1800] sm:$0xff]
    %v807 = vld [vmem:[%s1 + $0x1808] sm:$0xff]
    %v808 = vld [vmem:[%s1 + $0x1810] sm:$0xff]
    %v809 = vld [vmem:[%s1 + $0x1818] sm:$0xff]
    %v810 = vld [vmem:[%s1 + $0x1820] sm:$0xff]
    %v811 = vld [vmem:[%s1 + $0x1828] sm:$0xff]
    %v812 = vld [vmem:[%s1 + $0x1830] sm:$0xff]
    %v813 = vld [vmem:[%s1 + $0x1838] sm:$0xff]
    %v814 = vld [vmem:[%s1 + $0x1840] sm:$0xff]
    %v815 = vld [vmem:[%s1 + $0x1848] sm:$0xff]
    %v816 = vld [vmem:[%s1 + $0x1850] sm:$0xff]
    %v817 = vld [vmem:[%s1 + $0x1858] sm:$0xff]
    %v818 = vld [vmem:[%s1 + $0x1860] sm:$0xff]
    %v819 = vld [vmem:[%s1 + $0x1868] sm:$0xff]
    %v820 = vld [vmem:[%s1 + $0x1870] sm:$0xff]
    %v821 = vld [vmem:[%s1 + $0x1878] sm:$0xff]
    %v822 = vld [vmem:[%s2] sm:$0xf]
    %v824 = vlaneseq
    %v825 = vshrl.u32 %v824, 7
    %v826 = vsub.s32 0, %v825
    %v827 = vrot.slane %v822, %v826
    %v828 = vlaneseq
    %v829 = vshrl.u32 %v828, 7
    %v830 = vsub.s32 1, %v829
    %v831 = vrot.slane %v822, %v830
    %v832 = vlaneseq
    %v833 = vshrl.u32 %v832, 7
    %v834 = vsub.s32 2, %v833
    %v835 = vrot.slane %v822, %v834
    %v836 = vlaneseq
    %v837 = vshrl.u32 %v836, 7
    %v838 = vsub.s32 3, %v837
    %v839 = vrot.slane %v822, %v838
    %v860 = vcombine.low %v22, %v26
    %v861 = vcombine.high %v22, %v26
    %v862 = vcombine.low %v30, %v34
    %v863 = vcombine.high %v30, %v34
    %v865 = vunpack.c.l.s4 1966171168
    %v866 = vunpack.c.0.s8 %v865
    %v867 = vlaneseq
    %v868 = vshrl.u32 %v867, 7
    %v869 = vsub.s32 %v866, %v868
    %v870 = vrot.slane %v860, %v869
    %v872 = vunpack.c.l.s4 1966171168
    %v873 = vunpack.c.0.s8 %v872
    %v874 = vlaneseq
    %v875 = vshrl.u32 %v874, 7
    %v876 = vsub.s32 %v873, %v875
    %v877 = vrot.slane %v861, %v876
    %v879 = vunpack.c.l.s4 1966171168
    %v880 = vunpack.c.0.s8 %v879
    %v881 = vlaneseq
    %v882 = vshrl.u32 %v881, 7
    %v883 = vsub.s32 %v880, %v882
    %v884 = vrot.slane %v862, %v883
    %v886 = vunpack.c.l.s4 1966171168
    %v887 = vunpack.c.0.s8 %v886
    %v888 = vlaneseq
    %v889 = vshrl.u32 %v888, 7
    %v890 = vsub.s32 %v887, %v889
    %v891 = vrot.slane %v863, %v890
    %v892 = vcombine.low %v870, %v884
    %v893 = vcombine.high %v870, %v884
    %v894 = vcombine.low %v877, %v891
    %v895 = vcombine.high %v877, %v891
    %v897 = vunpack.c.l.s4 1966171168
    %v898 = vunpack.c.0.s8 %v897
    %v899 = vlaneseq
    %v900 = vshrl.u32 %v899, 7
    %v901 = vsub.s32 %v898, %v900
    %v902 = vrot.slane %v892, %v901
    %v904 = vunpack.c.l.s4 1966171168
    %v905 = vunpack.c.0.s8 %v904
    %v906 = vlaneseq
    %v907 = vshrl.u32 %v906, 7
    %v908 = vsub.s32 %v905, %v907
    %v909 = vrot.slane %v894, %v908
    %v911 = vunpack.c.l.s4 1966171168
    %v912 = vunpack.c.0.s8 %v911
    %v913 = vlaneseq
    %v914 = vshrl.u32 %v913, 7
    %v915 = vsub.s32 %v912, %v914
    %v916 = vrot.slane %v893, %v915
    %v918 = vunpack.c.l.s4 1966171168
    %v919 = vunpack.c.0.s8 %v918
    %v920 = vlaneseq
    %v921 = vshrl.u32 %v920, 7
    %v922 = vsub.s32 %v919, %v921
    %v923 = vrot.slane %v895, %v922
    %v924 = vcombine.high %v902, %v902
    %v925 = vcombine.high %v909, %v909
    %v926 = vcombine.high %v916, %v916
    %v927 = vcombine.high %v923, %v923
    %v928 = vcombine.low %v23, %v27
    %v929 = vcombine.high %v23, %v27
    %v930 = vcombine.low %v31, %v35
    %v931 = vcombine.high %v31, %v35
    %v933 = vunpack.c.l.s4 1966171168
    %v934 = vunpack.c.0.s8 %v933
    %v935 = vlaneseq
    %v936 = vshrl.u32 %v935, 7
    %v937 = vsub.s32 %v934, %v936
    %v938 = vrot.slane %v928, %v937
    %v940 = vunpack.c.l.s4 1966171168
    %v941 = vunpack.c.0.s8 %v940
    %v942 = vlaneseq
    %v943 = vshrl.u32 %v942, 7
    %v944 = vsub.s32 %v941, %v943
    %v945 = vrot.slane %v929, %v944
    %v947 = vunpack.c.l.s4 1966171168
    %v948 = vunpack.c.0.s8 %v947
    %v949 = vlaneseq
    %v950 = vshrl.u32 %v949, 7
    %v951 = vsub.s32 %v948, %v950
    %v952 = vrot.slane %v930, %v951
    %v954 = vunpack.c.l.s4 1966171168
    %v955 = vunpack.c.0.s8 %v954
    %v956 = vlaneseq
    %v957 = vshrl.u32 %v956, 7
    %v958 = vsub.s32 %v955, %v957
    %v959 = vrot.slane %v931, %v958
    %v960 = vcombine.low %v938, %v952
    %v961 = vcombine.high %v938, %v952
    %v962 = vcombine.low %v945, %v959
    %v963 = vcombine.high %v945, %v959
    %v965 = vunpack.c.l.s4 1966171168
    %v966 = vunpack.c.0.s8 %v965
    %v967 = vlaneseq
    %v968 = vshrl.u32 %v967, 7
    %v969 = vsub.s32 %v966, %v968
    %v970 = vrot.slane %v960, %v969
    %v972 = vunpack.c.l.s4 1966171168
    %v973 = vunpack.c.0.s8 %v972
    %v974 = vlaneseq
    %v975 = vshrl.u32 %v974, 7
    %v976 = vsub.s32 %v973, %v975
    %v977 = vrot.slane %v962, %v976
    %v979 = vunpack.c.l.s4 1966171168
    %v980 = vunpack.c.0.s8 %v979
    %v981 = vlaneseq
    %v982 = vshrl.u32 %v981, 7
    %v983 = vsub.s32 %v980, %v982
    %v984 = vrot.slane %v961, %v983
    %v986 = vunpack.c.l.s4 1966171168
    %v987 = vunpack.c.0.s8 %v986
    %v988 = vlaneseq
    %v989 = vshrl.u32 %v988, 7
    %v990 = vsub.s32 %v987, %v989
    %v991 = vrot.slane %v963, %v990
    %v992 = vcombine.high %v970, %v970
    %v993 = vcombine.high %v977, %v977
    %v994 = vcombine.high %v984, %v984
    %v995 = vcombine.high %v991, %v991
    %v996 = vcombine.low %v24, %v28
    %v997 = vcombine.high %v24, %v28
    %v998 = vcombine.low %v32, %v36
    %v999 = vcombine.high %v32, %v36
    %v1001 = vunpack.c.l.s4 1966171168
    %v1002 = vunpack.c.0.s8 %v1001
    %v1003 = vlaneseq
    %v1004 = vshrl.u32 %v1003, 7
    %v1005 = vsub.s32 %v1002, %v1004
    %v1006 = vrot.slane %v996, %v1005
    %v1008 = vunpack.c.l.s4 1966171168
    %v1009 = vunpack.c.0.s8 %v1008
    %v1010 = vlaneseq
    %v1011 = vshrl.u32 %v1010, 7
    %v1012 = vsub.s32 %v1009, %v1011
    %v1013 = vrot.slane %v997, %v1012
    %v1015 = vunpack.c.l.s4 1966171168
    %v1016 = vunpack.c.0.s8 %v1015
    %v1017 = vlaneseq
    %v1018 = vshrl.u32 %v1017, 7
    %v1019 = vsub.s32 %v1016, %v1018
    %v1020 = vrot.slane %v998, %v1019
    %v1022 = vunpack.c.l.s4 1966171168
    %v1023 = vunpack.c.0.s8 %v1022
    %v1024 = vlaneseq
    %v1025 = vshrl.u32 %v1024, 7
    %v1026 = vsub.s32 %v1023, %v1025
    %v1027 = vrot.slane %v999, %v1026
    %v1028 = vcombine.low %v1006, %v1020
    %v1029 = vcombine.high %v1006, %v1020
    %v1030 = vcombine.low %v1013, %v1027
    %v1031 = vcombine.high %v1013, %v1027
    %v1033 = vunpack.c.l.s4 1966171168
    %v1034 = vunpack.c.0.s8 %v1033
    %v1035 = vlaneseq
    %v1036 = vshrl.u32 %v1035, 7
    %v1037 = vsub.s32 %v1034, %v1036
    %v1038 = vrot.slane %v1028, %v1037
    %v1040 = vunpack.c.l.s4 1966171168
    %v1041 = vunpack.c.0.s8 %v1040
    %v1042 = vlaneseq
    %v1043 = vshrl.u32 %v1042, 7
    %v1044 = vsub.s32 %v1041, %v1043
    %v1045 = vrot.slane %v1030, %v1044
    %v1047 = vunpack.c.l.s4 1966171168
    %v1048 = vunpack.c.0.s8 %v1047
    %v1049 = vlaneseq
    %v1050 = vshrl.u32 %v1049, 7
    %v1051 = vsub.s32 %v1048, %v1050
    %v1052 = vrot.slane %v1029, %v1051
    %v1054 = vunpack.c.l.s4 1966171168
    %v1055 = vunpack.c.0.s8 %v1054
    %v1056 = vlaneseq
    %v1057 = vshrl.u32 %v1056, 7
    %v1058 = vsub.s32 %v1055, %v1057
    %v1059 = vrot.slane %v1031, %v1058
    %v1060 = vcombine.high %v1038, %v1038
    %v1061 = vcombine.high %v1045, %v1045
    %v1062 = vcombine.high %v1052, %v1052
    %v1063 = vcombine.high %v1059, %v1059
    %v1064 = vcombine.low %v25, %v29
    %v1065 = vcombine.low %v33, %v37
    %v1067 = vunpack.c.l.s4 1966171168
    %v1068 = vunpack.c.0.s8 %v1067
    %v1069 = vlaneseq
    %v1070 = vshrl.u32 %v1069, 7
    %v1071 = vsub.s32 %v1068, %v1070
    %v1072 = vrot.slane %v1064, %v1071
    %v1074 = vunpack.c.l.s4 1966171168
    %v1075 = vunpack.c.0.s8 %v1074
    %v1076 = vlaneseq
    %v1077 = vshrl.u32 %v1076, 7
    %v1078 = vsub.s32 %v1075, %v1077
    %v1079 = vrot.slane %v1065, %v1078
    %v1080 = vcombine.low %v1072, %v1079
    %v1082 = vunpack.c.l.s4 1966171168
    %v1083 = vunpack.c.0.s8 %v1082
    %v1084 = vlaneseq
    %v1085 = vshrl.u32 %v1084, 7
    %v1086 = vsub.s32 %v1083, %v1085
    %v1087 = vrot.slane %v1080, %v1086
    %v1896 = vunpack.c.l.b16 %v38
    %v1897 = vunpack.c.h.b16 %v38
    %v1898 = vunpack.c.l.b16 %v39
    %v1899 = vunpack.c.h.b16 %v39
    %v1900 = vunpack.c.l.b16 %v40
    %v1901 = vunpack.c.h.b16 %v40
    %v1902 = vunpack.c.l.b16 %v41
    %v1903 = vunpack.c.h.b16 %v41
    %v1904 = vunpack.c.l.b16 %v42
    %v1905 = vunpack.c.h.b16 %v42
    %v1906 = vunpack.c.l.b16 %v43
    %v1907 = vunpack.c.h.b16 %v43
    %v1908 = vunpack.c.l.b16 %v44
    %v1909 = vunpack.c.h.b16 %v44
    %v1910 = vunpack.c.l.b16 %v45
    %v1911 = vunpack.c.h.b16 %v45
    %v1912 = vunpack.c.l.b16 %v46
    %v1913 = vunpack.c.h.b16 %v46
    %v1914 = vunpack.c.l.b16 %v47
    %v1915 = vunpack.c.h.b16 %v47
    %v1916 = vunpack.c.l.b16 %v48
    %v1917 = vunpack.c.h.b16 %v48
    %v1918 = vunpack.c.l.b16 %v49
    %v1919 = vunpack.c.h.b16 %v49
    %v1920 = vunpack.c.l.b16 %v50
    %v1921 = vunpack.c.h.b16 %v50
    %v1922 = vunpack.c.l.b16 %v51
    %v1923 = vunpack.c.h.b16 %v51
    %v1924 = vunpack.c.l.b16 %v52
    %v1925 = vunpack.c.h.b16 %v52
    %v1926 = vunpack.c.l.b16 %v53
    %v1927 = vunpack.c.h.b16 %v53
    %v1928 = vunpack.c.l.b16 %v54
    %v1929 = vunpack.c.h.b16 %v54
    %v1930 = vunpack.c.l.b16 %v55
    %v1931 = vunpack.c.h.b16 %v55
    %v1932 = vunpack.c.l.b16 %v56
    %v1933 = vunpack.c.h.b16 %v56
    %v1934 = vunpack.c.l.b16 %v57
    %v1935 = vunpack.c.h.b16 %v57
    %v1936 = vunpack.c.l.b16 %v58
    %v1937 = vunpack.c.h.b16 %v58
    %v1938 = vunpack.c.l.b16 %v59
    %v1939 = vunpack.c.h.b16 %v59
    %v1940 = vunpack.c.l.b16 %v60
    %v1941 = vunpack.c.h.b16 %v60
    %v1942 = vunpack.c.l.b16 %v61
    %v1943 = vunpack.c.h.b16 %v61
    %v1944 = vunpack.c.l.b16 %v62
    %v1945 = vunpack.c.h.b16 %v62
    %v1946 = vunpack.c.l.b16 %v63
    %v1947 = vunpack.c.h.b16 %v63
    %v1948 = vunpack.c.l.b16 %v64
    %v1949 = vunpack.c.h.b16 %v64
    %v1950 = vunpack.c.l.b16 %v65
    %v1951 = vunpack.c.h.b16 %v65
    %v1952 = vunpack.c.l.b16 %v66
    %v1953 = vunpack.c.h.b16 %v66
    %v1954 = vunpack.c.l.b16 %v67
    %v1955 = vunpack.c.h.b16 %v67
    %v1956 = vunpack.c.l.b16 %v68
    %v1957 = vunpack.c.h.b16 %v68
    %v1958 = vunpack.c.l.b16 %v69
    %v1959 = vunpack.c.h.b16 %v69
    %v1960 = vunpack.c.l.b16 %v70
    %v1961 = vunpack.c.h.b16 %v70
    %v1962 = vunpack.c.l.b16 %v71
    %v1963 = vunpack.c.h.b16 %v71
    %v1964 = vunpack.c.l.b16 %v72
    %v1965 = vunpack.c.h.b16 %v72
    %v1966 = vunpack.c.l.b16 %v73
    %v1967 = vunpack.c.h.b16 %v73
    %v1968 = vunpack.c.l.b16 %v74
    %v1969 = vunpack.c.h.b16 %v74
    %v1970 = vunpack.c.l.b16 %v75
    %v1971 = vunpack.c.h.b16 %v75
    %v1972 = vunpack.c.l.b16 %v76
    %v1973 = vunpack.c.h.b16 %v76
    %v1974 = vunpack.c.l.b16 %v77
    %v1975 = vunpack.c.h.b16 %v77
    %v1976 = vunpack.c.l.b16 %v78
    %v1977 = vunpack.c.h.b16 %v78
    %v1978 = vunpack.c.l.b16 %v79
    %v1979 = vunpack.c.h.b16 %v79
    %v1980 = vunpack.c.l.b16 %v80
    %v1981 = vunpack.c.h.b16 %v80
    %v1982 = vunpack.c.l.b16 %v81
    %v1983 = vunpack.c.h.b16 %v81
    %v1984 = vunpack.c.l.b16 %v82
    %v1985 = vunpack.c.h.b16 %v82
    %v1986 = vunpack.c.l.b16 %v83
    %v1987 = vunpack.c.h.b16 %v83
    %v1988 = vunpack.c.l.b16 %v84
    %v1989 = vunpack.c.h.b16 %v84
    %v1990 = vunpack.c.l.b16 %v85
    %v1991 = vunpack.c.h.b16 %v85
    %v1992 = vunpack.c.l.b16 %v86
    %v1993 = vunpack.c.h.b16 %v86
    %v1994 = vunpack.c.l.b16 %v87
    %v1995 = vunpack.c.h.b16 %v87
    %v1996 = vunpack.c.l.b16 %v88
    %v1997 = vunpack.c.h.b16 %v88
    %v1998 = vunpack.c.l.b16 %v89
    %v1999 = vunpack.c.h.b16 %v89
    %v2000 = vunpack.c.l.b16 %v90
    %v2001 = vunpack.c.h.b16 %v90
    %v2002 = vunpack.c.l.b16 %v91
    %v2003 = vunpack.c.h.b16 %v91
    %v2004 = vunpack.c.l.b16 %v92
    %v2005 = vunpack.c.h.b16 %v92
    %v2006 = vunpack.c.l.b16 %v93
    %v2007 = vunpack.c.h.b16 %v93
    %v2008 = vunpack.c.l.b16 %v94
    %v2009 = vunpack.c.h.b16 %v94
    %v2010 = vunpack.c.l.b16 %v95
    %v2011 = vunpack.c.h.b16 %v95
    %v2012 = vunpack.c.l.b16 %v96
    %v2013 = vunpack.c.h.b16 %v96
    %v2014 = vunpack.c.l.b16 %v97
    %v2015 = vunpack.c.h.b16 %v97
    %v2016 = vunpack.c.l.b16 %v98
    %v2017 = vunpack.c.h.b16 %v98
    %v2018 = vunpack.c.l.b16 %v99
    %v2019 = vunpack.c.h.b16 %v99
    %v2020 = vunpack.c.l.b16 %v100
    %v2021 = vunpack.c.h.b16 %v100
    %v2022 = vunpack.c.l.b16 %v101
    %v2023 = vunpack.c.h.b16 %v101
    %v2024 = vunpack.c.l.b16 %v102
    %v2025 = vunpack.c.h.b16 %v102
    %v2026 = vunpack.c.l.b16 %v103
    %v2027 = vunpack.c.h.b16 %v103
    %v2028 = vunpack.c.l.b16 %v104
    %v2029 = vunpack.c.h.b16 %v104
    %v2030 = vunpack.c.l.b16 %v105
    %v2031 = vunpack.c.h.b16 %v105
    %v2032 = vunpack.c.l.b16 %v106
    %v2033 = vunpack.c.h.b16 %v106
    %v2034 = vunpack.c.l.b16 %v107
    %v2035 = vunpack.c.h.b16 %v107
    %v2036 = vunpack.c.l.b16 %v108
    %v2037 = vunpack.c.h.b16 %v108
    %v2038 = vunpack.c.l.b16 %v109
    %v2039 = vunpack.c.h.b16 %v109
    %v2040 = vunpack.c.l.b16 %v110
    %v2041 = vunpack.c.h.b16 %v110
    %v2042 = vunpack.c.l.b16 %v111
    %v2043 = vunpack.c.h.b16 %v111
    %v2044 = vunpack.c.l.b16 %v112
    %v2045 = vunpack.c.h.b16 %v112
    %v2046 = vunpack.c.l.b16 %v113
    %v2047 = vunpack.c.h.b16 %v113
    %v2048 = vunpack.c.l.b16 %v114
    %v2049 = vunpack.c.h.b16 %v114
    %v2050 = vunpack.c.l.b16 %v115
    %v2051 = vunpack.c.h.b16 %v115
    %v2052 = vunpack.c.l.b16 %v116
    %v2053 = vunpack.c.h.b16 %v116
    %v2054 = vunpack.c.l.b16 %v117
    %v2055 = vunpack.c.h.b16 %v117
    %v2056 = vunpack.c.l.b16 %v118
    %v2057 = vunpack.c.h.b16 %v118
    %v2058 = vunpack.c.l.b16 %v119
    %v2059 = vunpack.c.h.b16 %v119
    %v2060 = vunpack.c.l.b16 %v120
    %v2061 = vunpack.c.h.b16 %v120
    %v2062 = vunpack.c.l.b16 %v121
    %v2063 = vunpack.c.h.b16 %v121
    %v2064 = vunpack.c.l.b16 %v122
    %v2065 = vunpack.c.h.b16 %v122
    %v2066 = vunpack.c.l.b16 %v123
    %v2067 = vunpack.c.h.b16 %v123
    %v2068 = vunpack.c.l.b16 %v124
    %v2069 = vunpack.c.h.b16 %v124
    %v2070 = vunpack.c.l.b16 %v125
    %v2071 = vunpack.c.h.b16 %v125
    %v2072 = vunpack.c.l.b16 %v126
    %v2073 = vunpack.c.h.b16 %v126
    %v2074 = vunpack.c.l.b16 %v127
    %v2075 = vunpack.c.h.b16 %v127
    %v2076 = vunpack.c.l.b16 %v128
    %v2077 = vunpack.c.h.b16 %v128
    %v2078 = vunpack.c.l.b16 %v129
    %v2079 = vunpack.c.h.b16 %v129
    %v2080 = vunpack.c.l.b16 %v130
    %v2081 = vunpack.c.h.b16 %v130
    %v2082 = vunpack.c.l.b16 %v131
    %v2083 = vunpack.c.h.b16 %v131
    %v2084 = vunpack.c.l.b16 %v132
    %v2085 = vunpack.c.h.b16 %v132
    %v2086 = vunpack.c.l.b16 %v133
    %v2087 = vunpack.c.h.b16 %v133
    %v2088 = vunpack.c.l.b16 %v134
    %v2089 = vunpack.c.h.b16 %v134
    %v2090 = vunpack.c.l.b16 %v135
    %v2091 = vunpack.c.h.b16 %v135
    %v2092 = vunpack.c.l.b16 %v136
    %v2093 = vunpack.c.h.b16 %v136
    %v2094 = vunpack.c.l.b16 %v137
    %v2095 = vunpack.c.h.b16 %v137
    %v2096 = vunpack.c.l.b16 %v138
    %v2097 = vunpack.c.h.b16 %v138
    %v2098 = vunpack.c.l.b16 %v139
    %v2099 = vunpack.c.h.b16 %v139
    %v2100 = vunpack.c.l.b16 %v140
    %v2101 = vunpack.c.h.b16 %v140
    %v2102 = vunpack.c.l.b16 %v141
    %v2103 = vunpack.c.h.b16 %v141
    %v2104 = vunpack.c.l.b16 %v142
    %v2105 = vunpack.c.h.b16 %v142
    %v2106 = vunpack.c.l.b16 %v143
    %v2107 = vunpack.c.h.b16 %v143
    %v2108 = vunpack.c.l.b16 %v144
    %v2109 = vunpack.c.h.b16 %v144
    %v2110 = vunpack.c.l.b16 %v145
    %v2111 = vunpack.c.h.b16 %v145
    %v2112 = vunpack.c.l.b16 %v146
    %v2113 = vunpack.c.h.b16 %v146
    %v2114 = vunpack.c.l.b16 %v147
    %v2115 = vunpack.c.h.b16 %v147
    %v2116 = vunpack.c.l.b16 %v148
    %v2117 = vunpack.c.h.b16 %v148
    %v2118 = vunpack.c.l.b16 %v149
    %v2119 = vunpack.c.h.b16 %v149
    %v2120 = vunpack.c.l.b16 %v150
    %v2121 = vunpack.c.h.b16 %v150
    %v2122 = vunpack.c.l.b16 %v151
    %v2123 = vunpack.c.h.b16 %v151
    %v2124 = vunpack.c.l.b16 %v152
    %v2125 = vunpack.c.h.b16 %v152
    %v2126 = vunpack.c.l.b16 %v153
    %v2127 = vunpack.c.h.b16 %v153
    %v2128 = vunpack.c.l.b16 %v154
    %v2129 = vunpack.c.h.b16 %v154
    %v2130 = vunpack.c.l.b16 %v155
    %v2131 = vunpack.c.h.b16 %v155
    %v2132 = vunpack.c.l.b16 %v156
    %v2133 = vunpack.c.h.b16 %v156
    %v2134 = vunpack.c.l.b16 %v157
    %v2135 = vunpack.c.h.b16 %v157
    %v2136 = vunpack.c.l.b16 %v158
    %v2137 = vunpack.c.h.b16 %v158
    %v2138 = vunpack.c.l.b16 %v159
    %v2139 = vunpack.c.h.b16 %v159
    %v2140 = vunpack.c.l.b16 %v160
    %v2141 = vunpack.c.h.b16 %v160
    %v2142 = vunpack.c.l.b16 %v161
    %v2143 = vunpack.c.h.b16 %v161
    %v2144 = vunpack.c.l.b16 %v162
    %v2145 = vunpack.c.h.b16 %v162
    %v2146 = vunpack.c.l.b16 %v163
    %v2147 = vunpack.c.h.b16 %v163
    %v2148 = vunpack.c.l.b16 %v164
    %v2149 = vunpack.c.h.b16 %v164
    %v2150 = vunpack.c.l.b16 %v165
    %v2151 = vunpack.c.h.b16 %v165
    %v2152 = vunpack.c.l.b16 %v166
    %v2153 = vunpack.c.h.b16 %v166
    %v2154 = vunpack.c.l.b16 %v167
    %v2155 = vunpack.c.h.b16 %v167
    %v2156 = vunpack.c.l.b16 %v168
    %v2157 = vunpack.c.h.b16 %v168
    %v2158 = vunpack.c.l.b16 %v169
    %v2159 = vunpack.c.h.b16 %v169
    %v2160 = vunpack.c.l.b16 %v170
    %v2161 = vunpack.c.h.b16 %v170
    %v2162 = vunpack.c.l.b16 %v171
    %v2163 = vunpack.c.h.b16 %v171
    %v2164 = vunpack.c.l.b16 %v172
    %v2165 = vunpack.c.h.b16 %v172
    %v2166 = vunpack.c.l.b16 %v173
    %v2167 = vunpack.c.h.b16 %v173
    %v2168 = vunpack.c.l.b16 %v174
    %v2169 = vunpack.c.h.b16 %v174
    %v2170 = vunpack.c.l.b16 %v175
    %v2171 = vunpack.c.h.b16 %v175
    %v2172 = vunpack.c.l.b16 %v176
    %v2173 = vunpack.c.h.b16 %v176
    %v2174 = vunpack.c.l.b16 %v177
    %v2175 = vunpack.c.h.b16 %v177
    %v2176 = vunpack.c.l.b16 %v178
    %v2177 = vunpack.c.h.b16 %v178
    %v2178 = vunpack.c.l.b16 %v179
    %v2179 = vunpack.c.h.b16 %v179
    %v2180 = vunpack.c.l.b16 %v180
    %v2181 = vunpack.c.h.b16 %v180
    %v2182 = vunpack.c.l.b16 %v181
    %v2183 = vunpack.c.h.b16 %v181
    %v2184 = vunpack.c.l.b16 %v182
    %v2185 = vunpack.c.h.b16 %v182
    %v2186 = vunpack.c.l.b16 %v183
    %v2187 = vunpack.c.h.b16 %v183
    %v2188 = vunpack.c.l.b16 %v184
    %v2189 = vunpack.c.h.b16 %v184
    %v2190 = vunpack.c.l.b16 %v185
    %v2191 = vunpack.c.h.b16 %v185
    %v2192 = vunpack.c.l.b16 %v186
    %v2193 = vunpack.c.h.b16 %v186
    %v2194 = vunpack.c.l.b16 %v187
    %v2195 = vunpack.c.h.b16 %v187
    %v2196 = vunpack.c.l.b16 %v188
    %v2197 = vunpack.c.h.b16 %v188
    %v2198 = vunpack.c.l.b16 %v189
    %v2199 = vunpack.c.h.b16 %v189
    %v2200 = vunpack.c.l.b16 %v190
    %v2201 = vunpack.c.h.b16 %v190
    %v2202 = vunpack.c.l.b16 %v191
    %v2203 = vunpack.c.h.b16 %v191
    %v2204 = vunpack.c.l.b16 %v192
    %v2205 = vunpack.c.h.b16 %v192
    %v2206 = vunpack.c.l.b16 %v193
    %v2207 = vunpack.c.h.b16 %v193
    %v2208 = vunpack.c.l.b16 %v194
    %v2209 = vunpack.c.h.b16 %v194
    %v2210 = vunpack.c.l.b16 %v195
    %v2211 = vunpack.c.h.b16 %v195
    %v2212 = vunpack.c.l.b16 %v196
    %v2213 = vunpack.c.h.b16 %v196
    %v2214 = vunpack.c.l.b16 %v197
    %v2215 = vunpack.c.h.b16 %v197
    %v2216 = vunpack.c.l.b16 %v198
    %v2217 = vunpack.c.h.b16 %v198
    %v2218 = vunpack.c.l.b16 %v199
    %v2219 = vunpack.c.h.b16 %v199
    %v2220 = vunpack.c.l.b16 %v200
    %v2221 = vunpack.c.h.b16 %v200
    %v2222 = vunpack.c.l.b16 %v201
    %v2223 = vunpack.c.h.b16 %v201
    %v2224 = vunpack.c.l.b16 %v202
    %v2225 = vunpack.c.h.b16 %v202
    %v2226 = vunpack.c.l.b16 %v203
    %v2227 = vunpack.c.h.b16 %v203
    %v2228 = vunpack.c.l.b16 %v204
    %v2229 = vunpack.c.h.b16 %v204
    %v2230 = vunpack.c.l.b16 %v205
    %v2231 = vunpack.c.h.b16 %v205
    %v2232 = vunpack.c.l.b16 %v206
    %v2233 = vunpack.c.h.b16 %v206
    %v2234 = vunpack.c.l.b16 %v207
    %v2235 = vunpack.c.h.b16 %v207
    %v2236 = vunpack.c.l.b16 %v208
    %v2237 = vunpack.c.h.b16 %v208
    %v2238 = vunpack.c.l.b16 %v209
    %v2239 = vunpack.c.h.b16 %v209
    %v2240 = vunpack.c.l.b16 %v210
    %v2241 = vunpack.c.h.b16 %v210
    %v2242 = vunpack.c.l.b16 %v211
    %v2243 = vunpack.c.h.b16 %v211
    %v2244 = vunpack.c.l.b16 %v212
    %v2245 = vunpack.c.h.b16 %v212
    %v2246 = vunpack.c.l.b16 %v213
    %v2247 = vunpack.c.h.b16 %v213
    %v2248 = vunpack.c.l.b16 %v214
    %v2249 = vunpack.c.h.b16 %v214
    %v2250 = vunpack.c.l.b16 %v215
    %v2251 = vunpack.c.h.b16 %v215
    %v2252 = vunpack.c.l.b16 %v216
    %v2253 = vunpack.c.h.b16 %v216
    %v2254 = vunpack.c.l.b16 %v217
    %v2255 = vunpack.c.h.b16 %v217
    %v2256 = vunpack.c.l.b16 %v218
    %v2257 = vunpack.c.h.b16 %v218
    %v2258 = vunpack.c.l.b16 %v219
    %v2259 = vunpack.c.h.b16 %v219
    %v2260 = vunpack.c.l.b16 %v220
    %v2261 = vunpack.c.h.b16 %v220
    %v2262 = vunpack.c.l.b16 %v221
    %v2263 = vunpack.c.h.b16 %v221
    %v2264 = vunpack.c.l.b16 %v222
    %v2265 = vunpack.c.h.b16 %v222
    %v2266 = vunpack.c.l.b16 %v223
    %v2267 = vunpack.c.h.b16 %v223
    %v2268 = vunpack.c.l.b16 %v224
    %v2269 = vunpack.c.h.b16 %v224
    %v2270 = vunpack.c.l.b16 %v225
    %v2271 = vunpack.c.h.b16 %v225
    %v2272 = vunpack.c.l.b16 %v226
    %v2273 = vunpack.c.h.b16 %v226
    %v2274 = vunpack.c.l.b16 %v227
    %v2275 = vunpack.c.h.b16 %v227
    %v2276 = vunpack.c.l.b16 %v228
    %v2277 = vunpack.c.h.b16 %v228
    %v2278 = vunpack.c.l.b16 %v229
    %v2279 = vunpack.c.h.b16 %v229
    %v2280 = vunpack.c.l.b16 %v230
    %v2281 = vunpack.c.h.b16 %v230
    %v2282 = vunpack.c.l.b16 %v231
    %v2283 = vunpack.c.h.b16 %v231
    %v2284 = vunpack.c.l.b16 %v232
    %v2285 = vunpack.c.h.b16 %v232
    %v2286 = vunpack.c.l.b16 %v233
    %v2287 = vunpack.c.h.b16 %v233
    %v2288 = vunpack.c.l.b16 %v234
    %v2289 = vunpack.c.h.b16 %v234
    %v2290 = vunpack.c.l.b16 %v235
    %v2291 = vunpack.c.h.b16 %v235
    %v2292 = vunpack.c.l.b16 %v236
    %v2293 = vunpack.c.h.b16 %v236
    %v2294 = vunpack.c.l.b16 %v237
    %v2295 = vunpack.c.h.b16 %v237
    %v2296 = vunpack.c.l.b16 %v238
    %v2297 = vunpack.c.h.b16 %v238
    %v2298 = vunpack.c.l.b16 %v239
    %v2299 = vunpack.c.h.b16 %v239
    %v2300 = vunpack.c.l.b16 %v240
    %v2301 = vunpack.c.h.b16 %v240
    %v2302 = vunpack.c.l.b16 %v241
    %v2303 = vunpack.c.h.b16 %v241
    %v2304 = vunpack.c.l.b16 %v242
    %v2305 = vunpack.c.h.b16 %v242
    %v2306 = vunpack.c.l.b16 %v243
    %v2307 = vunpack.c.h.b16 %v243
    %v2308 = vunpack.c.l.b16 %v244
    %v2309 = vunpack.c.h.b16 %v244
    %v2310 = vunpack.c.l.b16 %v245
    %v2311 = vunpack.c.h.b16 %v245
    %v2312 = vunpack.c.l.b16 %v246
    %v2313 = vunpack.c.h.b16 %v246
    %v2314 = vunpack.c.l.b16 %v247
    %v2315 = vunpack.c.h.b16 %v247
    %v2316 = vunpack.c.l.b16 %v248
    %v2317 = vunpack.c.h.b16 %v248
    %v2318 = vunpack.c.l.b16 %v249
    %v2319 = vunpack.c.h.b16 %v249
    %v2320 = vunpack.c.l.b16 %v250
    %v2321 = vunpack.c.h.b16 %v250
    %v2322 = vunpack.c.l.b16 %v251
    %v2323 = vunpack.c.h.b16 %v251
    %v2324 = vunpack.c.l.b16 %v252
    %v2325 = vunpack.c.h.b16 %v252
    %v2326 = vunpack.c.l.b16 %v253
    %v2327 = vunpack.c.h.b16 %v253
    %v2328 = vunpack.c.l.b16 %v254
    %v2329 = vunpack.c.h.b16 %v254
    %v2330 = vunpack.c.l.b16 %v255
    %v2331 = vunpack.c.h.b16 %v255
    %v2332 = vunpack.c.l.b16 %v256
    %v2333 = vunpack.c.h.b16 %v256
    %v2334 = vunpack.c.l.b16 %v257
    %v2335 = vunpack.c.h.b16 %v257
    %v2336 = vunpack.c.l.b16 %v258
    %v2337 = vunpack.c.h.b16 %v258
    %v2338 = vunpack.c.l.b16 %v259
    %v2339 = vunpack.c.h.b16 %v259
    %v2340 = vunpack.c.l.b16 %v260
    %v2341 = vunpack.c.h.b16 %v260
    %v2342 = vunpack.c.l.b16 %v261
    %v2343 = vunpack.c.h.b16 %v261
    %v2344 = vunpack.c.l.b16 %v262
    %v2345 = vunpack.c.h.b16 %v262
    %v2346 = vunpack.c.l.b16 %v263
    %v2347 = vunpack.c.h.b16 %v263
    %v2348 = vunpack.c.l.b16 %v264
    %v2349 = vunpack.c.h.b16 %v264
    %v2350 = vunpack.c.l.b16 %v265
    %v2351 = vunpack.c.h.b16 %v265
    %v2352 = vunpack.c.l.b16 %v266
    %v2353 = vunpack.c.h.b16 %v266
    %v2354 = vunpack.c.l.b16 %v267
    %v2355 = vunpack.c.h.b16 %v267
    %v2356 = vunpack.c.l.b16 %v268
    %v2357 = vunpack.c.h.b16 %v268
    %v2358 = vunpack.c.l.b16 %v269
    %v2359 = vunpack.c.h.b16 %v269
    %v2360 = vunpack.c.l.b16 %v270
    %v2361 = vunpack.c.h.b16 %v270
    %v2362 = vunpack.c.l.b16 %v271
    %v2363 = vunpack.c.h.b16 %v271
    %v2364 = vunpack.c.l.b16 %v272
    %v2365 = vunpack.c.h.b16 %v272
    %v2366 = vunpack.c.l.b16 %v273
    %v2367 = vunpack.c.h.b16 %v273
    %v2368 = vunpack.c.l.b16 %v274
    %v2369 = vunpack.c.h.b16 %v274
    %v2370 = vunpack.c.l.b16 %v275
    %v2371 = vunpack.c.h.b16 %v275
    %v2372 = vunpack.c.l.b16 %v276
    %v2373 = vunpack.c.h.b16 %v276
    %v2374 = vunpack.c.l.b16 %v277
    %v2375 = vunpack.c.h.b16 %v277
    %v2376 = vunpack.c.l.b16 %v278
    %v2377 = vunpack.c.h.b16 %v278
    %v2378 = vunpack.c.l.b16 %v279
    %v2379 = vunpack.c.h.b16 %v279
    %v2380 = vunpack.c.l.b16 %v280
    %v2381 = vunpack.c.h.b16 %v280
    %v2382 = vunpack.c.l.b16 %v281
    %v2383 = vunpack.c.h.b16 %v281
    %v2384 = vunpack.c.l.b16 %v282
    %v2385 = vunpack.c.h.b16 %v282
    %v2386 = vunpack.c.l.b16 %v283
    %v2387 = vunpack.c.h.b16 %v283
    %v2388 = vunpack.c.l.b16 %v284
    %v2389 = vunpack.c.h.b16 %v284
    %v2390 = vunpack.c.l.b16 %v285
    %v2391 = vunpack.c.h.b16 %v285
    %v2392 = vunpack.c.l.b16 %v286
    %v2393 = vunpack.c.h.b16 %v286
    %v2394 = vunpack.c.l.b16 %v287
    %v2395 = vunpack.c.h.b16 %v287
    %v2396 = vunpack.c.l.b16 %v288
    %v2397 = vunpack.c.h.b16 %v288
    %v2398 = vunpack.c.l.b16 %v289
    %v2399 = vunpack.c.h.b16 %v289
    %v2400 = vunpack.c.l.b16 %v290
    %v2401 = vunpack.c.h.b16 %v290
    %v2402 = vunpack.c.l.b16 %v291
    %v2403 = vunpack.c.h.b16 %v291
    %v2404 = vunpack.c.l.b16 %v292
    %v2405 = vunpack.c.h.b16 %v292
    %v2406 = vunpack.c.l.b16 %v293
    %v2407 = vunpack.c.h.b16 %v293
    %v2408 = vunpack.c.l.b16 %v294
    %v2409 = vunpack.c.h.b16 %v294
    %v2410 = vunpack.c.l.b16 %v295
    %v2411 = vunpack.c.h.b16 %v295
    %v2412 = vunpack.c.l.b16 %v296
    %v2413 = vunpack.c.h.b16 %v296
    %v2414 = vunpack.c.l.b16 %v297
    %v2415 = vunpack.c.h.b16 %v297
    %v2416 = vunpack.c.l.b16 %v298
    %v2417 = vunpack.c.h.b16 %v298
    %v2418 = vunpack.c.l.b16 %v299
    %v2419 = vunpack.c.h.b16 %v299
    %v2420 = vunpack.c.l.b16 %v300
    %v2421 = vunpack.c.h.b16 %v300
    %v2422 = vunpack.c.l.b16 %v301
    %v2423 = vunpack.c.h.b16 %v301
    %v2424 = vunpack.c.l.b16 %v302
    %v2425 = vunpack.c.h.b16 %v302
    %v2426 = vunpack.c.l.b16 %v303
    %v2427 = vunpack.c.h.b16 %v303
    %v2428 = vunpack.c.l.b16 %v304
    %v2429 = vunpack.c.h.b16 %v304
    %v2430 = vunpack.c.l.b16 %v305
    %v2431 = vunpack.c.h.b16 %v305
    %v2432 = vunpack.c.l.b16 %v306
    %v2433 = vunpack.c.h.b16 %v306
    %v2434 = vunpack.c.l.b16 %v307
    %v2435 = vunpack.c.h.b16 %v307
    %v2436 = vunpack.c.l.b16 %v308
    %v2437 = vunpack.c.h.b16 %v308
    %v2438 = vunpack.c.l.b16 %v309
    %v2439 = vunpack.c.h.b16 %v309
    %v2440 = vunpack.c.l.b16 %v310
    %v2441 = vunpack.c.h.b16 %v310
    %v2442 = vunpack.c.l.b16 %v311
    %v2443 = vunpack.c.h.b16 %v311
    %v2444 = vunpack.c.l.b16 %v312
    %v2445 = vunpack.c.h.b16 %v312
    %v2446 = vunpack.c.l.b16 %v313
    %v2447 = vunpack.c.h.b16 %v313
    %v2448 = vunpack.c.l.b16 %v314
    %v2449 = vunpack.c.h.b16 %v314
    %v2450 = vunpack.c.l.b16 %v315
    %v2451 = vunpack.c.h.b16 %v315
    %v2452 = vunpack.c.l.b16 %v316
    %v2453 = vunpack.c.h.b16 %v316
    %v2454 = vunpack.c.l.b16 %v317
    %v2455 = vunpack.c.h.b16 %v317
    %v2456 = vunpack.c.l.b16 %v318
    %v2457 = vunpack.c.h.b16 %v318
    %v2458 = vunpack.c.l.b16 %v319
    %v2459 = vunpack.c.h.b16 %v319
    %v2460 = vunpack.c.l.b16 %v320
    %v2461 = vunpack.c.h.b16 %v320
    %v2462 = vunpack.c.l.b16 %v321
    %v2463 = vunpack.c.h.b16 %v321
    %v2464 = vunpack.c.l.b16 %v322
    %v2465 = vunpack.c.h.b16 %v322
    %v2466 = vunpack.c.l.b16 %v323
    %v2467 = vunpack.c.h.b16 %v323
    %v2468 = vunpack.c.l.b16 %v324
    %v2469 = vunpack.c.h.b16 %v324
    %v2470 = vunpack.c.l.b16 %v325
    %v2471 = vunpack.c.h.b16 %v325
    %v2472 = vunpack.c.l.b16 %v326
    %v2473 = vunpack.c.h.b16 %v326
    %v2474 = vunpack.c.l.b16 %v327
    %v2475 = vunpack.c.h.b16 %v327
    %v2476 = vunpack.c.l.b16 %v328
    %v2477 = vunpack.c.h.b16 %v328
    %v2478 = vunpack.c.l.b16 %v329
    %v2479 = vunpack.c.h.b16 %v329
    %v2480 = vunpack.c.l.b16 %v330
    %v2481 = vunpack.c.h.b16 %v330
    %v2482 = vunpack.c.l.b16 %v331
    %v2483 = vunpack.c.h.b16 %v331
    %v2484 = vunpack.c.l.b16 %v332
    %v2485 = vunpack.c.h.b16 %v332
    %v2486 = vunpack.c.l.b16 %v333
    %v2487 = vunpack.c.h.b16 %v333
    %v2488 = vunpack.c.l.b16 %v334
    %v2489 = vunpack.c.h.b16 %v334
    %v2490 = vunpack.c.l.b16 %v335
    %v2491 = vunpack.c.h.b16 %v335
    %v2492 = vunpack.c.l.b16 %v336
    %v2493 = vunpack.c.h.b16 %v336
    %v2494 = vunpack.c.l.b16 %v337
    %v2495 = vunpack.c.h.b16 %v337
    %v2496 = vunpack.c.l.b16 %v338
    %v2497 = vunpack.c.h.b16 %v338
    %v2498 = vunpack.c.l.b16 %v339
    %v2499 = vunpack.c.h.b16 %v339
    %v2500 = vunpack.c.l.b16 %v340
    %v2501 = vunpack.c.h.b16 %v340
    %v2502 = vunpack.c.l.b16 %v341
    %v2503 = vunpack.c.h.b16 %v341
    %v2504 = vunpack.c.l.b16 %v342
    %v2505 = vunpack.c.h.b16 %v342
    %v2506 = vunpack.c.l.b16 %v343
    %v2507 = vunpack.c.h.b16 %v343
    %v2508 = vunpack.c.l.b16 %v344
    %v2509 = vunpack.c.h.b16 %v344
    %v2510 = vunpack.c.l.b16 %v345
    %v2511 = vunpack.c.h.b16 %v345
    %v2512 = vunpack.c.l.b16 %v346
    %v2513 = vunpack.c.h.b16 %v346
    %v2514 = vunpack.c.l.b16 %v347
    %v2515 = vunpack.c.h.b16 %v347
    %v2516 = vunpack.c.l.b16 %v348
    %v2517 = vunpack.c.h.b16 %v348
    %v2518 = vunpack.c.l.b16 %v349
    %v2519 = vunpack.c.h.b16 %v349
    %v2520 = vunpack.c.l.b16 %v350
    %v2521 = vunpack.c.h.b16 %v350
    %v2522 = vunpack.c.l.b16 %v351
    %v2523 = vunpack.c.h.b16 %v351
    %v2524 = vunpack.c.l.b16 %v352
    %v2525 = vunpack.c.h.b16 %v352
    %v2526 = vunpack.c.l.b16 %v353
    %v2527 = vunpack.c.h.b16 %v353
    %v2528 = vunpack.c.l.b16 %v354
    %v2529 = vunpack.c.h.b16 %v354
    %v2530 = vunpack.c.l.b16 %v355
    %v2531 = vunpack.c.h.b16 %v355
    %v2532 = vunpack.c.l.b16 %v356
    %v2533 = vunpack.c.h.b16 %v356
    %v2534 = vunpack.c.l.b16 %v357
    %v2535 = vunpack.c.h.b16 %v357
    %v2536 = vunpack.c.l.b16 %v358
    %v2537 = vunpack.c.h.b16 %v358
    %v2538 = vunpack.c.l.b16 %v359
    %v2539 = vunpack.c.h.b16 %v359
    %v2540 = vunpack.c.l.b16 %v360
    %v2541 = vunpack.c.h.b16 %v360
    %v2542 = vunpack.c.l.b16 %v361
    %v2543 = vunpack.c.h.b16 %v361
    %v2544 = vunpack.c.l.b16 %v362
    %v2545 = vunpack.c.h.b16 %v362
    %v2546 = vunpack.c.l.b16 %v363
    %v2547 = vunpack.c.h.b16 %v363
    %v2548 = vunpack.c.l.b16 %v364
    %v2549 = vunpack.c.h.b16 %v364
    %v2550 = vunpack.c.l.b16 %v365
    %v2551 = vunpack.c.h.b16 %v365
    %v2552 = vunpack.c.l.b16 %v366
    %v2553 = vunpack.c.h.b16 %v366
    %v2554 = vunpack.c.l.b16 %v367
    %v2555 = vunpack.c.h.b16 %v367
    %v2556 = vunpack.c.l.b16 %v368
    %v2557 = vunpack.c.h.b16 %v368
    %v2558 = vunpack.c.l.b16 %v369
    %v2559 = vunpack.c.h.b16 %v369
    %v2560 = vunpack.c.l.b16 %v370
    %v2561 = vunpack.c.h.b16 %v370
    %v2562 = vunpack.c.l.b16 %v371
    %v2563 = vunpack.c.h.b16 %v371
    %v2564 = vunpack.c.l.b16 %v372
    %v2565 = vunpack.c.h.b16 %v372
    %v2566 = vunpack.c.l.b16 %v373
    %v2567 = vunpack.c.h.b16 %v373
    %v2568 = vunpack.c.l.b16 %v374
    %v2569 = vunpack.c.h.b16 %v374
    %v2570 = vunpack.c.l.b16 %v375
    %v2571 = vunpack.c.h.b16 %v375
    %v2572 = vunpack.c.l.b16 %v376
    %v2573 = vunpack.c.h.b16 %v376
    %v2574 = vunpack.c.l.b16 %v377
    %v2575 = vunpack.c.h.b16 %v377
    %v2576 = vunpack.c.l.b16 %v378
    %v2577 = vunpack.c.h.b16 %v378
    %v2578 = vunpack.c.l.b16 %v379
    %v2579 = vunpack.c.h.b16 %v379
    %v2580 = vunpack.c.l.b16 %v380
    %v2581 = vunpack.c.h.b16 %v380
    %v2582 = vunpack.c.l.b16 %v381
    %v2583 = vunpack.c.h.b16 %v381
    %v2584 = vunpack.c.l.b16 %v382
    %v2585 = vunpack.c.h.b16 %v382
    %v2586 = vunpack.c.l.b16 %v383
    %v2587 = vunpack.c.h.b16 %v383
    %v2588 = vunpack.c.l.b16 %v384
    %v2589 = vunpack.c.h.b16 %v384
    %v2590 = vunpack.c.l.b16 %v385
    %v2591 = vunpack.c.h.b16 %v385
    %v2592 = vunpack.c.l.b16 %v386
    %v2593 = vunpack.c.h.b16 %v386
    %v2594 = vunpack.c.l.b16 %v387
    %v2595 = vunpack.c.h.b16 %v387
    %v2596 = vunpack.c.l.b16 %v388
    %v2597 = vunpack.c.h.b16 %v388
    %v2598 = vunpack.c.l.b16 %v389
    %v2599 = vunpack.c.h.b16 %v389
    %v2600 = vunpack.c.l.b16 %v390
    %v2601 = vunpack.c.h.b16 %v390
    %v2602 = vunpack.c.l.b16 %v391
    %v2603 = vunpack.c.h.b16 %v391
    %v2604 = vunpack.c.l.b16 %v392
    %v2605 = vunpack.c.h.b16 %v392
    %v2606 = vunpack.c.l.b16 %v393
    %v2607 = vunpack.c.h.b16 %v393
    %v2608 = vunpack.c.l.b16 %v394
    %v2609 = vunpack.c.h.b16 %v394
    %v2610 = vunpack.c.l.b16 %v395
    %v2611 = vunpack.c.h.b16 %v395
    %v2612 = vunpack.c.l.b16 %v396
    %v2613 = vunpack.c.h.b16 %v396
    %v2614 = vunpack.c.l.b16 %v397
    %v2615 = vunpack.c.h.b16 %v397
    %v2616 = vunpack.c.l.b16 %v398
    %v2617 = vunpack.c.h.b16 %v398
    %v2618 = vunpack.c.l.b16 %v399
    %v2619 = vunpack.c.h.b16 %v399
    %v2620 = vunpack.c.l.b16 %v400
    %v2621 = vunpack.c.h.b16 %v400
    %v2622 = vunpack.c.l.b16 %v401
    %v2623 = vunpack.c.h.b16 %v401
    %v2624 = vunpack.c.l.b16 %v402
    %v2625 = vunpack.c.h.b16 %v402
    %v2626 = vunpack.c.l.b16 %v403
    %v2627 = vunpack.c.h.b16 %v403
    %v2628 = vunpack.c.l.b16 %v404
    %v2629 = vunpack.c.h.b16 %v404
    %v2630 = vunpack.c.l.b16 %v405
    %v2631 = vunpack.c.h.b16 %v405
    %v2632 = vunpack.c.l.b16 %v406
    %v2633 = vunpack.c.h.b16 %v406
    %v2634 = vunpack.c.l.b16 %v407
    %v2635 = vunpack.c.h.b16 %v407
    %v2636 = vunpack.c.l.b16 %v408
    %v2637 = vunpack.c.h.b16 %v408
    %v2638 = vunpack.c.l.b16 %v409
    %v2639 = vunpack.c.h.b16 %v409
    %v2640 = vunpack.c.l.b16 %v410
    %v2641 = vunpack.c.h.b16 %v410
    %v2642 = vunpack.c.l.b16 %v411
    %v2643 = vunpack.c.h.b16 %v411
    %v2644 = vunpack.c.l.b16 %v412
    %v2645 = vunpack.c.h.b16 %v412
    %v2646 = vunpack.c.l.b16 %v413
    %v2647 = vunpack.c.h.b16 %v413
    %v2648 = vunpack.c.l.b16 %v414
    %v2649 = vunpack.c.h.b16 %v414
    %v2650 = vunpack.c.l.b16 %v415
    %v2651 = vunpack.c.h.b16 %v415
    %v2652 = vunpack.c.l.b16 %v416
    %v2653 = vunpack.c.h.b16 %v416
    %v2654 = vunpack.c.l.b16 %v417
    %v2655 = vunpack.c.h.b16 %v417
    %v2656 = vunpack.c.l.b16 %v418
    %v2657 = vunpack.c.h.b16 %v418
    %v2658 = vunpack.c.l.b16 %v419
    %v2659 = vunpack.c.h.b16 %v419
    %v2660 = vunpack.c.l.b16 %v420
    %v2661 = vunpack.c.h.b16 %v420
    %v2662 = vunpack.c.l.b16 %v421
    %v2663 = vunpack.c.h.b16 %v421
    %v2664 = vunpack.c.l.b16 %v422
    %v2665 = vunpack.c.h.b16 %v422
    %v2666 = vunpack.c.l.b16 %v423
    %v2667 = vunpack.c.h.b16 %v423
    %v2668 = vunpack.c.l.b16 %v424
    %v2669 = vunpack.c.h.b16 %v424
    %v2670 = vunpack.c.l.b16 %v425
    %v2671 = vunpack.c.h.b16 %v425
    %v2672 = vunpack.c.l.b16 %v426
    %v2673 = vunpack.c.h.b16 %v426
    %v2674 = vunpack.c.l.b16 %v427
    %v2675 = vunpack.c.h.b16 %v427
    %v2676 = vunpack.c.l.b16 %v428
    %v2677 = vunpack.c.h.b16 %v428
    %v2678 = vunpack.c.l.b16 %v429
    %v2679 = vunpack.c.h.b16 %v429
    %v2680 = vunpack.c.l.b16 %v430
    %v2681 = vunpack.c.h.b16 %v430
    %v2682 = vunpack.c.l.b16 %v431
    %v2683 = vunpack.c.h.b16 %v431
    %v2684 = vunpack.c.l.b16 %v432
    %v2685 = vunpack.c.h.b16 %v432
    %v2686 = vunpack.c.l.b16 %v433
    %v2687 = vunpack.c.h.b16 %v433
    %v2688 = vunpack.c.l.b16 %v434
    %v2689 = vunpack.c.h.b16 %v434
    %v2690 = vunpack.c.l.b16 %v435
    %v2691 = vunpack.c.h.b16 %v435
    %v2692 = vunpack.c.l.b16 %v436
    %v2693 = vunpack.c.h.b16 %v436
    %v2694 = vunpack.c.l.b16 %v437
    %v2695 = vunpack.c.h.b16 %v437
    %v2696 = vunpack.c.l.b16 %v438
    %v2697 = vunpack.c.h.b16 %v438
    %v2698 = vunpack.c.l.b16 %v439
    %v2699 = vunpack.c.h.b16 %v439
    %v2700 = vunpack.c.l.b16 %v440
    %v2701 = vunpack.c.h.b16 %v440
    %v2702 = vunpack.c.l.b16 %v441
    %v2703 = vunpack.c.h.b16 %v441
    %v2704 = vunpack.c.l.b16 %v442
    %v2705 = vunpack.c.h.b16 %v442
    %v2706 = vunpack.c.l.b16 %v443
    %v2707 = vunpack.c.h.b16 %v443
    %v2708 = vunpack.c.l.b16 %v444
    %v2709 = vunpack.c.h.b16 %v444
    %v2710 = vunpack.c.l.b16 %v445
    %v2711 = vunpack.c.h.b16 %v445
    %v2712 = vunpack.c.l.b16 %v446
    %v2713 = vunpack.c.h.b16 %v446
    %v2714 = vunpack.c.l.b16 %v447
    %v2715 = vunpack.c.h.b16 %v447
    %v2716 = vunpack.c.l.b16 %v448
    %v2717 = vunpack.c.h.b16 %v448
    %v2718 = vunpack.c.l.b16 %v449
    %v2719 = vunpack.c.h.b16 %v449
    %v2720 = vunpack.c.l.b16 %v450
    %v2721 = vunpack.c.h.b16 %v450
    %v2722 = vunpack.c.l.b16 %v451
    %v2723 = vunpack.c.h.b16 %v451
    %v2724 = vunpack.c.l.b16 %v452
    %v2725 = vunpack.c.h.b16 %v452
    %v2726 = vunpack.c.l.b16 %v453
    %v2727 = vunpack.c.h.b16 %v453
    %v2728 = vunpack.c.l.b16 %v454
    %v2729 = vunpack.c.h.b16 %v454
    %v2730 = vunpack.c.l.b16 %v455
    %v2731 = vunpack.c.h.b16 %v455
    %v2732 = vunpack.c.l.b16 %v456
    %v2733 = vunpack.c.h.b16 %v456
    %v2734 = vunpack.c.l.b16 %v457
    %v2735 = vunpack.c.h.b16 %v457
    %v2736 = vunpack.c.l.b16 %v458
    %v2737 = vunpack.c.h.b16 %v458
    %v2738 = vunpack.c.l.b16 %v459
    %v2739 = vunpack.c.h.b16 %v459
    %v2740 = vunpack.c.l.b16 %v460
    %v2741 = vunpack.c.h.b16 %v460
    %v2742 = vunpack.c.l.b16 %v461
    %v2743 = vunpack.c.h.b16 %v461
    %v2744 = vunpack.c.l.b16 %v462
    %v2745 = vunpack.c.h.b16 %v462
    %v2746 = vunpack.c.l.b16 %v463
    %v2747 = vunpack.c.h.b16 %v463
    %v2748 = vunpack.c.l.b16 %v464
    %v2749 = vunpack.c.h.b16 %v464
    %v2750 = vunpack.c.l.b16 %v465
    %v2751 = vunpack.c.h.b16 %v465
    %v2752 = vunpack.c.l.b16 %v466
    %v2753 = vunpack.c.h.b16 %v466
    %v2754 = vunpack.c.l.b16 %v467
    %v2755 = vunpack.c.h.b16 %v467
    %v2756 = vunpack.c.l.b16 %v468
    %v2757 = vunpack.c.h.b16 %v468
    %v2758 = vunpack.c.l.b16 %v469
    %v2759 = vunpack.c.h.b16 %v469
    %v2760 = vunpack.c.l.b16 %v470
    %v2761 = vunpack.c.h.b16 %v470
    %v2762 = vunpack.c.l.b16 %v471
    %v2763 = vunpack.c.h.b16 %v471
    %v2764 = vunpack.c.l.b16 %v472
    %v2765 = vunpack.c.h.b16 %v472
    %v2766 = vunpack.c.l.b16 %v473
    %v2767 = vunpack.c.h.b16 %v473
    %v2768 = vunpack.c.l.b16 %v474
    %v2769 = vunpack.c.h.b16 %v474
    %v2770 = vunpack.c.l.b16 %v475
    %v2771 = vunpack.c.h.b16 %v475
    %v2772 = vunpack.c.l.b16 %v476
    %v2773 = vunpack.c.h.b16 %v476
    %v2774 = vunpack.c.l.b16 %v477
    %v2775 = vunpack.c.h.b16 %v477
    %v2776 = vunpack.c.l.b16 %v478
    %v2777 = vunpack.c.h.b16 %v478
    %v2778 = vunpack.c.l.b16 %v479
    %v2779 = vunpack.c.h.b16 %v479
    %v2780 = vunpack.c.l.b16 %v480
    %v2781 = vunpack.c.h.b16 %v480
    %v2782 = vunpack.c.l.b16 %v481
    %v2783 = vunpack.c.h.b16 %v481
    %v2784 = vunpack.c.l.b16 %v482
    %v2785 = vunpack.c.h.b16 %v482
    %v2786 = vunpack.c.l.b16 %v483
    %v2787 = vunpack.c.h.b16 %v483
    %v2788 = vunpack.c.l.b16 %v484
    %v2789 = vunpack.c.h.b16 %v484
    %v2790 = vunpack.c.l.b16 %v485
    %v2791 = vunpack.c.h.b16 %v485
    %v2792 = vunpack.c.l.b16 %v486
    %v2793 = vunpack.c.h.b16 %v486
    %v2794 = vunpack.c.l.b16 %v487
    %v2795 = vunpack.c.h.b16 %v487
    %v2796 = vunpack.c.l.b16 %v488
    %v2797 = vunpack.c.h.b16 %v488
    %v2798 = vunpack.c.l.b16 %v489
    %v2799 = vunpack.c.h.b16 %v489
    %v2800 = vunpack.c.l.b16 %v490
    %v2801 = vunpack.c.h.b16 %v490
    %v2802 = vunpack.c.l.b16 %v491
    %v2803 = vunpack.c.h.b16 %v491
    %v2804 = vunpack.c.l.b16 %v492
    %v2805 = vunpack.c.h.b16 %v492
    %v2806 = vunpack.c.l.b16 %v493
    %v2807 = vunpack.c.h.b16 %v493
    %v2808 = vunpack.c.l.b16 %v494
    %v2809 = vunpack.c.h.b16 %v494
    %v2810 = vunpack.c.l.b16 %v495
    %v2811 = vunpack.c.h.b16 %v495
    %v2812 = vunpack.c.l.b16 %v496
    %v2813 = vunpack.c.h.b16 %v496
    %v2814 = vunpack.c.l.b16 %v497
    %v2815 = vunpack.c.h.b16 %v497
    %v2816 = vunpack.c.l.b16 %v498
    %v2817 = vunpack.c.h.b16 %v498
    %v2818 = vunpack.c.l.b16 %v499
    %v2819 = vunpack.c.h.b16 %v499
    %v2820 = vunpack.c.l.b16 %v500
    %v2821 = vunpack.c.h.b16 %v500
    %v2822 = vunpack.c.l.b16 %v501
    %v2823 = vunpack.c.h.b16 %v501
    %v2824 = vunpack.c.l.b16 %v502
    %v2825 = vunpack.c.h.b16 %v502
    %v2826 = vunpack.c.l.b16 %v503
    %v2827 = vunpack.c.h.b16 %v503
    %v2828 = vunpack.c.l.b16 %v504
    %v2829 = vunpack.c.h.b16 %v504
    %v2830 = vunpack.c.l.b16 %v505
    %v2831 = vunpack.c.h.b16 %v505
    %v2832 = vunpack.c.l.b16 %v506
    %v2833 = vunpack.c.h.b16 %v506
    %v2834 = vunpack.c.l.b16 %v507
    %v2835 = vunpack.c.h.b16 %v507
    %v2836 = vunpack.c.l.b16 %v508
    %v2837 = vunpack.c.h.b16 %v508
    %v2838 = vunpack.c.l.b16 %v509
    %v2839 = vunpack.c.h.b16 %v509
    %v2840 = vunpack.c.l.b16 %v510
    %v2841 = vunpack.c.h.b16 %v510
    %v2842 = vunpack.c.l.b16 %v511
    %v2843 = vunpack.c.h.b16 %v511
    %v2844 = vunpack.c.l.b16 %v512
    %v2845 = vunpack.c.h.b16 %v512
    %v2846 = vunpack.c.l.b16 %v513
    %v2847 = vunpack.c.h.b16 %v513
    %v2848 = vunpack.c.l.b16 %v514
    %v2849 = vunpack.c.h.b16 %v514
    %v2850 = vunpack.c.l.b16 %v515
    %v2851 = vunpack.c.h.b16 %v515
    %v2852 = vunpack.c.l.b16 %v516
    %v2853 = vunpack.c.h.b16 %v516
    %v2854 = vunpack.c.l.b16 %v517
    %v2855 = vunpack.c.h.b16 %v517
    %v2856 = vunpack.c.l.b16 %v518
    %v2857 = vunpack.c.h.b16 %v518
    %v2858 = vunpack.c.l.b16 %v519
    %v2859 = vunpack.c.h.b16 %v519
    %v2860 = vunpack.c.l.b16 %v520
    %v2861 = vunpack.c.h.b16 %v520
    %v2862 = vunpack.c.l.b16 %v521
    %v2863 = vunpack.c.h.b16 %v521
    %v2864 = vunpack.c.l.b16 %v522
    %v2865 = vunpack.c.h.b16 %v522
    %v2866 = vunpack.c.l.b16 %v523
    %v2867 = vunpack.c.h.b16 %v523
    %v2868 = vunpack.c.l.b16 %v524
    %v2869 = vunpack.c.h.b16 %v524
    %v2870 = vunpack.c.l.b16 %v525
    %v2871 = vunpack.c.h.b16 %v525
    %v2872 = vunpack.c.l.b16 %v526
    %v2873 = vunpack.c.h.b16 %v526
    %v2874 = vunpack.c.l.b16 %v527
    %v2875 = vunpack.c.h.b16 %v527
    %v2876 = vunpack.c.l.b16 %v528
    %v2877 = vunpack.c.h.b16 %v528
    %v2878 = vunpack.c.l.b16 %v529
    %v2879 = vunpack.c.h.b16 %v529
    %v2880 = vunpack.c.l.b16 %v530
    %v2881 = vunpack.c.h.b16 %v530
    %v2882 = vunpack.c.l.b16 %v531
    %v2883 = vunpack.c.h.b16 %v531
    %v2884 = vunpack.c.l.b16 %v532
    %v2885 = vunpack.c.h.b16 %v532
    %v2886 = vunpack.c.l.b16 %v533
    %v2887 = vunpack.c.h.b16 %v533
    %v2888 = vunpack.c.l.b16 %v534
    %v2889 = vunpack.c.h.b16 %v534
    %v2890 = vunpack.c.l.b16 %v535
    %v2891 = vunpack.c.h.b16 %v535
    %v2892 = vunpack.c.l.b16 %v536
    %v2893 = vunpack.c.h.b16 %v536
    %v2894 = vunpack.c.l.b16 %v537
    %v2895 = vunpack.c.h.b16 %v537
    %v2896 = vunpack.c.l.b16 %v538
    %v2897 = vunpack.c.h.b16 %v538
    %v2898 = vunpack.c.l.b16 %v539
    %v2899 = vunpack.c.h.b16 %v539
    %v2900 = vunpack.c.l.b16 %v540
    %v2901 = vunpack.c.h.b16 %v540
    %v2902 = vunpack.c.l.b16 %v541
    %v2903 = vunpack.c.h.b16 %v541
    %v2904 = vunpack.c.l.b16 %v542
    %v2905 = vunpack.c.h.b16 %v542
    %v2906 = vunpack.c.l.b16 %v543
    %v2907 = vunpack.c.h.b16 %v543
    %v2908 = vunpack.c.l.b16 %v544
    %v2909 = vunpack.c.h.b16 %v544
    %v2910 = vunpack.c.l.b16 %v545
    %v2911 = vunpack.c.h.b16 %v545
    %v2912 = vunpack.c.l.b16 %v546
    %v2913 = vunpack.c.h.b16 %v546
    %v2914 = vunpack.c.l.b16 %v547
    %v2915 = vunpack.c.h.b16 %v547
    %v2916 = vunpack.c.l.b16 %v548
    %v2917 = vunpack.c.h.b16 %v548
    %v2918 = vunpack.c.l.b16 %v549
    %v2919 = vunpack.c.h.b16 %v549
    %v2920 = vunpack.c.l.b16 %v550
    %v2921 = vunpack.c.h.b16 %v550
    %v2922 = vunpack.c.l.b16 %v551
    %v2923 = vunpack.c.h.b16 %v551
    %v2924 = vunpack.c.l.b16 %v552
    %v2925 = vunpack.c.h.b16 %v552
    %v2926 = vunpack.c.l.b16 %v553
    %v2927 = vunpack.c.h.b16 %v553
    %v2928 = vunpack.c.l.b16 %v554
    %v2929 = vunpack.c.h.b16 %v554
    %v2930 = vunpack.c.l.b16 %v555
    %v2931 = vunpack.c.h.b16 %v555
    %v2932 = vunpack.c.l.b16 %v556
    %v2933 = vunpack.c.h.b16 %v556
    %v2934 = vunpack.c.l.b16 %v557
    %v2935 = vunpack.c.h.b16 %v557
    %v2936 = vunpack.c.l.b16 %v558
    %v2937 = vunpack.c.h.b16 %v558
    %v2938 = vunpack.c.l.b16 %v559
    %v2939 = vunpack.c.h.b16 %v559
    %v2940 = vunpack.c.l.b16 %v560
    %v2941 = vunpack.c.h.b16 %v560
    %v2942 = vunpack.c.l.b16 %v561
    %v2943 = vunpack.c.h.b16 %v561
    %v2944 = vunpack.c.l.b16 %v562
    %v2945 = vunpack.c.h.b16 %v562
    %v2946 = vunpack.c.l.b16 %v563
    %v2947 = vunpack.c.h.b16 %v563
    %v2948 = vunpack.c.l.b16 %v564
    %v2949 = vunpack.c.h.b16 %v564
    %v2950 = vunpack.c.l.b16 %v565
    %v2951 = vunpack.c.h.b16 %v565
    %v2952 = vunpack.c.l.b16 %v566
    %v2953 = vunpack.c.h.b16 %v566
    %v2954 = vunpack.c.l.b16 %v567
    %v2955 = vunpack.c.h.b16 %v567
    %v2956 = vunpack.c.l.b16 %v568
    %v2957 = vunpack.c.h.b16 %v568
    %v2958 = vunpack.c.l.b16 %v569
    %v2959 = vunpack.c.h.b16 %v569
    %v2960 = vunpack.c.l.b16 %v570
    %v2961 = vunpack.c.h.b16 %v570
    %v2962 = vunpack.c.l.b16 %v571
    %v2963 = vunpack.c.h.b16 %v571
    %v2964 = vunpack.c.l.b16 %v572
    %v2965 = vunpack.c.h.b16 %v572
    %v2966 = vunpack.c.l.b16 %v573
    %v2967 = vunpack.c.h.b16 %v573
    %v2968 = vunpack.c.l.b16 %v574
    %v2969 = vunpack.c.h.b16 %v574
    %v2970 = vunpack.c.l.b16 %v575
    %v2971 = vunpack.c.h.b16 %v575
    %v2972 = vunpack.c.l.b16 %v576
    %v2973 = vunpack.c.h.b16 %v576
    %v2974 = vunpack.c.l.b16 %v577
    %v2975 = vunpack.c.h.b16 %v577
    %v2976 = vunpack.c.l.b16 %v578
    %v2977 = vunpack.c.h.b16 %v578
    %v2978 = vunpack.c.l.b16 %v579
    %v2979 = vunpack.c.h.b16 %v579
    %v2980 = vunpack.c.l.b16 %v580
    %v2981 = vunpack.c.h.b16 %v580
    %v2982 = vunpack.c.l.b16 %v581
    %v2983 = vunpack.c.h.b16 %v581
    %v2984 = vunpack.c.l.b16 %v582
    %v2985 = vunpack.c.h.b16 %v582
    %v2986 = vunpack.c.l.b16 %v583
    %v2987 = vunpack.c.h.b16 %v583
    %v2988 = vunpack.c.l.b16 %v584
    %v2989 = vunpack.c.h.b16 %v584
    %v2990 = vunpack.c.l.b16 %v585
    %v2991 = vunpack.c.h.b16 %v585
    %v2992 = vunpack.c.l.b16 %v586
    %v2993 = vunpack.c.h.b16 %v586
    %v2994 = vunpack.c.l.b16 %v587
    %v2995 = vunpack.c.h.b16 %v587
    %v2996 = vunpack.c.l.b16 %v588
    %v2997 = vunpack.c.h.b16 %v588
    %v2998 = vunpack.c.l.b16 %v589
    %v2999 = vunpack.c.h.b16 %v589
    %v3000 = vunpack.c.l.b16 %v590
    %v3001 = vunpack.c.h.b16 %v590
    %v3002 = vunpack.c.l.b16 %v591
    %v3003 = vunpack.c.h.b16 %v591
    %v3004 = vunpack.c.l.b16 %v592
    %v3005 = vunpack.c.h.b16 %v592
    %v3006 = vunpack.c.l.b16 %v593
    %v3007 = vunpack.c.h.b16 %v593
    %v3008 = vunpack.c.l.b16 %v594
    %v3009 = vunpack.c.h.b16 %v594
    %v3010 = vunpack.c.l.b16 %v595
    %v3011 = vunpack.c.h.b16 %v595
    %v3012 = vunpack.c.l.b16 %v596
    %v3013 = vunpack.c.h.b16 %v596
    %v3014 = vunpack.c.l.b16 %v597
    %v3015 = vunpack.c.h.b16 %v597
    %v3016 = vunpack.c.l.b16 %v598
    %v3017 = vunpack.c.h.b16 %v598
    %v3018 = vunpack.c.l.b16 %v599
    %v3019 = vunpack.c.h.b16 %v599
    %v3020 = vunpack.c.l.b16 %v600
    %v3021 = vunpack.c.h.b16 %v600
    %v3022 = vunpack.c.l.b16 %v601
    %v3023 = vunpack.c.h.b16 %v601
    %v3024 = vunpack.c.l.b16 %v602
    %v3025 = vunpack.c.h.b16 %v602
    %v3026 = vunpack.c.l.b16 %v603
    %v3027 = vunpack.c.h.b16 %v603
    %v3028 = vunpack.c.l.b16 %v604
    %v3029 = vunpack.c.h.b16 %v604
    %v3030 = vunpack.c.l.b16 %v605
    %v3031 = vunpack.c.h.b16 %v605
    %v3032 = vunpack.c.l.b16 %v606
    %v3033 = vunpack.c.h.b16 %v606
    %v3034 = vunpack.c.l.b16 %v607
    %v3035 = vunpack.c.h.b16 %v607
    %v3036 = vunpack.c.l.b16 %v608
    %v3037 = vunpack.c.h.b16 %v608
    %v3038 = vunpack.c.l.b16 %v609
    %v3039 = vunpack.c.h.b16 %v609
    %v3040 = vunpack.c.l.b16 %v610
    %v3041 = vunpack.c.h.b16 %v610
    %v3042 = vunpack.c.l.b16 %v611
    %v3043 = vunpack.c.h.b16 %v611
    %v3044 = vunpack.c.l.b16 %v612
    %v3045 = vunpack.c.h.b16 %v612
    %v3046 = vunpack.c.l.b16 %v613
    %v3047 = vunpack.c.h.b16 %v613
    %v3048 = vunpack.c.l.b16 %v614
    %v3049 = vunpack.c.h.b16 %v614
    %v3050 = vunpack.c.l.b16 %v615
    %v3051 = vunpack.c.h.b16 %v615
    %v3052 = vunpack.c.l.b16 %v616
    %v3053 = vunpack.c.h.b16 %v616
    %v3054 = vunpack.c.l.b16 %v617
    %v3055 = vunpack.c.h.b16 %v617
    %v3056 = vunpack.c.l.b16 %v618
    %v3057 = vunpack.c.h.b16 %v618
    %v3058 = vunpack.c.l.b16 %v619
    %v3059 = vunpack.c.h.b16 %v619
    %v3060 = vunpack.c.l.b16 %v620
    %v3061 = vunpack.c.h.b16 %v620
    %v3062 = vunpack.c.l.b16 %v621
    %v3063 = vunpack.c.h.b16 %v621
    %v3064 = vunpack.c.l.b16 %v622
    %v3065 = vunpack.c.h.b16 %v622
    %v3066 = vunpack.c.l.b16 %v623
    %v3067 = vunpack.c.h.b16 %v623
    %v3068 = vunpack.c.l.b16 %v624
    %v3069 = vunpack.c.h.b16 %v624
    %v3070 = vunpack.c.l.b16 %v625
    %v3071 = vunpack.c.h.b16 %v625
    %v3072 = vunpack.c.l.b16 %v626
    %v3073 = vunpack.c.h.b16 %v626
    %v3074 = vunpack.c.l.b16 %v627
    %v3075 = vunpack.c.h.b16 %v627
    %v3076 = vunpack.c.l.b16 %v628
    %v3077 = vunpack.c.h.b16 %v628
    %v3078 = vunpack.c.l.b16 %v629
    %v3079 = vunpack.c.h.b16 %v629
    %v3080 = vunpack.c.l.b16 %v630
    %v3081 = vunpack.c.h.b16 %v630
    %v3082 = vunpack.c.l.b16 %v631
    %v3083 = vunpack.c.h.b16 %v631
    %v3084 = vunpack.c.l.b16 %v632
    %v3085 = vunpack.c.h.b16 %v632
    %v3086 = vunpack.c.l.b16 %v633
    %v3087 = vunpack.c.h.b16 %v633
    %v3088 = vunpack.c.l.b16 %v634
    %v3089 = vunpack.c.h.b16 %v634
    %v3090 = vunpack.c.l.b16 %v635
    %v3091 = vunpack.c.h.b16 %v635
    %v3092 = vunpack.c.l.b16 %v636
    %v3093 = vunpack.c.h.b16 %v636
    %v3094 = vunpack.c.l.b16 %v637
    %v3095 = vunpack.c.h.b16 %v637
    %v3096 = vunpack.c.l.b16 %v638
    %v3097 = vunpack.c.h.b16 %v638
    %v3098 = vunpack.c.l.b16 %v639
    %v3099 = vunpack.c.h.b16 %v639
    %v3100 = vunpack.c.l.b16 %v640
    %v3101 = vunpack.c.h.b16 %v640
    %v3102 = vunpack.c.l.b16 %v641
    %v3103 = vunpack.c.h.b16 %v641
    %v3104 = vunpack.c.l.b16 %v642
    %v3105 = vunpack.c.h.b16 %v642
    %v3106 = vunpack.c.l.b16 %v643
    %v3107 = vunpack.c.h.b16 %v643
    %v3108 = vunpack.c.l.b16 %v644
    %v3109 = vunpack.c.h.b16 %v644
    %v3110 = vunpack.c.l.b16 %v645
    %v3111 = vunpack.c.h.b16 %v645
    %v3112 = vunpack.c.l.b16 %v646
    %v3113 = vunpack.c.h.b16 %v646
    %v3114 = vunpack.c.l.b16 %v647
    %v3115 = vunpack.c.h.b16 %v647
    %v3116 = vunpack.c.l.b16 %v648
    %v3117 = vunpack.c.h.b16 %v648
    %v3118 = vunpack.c.l.b16 %v649
    %v3119 = vunpack.c.h.b16 %v649
    %v3120 = vunpack.c.l.b16 %v650
    %v3121 = vunpack.c.h.b16 %v650
    %v3122 = vunpack.c.l.b16 %v651
    %v3123 = vunpack.c.h.b16 %v651
    %v3124 = vunpack.c.l.b16 %v652
    %v3125 = vunpack.c.h.b16 %v652
    %v3126 = vunpack.c.l.b16 %v653
    %v3127 = vunpack.c.h.b16 %v653
    %v3128 = vunpack.c.l.b16 %v654
    %v3129 = vunpack.c.h.b16 %v654
    %v3130 = vunpack.c.l.b16 %v655
    %v3131 = vunpack.c.h.b16 %v655
    %v3132 = vunpack.c.l.b16 %v656
    %v3133 = vunpack.c.h.b16 %v656
    %v3134 = vunpack.c.l.b16 %v657
    %v3135 = vunpack.c.h.b16 %v657
    %v3136 = vunpack.c.l.b16 %v658
    %v3137 = vunpack.c.h.b16 %v658
    %v3138 = vunpack.c.l.b16 %v659
    %v3139 = vunpack.c.h.b16 %v659
    %v3140 = vunpack.c.l.b16 %v660
    %v3141 = vunpack.c.h.b16 %v660
    %v3142 = vunpack.c.l.b16 %v661
    %v3143 = vunpack.c.h.b16 %v661
    %v3144 = vunpack.c.l.b16 %v662
    %v3145 = vunpack.c.h.b16 %v662
    %v3146 = vunpack.c.l.b16 %v663
    %v3147 = vunpack.c.h.b16 %v663
    %v3148 = vunpack.c.l.b16 %v664
    %v3149 = vunpack.c.h.b16 %v664
    %v3150 = vunpack.c.l.b16 %v665
    %v3151 = vunpack.c.h.b16 %v665
    %v3152 = vunpack.c.l.b16 %v666
    %v3153 = vunpack.c.h.b16 %v666
    %v3154 = vunpack.c.l.b16 %v667
    %v3155 = vunpack.c.h.b16 %v667
    %v3156 = vunpack.c.l.b16 %v668
    %v3157 = vunpack.c.h.b16 %v668
    %v3158 = vunpack.c.l.b16 %v669
    %v3159 = vunpack.c.h.b16 %v669
    %v3160 = vunpack.c.l.b16 %v670
    %v3161 = vunpack.c.h.b16 %v670
    %v3162 = vunpack.c.l.b16 %v671
    %v3163 = vunpack.c.h.b16 %v671
    %v3164 = vunpack.c.l.b16 %v672
    %v3165 = vunpack.c.h.b16 %v672
    %v3166 = vunpack.c.l.b16 %v673
    %v3167 = vunpack.c.h.b16 %v673
    %v3168 = vunpack.c.l.b16 %v674
    %v3169 = vunpack.c.h.b16 %v674
    %v3170 = vunpack.c.l.b16 %v675
    %v3171 = vunpack.c.h.b16 %v675
    %v3172 = vunpack.c.l.b16 %v676
    %v3173 = vunpack.c.h.b16 %v676
    %v3174 = vunpack.c.l.b16 %v677
    %v3175 = vunpack.c.h.b16 %v677
    %v3176 = vunpack.c.l.b16 %v678
    %v3177 = vunpack.c.h.b16 %v678
    %v3178 = vunpack.c.l.b16 %v679
    %v3179 = vunpack.c.h.b16 %v679
    %v3180 = vunpack.c.l.b16 %v680
    %v3181 = vunpack.c.h.b16 %v680
    %v3182 = vunpack.c.l.b16 %v681
    %v3183 = vunpack.c.h.b16 %v681
    %v3184 = vunpack.c.l.b16 %v682
    %v3185 = vunpack.c.h.b16 %v682
    %v3186 = vunpack.c.l.b16 %v683
    %v3187 = vunpack.c.h.b16 %v683
    %v3188 = vunpack.c.l.b16 %v684
    %v3189 = vunpack.c.h.b16 %v684
    %v3190 = vunpack.c.l.b16 %v685
    %v3191 = vunpack.c.h.b16 %v685
    %v3192 = vunpack.c.l.b16 %v686
    %v3193 = vunpack.c.h.b16 %v686
    %v3194 = vunpack.c.l.b16 %v687
    %v3195 = vunpack.c.h.b16 %v687
    %v3196 = vunpack.c.l.b16 %v688
    %v3197 = vunpack.c.h.b16 %v688
    %v3198 = vunpack.c.l.b16 %v689
    %v3199 = vunpack.c.h.b16 %v689
    %v3200 = vunpack.c.l.b16 %v690
    %v3201 = vunpack.c.h.b16 %v690
    %v3202 = vunpack.c.l.b16 %v691
    %v3203 = vunpack.c.h.b16 %v691
    %v3204 = vunpack.c.l.b16 %v692
    %v3205 = vunpack.c.h.b16 %v692
    %v3206 = vunpack.c.l.b16 %v693
    %v3207 = vunpack.c.h.b16 %v693
    %v3208 = vunpack.c.l.b16 %v694
    %v3209 = vunpack.c.h.b16 %v694
    %v3210 = vunpack.c.l.b16 %v695
    %v3211 = vunpack.c.h.b16 %v695
    %v3212 = vunpack.c.l.b16 %v696
    %v3213 = vunpack.c.h.b16 %v696
    %v3214 = vunpack.c.l.b16 %v697
    %v3215 = vunpack.c.h.b16 %v697
    %v3216 = vunpack.c.l.b16 %v698
    %v3217 = vunpack.c.h.b16 %v698
    %v3218 = vunpack.c.l.b16 %v699
    %v3219 = vunpack.c.h.b16 %v699
    %v3220 = vunpack.c.l.b16 %v700
    %v3221 = vunpack.c.h.b16 %v700
    %v3222 = vunpack.c.l.b16 %v701
    %v3223 = vunpack.c.h.b16 %v701
    %v3224 = vunpack.c.l.b16 %v702
    %v3225 = vunpack.c.h.b16 %v702
    %v3226 = vunpack.c.l.b16 %v703
    %v3227 = vunpack.c.h.b16 %v703
    %v3228 = vunpack.c.l.b16 %v704
    %v3229 = vunpack.c.h.b16 %v704
    %v3230 = vunpack.c.l.b16 %v705
    %v3231 = vunpack.c.h.b16 %v705
    %v3232 = vunpack.c.l.b16 %v706
    %v3233 = vunpack.c.h.b16 %v706
    %v3234 = vunpack.c.l.b16 %v707
    %v3235 = vunpack.c.h.b16 %v707
    %v3236 = vunpack.c.l.b16 %v708
    %v3237 = vunpack.c.h.b16 %v708
    %v3238 = vunpack.c.l.b16 %v709
    %v3239 = vunpack.c.h.b16 %v709
    %v3240 = vunpack.c.l.b16 %v710
    %v3241 = vunpack.c.h.b16 %v710
    %v3242 = vunpack.c.l.b16 %v711
    %v3243 = vunpack.c.h.b16 %v711
    %v3244 = vunpack.c.l.b16 %v712
    %v3245 = vunpack.c.h.b16 %v712
    %v3246 = vunpack.c.l.b16 %v713
    %v3247 = vunpack.c.h.b16 %v713
    %v3248 = vunpack.c.l.b16 %v714
    %v3249 = vunpack.c.h.b16 %v714
    %v3250 = vunpack.c.l.b16 %v715
    %v3251 = vunpack.c.h.b16 %v715
    %v3252 = vunpack.c.l.b16 %v716
    %v3253 = vunpack.c.h.b16 %v716
    %v3254 = vunpack.c.l.b16 %v717
    %v3255 = vunpack.c.h.b16 %v717
    %v3256 = vunpack.c.l.b16 %v718
    %v3257 = vunpack.c.h.b16 %v718
    %v3258 = vunpack.c.l.b16 %v719
    %v3259 = vunpack.c.h.b16 %v719
    %v3260 = vunpack.c.l.b16 %v720
    %v3261 = vunpack.c.h.b16 %v720
    %v3262 = vunpack.c.l.b16 %v721
    %v3263 = vunpack.c.h.b16 %v721
    %v3264 = vunpack.c.l.b16 %v722
    %v3265 = vunpack.c.h.b16 %v722
    %v3266 = vunpack.c.l.b16 %v723
    %v3267 = vunpack.c.h.b16 %v723
    %v3268 = vunpack.c.l.b16 %v724
    %v3269 = vunpack.c.h.b16 %v724
    %v3270 = vunpack.c.l.b16 %v725
    %v3271 = vunpack.c.h.b16 %v725
    %v3272 = vunpack.c.l.b16 %v726
    %v3273 = vunpack.c.h.b16 %v726
    %v3274 = vunpack.c.l.b16 %v727
    %v3275 = vunpack.c.h.b16 %v727
    %v3276 = vunpack.c.l.b16 %v728
    %v3277 = vunpack.c.h.b16 %v728
    %v3278 = vunpack.c.l.b16 %v729
    %v3279 = vunpack.c.h.b16 %v729
    %v3280 = vunpack.c.l.b16 %v730
    %v3281 = vunpack.c.h.b16 %v730
    %v3282 = vunpack.c.l.b16 %v731
    %v3283 = vunpack.c.h.b16 %v731
    %v3284 = vunpack.c.l.b16 %v732
    %v3285 = vunpack.c.h.b16 %v732
    %v3286 = vunpack.c.l.b16 %v733
    %v3287 = vunpack.c.h.b16 %v733
    %v3288 = vunpack.c.l.b16 %v734
    %v3289 = vunpack.c.h.b16 %v734
    %v3290 = vunpack.c.l.b16 %v735
    %v3291 = vunpack.c.h.b16 %v735
    %v3292 = vunpack.c.l.b16 %v736
    %v3293 = vunpack.c.h.b16 %v736
    %v3294 = vunpack.c.l.b16 %v737
    %v3295 = vunpack.c.h.b16 %v737
    %v3296 = vunpack.c.l.b16 %v738
    %v3297 = vunpack.c.h.b16 %v738
    %v3298 = vunpack.c.l.b16 %v739
    %v3299 = vunpack.c.h.b16 %v739
    %v3300 = vunpack.c.l.b16 %v740
    %v3301 = vunpack.c.h.b16 %v740
    %v3302 = vunpack.c.l.b16 %v741
    %v3303 = vunpack.c.h.b16 %v741
    %v3304 = vunpack.c.l.b16 %v742
    %v3305 = vunpack.c.h.b16 %v742
    %v3306 = vunpack.c.l.b16 %v743
    %v3307 = vunpack.c.h.b16 %v743
    %v3308 = vunpack.c.l.b16 %v744
    %v3309 = vunpack.c.h.b16 %v744
    %v3310 = vunpack.c.l.b16 %v745
    %v3311 = vunpack.c.h.b16 %v745
    %v3312 = vunpack.c.l.b16 %v746
    %v3313 = vunpack.c.h.b16 %v746
    %v3314 = vunpack.c.l.b16 %v747
    %v3315 = vunpack.c.h.b16 %v747
    %v3316 = vunpack.c.l.b16 %v748
    %v3317 = vunpack.c.h.b16 %v748
    %v3318 = vunpack.c.l.b16 %v749
    %v3319 = vunpack.c.h.b16 %v749
    %v3320 = vunpack.c.l.b16 %v750
    %v3321 = vunpack.c.h.b16 %v750
    %v3322 = vunpack.c.l.b16 %v751
    %v3323 = vunpack.c.h.b16 %v751
    %v3324 = vunpack.c.l.b16 %v752
    %v3325 = vunpack.c.h.b16 %v752
    %v3326 = vunpack.c.l.b16 %v753
    %v3327 = vunpack.c.h.b16 %v753
    %v3328 = vunpack.c.l.b16 %v754
    %v3329 = vunpack.c.h.b16 %v754
    %v3330 = vunpack.c.l.b16 %v755
    %v3331 = vunpack.c.h.b16 %v755
    %v3332 = vunpack.c.l.b16 %v756
    %v3333 = vunpack.c.h.b16 %v756
    %v3334 = vunpack.c.l.b16 %v757
    %v3335 = vunpack.c.h.b16 %v757
    %v3336 = vunpack.c.l.b16 %v758
    %v3337 = vunpack.c.h.b16 %v758
    %v3338 = vunpack.c.l.b16 %v759
    %v3339 = vunpack.c.h.b16 %v759
    %v3340 = vunpack.c.l.b16 %v760
    %v3341 = vunpack.c.h.b16 %v760
    %v3342 = vunpack.c.l.b16 %v761
    %v3343 = vunpack.c.h.b16 %v761
    %v3344 = vunpack.c.l.b16 %v762
    %v3345 = vunpack.c.h.b16 %v762
    %v3346 = vunpack.c.l.b16 %v763
    %v3347 = vunpack.c.h.b16 %v763
    %v3348 = vunpack.c.l.b16 %v764
    %v3349 = vunpack.c.h.b16 %v764
    %v3350 = vunpack.c.l.b16 %v765
    %v3351 = vunpack.c.h.b16 %v765
    %v3352 = vunpack.c.l.b16 %v766
    %v3353 = vunpack.c.h.b16 %v766
    %v3354 = vunpack.c.l.b16 %v767
    %v3355 = vunpack.c.h.b16 %v767
    %v3356 = vunpack.c.l.b16 %v768
    %v3357 = vunpack.c.h.b16 %v768
    %v3358 = vunpack.c.l.b16 %v769
    %v3359 = vunpack.c.h.b16 %v769
    %v3360 = vunpack.c.l.b16 %v770
    %v3361 = vunpack.c.h.b16 %v770
    %v3362 = vunpack.c.l.b16 %v771
    %v3363 = vunpack.c.h.b16 %v771
    %v3364 = vunpack.c.l.b16 %v772
    %v3365 = vunpack.c.h.b16 %v772
    %v3366 = vunpack.c.l.b16 %v773
    %v3367 = vunpack.c.h.b16 %v773
    %v3368 = vunpack.c.l.b16 %v774
    %v3369 = vunpack.c.h.b16 %v774
    %v3370 = vunpack.c.l.b16 %v775
    %v3371 = vunpack.c.h.b16 %v775
    %v3372 = vunpack.c.l.b16 %v776
    %v3373 = vunpack.c.h.b16 %v776
    %v3374 = vunpack.c.l.b16 %v777
    %v3375 = vunpack.c.h.b16 %v777
    %v3376 = vunpack.c.l.b16 %v778
    %v3377 = vunpack.c.h.b16 %v778
    %v3378 = vunpack.c.l.b16 %v779
    %v3379 = vunpack.c.h.b16 %v779
    %v3380 = vunpack.c.l.b16 %v780
    %v3381 = vunpack.c.h.b16 %v780
    %v3382 = vunpack.c.l.b16 %v781
    %v3383 = vunpack.c.h.b16 %v781
    %v3384 = vunpack.c.l.b16 %v782
    %v3385 = vunpack.c.h.b16 %v782
    %v3386 = vunpack.c.l.b16 %v783
    %v3387 = vunpack.c.h.b16 %v783
    %v3388 = vunpack.c.l.b16 %v784
    %v3389 = vunpack.c.h.b16 %v784
    %v3390 = vunpack.c.l.b16 %v785
    %v3391 = vunpack.c.h.b16 %v785
    %v3392 = vunpack.c.l.b16 %v786
    %v3393 = vunpack.c.h.b16 %v786
    %v3394 = vunpack.c.l.b16 %v787
    %v3395 = vunpack.c.h.b16 %v787
    %v3396 = vunpack.c.l.b16 %v788
    %v3397 = vunpack.c.h.b16 %v788
    %v3398 = vunpack.c.l.b16 %v789
    %v3399 = vunpack.c.h.b16 %v789
    %v3400 = vunpack.c.l.b16 %v790
    %v3401 = vunpack.c.h.b16 %v790
    %v3402 = vunpack.c.l.b16 %v791
    %v3403 = vunpack.c.h.b16 %v791
    %v3404 = vunpack.c.l.b16 %v792
    %v3405 = vunpack.c.h.b16 %v792
    %v3406 = vunpack.c.l.b16 %v793
    %v3407 = vunpack.c.h.b16 %v793
    %v3408 = vunpack.c.l.b16 %v794
    %v3409 = vunpack.c.h.b16 %v794
    %v3410 = vunpack.c.l.b16 %v795
    %v3411 = vunpack.c.h.b16 %v795
    %v3412 = vunpack.c.l.b16 %v796
    %v3413 = vunpack.c.h.b16 %v796
    %v3414 = vunpack.c.l.b16 %v797
    %v3415 = vunpack.c.h.b16 %v797
    %v3416 = vunpack.c.l.b16 %v798
    %v3417 = vunpack.c.h.b16 %v798
    %v3418 = vunpack.c.l.b16 %v799
    %v3419 = vunpack.c.h.b16 %v799
    %v3420 = vunpack.c.l.b16 %v800
    %v3421 = vunpack.c.h.b16 %v800
    %v3422 = vunpack.c.l.b16 %v801
    %v3423 = vunpack.c.h.b16 %v801
    %v3424 = vunpack.c.l.b16 %v802
    %v3425 = vunpack.c.h.b16 %v802
    %v3426 = vunpack.c.l.b16 %v803
    %v3427 = vunpack.c.h.b16 %v803
    %v3428 = vunpack.c.l.b16 %v804
    %v3429 = vunpack.c.h.b16 %v804
    %v3430 = vunpack.c.l.b16 %v805
    %v3431 = vunpack.c.h.b16 %v805
    %v3432 = vunpack.c.l.b16 %v806
    %v3433 = vunpack.c.h.b16 %v806
    %v3434 = vunpack.c.l.b16 %v807
    %v3435 = vunpack.c.h.b16 %v807
    %v3436 = vunpack.c.l.b16 %v808
    %v3437 = vunpack.c.h.b16 %v808
    %v3438 = vunpack.c.l.b16 %v809
    %v3439 = vunpack.c.h.b16 %v809
    %v3440 = vunpack.c.l.b16 %v810
    %v3441 = vunpack.c.h.b16 %v810
    %v3442 = vunpack.c.l.b16 %v811
    %v3443 = vunpack.c.h.b16 %v811
    %v3444 = vunpack.c.l.b16 %v812
    %v3445 = vunpack.c.h.b16 %v812
    %v3446 = vunpack.c.l.b16 %v813
    %v3447 = vunpack.c.h.b16 %v813
    %v3448 = vunpack.c.l.b16 %v814
    %v3449 = vunpack.c.h.b16 %v814
    %v3450 = vunpack.c.l.b16 %v815
    %v3451 = vunpack.c.h.b16 %v815
    %v3452 = vunpack.c.l.b16 %v816
    %v3453 = vunpack.c.h.b16 %v816
    %v3454 = vunpack.c.l.b16 %v817
    %v3455 = vunpack.c.h.b16 %v817
    %v3456 = vunpack.c.l.b16 %v818
    %v3457 = vunpack.c.h.b16 %v818
    %v3458 = vunpack.c.l.b16 %v819
    %v3459 = vunpack.c.h.b16 %v819
    %v3460 = vunpack.c.l.b16 %v820
    %v3461 = vunpack.c.h.b16 %v820
    %v3462 = vunpack.c.l.b16 %v821
    %v3463 = vunpack.c.h.b16 %v821
    %v3464 = vpack.c.b16 %v1900, %v1896
    %v3465 = vpack.c.b16 %v1901, %v1897
    %v3466 = vpack.c.b16 %v1902, %v1898
    %v3467 = vpack.c.b16 %v1903, %v1899
    %v3468 = vpack.c.b16 %v1908, %v1904
    %v3469 = vpack.c.b16 %v1909, %v1905
    %v3470 = vpack.c.b16 %v1910, %v1906
    %v3471 = vpack.c.b16 %v1911, %v1907
    %v3472 = vpack.c.b16 %v1916, %v1912
    %v3473 = vpack.c.b16 %v1917, %v1913
    %v3474 = vpack.c.b16 %v1918, %v1914
    %v3475 = vpack.c.b16 %v1919, %v1915
    %v3476 = vpack.c.b16 %v1924, %v1920
    %v3477 = vpack.c.b16 %v1925, %v1921
    %v3478 = vpack.c.b16 %v1926, %v1922
    %v3479 = vpack.c.b16 %v1927, %v1923
    %v3480 = vpack.c.b16 %v1932, %v1928
    %v3481 = vpack.c.b16 %v1933, %v1929
    %v3482 = vpack.c.b16 %v1934, %v1930
    %v3483 = vpack.c.b16 %v1935, %v1931
    %v3484 = vpack.c.b16 %v1940, %v1936
    %v3485 = vpack.c.b16 %v1941, %v1937
    %v3486 = vpack.c.b16 %v1942, %v1938
    %v3487 = vpack.c.b16 %v1943, %v1939
    %v3488 = vpack.c.b16 %v1948, %v1944
    %v3489 = vpack.c.b16 %v1949, %v1945
    %v3490 = vpack.c.b16 %v1950, %v1946
    %v3491 = vpack.c.b16 %v1951, %v1947
    %v3492 = vpack.c.b16 %v1956, %v1952
    %v3493 = vpack.c.b16 %v1957, %v1953
    %v3494 = vpack.c.b16 %v1958, %v1954
    %v3495 = vpack.c.b16 %v1959, %v1955
    %v3496 = vpack.c.b16 %v1964, %v1960
    %v3497 = vpack.c.b16 %v1965, %v1961
    %v3498 = vpack.c.b16 %v1966, %v1962
    %v3499 = vpack.c.b16 %v1967, %v1963
    %v3500 = vpack.c.b16 %v1972, %v1968
    %v3501 = vpack.c.b16 %v1973, %v1969
    %v3502 = vpack.c.b16 %v1974, %v1970
    %v3503 = vpack.c.b16 %v1975, %v1971
    %v3504 = vpack.c.b16 %v1980, %v1976
    %v3505 = vpack.c.b16 %v1981, %v1977
    %v3506 = vpack.c.b16 %v1982, %v1978
    %v3507 = vpack.c.b16 %v1983, %v1979
    %v3508 = vpack.c.b16 %v1988, %v1984
    %v3509 = vpack.c.b16 %v1989, %v1985
    %v3510 = vpack.c.b16 %v1990, %v1986
    %v3511 = vpack.c.b16 %v1991, %v1987
    %v3512 = vpack.c.b16 %v1996, %v1992
    %v3513 = vpack.c.b16 %v1997, %v1993
    %v3514 = vpack.c.b16 %v1998, %v1994
    %v3515 = vpack.c.b16 %v1999, %v1995
    %v3516 = vpack.c.b16 %v2004, %v2000
    %v3517 = vpack.c.b16 %v2005, %v2001
    %v3518 = vpack.c.b16 %v2006, %v2002
    %v3519 = vpack.c.b16 %v2007, %v2003
    %v3520 = vpack.c.b16 %v2012, %v2008
    %v3521 = vpack.c.b16 %v2013, %v2009
    %v3522 = vpack.c.b16 %v2014, %v2010
    %v3523 = vpack.c.b16 %v2015, %v2011
    %v3524 = vpack.c.b16 %v2020, %v2016
    %v3525 = vpack.c.b16 %v2021, %v2017
    %v3526 = vpack.c.b16 %v2022, %v2018
    %v3527 = vpack.c.b16 %v2023, %v2019
    %v3528 = vpack.c.b16 %v2028, %v2024
    %v3529 = vpack.c.b16 %v2029, %v2025
    %v3530 = vpack.c.b16 %v2030, %v2026
    %v3531 = vpack.c.b16 %v2031, %v2027
    %v3532 = vpack.c.b16 %v2036, %v2032
    %v3533 = vpack.c.b16 %v2037, %v2033
    %v3534 = vpack.c.b16 %v2038, %v2034
    %v3535 = vpack.c.b16 %v2039, %v2035
    %v3536 = vpack.c.b16 %v2044, %v2040
    %v3537 = vpack.c.b16 %v2045, %v2041
    %v3538 = vpack.c.b16 %v2046, %v2042
    %v3539 = vpack.c.b16 %v2047, %v2043
    %v3540 = vpack.c.b16 %v2052, %v2048
    %v3541 = vpack.c.b16 %v2053, %v2049
    %v3542 = vpack.c.b16 %v2054, %v2050
    %v3543 = vpack.c.b16 %v2055, %v2051
    %v3544 = vpack.c.b16 %v2060, %v2056
    %v3545 = vpack.c.b16 %v2061, %v2057
    %v3546 = vpack.c.b16 %v2062, %v2058
    %v3547 = vpack.c.b16 %v2063, %v2059
    %v3548 = vpack.c.b16 %v2068, %v2064
    %v3549 = vpack.c.b16 %v2069, %v2065
    %v3550 = vpack.c.b16 %v2070, %v2066
    %v3551 = vpack.c.b16 %v2071, %v2067
    %v3552 = vpack.c.b16 %v2076, %v2072
    %v3553 = vpack.c.b16 %v2077, %v2073
    %v3554 = vpack.c.b16 %v2078, %v2074
    %v3555 = vpack.c.b16 %v2079, %v2075
    %v3556 = vpack.c.b16 %v2084, %v2080
    %v3557 = vpack.c.b16 %v2085, %v2081
    %v3558 = vpack.c.b16 %v2086, %v2082
    %v3559 = vpack.c.b16 %v2087, %v2083
    %v3560 = vpack.c.b16 %v2092, %v2088
    %v3561 = vpack.c.b16 %v2093, %v2089
    %v3562 = vpack.c.b16 %v2094, %v2090
    %v3563 = vpack.c.b16 %v2095, %v2091
    %v3564 = vpack.c.b16 %v2100, %v2096
    %v3565 = vpack.c.b16 %v2101, %v2097
    %v3566 = vpack.c.b16 %v2102, %v2098
    %v3567 = vpack.c.b16 %v2103, %v2099
    %v3568 = vpack.c.b16 %v2108, %v2104
    %v3569 = vpack.c.b16 %v2109, %v2105
    %v3570 = vpack.c.b16 %v2110, %v2106
    %v3571 = vpack.c.b16 %v2111, %v2107
    %v3572 = vpack.c.b16 %v2116, %v2112
    %v3573 = vpack.c.b16 %v2117, %v2113
    %v3574 = vpack.c.b16 %v2118, %v2114
    %v3575 = vpack.c.b16 %v2119, %v2115
    %v3576 = vpack.c.b16 %v2124, %v2120
    %v3577 = vpack.c.b16 %v2125, %v2121
    %v3578 = vpack.c.b16 %v2126, %v2122
    %v3579 = vpack.c.b16 %v2127, %v2123
    %v3580 = vpack.c.b16 %v2132, %v2128
    %v3581 = vpack.c.b16 %v2133, %v2129
    %v3582 = vpack.c.b16 %v2134, %v2130
    %v3583 = vpack.c.b16 %v2135, %v2131
    %v3584 = vpack.c.b16 %v2140, %v2136
    %v3585 = vpack.c.b16 %v2141, %v2137
    %v3586 = vpack.c.b16 %v2142, %v2138
    %v3587 = vpack.c.b16 %v2143, %v2139
    %v3588 = vpack.c.b16 %v2148, %v2144
    %v3589 = vpack.c.b16 %v2149, %v2145
    %v3590 = vpack.c.b16 %v2150, %v2146
    %v3591 = vpack.c.b16 %v2151, %v2147
    %v3592 = vpack.c.b16 %v2156, %v2152
    %v3593 = vpack.c.b16 %v2157, %v2153
    %v3594 = vpack.c.b16 %v2158, %v2154
    %v3595 = vpack.c.b16 %v2159, %v2155
    %v3596 = vpack.c.b16 %v2164, %v2160
    %v3597 = vpack.c.b16 %v2165, %v2161
    %v3598 = vpack.c.b16 %v2166, %v2162
    %v3599 = vpack.c.b16 %v2167, %v2163
    %v3600 = vpack.c.b16 %v2172, %v2168
    %v3601 = vpack.c.b16 %v2173, %v2169
    %v3602 = vpack.c.b16 %v2174, %v2170
    %v3603 = vpack.c.b16 %v2175, %v2171
    %v3604 = vpack.c.b16 %v2180, %v2176
    %v3605 = vpack.c.b16 %v2181, %v2177
    %v3606 = vpack.c.b16 %v2182, %v2178
    %v3607 = vpack.c.b16 %v2183, %v2179
    %v3608 = vpack.c.b16 %v2188, %v2184
    %v3609 = vpack.c.b16 %v2189, %v2185
    %v3610 = vpack.c.b16 %v2190, %v2186
    %v3611 = vpack.c.b16 %v2191, %v2187
    %v3612 = vpack.c.b16 %v2196, %v2192
    %v3613 = vpack.c.b16 %v2197, %v2193
    %v3614 = vpack.c.b16 %v2198, %v2194
    %v3615 = vpack.c.b16 %v2199, %v2195
    %v3616 = vpack.c.b16 %v2204, %v2200
    %v3617 = vpack.c.b16 %v2205, %v2201
    %v3618 = vpack.c.b16 %v2206, %v2202
    %v3619 = vpack.c.b16 %v2207, %v2203
    %v3620 = vpack.c.b16 %v2212, %v2208
    %v3621 = vpack.c.b16 %v2213, %v2209
    %v3622 = vpack.c.b16 %v2214, %v2210
    %v3623 = vpack.c.b16 %v2215, %v2211
    %v3624 = vpack.c.b16 %v2220, %v2216
    %v3625 = vpack.c.b16 %v2221, %v2217
    %v3626 = vpack.c.b16 %v2222, %v2218
    %v3627 = vpack.c.b16 %v2223, %v2219
    %v3628 = vpack.c.b16 %v2228, %v2224
    %v3629 = vpack.c.b16 %v2229, %v2225
    %v3630 = vpack.c.b16 %v2230, %v2226
    %v3631 = vpack.c.b16 %v2231, %v2227
    %v3632 = vpack.c.b16 %v2236, %v2232
    %v3633 = vpack.c.b16 %v2237, %v2233
    %v3634 = vpack.c.b16 %v2238, %v2234
    %v3635 = vpack.c.b16 %v2239, %v2235
    %v3636 = vpack.c.b16 %v2244, %v2240
    %v3637 = vpack.c.b16 %v2245, %v2241
    %v3638 = vpack.c.b16 %v2246, %v2242
    %v3639 = vpack.c.b16 %v2247, %v2243
    %v3640 = vpack.c.b16 %v2252, %v2248
    %v3641 = vpack.c.b16 %v2253, %v2249
    %v3642 = vpack.c.b16 %v2254, %v2250
    %v3643 = vpack.c.b16 %v2255, %v2251
    %v3644 = vpack.c.b16 %v2260, %v2256
    %v3645 = vpack.c.b16 %v2261, %v2257
    %v3646 = vpack.c.b16 %v2262, %v2258
    %v3647 = vpack.c.b16 %v2263, %v2259
    %v3648 = vpack.c.b16 %v2268, %v2264
    %v3649 = vpack.c.b16 %v2269, %v2265
    %v3650 = vpack.c.b16 %v2270, %v2266
    %v3651 = vpack.c.b16 %v2271, %v2267
    %v3652 = vpack.c.b16 %v2276, %v2272
    %v3653 = vpack.c.b16 %v2277, %v2273
    %v3654 = vpack.c.b16 %v2278, %v2274
    %v3655 = vpack.c.b16 %v2279, %v2275
    %v3656 = vpack.c.b16 %v2284, %v2280
    %v3657 = vpack.c.b16 %v2285, %v2281
    %v3658 = vpack.c.b16 %v2286, %v2282
    %v3659 = vpack.c.b16 %v2287, %v2283
    %v3660 = vpack.c.b16 %v2292, %v2288
    %v3661 = vpack.c.b16 %v2293, %v2289
    %v3662 = vpack.c.b16 %v2294, %v2290
    %v3663 = vpack.c.b16 %v2295, %v2291
    %v3664 = vpack.c.b16 %v2300, %v2296
    %v3665 = vpack.c.b16 %v2301, %v2297
    %v3666 = vpack.c.b16 %v2302, %v2298
    %v3667 = vpack.c.b16 %v2303, %v2299
    %v3668 = vpack.c.b16 %v2308, %v2304
    %v3669 = vpack.c.b16 %v2309, %v2305
    %v3670 = vpack.c.b16 %v2310, %v2306
    %v3671 = vpack.c.b16 %v2311, %v2307
    %v3672 = vpack.c.b16 %v2316, %v2312
    %v3673 = vpack.c.b16 %v2317, %v2313
    %v3674 = vpack.c.b16 %v2318, %v2314
    %v3675 = vpack.c.b16 %v2319, %v2315
    %v3676 = vpack.c.b16 %v2324, %v2320
    %v3677 = vpack.c.b16 %v2325, %v2321
    %v3678 = vpack.c.b16 %v2326, %v2322
    %v3679 = vpack.c.b16 %v2327, %v2323
    %v3680 = vpack.c.b16 %v2332, %v2328
    %v3681 = vpack.c.b16 %v2333, %v2329
    %v3682 = vpack.c.b16 %v2334, %v2330
    %v3683 = vpack.c.b16 %v2335, %v2331
    %v3684 = vpack.c.b16 %v2340, %v2336
    %v3685 = vpack.c.b16 %v2341, %v2337
    %v3686 = vpack.c.b16 %v2342, %v2338
    %v3687 = vpack.c.b16 %v2343, %v2339
    %v3688 = vpack.c.b16 %v2348, %v2344
    %v3689 = vpack.c.b16 %v2349, %v2345
    %v3690 = vpack.c.b16 %v2350, %v2346
    %v3691 = vpack.c.b16 %v2351, %v2347
    %v3692 = vpack.c.b16 %v2356, %v2352
    %v3693 = vpack.c.b16 %v2357, %v2353
    %v3694 = vpack.c.b16 %v2358, %v2354
    %v3695 = vpack.c.b16 %v2359, %v2355
    %v3696 = vpack.c.b16 %v2364, %v2360
    %v3697 = vpack.c.b16 %v2365, %v2361
    %v3698 = vpack.c.b16 %v2366, %v2362
    %v3699 = vpack.c.b16 %v2367, %v2363
    %v3700 = vpack.c.b16 %v2372, %v2368
    %v3701 = vpack.c.b16 %v2373, %v2369
    %v3702 = vpack.c.b16 %v2374, %v2370
    %v3703 = vpack.c.b16 %v2375, %v2371
    %v3704 = vpack.c.b16 %v2380, %v2376
    %v3705 = vpack.c.b16 %v2381, %v2377
    %v3706 = vpack.c.b16 %v2382, %v2378
    %v3707 = vpack.c.b16 %v2383, %v2379
    %v3708 = vpack.c.b16 %v2388, %v2384
    %v3709 = vpack.c.b16 %v2389, %v2385
    %v3710 = vpack.c.b16 %v2390, %v2386
    %v3711 = vpack.c.b16 %v2391, %v2387
    %v3712 = vpack.c.b16 %v2396, %v2392
    %v3713 = vpack.c.b16 %v2397, %v2393
    %v3714 = vpack.c.b16 %v2398, %v2394
    %v3715 = vpack.c.b16 %v2399, %v2395
    %v3716 = vpack.c.b16 %v2404, %v2400
    %v3717 = vpack.c.b16 %v2405, %v2401
    %v3718 = vpack.c.b16 %v2406, %v2402
    %v3719 = vpack.c.b16 %v2407, %v2403
    %v3720 = vpack.c.b16 %v2412, %v2408
    %v3721 = vpack.c.b16 %v2413, %v2409
    %v3722 = vpack.c.b16 %v2414, %v2410
    %v3723 = vpack.c.b16 %v2415, %v2411
    %v3724 = vpack.c.b16 %v2420, %v2416
    %v3725 = vpack.c.b16 %v2421, %v2417
    %v3726 = vpack.c.b16 %v2422, %v2418
    %v3727 = vpack.c.b16 %v2423, %v2419
    %v3728 = vpack.c.b16 %v2428, %v2424
    %v3729 = vpack.c.b16 %v2429, %v2425
    %v3730 = vpack.c.b16 %v2430, %v2426
    %v3731 = vpack.c.b16 %v2431, %v2427
    %v3732 = vpack.c.b16 %v2436, %v2432
    %v3733 = vpack.c.b16 %v2437, %v2433
    %v3734 = vpack.c.b16 %v2438, %v2434
    %v3735 = vpack.c.b16 %v2439, %v2435
    %v3736 = vpack.c.b16 %v2444, %v2440
    %v3737 = vpack.c.b16 %v2445, %v2441
    %v3738 = vpack.c.b16 %v2446, %v2442
    %v3739 = vpack.c.b16 %v2447, %v2443
    %v3740 = vpack.c.b16 %v2452, %v2448
    %v3741 = vpack.c.b16 %v2453, %v2449
    %v3742 = vpack.c.b16 %v2454, %v2450
    %v3743 = vpack.c.b16 %v2455, %v2451
    %v3744 = vpack.c.b16 %v2460, %v2456
    %v3745 = vpack.c.b16 %v2461, %v2457
    %v3746 = vpack.c.b16 %v2462, %v2458
    %v3747 = vpack.c.b16 %v2463, %v2459
    %v3748 = vpack.c.b16 %v2468, %v2464
    %v3749 = vpack.c.b16 %v2469, %v2465
    %v3750 = vpack.c.b16 %v2470, %v2466
    %v3751 = vpack.c.b16 %v2471, %v2467
    %v3752 = vpack.c.b16 %v2476, %v2472
    %v3753 = vpack.c.b16 %v2477, %v2473
    %v3754 = vpack.c.b16 %v2478, %v2474
    %v3755 = vpack.c.b16 %v2479, %v2475
    %v3756 = vpack.c.b16 %v2484, %v2480
    %v3757 = vpack.c.b16 %v2485, %v2481
    %v3758 = vpack.c.b16 %v2486, %v2482
    %v3759 = vpack.c.b16 %v2487, %v2483
    %v3760 = vpack.c.b16 %v2492, %v2488
    %v3761 = vpack.c.b16 %v2493, %v2489
    %v3762 = vpack.c.b16 %v2494, %v2490
    %v3763 = vpack.c.b16 %v2495, %v2491
    %v3764 = vpack.c.b16 %v2500, %v2496
    %v3765 = vpack.c.b16 %v2501, %v2497
    %v3766 = vpack.c.b16 %v2502, %v2498
    %v3767 = vpack.c.b16 %v2503, %v2499
    %v3768 = vpack.c.b16 %v2508, %v2504
    %v3769 = vpack.c.b16 %v2509, %v2505
    %v3770 = vpack.c.b16 %v2510, %v2506
    %v3771 = vpack.c.b16 %v2511, %v2507
    %v3772 = vpack.c.b16 %v2516, %v2512
    %v3773 = vpack.c.b16 %v2517, %v2513
    %v3774 = vpack.c.b16 %v2518, %v2514
    %v3775 = vpack.c.b16 %v2519, %v2515
    %v3776 = vpack.c.b16 %v2524, %v2520
    %v3777 = vpack.c.b16 %v2525, %v2521
    %v3778 = vpack.c.b16 %v2526, %v2522
    %v3779 = vpack.c.b16 %v2527, %v2523
    %v3780 = vpack.c.b16 %v2532, %v2528
    %v3781 = vpack.c.b16 %v2533, %v2529
    %v3782 = vpack.c.b16 %v2534, %v2530
    %v3783 = vpack.c.b16 %v2535, %v2531
    %v3784 = vpack.c.b16 %v2540, %v2536
    %v3785 = vpack.c.b16 %v2541, %v2537
    %v3786 = vpack.c.b16 %v2542, %v2538
    %v3787 = vpack.c.b16 %v2543, %v2539
    %v3788 = vpack.c.b16 %v2548, %v2544
    %v3789 = vpack.c.b16 %v2549, %v2545
    %v3790 = vpack.c.b16 %v2550, %v2546
    %v3791 = vpack.c.b16 %v2551, %v2547
    %v3792 = vpack.c.b16 %v2556, %v2552
    %v3793 = vpack.c.b16 %v2557, %v2553
    %v3794 = vpack.c.b16 %v2558, %v2554
    %v3795 = vpack.c.b16 %v2559, %v2555
    %v3796 = vpack.c.b16 %v2564, %v2560
    %v3797 = vpack.c.b16 %v2565, %v2561
    %v3798 = vpack.c.b16 %v2566, %v2562
    %v3799 = vpack.c.b16 %v2567, %v2563
    %v3800 = vpack.c.b16 %v2572, %v2568
    %v3801 = vpack.c.b16 %v2573, %v2569
    %v3802 = vpack.c.b16 %v2574, %v2570
    %v3803 = vpack.c.b16 %v2575, %v2571
    %v3804 = vpack.c.b16 %v2580, %v2576
    %v3805 = vpack.c.b16 %v2581, %v2577
    %v3806 = vpack.c.b16 %v2582, %v2578
    %v3807 = vpack.c.b16 %v2583, %v2579
    %v3808 = vpack.c.b16 %v2588, %v2584
    %v3809 = vpack.c.b16 %v2589, %v2585
    %v3810 = vpack.c.b16 %v2590, %v2586
    %v3811 = vpack.c.b16 %v2591, %v2587
    %v3812 = vpack.c.b16 %v2596, %v2592
    %v3813 = vpack.c.b16 %v2597, %v2593
    %v3814 = vpack.c.b16 %v2598, %v2594
    %v3815 = vpack.c.b16 %v2599, %v2595
    %v3816 = vpack.c.b16 %v2604, %v2600
    %v3817 = vpack.c.b16 %v2605, %v2601
    %v3818 = vpack.c.b16 %v2606, %v2602
    %v3819 = vpack.c.b16 %v2607, %v2603
    %v3820 = vpack.c.b16 %v2612, %v2608
    %v3821 = vpack.c.b16 %v2613, %v2609
    %v3822 = vpack.c.b16 %v2614, %v2610
    %v3823 = vpack.c.b16 %v2615, %v2611
    %v3824 = vpack.c.b16 %v2620, %v2616
    %v3825 = vpack.c.b16 %v2621, %v2617
    %v3826 = vpack.c.b16 %v2622, %v2618
    %v3827 = vpack.c.b16 %v2623, %v2619
    %v3828 = vpack.c.b16 %v2628, %v2624
    %v3829 = vpack.c.b16 %v2629, %v2625
    %v3830 = vpack.c.b16 %v2630, %v2626
    %v3831 = vpack.c.b16 %v2631, %v2627
    %v3832 = vpack.c.b16 %v2636, %v2632
    %v3833 = vpack.c.b16 %v2637, %v2633
    %v3834 = vpack.c.b16 %v2638, %v2634
    %v3835 = vpack.c.b16 %v2639, %v2635
    %v3836 = vpack.c.b16 %v2644, %v2640
    %v3837 = vpack.c.b16 %v2645, %v2641
    %v3838 = vpack.c.b16 %v2646, %v2642
    %v3839 = vpack.c.b16 %v2647, %v2643
    %v3840 = vpack.c.b16 %v2652, %v2648
    %v3841 = vpack.c.b16 %v2653, %v2649
    %v3842 = vpack.c.b16 %v2654, %v2650
    %v3843 = vpack.c.b16 %v2655, %v2651
    %v3844 = vpack.c.b16 %v2660, %v2656
    %v3845 = vpack.c.b16 %v2661, %v2657
    %v3846 = vpack.c.b16 %v2662, %v2658
    %v3847 = vpack.c.b16 %v2663, %v2659
    %v3848 = vpack.c.b16 %v2668, %v2664
    %v3849 = vpack.c.b16 %v2669, %v2665
    %v3850 = vpack.c.b16 %v2670, %v2666
    %v3851 = vpack.c.b16 %v2671, %v2667
    %v3852 = vpack.c.b16 %v2676, %v2672
    %v3853 = vpack.c.b16 %v2677, %v2673
    %v3854 = vpack.c.b16 %v2678, %v2674
    %v3855 = vpack.c.b16 %v2679, %v2675
    %v3856 = vpack.c.b16 %v2684, %v2680
    %v3857 = vpack.c.b16 %v2685, %v2681
    %v3858 = vpack.c.b16 %v2686, %v2682
    %v3859 = vpack.c.b16 %v2687, %v2683
    %v3860 = vpack.c.b16 %v2692, %v2688
    %v3861 = vpack.c.b16 %v2693, %v2689
    %v3862 = vpack.c.b16 %v2694, %v2690
    %v3863 = vpack.c.b16 %v2695, %v2691
    %v3864 = vpack.c.b16 %v2700, %v2696
    %v3865 = vpack.c.b16 %v2701, %v2697
    %v3866 = vpack.c.b16 %v2702, %v2698
    %v3867 = vpack.c.b16 %v2703, %v2699
    %v3868 = vpack.c.b16 %v2708, %v2704
    %v3869 = vpack.c.b16 %v2709, %v2705
    %v3870 = vpack.c.b16 %v2710, %v2706
    %v3871 = vpack.c.b16 %v2711, %v2707
    %v3872 = vpack.c.b16 %v2716, %v2712
    %v3873 = vpack.c.b16 %v2717, %v2713
    %v3874 = vpack.c.b16 %v2718, %v2714
    %v3875 = vpack.c.b16 %v2719, %v2715
    %v3876 = vpack.c.b16 %v2724, %v2720
    %v3877 = vpack.c.b16 %v2725, %v2721
    %v3878 = vpack.c.b16 %v2726, %v2722
    %v3879 = vpack.c.b16 %v2727, %v2723
    %v3880 = vpack.c.b16 %v2732, %v2728
    %v3881 = vpack.c.b16 %v2733, %v2729
    %v3882 = vpack.c.b16 %v2734, %v2730
    %v3883 = vpack.c.b16 %v2735, %v2731
    %v3884 = vpack.c.b16 %v2740, %v2736
    %v3885 = vpack.c.b16 %v2741, %v2737
    %v3886 = vpack.c.b16 %v2742, %v2738
    %v3887 = vpack.c.b16 %v2743, %v2739
    %v3888 = vpack.c.b16 %v2748, %v2744
    %v3889 = vpack.c.b16 %v2749, %v2745
    %v3890 = vpack.c.b16 %v2750, %v2746
    %v3891 = vpack.c.b16 %v2751, %v2747
    %v3892 = vpack.c.b16 %v2756, %v2752
    %v3893 = vpack.c.b16 %v2757, %v2753
    %v3894 = vpack.c.b16 %v2758, %v2754
    %v3895 = vpack.c.b16 %v2759, %v2755
    %v3896 = vpack.c.b16 %v2764, %v2760
    %v3897 = vpack.c.b16 %v2765, %v2761
    %v3898 = vpack.c.b16 %v2766, %v2762
    %v3899 = vpack.c.b16 %v2767, %v2763
    %v3900 = vpack.c.b16 %v2772, %v2768
    %v3901 = vpack.c.b16 %v2773, %v2769
    %v3902 = vpack.c.b16 %v2774, %v2770
    %v3903 = vpack.c.b16 %v2775, %v2771
    %v3904 = vpack.c.b16 %v2780, %v2776
    %v3905 = vpack.c.b16 %v2781, %v2777
    %v3906 = vpack.c.b16 %v2782, %v2778
    %v3907 = vpack.c.b16 %v2783, %v2779
    %v3908 = vpack.c.b16 %v2788, %v2784
    %v3909 = vpack.c.b16 %v2789, %v2785
    %v3910 = vpack.c.b16 %v2790, %v2786
    %v3911 = vpack.c.b16 %v2791, %v2787
    %v3912 = vpack.c.b16 %v2796, %v2792
    %v3913 = vpack.c.b16 %v2797, %v2793
    %v3914 = vpack.c.b16 %v2798, %v2794
    %v3915 = vpack.c.b16 %v2799, %v2795
    %v3916 = vpack.c.b16 %v2804, %v2800
    %v3917 = vpack.c.b16 %v2805, %v2801
    %v3918 = vpack.c.b16 %v2806, %v2802
    %v3919 = vpack.c.b16 %v2807, %v2803
    %v3920 = vpack.c.b16 %v2812, %v2808
    %v3921 = vpack.c.b16 %v2813, %v2809
    %v3922 = vpack.c.b16 %v2814, %v2810
    %v3923 = vpack.c.b16 %v2815, %v2811
    %v3924 = vpack.c.b16 %v2820, %v2816
    %v3925 = vpack.c.b16 %v2821, %v2817
    %v3926 = vpack.c.b16 %v2822, %v2818
    %v3927 = vpack.c.b16 %v2823, %v2819
    %v3928 = vpack.c.b16 %v2828, %v2824
    %v3929 = vpack.c.b16 %v2829, %v2825
    %v3930 = vpack.c.b16 %v2830, %v2826
    %v3931 = vpack.c.b16 %v2831, %v2827
    %v3932 = vpack.c.b16 %v2836, %v2832
    %v3933 = vpack.c.b16 %v2837, %v2833
    %v3934 = vpack.c.b16 %v2838, %v2834
    %v3935 = vpack.c.b16 %v2839, %v2835
    %v3936 = vpack.c.b16 %v2844, %v2840
    %v3937 = vpack.c.b16 %v2845, %v2841
    %v3938 = vpack.c.b16 %v2846, %v2842
    %v3939 = vpack.c.b16 %v2847, %v2843
    %v3940 = vpack.c.b16 %v2852, %v2848
    %v3941 = vpack.c.b16 %v2853, %v2849
    %v3942 = vpack.c.b16 %v2854, %v2850
    %v3943 = vpack.c.b16 %v2855, %v2851
    %v3944 = vpack.c.b16 %v2860, %v2856
    %v3945 = vpack.c.b16 %v2861, %v2857
    %v3946 = vpack.c.b16 %v2862, %v2858
    %v3947 = vpack.c.b16 %v2863, %v2859
    %v3948 = vpack.c.b16 %v2868, %v2864
    %v3949 = vpack.c.b16 %v2869, %v2865
    %v3950 = vpack.c.b16 %v2870, %v2866
    %v3951 = vpack.c.b16 %v2871, %v2867
    %v3952 = vpack.c.b16 %v2876, %v2872
    %v3953 = vpack.c.b16 %v2877, %v2873
    %v3954 = vpack.c.b16 %v2878, %v2874
    %v3955 = vpack.c.b16 %v2879, %v2875
    %v3956 = vpack.c.b16 %v2884, %v2880
    %v3957 = vpack.c.b16 %v2885, %v2881
    %v3958 = vpack.c.b16 %v2886, %v2882
    %v3959 = vpack.c.b16 %v2887, %v2883
    %v3960 = vpack.c.b16 %v2892, %v2888
    %v3961 = vpack.c.b16 %v2893, %v2889
    %v3962 = vpack.c.b16 %v2894, %v2890
    %v3963 = vpack.c.b16 %v2895, %v2891
    %v3964 = vpack.c.b16 %v2900, %v2896
    %v3965 = vpack.c.b16 %v2901, %v2897
    %v3966 = vpack.c.b16 %v2902, %v2898
    %v3967 = vpack.c.b16 %v2903, %v2899
    %v3968 = vpack.c.b16 %v2908, %v2904
    %v3969 = vpack.c.b16 %v2909, %v2905
    %v3970 = vpack.c.b16 %v2910, %v2906
    %v3971 = vpack.c.b16 %v2911, %v2907
    %v3972 = vpack.c.b16 %v2916, %v2912
    %v3973 = vpack.c.b16 %v2917, %v2913
    %v3974 = vpack.c.b16 %v2918, %v2914
    %v3975 = vpack.c.b16 %v2919, %v2915
    %v3976 = vpack.c.b16 %v2924, %v2920
    %v3977 = vpack.c.b16 %v2925, %v2921
    %v3978 = vpack.c.b16 %v2926, %v2922
    %v3979 = vpack.c.b16 %v2927, %v2923
    %v3980 = vpack.c.b16 %v2932, %v2928
    %v3981 = vpack.c.b16 %v2933, %v2929
    %v3982 = vpack.c.b16 %v2934, %v2930
    %v3983 = vpack.c.b16 %v2935, %v2931
    %v3984 = vpack.c.b16 %v2940, %v2936
    %v3985 = vpack.c.b16 %v2941, %v2937
    %v3986 = vpack.c.b16 %v2942, %v2938
    %v3987 = vpack.c.b16 %v2943, %v2939
    %v3988 = vpack.c.b16 %v2948, %v2944
    %v3989 = vpack.c.b16 %v2949, %v2945
    %v3990 = vpack.c.b16 %v2950, %v2946
    %v3991 = vpack.c.b16 %v2951, %v2947
    %v3992 = vpack.c.b16 %v2956, %v2952
    %v3993 = vpack.c.b16 %v2957, %v2953
    %v3994 = vpack.c.b16 %v2958, %v2954
    %v3995 = vpack.c.b16 %v2959, %v2955
    %v3996 = vpack.c.b16 %v2964, %v2960
    %v3997 = vpack.c.b16 %v2965, %v2961
    %v3998 = vpack.c.b16 %v2966, %v2962
    %v3999 = vpack.c.b16 %v2967, %v2963
    %v4000 = vpack.c.b16 %v2972, %v2968
    %v4001 = vpack.c.b16 %v2973, %v2969
    %v4002 = vpack.c.b16 %v2974, %v2970
    %v4003 = vpack.c.b16 %v2975, %v2971
    %v4004 = vpack.c.b16 %v2980, %v2976
    %v4005 = vpack.c.b16 %v2981, %v2977
    %v4006 = vpack.c.b16 %v2982, %v2978
    %v4007 = vpack.c.b16 %v2983, %v2979
    %v4008 = vpack.c.b16 %v2988, %v2984
    %v4009 = vpack.c.b16 %v2989, %v2985
    %v4010 = vpack.c.b16 %v2990, %v2986
    %v4011 = vpack.c.b16 %v2991, %v2987
    %v4012 = vpack.c.b16 %v2996, %v2992
    %v4013 = vpack.c.b16 %v2997, %v2993
    %v4014 = vpack.c.b16 %v2998, %v2994
    %v4015 = vpack.c.b16 %v2999, %v2995
    %v4016 = vpack.c.b16 %v3004, %v3000
    %v4017 = vpack.c.b16 %v3005, %v3001
    %v4018 = vpack.c.b16 %v3006, %v3002
    %v4019 = vpack.c.b16 %v3007, %v3003
    %v4020 = vpack.c.b16 %v3012, %v3008
    %v4021 = vpack.c.b16 %v3013, %v3009
    %v4022 = vpack.c.b16 %v3014, %v3010
    %v4023 = vpack.c.b16 %v3015, %v3011
    %v4024 = vpack.c.b16 %v3020, %v3016
    %v4025 = vpack.c.b16 %v3021, %v3017
    %v4026 = vpack.c.b16 %v3022, %v3018
    %v4027 = vpack.c.b16 %v3023, %v3019
    %v4028 = vpack.c.b16 %v3028, %v3024
    %v4029 = vpack.c.b16 %v3029, %v3025
    %v4030 = vpack.c.b16 %v3030, %v3026
    %v4031 = vpack.c.b16 %v3031, %v3027
    %v4032 = vpack.c.b16 %v3036, %v3032
    %v4033 = vpack.c.b16 %v3037, %v3033
    %v4034 = vpack.c.b16 %v3038, %v3034
    %v4035 = vpack.c.b16 %v3039, %v3035
    %v4036 = vpack.c.b16 %v3044, %v3040
    %v4037 = vpack.c.b16 %v3045, %v3041
    %v4038 = vpack.c.b16 %v3046, %v3042
    %v4039 = vpack.c.b16 %v3047, %v3043
    %v4040 = vpack.c.b16 %v3052, %v3048
    %v4041 = vpack.c.b16 %v3053, %v3049
    %v4042 = vpack.c.b16 %v3054, %v3050
    %v4043 = vpack.c.b16 %v3055, %v3051
    %v4044 = vpack.c.b16 %v3060, %v3056
    %v4045 = vpack.c.b16 %v3061, %v3057
    %v4046 = vpack.c.b16 %v3062, %v3058
    %v4047 = vpack.c.b16 %v3063, %v3059
    %v4048 = vpack.c.b16 %v3068, %v3064
    %v4049 = vpack.c.b16 %v3069, %v3065
    %v4050 = vpack.c.b16 %v3070, %v3066
    %v4051 = vpack.c.b16 %v3071, %v3067
    %v4052 = vpack.c.b16 %v3076, %v3072
    %v4053 = vpack.c.b16 %v3077, %v3073
    %v4054 = vpack.c.b16 %v3078, %v3074
    %v4055 = vpack.c.b16 %v3079, %v3075
    %v4056 = vpack.c.b16 %v3084, %v3080
    %v4057 = vpack.c.b16 %v3085, %v3081
    %v4058 = vpack.c.b16 %v3086, %v3082
    %v4059 = vpack.c.b16 %v3087, %v3083
    %v4060 = vpack.c.b16 %v3092, %v3088
    %v4061 = vpack.c.b16 %v3093, %v3089
    %v4062 = vpack.c.b16 %v3094, %v3090
    %v4063 = vpack.c.b16 %v3095, %v3091
    %v4064 = vpack.c.b16 %v3100, %v3096
    %v4065 = vpack.c.b16 %v3101, %v3097
    %v4066 = vpack.c.b16 %v3102, %v3098
    %v4067 = vpack.c.b16 %v3103, %v3099
    %v4068 = vpack.c.b16 %v3108, %v3104
    %v4069 = vpack.c.b16 %v3109, %v3105
    %v4070 = vpack.c.b16 %v3110, %v3106
    %v4071 = vpack.c.b16 %v3111, %v3107
    %v4072 = vpack.c.b16 %v3116, %v3112
    %v4073 = vpack.c.b16 %v3117, %v3113
    %v4074 = vpack.c.b16 %v3118, %v3114
    %v4075 = vpack.c.b16 %v3119, %v3115
    %v4076 = vpack.c.b16 %v3124, %v3120
    %v4077 = vpack.c.b16 %v3125, %v3121
    %v4078 = vpack.c.b16 %v3126, %v3122
    %v4079 = vpack.c.b16 %v3127, %v3123
    %v4080 = vpack.c.b16 %v3132, %v3128
    %v4081 = vpack.c.b16 %v3133, %v3129
    %v4082 = vpack.c.b16 %v3134, %v3130
    %v4083 = vpack.c.b16 %v3135, %v3131
    %v4084 = vpack.c.b16 %v3140, %v3136
    %v4085 = vpack.c.b16 %v3141, %v3137
    %v4086 = vpack.c.b16 %v3142, %v3138
    %v4087 = vpack.c.b16 %v3143, %v3139
    %v4088 = vpack.c.b16 %v3148, %v3144
    %v4089 = vpack.c.b16 %v3149, %v3145
    %v4090 = vpack.c.b16 %v3150, %v3146
    %v4091 = vpack.c.b16 %v3151, %v3147
    %v4092 = vpack.c.b16 %v3156, %v3152
    %v4093 = vpack.c.b16 %v3157, %v3153
    %v4094 = vpack.c.b16 %v3158, %v3154
    %v4095 = vpack.c.b16 %v3159, %v3155
    %v4096 = vpack.c.b16 %v3164, %v3160
    %v4097 = vpack.c.b16 %v3165, %v3161
    %v4098 = vpack.c.b16 %v3166, %v3162
    %v4099 = vpack.c.b16 %v3167, %v3163
    %v4100 = vpack.c.b16 %v3172, %v3168
    %v4101 = vpack.c.b16 %v3173, %v3169
    %v4102 = vpack.c.b16 %v3174, %v3170
    %v4103 = vpack.c.b16 %v3175, %v3171
    %v4104 = vpack.c.b16 %v3180, %v3176
    %v4105 = vpack.c.b16 %v3181, %v3177
    %v4106 = vpack.c.b16 %v3182, %v3178
    %v4107 = vpack.c.b16 %v3183, %v3179
    %v4108 = vpack.c.b16 %v3188, %v3184
    %v4109 = vpack.c.b16 %v3189, %v3185
    %v4110 = vpack.c.b16 %v3190, %v3186
    %v4111 = vpack.c.b16 %v3191, %v3187
    %v4112 = vpack.c.b16 %v3196, %v3192
    %v4113 = vpack.c.b16 %v3197, %v3193
    %v4114 = vpack.c.b16 %v3198, %v3194
    %v4115 = vpack.c.b16 %v3199, %v3195
    %v4116 = vpack.c.b16 %v3204, %v3200
    %v4117 = vpack.c.b16 %v3205, %v3201
    %v4118 = vpack.c.b16 %v3206, %v3202
    %v4119 = vpack.c.b16 %v3207, %v3203
    %v4120 = vpack.c.b16 %v3212, %v3208
    %v4121 = vpack.c.b16 %v3213, %v3209
    %v4122 = vpack.c.b16 %v3214, %v3210
    %v4123 = vpack.c.b16 %v3215, %v3211
    %v4124 = vpack.c.b16 %v3220, %v3216
    %v4125 = vpack.c.b16 %v3221, %v3217
    %v4126 = vpack.c.b16 %v3222, %v3218
    %v4127 = vpack.c.b16 %v3223, %v3219
    %v4128 = vpack.c.b16 %v3228, %v3224
    %v4129 = vpack.c.b16 %v3229, %v3225
    %v4130 = vpack.c.b16 %v3230, %v3226
    %v4131 = vpack.c.b16 %v3231, %v3227
    %v4132 = vpack.c.b16 %v3236, %v3232
    %v4133 = vpack.c.b16 %v3237, %v3233
    %v4134 = vpack.c.b16 %v3238, %v3234
    %v4135 = vpack.c.b16 %v3239, %v3235
    %v4136 = vpack.c.b16 %v3244, %v3240
    %v4137 = vpack.c.b16 %v3245, %v3241
    %v4138 = vpack.c.b16 %v3246, %v3242
    %v4139 = vpack.c.b16 %v3247, %v3243
    %v4140 = vpack.c.b16 %v3252, %v3248
    %v4141 = vpack.c.b16 %v3253, %v3249
    %v4142 = vpack.c.b16 %v3254, %v3250
    %v4143 = vpack.c.b16 %v3255, %v3251
    %v4144 = vpack.c.b16 %v3260, %v3256
    %v4145 = vpack.c.b16 %v3261, %v3257
    %v4146 = vpack.c.b16 %v3262, %v3258
    %v4147 = vpack.c.b16 %v3263, %v3259
    %v4148 = vpack.c.b16 %v3268, %v3264
    %v4149 = vpack.c.b16 %v3269, %v3265
    %v4150 = vpack.c.b16 %v3270, %v3266
    %v4151 = vpack.c.b16 %v3271, %v3267
    %v4152 = vpack.c.b16 %v3276, %v3272
    %v4153 = vpack.c.b16 %v3277, %v3273
    %v4154 = vpack.c.b16 %v3278, %v3274
    %v4155 = vpack.c.b16 %v3279, %v3275
    %v4156 = vpack.c.b16 %v3284, %v3280
    %v4157 = vpack.c.b16 %v3285, %v3281
    %v4158 = vpack.c.b16 %v3286, %v3282
    %v4159 = vpack.c.b16 %v3287, %v3283
    %v4160 = vpack.c.b16 %v3292, %v3288
    %v4161 = vpack.c.b16 %v3293, %v3289
    %v4162 = vpack.c.b16 %v3294, %v3290
    %v4163 = vpack.c.b16 %v3295, %v3291
    %v4164 = vpack.c.b16 %v3300, %v3296
    %v4165 = vpack.c.b16 %v3301, %v3297
    %v4166 = vpack.c.b16 %v3302, %v3298
    %v4167 = vpack.c.b16 %v3303, %v3299
    %v4168 = vpack.c.b16 %v3308, %v3304
    %v4169 = vpack.c.b16 %v3309, %v3305
    %v4170 = vpack.c.b16 %v3310, %v3306
    %v4171 = vpack.c.b16 %v3311, %v3307
    %v4172 = vpack.c.b16 %v3316, %v3312
    %v4173 = vpack.c.b16 %v3317, %v3313
    %v4174 = vpack.c.b16 %v3318, %v3314
    %v4175 = vpack.c.b16 %v3319, %v3315
    %v4176 = vpack.c.b16 %v3324, %v3320
    %v4177 = vpack.c.b16 %v3325, %v3321
    %v4178 = vpack.c.b16 %v3326, %v3322
    %v4179 = vpack.c.b16 %v3327, %v3323
    %v4180 = vpack.c.b16 %v3332, %v3328
    %v4181 = vpack.c.b16 %v3333, %v3329
    %v4182 = vpack.c.b16 %v3334, %v3330
    %v4183 = vpack.c.b16 %v3335, %v3331
    %v4184 = vpack.c.b16 %v3340, %v3336
    %v4185 = vpack.c.b16 %v3341, %v3337
    %v4186 = vpack.c.b16 %v3342, %v3338
    %v4187 = vpack.c.b16 %v3343, %v3339
    %v4188 = vpack.c.b16 %v3348, %v3344
    %v4189 = vpack.c.b16 %v3349, %v3345
    %v4190 = vpack.c.b16 %v3350, %v3346
    %v4191 = vpack.c.b16 %v3351, %v3347
    %v4192 = vpack.c.b16 %v3356, %v3352
    %v4193 = vpack.c.b16 %v3357, %v3353
    %v4194 = vpack.c.b16 %v3358, %v3354
    %v4195 = vpack.c.b16 %v3359, %v3355
    %v4196 = vpack.c.b16 %v3364, %v3360
    %v4197 = vpack.c.b16 %v3365, %v3361
    %v4198 = vpack.c.b16 %v3366, %v3362
    %v4199 = vpack.c.b16 %v3367, %v3363
    %v4200 = vpack.c.b16 %v3372, %v3368
    %v4201 = vpack.c.b16 %v3373, %v3369
    %v4202 = vpack.c.b16 %v3374, %v3370
    %v4203 = vpack.c.b16 %v3375, %v3371
    %v4204 = vpack.c.b16 %v3380, %v3376
    %v4205 = vpack.c.b16 %v3381, %v3377
    %v4206 = vpack.c.b16 %v3382, %v3378
    %v4207 = vpack.c.b16 %v3383, %v3379
    %v4208 = vpack.c.b16 %v3388, %v3384
    %v4209 = vpack.c.b16 %v3389, %v3385
    %v4210 = vpack.c.b16 %v3390, %v3386
    %v4211 = vpack.c.b16 %v3391, %v3387
    %v4212 = vpack.c.b16 %v3396, %v3392
    %v4213 = vpack.c.b16 %v3397, %v3393
    %v4214 = vpack.c.b16 %v3398, %v3394
    %v4215 = vpack.c.b16 %v3399, %v3395
    %v4216 = vpack.c.b16 %v3404, %v3400
    %v4217 = vpack.c.b16 %v3405, %v3401
    %v4218 = vpack.c.b16 %v3406, %v3402
    %v4219 = vpack.c.b16 %v3407, %v3403
    %v4220 = vpack.c.b16 %v3412, %v3408
    %v4221 = vpack.c.b16 %v3413, %v3409
    %v4222 = vpack.c.b16 %v3414, %v3410
    %v4223 = vpack.c.b16 %v3415, %v3411
    %v4224 = vpack.c.b16 %v3420, %v3416
    %v4225 = vpack.c.b16 %v3421, %v3417
    %v4226 = vpack.c.b16 %v3422, %v3418
    %v4227 = vpack.c.b16 %v3423, %v3419
    %v4228 = vpack.c.b16 %v3428, %v3424
    %v4229 = vpack.c.b16 %v3429, %v3425
    %v4230 = vpack.c.b16 %v3430, %v3426
    %v4231 = vpack.c.b16 %v3431, %v3427
    %v4232 = vpack.c.b16 %v3436, %v3432
    %v4233 = vpack.c.b16 %v3437, %v3433
    %v4234 = vpack.c.b16 %v3438, %v3434
    %v4235 = vpack.c.b16 %v3439, %v3435
    %v4236 = vpack.c.b16 %v3444, %v3440
    %v4237 = vpack.c.b16 %v3445, %v3441
    %v4238 = vpack.c.b16 %v3446, %v3442
    %v4239 = vpack.c.b16 %v3447, %v3443
    %v4240 = vpack.c.b16 %v3452, %v3448
    %v4241 = vpack.c.b16 %v3453, %v3449
    %v4242 = vpack.c.b16 %v3454, %v3450
    %v4243 = vpack.c.b16 %v3455, %v3451
    %v4244 = vpack.c.b16 %v3460, %v3456
    %v4245 = vpack.c.b16 %v3461, %v3457
    %v4246 = vpack.c.b16 %v3462, %v3458
    %v4247 = vpack.c.b16 %v3463, %v3459
    %vm5032 = vcmask 523264
    %v5034 = vsel %vm5032, %v1087, 0
    %5036 = vmatprep.subr.bf16.mxu0 %v3493
    %5037 = vmatpush1.bf16.msra.mxu0 %v3492
    %5038 = vmatprep.subr.bf16.mxu0 %v3489
    %5039 = vmatpush1.bf16.msra.mxu0 %v3488
    %5040 = vmatprep.subr.bf16.mxu0 %v3485
    %5041 = vmatpush1.bf16.msra.mxu0 %v3484
    %5042 = vmatprep.subr.bf16.mxu0 %v3481
    %5043 = vmatpush1.bf16.msra.mxu0 %v3480
    %5044 = vmatprep.subr.bf16.mxu0 %v3477
    %5045 = vmatpush1.bf16.msra.mxu0 %v3476
    %5046 = vmatprep.subr.bf16.mxu0 %v3473
    %5047 = vmatpush1.bf16.msra.mxu0 %v3472
    %5048 = vmatprep.subr.bf16.mxu0 %v3469
    %5049 = vmatpush1.bf16.msra.mxu0 %v3468
    %5050 = vmatprep.subr.bf16.mxu0 %v3465
    %5051 = vmatpush1.bf16.msra.mxu0 %v3464
    %5052 = vmatprep.subr.bf16.mxu0 %v3525
    %5053 = vmatpush2.bf16.msra.mxu0 %v3524
    %5054 = vmatprep.subr.bf16.mxu0 %v3521
    %5055 = vmatpush2.bf16.msra.mxu0 %v3520
    %5056 = vmatprep.subr.bf16.mxu0 %v3517
    %5057 = vmatpush2.bf16.msra.mxu0 %v3516
    %5058 = vmatprep.subr.bf16.mxu0 %v3513
    %5059 = vmatpush2.bf16.msra.mxu0 %v3512
    %5060 = vmatprep.subr.bf16.mxu0 %v3509
    %5061 = vmatpush2.bf16.msra.mxu0 %v3508
    %5062 = vmatprep.subr.bf16.mxu0 %v3505
    %5063 = vmatpush2.bf16.msra.mxu0 %v3504
    %5064 = vmatprep.subr.bf16.mxu0 %v3501
    %5065 = vmatpush2.bf16.msra.mxu0 %v3500
    %5066 = vmatprep.subr.bf16.mxu0 %v3497
    %5067 = vmatpush2.bf16.msra.mxu0 %v3496
    %5068 = vmatprep.mubr.bf16.mxu0 %v916
    %5069 = vmatmul.mubr.bf16.gmra.mxu0 %v902
    %v5070 = vpop.f32.mrf.mxu0
    %v5071 = vadd.f32 %v827, %v5070
    %v5072 = vpop.f32.mrf.mxu0
    %v5073 = vadd.f32 %v831, %v5072
    %v5074 = vpop.f32.mrf.mxu0
    %v5075 = vpop.f32.mrf.mxu0
    %5076 = vdwg.mxu0
    %5077 = vmatprep.subr.bf16.mxu0 %v3557
    %5078 = vmatpush1.bf16.msra.mxu0 %v3556
    %5079 = vmatprep.subr.bf16.mxu0 %v3553
    %5080 = vmatpush1.bf16.msra.mxu0 %v3552
    %5081 = vmatprep.subr.bf16.mxu0 %v3549
    %5082 = vmatpush1.bf16.msra.mxu0 %v3548
    %5083 = vmatprep.subr.bf16.mxu0 %v3545
    %5084 = vmatpush1.bf16.msra.mxu0 %v3544
    %5085 = vmatprep.subr.bf16.mxu0 %v3541
    %5086 = vmatpush1.bf16.msra.mxu0 %v3540
    %5087 = vmatprep.subr.bf16.mxu0 %v3537
    %5088 = vmatpush1.bf16.msra.mxu0 %v3536
    %5089 = vmatprep.subr.bf16.mxu0 %v3533
    %5090 = vmatpush1.bf16.msra.mxu0 %v3532
    %5091 = vmatprep.subr.bf16.mxu0 %v3529
    %5092 = vmatpush1.bf16.msra.mxu0 %v3528
    %5093 = vmatprep.subr.bf16.mxu0 %v3589
    %5094 = vmatpush2.bf16.msra.mxu0 %v3588
    %5095 = vmatprep.subr.bf16.mxu0 %v3585
    %5096 = vmatpush2.bf16.msra.mxu0 %v3584
    %5097 = vmatprep.subr.bf16.mxu0 %v3581
    %5098 = vmatpush2.bf16.msra.mxu0 %v3580
    %5099 = vmatprep.subr.bf16.mxu0 %v3577
    %5100 = vmatpush2.bf16.msra.mxu0 %v3576
    %5101 = vmatprep.subr.bf16.mxu0 %v3573
    %5102 = vmatpush2.bf16.msra.mxu0 %v3572
    %5103 = vmatprep.subr.bf16.mxu0 %v3569
    %5104 = vmatpush2.bf16.msra.mxu0 %v3568
    %5105 = vmatprep.subr.bf16.mxu0 %v3565
    %5106 = vmatpush2.bf16.msra.mxu0 %v3564
    %5107 = vmatprep.subr.bf16.mxu0 %v3561
    %5108 = vmatpush2.bf16.msra.mxu0 %v3560
    %5109 = vmatprep.mubr.bf16.mxu0 %v926
    %5110 = vmatmul.mubr.bf16.gmra.mxu0 %v924
    %v5111 = vpop.f32.mrf.mxu0
    %v5112 = vadd.f32 %v5071, %v5111
    %v5113 = vpop.f32.mrf.mxu0
    %v5114 = vadd.f32 %v5073, %v5113
    %v5115 = vpop.f32.mrf.mxu0
    %v5116 = vpop.f32.mrf.mxu0
    %5117 = vdwg.mxu0
    %5118 = vmatprep.subr.bf16.mxu0 %v3621
    %5119 = vmatpush1.bf16.msra.mxu0 %v3620
    %5120 = vmatprep.subr.bf16.mxu0 %v3617
    %5121 = vmatpush1.bf16.msra.mxu0 %v3616
    %5122 = vmatprep.subr.bf16.mxu0 %v3613
    %5123 = vmatpush1.bf16.msra.mxu0 %v3612
    %5124 = vmatprep.subr.bf16.mxu0 %v3609
    %5125 = vmatpush1.bf16.msra.mxu0 %v3608
    %5126 = vmatprep.subr.bf16.mxu0 %v3605
    %5127 = vmatpush1.bf16.msra.mxu0 %v3604
    %5128 = vmatprep.subr.bf16.mxu0 %v3601
    %5129 = vmatpush1.bf16.msra.mxu0 %v3600
    %5130 = vmatprep.subr.bf16.mxu0 %v3597
    %5131 = vmatpush1.bf16.msra.mxu0 %v3596
    %5132 = vmatprep.subr.bf16.mxu0 %v3593
    %5133 = vmatpush1.bf16.msra.mxu0 %v3592
    %5134 = vmatprep.subr.bf16.mxu0 %v3653
    %5135 = vmatpush2.bf16.msra.mxu0 %v3652
    %5136 = vmatprep.subr.bf16.mxu0 %v3649
    %5137 = vmatpush2.bf16.msra.mxu0 %v3648
    %5138 = vmatprep.subr.bf16.mxu0 %v3645
    %5139 = vmatpush2.bf16.msra.mxu0 %v3644
    %5140 = vmatprep.subr.bf16.mxu0 %v3641
    %5141 = vmatpush2.bf16.msra.mxu0 %v3640
    %5142 = vmatprep.subr.bf16.mxu0 %v3637
    %5143 = vmatpush2.bf16.msra.mxu0 %v3636
    %5144 = vmatprep.subr.bf16.mxu0 %v3633
    %5145 = vmatpush2.bf16.msra.mxu0 %v3632
    %5146 = vmatprep.subr.bf16.mxu0 %v3629
    %5147 = vmatpush2.bf16.msra.mxu0 %v3628
    %5148 = vmatprep.subr.bf16.mxu0 %v3625
    %5149 = vmatpush2.bf16.msra.mxu0 %v3624
    %5150 = vmatprep.mubr.bf16.mxu0 %v923
    %5151 = vmatmul.mubr.bf16.gmra.mxu0 %v909
    %v5152 = vpop.f32.mrf.mxu0
    %v5153 = vadd.f32 %v5112, %v5152
    %v5154 = vpop.f32.mrf.mxu0
    %v5155 = vadd.f32 %v5114, %v5154
    %v5156 = vpop.f32.mrf.mxu0
    %v5157 = vpop.f32.mrf.mxu0
    %5158 = vdwg.mxu0
    %5159 = vmatprep.subr.bf16.mxu0 %v3685
    %5160 = vmatpush1.bf16.msra.mxu0 %v3684
    %5161 = vmatprep.subr.bf16.mxu0 %v3681
    %5162 = vmatpush1.bf16.msra.mxu0 %v3680
    %5163 = vmatprep.subr.bf16.mxu0 %v3677
    %5164 = vmatpush1.bf16.msra.mxu0 %v3676
    %5165 = vmatprep.subr.bf16.mxu0 %v3673
    %5166 = vmatpush1.bf16.msra.mxu0 %v3672
    %5167 = vmatprep.subr.bf16.mxu0 %v3669
    %5168 = vmatpush1.bf16.msra.mxu0 %v3668
    %5169 = vmatprep.subr.bf16.mxu0 %v3665
    %5170 = vmatpush1.bf16.msra.mxu0 %v3664
    %5171 = vmatprep.subr.bf16.mxu0 %v3661
    %5172 = vmatpush1.bf16.msra.mxu0 %v3660
    %5173 = vmatprep.subr.bf16.mxu0 %v3657
    %5174 = vmatpush1.bf16.msra.mxu0 %v3656
    %5175 = vmatprep.subr.bf16.mxu0 %v3717
    %5176 = vmatpush2.bf16.msra.mxu0 %v3716
    %5177 = vmatprep.subr.bf16.mxu0 %v3713
    %5178 = vmatpush2.bf16.msra.mxu0 %v3712
    %5179 = vmatprep.subr.bf16.mxu0 %v3709
    %5180 = vmatpush2.bf16.msra.mxu0 %v3708
    %5181 = vmatprep.subr.bf16.mxu0 %v3705
    %5182 = vmatpush2.bf16.msra.mxu0 %v3704
    %5183 = vmatprep.subr.bf16.mxu0 %v3701
    %5184 = vmatpush2.bf16.msra.mxu0 %v3700
    %5185 = vmatprep.subr.bf16.mxu0 %v3697
    %5186 = vmatpush2.bf16.msra.mxu0 %v3696
    %5187 = vmatprep.subr.bf16.mxu0 %v3693
    %5188 = vmatpush2.bf16.msra.mxu0 %v3692
    %5189 = vmatprep.subr.bf16.mxu0 %v3689
    %5190 = vmatpush2.bf16.msra.mxu0 %v3688
    %5191 = vmatprep.mubr.bf16.mxu0 %v927
    %5192 = vmatmul.mubr.bf16.gmra.mxu0 %v925
    %v5193 = vpop.f32.mrf.mxu0
    %v5194 = vadd.f32 %v5153, %v5193
    %v5195 = vpop.f32.mrf.mxu0
    %v5196 = vadd.f32 %v5155, %v5195
    %v5197 = vpop.f32.mrf.mxu0
    %v5198 = vpop.f32.mrf.mxu0
    %5199 = vdwg.mxu0
    %5200 = vmatprep.subr.bf16.mxu0 %v3749
    %5201 = vmatpush1.bf16.msra.mxu0 %v3748
    %5202 = vmatprep.subr.bf16.mxu0 %v3745
    %5203 = vmatpush1.bf16.msra.mxu0 %v3744
    %5204 = vmatprep.subr.bf16.mxu0 %v3741
    %5205 = vmatpush1.bf16.msra.mxu0 %v3740
    %5206 = vmatprep.subr.bf16.mxu0 %v3737
    %5207 = vmatpush1.bf16.msra.mxu0 %v3736
    %5208 = vmatprep.subr.bf16.mxu0 %v3733
    %5209 = vmatpush1.bf16.msra.mxu0 %v3732
    %5210 = vmatprep.subr.bf16.mxu0 %v3729
    %5211 = vmatpush1.bf16.msra.mxu0 %v3728
    %5212 = vmatprep.subr.bf16.mxu0 %v3725
    %5213 = vmatpush1.bf16.msra.mxu0 %v3724
    %5214 = vmatprep.subr.bf16.mxu0 %v3721
    %5215 = vmatpush1.bf16.msra.mxu0 %v3720
    %5216 = vmatprep.subr.bf16.mxu0 %v3781
    %5217 = vmatpush2.bf16.msra.mxu0 %v3780
    %5218 = vmatprep.subr.bf16.mxu0 %v3777
    %5219 = vmatpush2.bf16.msra.mxu0 %v3776
    %5220 = vmatprep.subr.bf16.mxu0 %v3773
    %5221 = vmatpush2.bf16.msra.mxu0 %v3772
    %5222 = vmatprep.subr.bf16.mxu0 %v3769
    %5223 = vmatpush2.bf16.msra.mxu0 %v3768
    %5224 = vmatprep.subr.bf16.mxu0 %v3765
    %5225 = vmatpush2.bf16.msra.mxu0 %v3764
    %5226 = vmatprep.subr.bf16.mxu0 %v3761
    %5227 = vmatpush2.bf16.msra.mxu0 %v3760
    %5228 = vmatprep.subr.bf16.mxu0 %v3757
    %5229 = vmatpush2.bf16.msra.mxu0 %v3756
    %5230 = vmatprep.subr.bf16.mxu0 %v3753
    %5231 = vmatpush2.bf16.msra.mxu0 %v3752
    %5232 = vmatprep.mubr.bf16.mxu0 %v984
    %5233 = vmatmul.mubr.bf16.gmra.mxu0 %v970
    %v5234 = vpop.f32.mrf.mxu0
    %v5235 = vadd.f32 %v5194, %v5234
    %v5236 = vpop.f32.mrf.mxu0
    %v5237 = vadd.f32 %v5196, %v5236
    %v5238 = vpop.f32.mrf.mxu0
    %v5239 = vpop.f32.mrf.mxu0
    %5240 = vdwg.mxu0
    %5241 = vmatprep.subr.bf16.mxu0 %v3813
    %5242 = vmatpush1.bf16.msra.mxu0 %v3812
    %5243 = vmatprep.subr.bf16.mxu0 %v3809
    %5244 = vmatpush1.bf16.msra.mxu0 %v3808
    %5245 = vmatprep.subr.bf16.mxu0 %v3805
    %5246 = vmatpush1.bf16.msra.mxu0 %v3804
    %5247 = vmatprep.subr.bf16.mxu0 %v3801
    %5248 = vmatpush1.bf16.msra.mxu0 %v3800
    %5249 = vmatprep.subr.bf16.mxu0 %v3797
    %5250 = vmatpush1.bf16.msra.mxu0 %v3796
    %5251 = vmatprep.subr.bf16.mxu0 %v3793
    %5252 = vmatpush1.bf16.msra.mxu0 %v3792
    %5253 = vmatprep.subr.bf16.mxu0 %v3789
    %5254 = vmatpush1.bf16.msra.mxu0 %v3788
    %5255 = vmatprep.subr.bf16.mxu0 %v3785
    %5256 = vmatpush1.bf16.msra.mxu0 %v3784
    %5257 = vmatprep.subr.bf16.mxu0 %v3845
    %5258 = vmatpush2.bf16.msra.mxu0 %v3844
    %5259 = vmatprep.subr.bf16.mxu0 %v3841
    %5260 = vmatpush2.bf16.msra.mxu0 %v3840
    %5261 = vmatprep.subr.bf16.mxu0 %v3837
    %5262 = vmatpush2.bf16.msra.mxu0 %v3836
    %5263 = vmatprep.subr.bf16.mxu0 %v3833
    %5264 = vmatpush2.bf16.msra.mxu0 %v3832
    %5265 = vmatprep.subr.bf16.mxu0 %v3829
    %5266 = vmatpush2.bf16.msra.mxu0 %v3828
    %5267 = vmatprep.subr.bf16.mxu0 %v3825
    %5268 = vmatpush2.bf16.msra.mxu0 %v3824
    %5269 = vmatprep.subr.bf16.mxu0 %v3821
    %5270 = vmatpush2.bf16.msra.mxu0 %v3820
    %5271 = vmatprep.subr.bf16.mxu0 %v3817
    %5272 = vmatpush2.bf16.msra.mxu0 %v3816
    %5273 = vmatprep.mubr.bf16.mxu0 %v994
    %5274 = vmatmul.mubr.bf16.gmra.mxu0 %v992
    %v5275 = vpop.f32.mrf.mxu0
    %v5276 = vadd.f32 %v5235, %v5275
    %v5277 = vpop.f32.mrf.mxu0
    %v5278 = vadd.f32 %v5237, %v5277
    %v5279 = vpop.f32.mrf.mxu0
    %v5280 = vpop.f32.mrf.mxu0
    %5281 = vdwg.mxu0
    %5282 = vmatprep.subr.bf16.mxu0 %v3877
    %5283 = vmatpush1.bf16.msra.mxu0 %v3876
    %5284 = vmatprep.subr.bf16.mxu0 %v3873
    %5285 = vmatpush1.bf16.msra.mxu0 %v3872
    %5286 = vmatprep.subr.bf16.mxu0 %v3869
    %5287 = vmatpush1.bf16.msra.mxu0 %v3868
    %5288 = vmatprep.subr.bf16.mxu0 %v3865
    %5289 = vmatpush1.bf16.msra.mxu0 %v3864
    %5290 = vmatprep.subr.bf16.mxu0 %v3861
    %5291 = vmatpush1.bf16.msra.mxu0 %v3860
    %5292 = vmatprep.subr.bf16.mxu0 %v3857
    %5293 = vmatpush1.bf16.msra.mxu0 %v3856
    %5294 = vmatprep.subr.bf16.mxu0 %v3853
    %5295 = vmatpush1.bf16.msra.mxu0 %v3852
    %5296 = vmatprep.subr.bf16.mxu0 %v3849
    %5297 = vmatpush1.bf16.msra.mxu0 %v3848
    %5298 = vmatprep.subr.bf16.mxu0 %v3909
    %5299 = vmatpush2.bf16.msra.mxu0 %v3908
    %5300 = vmatprep.subr.bf16.mxu0 %v3905
    %5301 = vmatpush2.bf16.msra.mxu0 %v3904
    %5302 = vmatprep.subr.bf16.mxu0 %v3901
    %5303 = vmatpush2.bf16.msra.mxu0 %v3900
    %5304 = vmatprep.subr.bf16.mxu0 %v3897
    %5305 = vmatpush2.bf16.msra.mxu0 %v3896
    %5306 = vmatprep.subr.bf16.mxu0 %v3893
    %5307 = vmatpush2.bf16.msra.mxu0 %v3892
    %5308 = vmatprep.subr.bf16.mxu0 %v3889
    %5309 = vmatpush2.bf16.msra.mxu0 %v3888
    %5310 = vmatprep.subr.bf16.mxu0 %v3885
    %5311 = vmatpush2.bf16.msra.mxu0 %v3884
    %5312 = vmatprep.subr.bf16.mxu0 %v3881
    %5313 = vmatpush2.bf16.msra.mxu0 %v3880
    %5314 = vmatprep.mubr.bf16.mxu0 %v991
    %5315 = vmatmul.mubr.bf16.gmra.mxu0 %v977
    %v5316 = vpop.f32.mrf.mxu0
    %v5317 = vadd.f32 %v5276, %v5316
    %v5318 = vpop.f32.mrf.mxu0
    %v5319 = vadd.f32 %v5278, %v5318
    %v5320 = vpop.f32.mrf.mxu0
    %v5321 = vpop.f32.mrf.mxu0
    %5322 = vdwg.mxu0
    %5323 = vmatprep.subr.bf16.mxu0 %v3941
    %5324 = vmatpush1.bf16.msra.mxu0 %v3940
    %5325 = vmatprep.subr.bf16.mxu0 %v3937
    %5326 = vmatpush1.bf16.msra.mxu0 %v3936
    %5327 = vmatprep.subr.bf16.mxu0 %v3933
    %5328 = vmatpush1.bf16.msra.mxu0 %v3932
    %5329 = vmatprep.subr.bf16.mxu0 %v3929
    %5330 = vmatpush1.bf16.msra.mxu0 %v3928
    %5331 = vmatprep.subr.bf16.mxu0 %v3925
    %5332 = vmatpush1.bf16.msra.mxu0 %v3924
    %5333 = vmatprep.subr.bf16.mxu0 %v3921
    %5334 = vmatpush1.bf16.msra.mxu0 %v3920
    %5335 = vmatprep.subr.bf16.mxu0 %v3917
    %5336 = vmatpush1.bf16.msra.mxu0 %v3916
    %5337 = vmatprep.subr.bf16.mxu0 %v3913
    %5338 = vmatpush1.bf16.msra.mxu0 %v3912
    %5339 = vmatprep.subr.bf16.mxu0 %v3973
    %5340 = vmatpush2.bf16.msra.mxu0 %v3972
    %5341 = vmatprep.subr.bf16.mxu0 %v3969
    %5342 = vmatpush2.bf16.msra.mxu0 %v3968
    %5343 = vmatprep.subr.bf16.mxu0 %v3965
    %5344 = vmatpush2.bf16.msra.mxu0 %v3964
    %5345 = vmatprep.subr.bf16.mxu0 %v3961
    %5346 = vmatpush2.bf16.msra.mxu0 %v3960
    %5347 = vmatprep.subr.bf16.mxu0 %v3957
    %5348 = vmatpush2.bf16.msra.mxu0 %v3956
    %5349 = vmatprep.subr.bf16.mxu0 %v3953
    %5350 = vmatpush2.bf16.msra.mxu0 %v3952
    %5351 = vmatprep.subr.bf16.mxu0 %v3949
    %5352 = vmatpush2.bf16.msra.mxu0 %v3948
    %5353 = vmatprep.subr.bf16.mxu0 %v3945
    %5354 = vmatpush2.bf16.msra.mxu0 %v3944
    %5355 = vmatprep.mubr.bf16.mxu0 %v995
    %5356 = vmatmul.mubr.bf16.gmra.mxu0 %v993
    %v5357 = vpop.f32.mrf.mxu0
    %v5358 = vadd.f32 %v5317, %v5357
    %v5359 = vpop.f32.mrf.mxu0
    %v5360 = vadd.f32 %v5319, %v5359
    %v5361 = vpop.f32.mrf.mxu0
    %v5362 = vpop.f32.mrf.mxu0
    %5363 = vdwg.mxu0
    %5364 = vmatprep.subr.bf16.mxu0 %v4005
    %5365 = vmatpush1.bf16.msra.mxu0 %v4004
    %5366 = vmatprep.subr.bf16.mxu0 %v4001
    %5367 = vmatpush1.bf16.msra.mxu0 %v4000
    %5368 = vmatprep.subr.bf16.mxu0 %v3997
    %5369 = vmatpush1.bf16.msra.mxu0 %v3996
    %5370 = vmatprep.subr.bf16.mxu0 %v3993
    %5371 = vmatpush1.bf16.msra.mxu0 %v3992
    %5372 = vmatprep.subr.bf16.mxu0 %v3989
    %5373 = vmatpush1.bf16.msra.mxu0 %v3988
    %5374 = vmatprep.subr.bf16.mxu0 %v3985
    %5375 = vmatpush1.bf16.msra.mxu0 %v3984
    %5376 = vmatprep.subr.bf16.mxu0 %v3981
    %5377 = vmatpush1.bf16.msra.mxu0 %v3980
    %5378 = vmatprep.subr.bf16.mxu0 %v3977
    %5379 = vmatpush1.bf16.msra.mxu0 %v3976
    %5380 = vmatprep.subr.bf16.mxu0 %v4037
    %5381 = vmatpush2.bf16.msra.mxu0 %v4036
    %5382 = vmatprep.subr.bf16.mxu0 %v4033
    %5383 = vmatpush2.bf16.msra.mxu0 %v4032
    %5384 = vmatprep.subr.bf16.mxu0 %v4029
    %5385 = vmatpush2.bf16.msra.mxu0 %v4028
    %5386 = vmatprep.subr.bf16.mxu0 %v4025
    %5387 = vmatpush2.bf16.msra.mxu0 %v4024
    %5388 = vmatprep.subr.bf16.mxu0 %v4021
    %5389 = vmatpush2.bf16.msra.mxu0 %v4020
    %5390 = vmatprep.subr.bf16.mxu0 %v4017
    %5391 = vmatpush2.bf16.msra.mxu0 %v4016
    %5392 = vmatprep.subr.bf16.mxu0 %v4013
    %5393 = vmatpush2.bf16.msra.mxu0 %v4012
    %5394 = vmatprep.subr.bf16.mxu0 %v4009
    %5395 = vmatpush2.bf16.msra.mxu0 %v4008
    %5396 = vmatprep.mubr.bf16.mxu0 %v1052
    %5397 = vmatmul.mubr.bf16.gmra.mxu0 %v1038
    %v5398 = vpop.f32.mrf.mxu0
    %v5399 = vadd.f32 %v5358, %v5398
    %v5400 = vpop.f32.mrf.mxu0
    %v5401 = vadd.f32 %v5360, %v5400
    %v5402 = vpop.f32.mrf.mxu0
    %v5403 = vpop.f32.mrf.mxu0
    %5404 = vdwg.mxu0
    %5405 = vmatprep.subr.bf16.mxu0 %v4069
    %5406 = vmatpush1.bf16.msra.mxu0 %v4068
    %5407 = vmatprep.subr.bf16.mxu0 %v4065
    %5408 = vmatpush1.bf16.msra.mxu0 %v4064
    %5409 = vmatprep.subr.bf16.mxu0 %v4061
    %5410 = vmatpush1.bf16.msra.mxu0 %v4060
    %5411 = vmatprep.subr.bf16.mxu0 %v4057
    %5412 = vmatpush1.bf16.msra.mxu0 %v4056
    %5413 = vmatprep.subr.bf16.mxu0 %v4053
    %5414 = vmatpush1.bf16.msra.mxu0 %v4052
    %5415 = vmatprep.subr.bf16.mxu0 %v4049
    %5416 = vmatpush1.bf16.msra.mxu0 %v4048
    %5417 = vmatprep.subr.bf16.mxu0 %v4045
    %5418 = vmatpush1.bf16.msra.mxu0 %v4044
    %5419 = vmatprep.subr.bf16.mxu0 %v4041
    %5420 = vmatpush1.bf16.msra.mxu0 %v4040
    %5421 = vmatprep.subr.bf16.mxu0 %v4101
    %5422 = vmatpush2.bf16.msra.mxu0 %v4100
    %5423 = vmatprep.subr.bf16.mxu0 %v4097
    %5424 = vmatpush2.bf16.msra.mxu0 %v4096
    %5425 = vmatprep.subr.bf16.mxu0 %v4093
    %5426 = vmatpush2.bf16.msra.mxu0 %v4092
    %5427 = vmatprep.subr.bf16.mxu0 %v4089
    %5428 = vmatpush2.bf16.msra.mxu0 %v4088
    %5429 = vmatprep.subr.bf16.mxu0 %v4085
    %5430 = vmatpush2.bf16.msra.mxu0 %v4084
    %5431 = vmatprep.subr.bf16.mxu0 %v4081
    %5432 = vmatpush2.bf16.msra.mxu0 %v4080
    %5433 = vmatprep.subr.bf16.mxu0 %v4077
    %5434 = vmatpush2.bf16.msra.mxu0 %v4076
    %5435 = vmatprep.subr.bf16.mxu0 %v4073
    %5436 = vmatpush2.bf16.msra.mxu0 %v4072
    %5437 = vmatprep.mubr.bf16.mxu0 %v1062
    %5438 = vmatmul.mubr.bf16.gmra.mxu0 %v1060
    %v5439 = vpop.f32.mrf.mxu0
    %v5440 = vadd.f32 %v5399, %v5439
    %v5441 = vpop.f32.mrf.mxu0
    %v5442 = vadd.f32 %v5401, %v5441
    %v5443 = vpop.f32.mrf.mxu0
    %v5444 = vpop.f32.mrf.mxu0
    %5445 = vdwg.mxu0
    %5446 = vmatprep.subr.bf16.mxu0 %v4133
    %5447 = vmatpush1.bf16.msra.mxu0 %v4132
    %5448 = vmatprep.subr.bf16.mxu0 %v4129
    %5449 = vmatpush1.bf16.msra.mxu0 %v4128
    %5450 = vmatprep.subr.bf16.mxu0 %v4125
    %5451 = vmatpush1.bf16.msra.mxu0 %v4124
    %5452 = vmatprep.subr.bf16.mxu0 %v4121
    %5453 = vmatpush1.bf16.msra.mxu0 %v4120
    %5454 = vmatprep.subr.bf16.mxu0 %v4117
    %5455 = vmatpush1.bf16.msra.mxu0 %v4116
    %5456 = vmatprep.subr.bf16.mxu0 %v4113
    %5457 = vmatpush1.bf16.msra.mxu0 %v4112
    %5458 = vmatprep.subr.bf16.mxu0 %v4109
    %5459 = vmatpush1.bf16.msra.mxu0 %v4108
    %5460 = vmatprep.subr.bf16.mxu0 %v4105
    %5461 = vmatpush1.bf16.msra.mxu0 %v4104
    %5462 = vmatprep.subr.bf16.mxu0 %v4165
    %5463 = vmatpush2.bf16.msra.mxu0 %v4164
    %5464 = vmatprep.subr.bf16.mxu0 %v4161
    %5465 = vmatpush2.bf16.msra.mxu0 %v4160
    %5466 = vmatprep.subr.bf16.mxu0 %v4157
    %5467 = vmatpush2.bf16.msra.mxu0 %v4156
    %5468 = vmatprep.subr.bf16.mxu0 %v4153
    %5469 = vmatpush2.bf16.msra.mxu0 %v4152
    %5470 = vmatprep.subr.bf16.mxu0 %v4149
    %5471 = vmatpush2.bf16.msra.mxu0 %v4148
    %5472 = vmatprep.subr.bf16.mxu0 %v4145
    %5473 = vmatpush2.bf16.msra.mxu0 %v4144
    %5474 = vmatprep.subr.bf16.mxu0 %v4141
    %5475 = vmatpush2.bf16.msra.mxu0 %v4140
    %5476 = vmatprep.subr.bf16.mxu0 %v4137
    %5477 = vmatpush2.bf16.msra.mxu0 %v4136
    %5478 = vmatprep.mubr.bf16.mxu0 %v1059
    %5479 = vmatmul.mubr.bf16.gmra.mxu0 %v1045
    %v5480 = vpop.f32.mrf.mxu0
    %v5481 = vadd.f32 %v5440, %v5480
    %v5482 = vpop.f32.mrf.mxu0
    %v5483 = vadd.f32 %v5442, %v5482
    %v5484 = vpop.f32.mrf.mxu0
    %v5485 = vpop.f32.mrf.mxu0
    %5486 = vdwg.mxu0
    %5487 = vmatprep.subr.bf16.mxu0 %v4197
    %5488 = vmatpush1.bf16.msra.mxu0 %v4196
    %5489 = vmatprep.subr.bf16.mxu0 %v4193
    %5490 = vmatpush1.bf16.msra.mxu0 %v4192
    %5491 = vmatprep.subr.bf16.mxu0 %v4189
    %5492 = vmatpush1.bf16.msra.mxu0 %v4188
    %5493 = vmatprep.subr.bf16.mxu0 %v4185
    %5494 = vmatpush1.bf16.msra.mxu0 %v4184
    %5495 = vmatprep.subr.bf16.mxu0 %v4181
    %5496 = vmatpush1.bf16.msra.mxu0 %v4180
    %5497 = vmatprep.subr.bf16.mxu0 %v4177
    %5498 = vmatpush1.bf16.msra.mxu0 %v4176
    %5499 = vmatprep.subr.bf16.mxu0 %v4173
    %5500 = vmatpush1.bf16.msra.mxu0 %v4172
    %5501 = vmatprep.subr.bf16.mxu0 %v4169
    %5502 = vmatpush1.bf16.msra.mxu0 %v4168
    %5503 = vmatprep.subr.bf16.mxu0 %v4229
    %5504 = vmatpush2.bf16.msra.mxu0 %v4228
    %5505 = vmatprep.subr.bf16.mxu0 %v4225
    %5506 = vmatpush2.bf16.msra.mxu0 %v4224
    %5507 = vmatprep.subr.bf16.mxu0 %v4221
    %5508 = vmatpush2.bf16.msra.mxu0 %v4220
    %5509 = vmatprep.subr.bf16.mxu0 %v4217
    %5510 = vmatpush2.bf16.msra.mxu0 %v4216
    %5511 = vmatprep.subr.bf16.mxu0 %v4213
    %5512 = vmatpush2.bf16.msra.mxu0 %v4212
    %5513 = vmatprep.subr.bf16.mxu0 %v4209
    %5514 = vmatpush2.bf16.msra.mxu0 %v4208
    %5515 = vmatprep.subr.bf16.mxu0 %v4205
    %5516 = vmatpush2.bf16.msra.mxu0 %v4204
    %5517 = vmatprep.subr.bf16.mxu0 %v4201
    %5518 = vmatpush2.bf16.msra.mxu0 %v4200
    %5519 = vmatprep.mubr.bf16.mxu0 %v1063
    %5520 = vmatmul.mubr.bf16.gmra.mxu0 %v1061
    %v5521 = vpop.f32.mrf.mxu0
    %v5522 = vadd.f32 %v5481, %v5521
    %v5523 = vpop.f32.mrf.mxu0
    %v5524 = vadd.f32 %v5483, %v5523
    %v5525 = vpop.f32.mrf.mxu0
    %v5526 = vpop.f32.mrf.mxu0
    %5527 = vdwg.mxu0
    %5528 = vmatprep.subr.bf16.mxu0 0
    %5529 = vmatpush1.bf16.msra.mxu0 0
    %5530 = vmatprep.subr.bf16.mxu0 0
    %5531 = vmatpush1.bf16.msra.mxu0 0
    %5532 = vmatprep.subr.bf16.mxu0 0
    %5533 = vmatpush1.bf16.msra.mxu0 0
    %5534 = vmatprep.subr.bf16.mxu0 0
    %5535 = vmatpush1.bf16.msra.mxu0 0
    %5536 = vmatprep.subr.bf16.mxu0 %v4245
    %5537 = vmatpush1.bf16.msra.mxu0 %v4244
    %5538 = vmatprep.subr.bf16.mxu0 %v4241
    %5539 = vmatpush1.bf16.msra.mxu0 %v4240
    %5540 = vmatprep.subr.bf16.mxu0 %v4237
    %5541 = vmatpush1.bf16.msra.mxu0 %v4236
    %5542 = vmatprep.subr.bf16.mxu0 %v4233
    %5543 = vmatpush1.bf16.msra.mxu0 %v4232
    %5544 = vmatprep.subr.bf16.mxu0 0
    %5545 = vmatpush2.bf16.msra.mxu0 0
    %5546 = vmatprep.subr.bf16.mxu0 0
    %5547 = vmatpush2.bf16.msra.mxu0 0
    %5548 = vmatprep.subr.bf16.mxu0 0
    %5549 = vmatpush2.bf16.msra.mxu0 0
    %5550 = vmatprep.subr.bf16.mxu0 0
    %5551 = vmatpush2.bf16.msra.mxu0 0
    %5552 = vmatprep.subr.bf16.mxu0 0
    %5553 = vmatpush2.bf16.msra.mxu0 0
    %5554 = vmatprep.subr.bf16.mxu0 0
    %5555 = vmatpush2.bf16.msra.mxu0 0
    %5556 = vmatprep.subr.bf16.mxu0 0
    %5557 = vmatpush2.bf16.msra.mxu0 0
    %5558 = vmatprep.subr.bf16.mxu0 0
    %5559 = vmatpush2.bf16.msra.mxu0 0
    %5560 = vmatprep.mubr.bf16.mxu0 0
    %5561 = vmatmul.mubr.bf16.gmra.mxu0 %v5034
    %v5562 = vpop.f32.mrf.mxu0
    %v5563 = vadd.f32 %v5522, %v5562
    %v5564 = vpop.f32.mrf.mxu0
    %v5565 = vadd.f32 %v5524, %v5564
    %v5566 = vpop.f32.mrf.mxu0
    %v5567 = vpop.f32.mrf.mxu0
    %5568 = vdwg.mxu0
    %5569 = vmatprep.subr.bf16.mxu0 %v3495
    %5570 = vmatpush1.bf16.msra.mxu0 %v3494
    %5571 = vmatprep.subr.bf16.mxu0 %v3491
    %5572 = vmatpush1.bf16.msra.mxu0 %v3490
    %5573 = vmatprep.subr.bf16.mxu0 %v3487
    %5574 = vmatpush1.bf16.msra.mxu0 %v3486
    %5575 = vmatprep.subr.bf16.mxu0 %v3483
    %5576 = vmatpush1.bf16.msra.mxu0 %v3482
    %5577 = vmatprep.subr.bf16.mxu0 %v3479
    %5578 = vmatpush1.bf16.msra.mxu0 %v3478
    %5579 = vmatprep.subr.bf16.mxu0 %v3475
    %5580 = vmatpush1.bf16.msra.mxu0 %v3474
    %5581 = vmatprep.subr.bf16.mxu0 %v3471
    %5582 = vmatpush1.bf16.msra.mxu0 %v3470
    %5583 = vmatprep.subr.bf16.mxu0 %v3467
    %5584 = vmatpush1.bf16.msra.mxu0 %v3466
    %5585 = vmatprep.subr.bf16.mxu0 %v3527
    %5586 = vmatpush2.bf16.msra.mxu0 %v3526
    %5587 = vmatprep.subr.bf16.mxu0 %v3523
    %5588 = vmatpush2.bf16.msra.mxu0 %v3522
    %5589 = vmatprep.subr.bf16.mxu0 %v3519
    %5590 = vmatpush2.bf16.msra.mxu0 %v3518
    %5591 = vmatprep.subr.bf16.mxu0 %v3515
    %5592 = vmatpush2.bf16.msra.mxu0 %v3514
    %5593 = vmatprep.subr.bf16.mxu0 %v3511
    %5594 = vmatpush2.bf16.msra.mxu0 %v3510
    %5595 = vmatprep.subr.bf16.mxu0 %v3507
    %5596 = vmatpush2.bf16.msra.mxu0 %v3506
    %5597 = vmatprep.subr.bf16.mxu0 %v3503
    %5598 = vmatpush2.bf16.msra.mxu0 %v3502
    %5599 = vmatprep.subr.bf16.mxu0 %v3499
    %5600 = vmatpush2.bf16.msra.mxu0 %v3498
    %5601 = vmatprep.mubr.bf16.mxu0 %v916
    %5602 = vmatmul.mubr.bf16.gmra.mxu0 %v902
    %v5603 = vpop.f32.mrf.mxu0
    %v5604 = vadd.f32 %v835, %v5603
    %v5605 = vpop.f32.mrf.mxu0
    %v5606 = vadd.f32 %v839, %v5605
    %v5607 = vpop.f32.mrf.mxu0
    %v5608 = vpop.f32.mrf.mxu0
    %5609 = vdwg.mxu0
    %5610 = vmatprep.subr.bf16.mxu0 %v3559
    %5611 = vmatpush1.bf16.msra.mxu0 %v3558
    %5612 = vmatprep.subr.bf16.mxu0 %v3555
    %5613 = vmatpush1.bf16.msra.mxu0 %v3554
    %5614 = vmatprep.subr.bf16.mxu0 %v3551
    %5615 = vmatpush1.bf16.msra.mxu0 %v3550
    %5616 = vmatprep.subr.bf16.mxu0 %v3547
    %5617 = vmatpush1.bf16.msra.mxu0 %v3546
    %5618 = vmatprep.subr.bf16.mxu0 %v3543
    %5619 = vmatpush1.bf16.msra.mxu0 %v3542
    %5620 = vmatprep.subr.bf16.mxu0 %v3539
    %5621 = vmatpush1.bf16.msra.mxu0 %v3538
    %5622 = vmatprep.subr.bf16.mxu0 %v3535
    %5623 = vmatpush1.bf16.msra.mxu0 %v3534
    %5624 = vmatprep.subr.bf16.mxu0 %v3531
    %5625 = vmatpush1.bf16.msra.mxu0 %v3530
    %5626 = vmatprep.subr.bf16.mxu0 %v3591
    %5627 = vmatpush2.bf16.msra.mxu0 %v3590
    %5628 = vmatprep.subr.bf16.mxu0 %v3587
    %5629 = vmatpush2.bf16.msra.mxu0 %v3586
    %5630 = vmatprep.subr.bf16.mxu0 %v3583
    %5631 = vmatpush2.bf16.msra.mxu0 %v3582
    %5632 = vmatprep.subr.bf16.mxu0 %v3579
    %5633 = vmatpush2.bf16.msra.mxu0 %v3578
    %5634 = vmatprep.subr.bf16.mxu0 %v3575
    %5635 = vmatpush2.bf16.msra.mxu0 %v3574
    %5636 = vmatprep.subr.bf16.mxu0 %v3571
    %5637 = vmatpush2.bf16.msra.mxu0 %v3570
    %5638 = vmatprep.subr.bf16.mxu0 %v3567
    %5639 = vmatpush2.bf16.msra.mxu0 %v3566
    %5640 = vmatprep.subr.bf16.mxu0 %v3563
    %5641 = vmatpush2.bf16.msra.mxu0 %v3562
    %5642 = vmatprep.mubr.bf16.mxu0 %v926
    %5643 = vmatmul.mubr.bf16.gmra.mxu0 %v924
    %v5644 = vpop.f32.mrf.mxu0
    %v5645 = vadd.f32 %v5604, %v5644
    %v5646 = vpop.f32.mrf.mxu0
    %v5647 = vadd.f32 %v5606, %v5646
    %v5648 = vpop.f32.mrf.mxu0
    %v5649 = vpop.f32.mrf.mxu0
    %5650 = vdwg.mxu0
    %5651 = vmatprep.subr.bf16.mxu0 %v3623
    %5652 = vmatpush1.bf16.msra.mxu0 %v3622
    %5653 = vmatprep.subr.bf16.mxu0 %v3619
    %5654 = vmatpush1.bf16.msra.mxu0 %v3618
    %5655 = vmatprep.subr.bf16.mxu0 %v3615
    %5656 = vmatpush1.bf16.msra.mxu0 %v3614
    %5657 = vmatprep.subr.bf16.mxu0 %v3611
    %5658 = vmatpush1.bf16.msra.mxu0 %v3610
    %5659 = vmatprep.subr.bf16.mxu0 %v3607
    %5660 = vmatpush1.bf16.msra.mxu0 %v3606
    %5661 = vmatprep.subr.bf16.mxu0 %v3603
    %5662 = vmatpush1.bf16.msra.mxu0 %v3602
    %5663 = vmatprep.subr.bf16.mxu0 %v3599
    %5664 = vmatpush1.bf16.msra.mxu0 %v3598
    %5665 = vmatprep.subr.bf16.mxu0 %v3595
    %5666 = vmatpush1.bf16.msra.mxu0 %v3594
    %5667 = vmatprep.subr.bf16.mxu0 %v3655
    %5668 = vmatpush2.bf16.msra.mxu0 %v3654
    %5669 = vmatprep.subr.bf16.mxu0 %v3651
    %5670 = vmatpush2.bf16.msra.mxu0 %v3650
    %5671 = vmatprep.subr.bf16.mxu0 %v3647
    %5672 = vmatpush2.bf16.msra.mxu0 %v3646
    %5673 = vmatprep.subr.bf16.mxu0 %v3643
    %5674 = vmatpush2.bf16.msra.mxu0 %v3642
    %5675 = vmatprep.subr.bf16.mxu0 %v3639
    %5676 = vmatpush2.bf16.msra.mxu0 %v3638
    %5677 = vmatprep.subr.bf16.mxu0 %v3635
    %5678 = vmatpush2.bf16.msra.mxu0 %v3634
    %5679 = vmatprep.subr.bf16.mxu0 %v3631
    %5680 = vmatpush2.bf16.msra.mxu0 %v3630
    %5681 = vmatprep.subr.bf16.mxu0 %v3627
    %5682 = vmatpush2.bf16.msra.mxu0 %v3626
    %5683 = vmatprep.mubr.bf16.mxu0 %v923
    %5684 = vmatmul.mubr.bf16.gmra.mxu0 %v909
    %v5685 = vpop.f32.mrf.mxu0
    %v5686 = vadd.f32 %v5645, %v5685
    %v5687 = vpop.f32.mrf.mxu0
    %v5688 = vadd.f32 %v5647, %v5687
    %v5689 = vpop.f32.mrf.mxu0
    %v5690 = vpop.f32.mrf.mxu0
    %5691 = vdwg.mxu0
    %5692 = vmatprep.subr.bf16.mxu0 %v3687
    %5693 = vmatpush1.bf16.msra.mxu0 %v3686
    %5694 = vmatprep.subr.bf16.mxu0 %v3683
    %5695 = vmatpush1.bf16.msra.mxu0 %v3682
    %5696 = vmatprep.subr.bf16.mxu0 %v3679
    %5697 = vmatpush1.bf16.msra.mxu0 %v3678
    %5698 = vmatprep.subr.bf16.mxu0 %v3675
    %5699 = vmatpush1.bf16.msra.mxu0 %v3674
    %5700 = vmatprep.subr.bf16.mxu0 %v3671
    %5701 = vmatpush1.bf16.msra.mxu0 %v3670
    %5702 = vmatprep.subr.bf16.mxu0 %v3667
    %5703 = vmatpush1.bf16.msra.mxu0 %v3666
    %5704 = vmatprep.subr.bf16.mxu0 %v3663
    %5705 = vmatpush1.bf16.msra.mxu0 %v3662
    %5706 = vmatprep.subr.bf16.mxu0 %v3659
    %5707 = vmatpush1.bf16.msra.mxu0 %v3658
    %5708 = vmatprep.subr.bf16.mxu0 %v3719
    %5709 = vmatpush2.bf16.msra.mxu0 %v3718
    %5710 = vmatprep.subr.bf16.mxu0 %v3715
    %5711 = vmatpush2.bf16.msra.mxu0 %v3714
    %5712 = vmatprep.subr.bf16.mxu0 %v3711
    %5713 = vmatpush2.bf16.msra.mxu0 %v3710
    %5714 = vmatprep.subr.bf16.mxu0 %v3707
    %5715 = vmatpush2.bf16.msra.mxu0 %v3706
    %5716 = vmatprep.subr.bf16.mxu0 %v3703
    %5717 = vmatpush2.bf16.msra.mxu0 %v3702
    %5718 = vmatprep.subr.bf16.mxu0 %v3699
    %5719 = vmatpush2.bf16.msra.mxu0 %v3698
    %5720 = vmatprep.subr.bf16.mxu0 %v3695
    %5721 = vmatpush2.bf16.msra.mxu0 %v3694
    %5722 = vmatprep.subr.bf16.mxu0 %v3691
    %5723 = vmatpush2.bf16.msra.mxu0 %v3690
    %5724 = vmatprep.mubr.bf16.mxu0 %v927
    %5725 = vmatmul.mubr.bf16.gmra.mxu0 %v925
    %v5726 = vpop.f32.mrf.mxu0
    %v5727 = vadd.f32 %v5686, %v5726
    %v5728 = vpop.f32.mrf.mxu0
    %v5729 = vadd.f32 %v5688, %v5728
    %v5730 = vpop.f32.mrf.mxu0
    %v5731 = vpop.f32.mrf.mxu0
    %5732 = vdwg.mxu0
    %5733 = vmatprep.subr.bf16.mxu0 %v3751
    %5734 = vmatpush1.bf16.msra.mxu0 %v3750
    %5735 = vmatprep.subr.bf16.mxu0 %v3747
    %5736 = vmatpush1.bf16.msra.mxu0 %v3746
    %5737 = vmatprep.subr.bf16.mxu0 %v3743
    %5738 = vmatpush1.bf16.msra.mxu0 %v3742
    %5739 = vmatprep.subr.bf16.mxu0 %v3739
    %5740 = vmatpush1.bf16.msra.mxu0 %v3738
    %5741 = vmatprep.subr.bf16.mxu0 %v3735
    %5742 = vmatpush1.bf16.msra.mxu0 %v3734
    %5743 = vmatprep.subr.bf16.mxu0 %v3731
    %5744 = vmatpush1.bf16.msra.mxu0 %v3730
    %5745 = vmatprep.subr.bf16.mxu0 %v3727
    %5746 = vmatpush1.bf16.msra.mxu0 %v3726
    %5747 = vmatprep.subr.bf16.mxu0 %v3723
    %5748 = vmatpush1.bf16.msra.mxu0 %v3722
    %5749 = vmatprep.subr.bf16.mxu0 %v3783
    %5750 = vmatpush2.bf16.msra.mxu0 %v3782
    %5751 = vmatprep.subr.bf16.mxu0 %v3779
    %5752 = vmatpush2.bf16.msra.mxu0 %v3778
    %5753 = vmatprep.subr.bf16.mxu0 %v3775
    %5754 = vmatpush2.bf16.msra.mxu0 %v3774
    %5755 = vmatprep.subr.bf16.mxu0 %v3771
    %5756 = vmatpush2.bf16.msra.mxu0 %v3770
    %5757 = vmatprep.subr.bf16.mxu0 %v3767
    %5758 = vmatpush2.bf16.msra.mxu0 %v3766
    %5759 = vmatprep.subr.bf16.mxu0 %v3763
    %5760 = vmatpush2.bf16.msra.mxu0 %v3762
    %5761 = vmatprep.subr.bf16.mxu0 %v3759
    %5762 = vmatpush2.bf16.msra.mxu0 %v3758
    %5763 = vmatprep.subr.bf16.mxu0 %v3755
    %5764 = vmatpush2.bf16.msra.mxu0 %v3754
    %5765 = vmatprep.mubr.bf16.mxu0 %v984
    %5766 = vmatmul.mubr.bf16.gmra.mxu0 %v970
    %v5767 = vpop.f32.mrf.mxu0
    %v5768 = vadd.f32 %v5727, %v5767
    %v5769 = vpop.f32.mrf.mxu0
    %v5770 = vadd.f32 %v5729, %v5769
    %v5771 = vpop.f32.mrf.mxu0
    %v5772 = vpop.f32.mrf.mxu0
    %5773 = vdwg.mxu0
    %5774 = vmatprep.subr.bf16.mxu0 %v3815
    %5775 = vmatpush1.bf16.msra.mxu0 %v3814
    %5776 = vmatprep.subr.bf16.mxu0 %v3811
    %5777 = vmatpush1.bf16.msra.mxu0 %v3810
    %5778 = vmatprep.subr.bf16.mxu0 %v3807
    %5779 = vmatpush1.bf16.msra.mxu0 %v3806
    %5780 = vmatprep.subr.bf16.mxu0 %v3803
    %5781 = vmatpush1.bf16.msra.mxu0 %v3802
    %5782 = vmatprep.subr.bf16.mxu0 %v3799
    %5783 = vmatpush1.bf16.msra.mxu0 %v3798
    %5784 = vmatprep.subr.bf16.mxu0 %v3795
    %5785 = vmatpush1.bf16.msra.mxu0 %v3794
    %5786 = vmatprep.subr.bf16.mxu0 %v3791
    %5787 = vmatpush1.bf16.msra.mxu0 %v3790
    %5788 = vmatprep.subr.bf16.mxu0 %v3787
    %5789 = vmatpush1.bf16.msra.mxu0 %v3786
    %5790 = vmatprep.subr.bf16.mxu0 %v3847
    %5791 = vmatpush2.bf16.msra.mxu0 %v3846
    %5792 = vmatprep.subr.bf16.mxu0 %v3843
    %5793 = vmatpush2.bf16.msra.mxu0 %v3842
    %5794 = vmatprep.subr.bf16.mxu0 %v3839
    %5795 = vmatpush2.bf16.msra.mxu0 %v3838
    %5796 = vmatprep.subr.bf16.mxu0 %v3835
    %5797 = vmatpush2.bf16.msra.mxu0 %v3834
    %5798 = vmatprep.subr.bf16.mxu0 %v3831
    %5799 = vmatpush2.bf16.msra.mxu0 %v3830
    %5800 = vmatprep.subr.bf16.mxu0 %v3827
    %5801 = vmatpush2.bf16.msra.mxu0 %v3826
    %5802 = vmatprep.subr.bf16.mxu0 %v3823
    %5803 = vmatpush2.bf16.msra.mxu0 %v3822
    %5804 = vmatprep.subr.bf16.mxu0 %v3819
    %5805 = vmatpush2.bf16.msra.mxu0 %v3818
    %5806 = vmatprep.mubr.bf16.mxu0 %v994
    %5807 = vmatmul.mubr.bf16.gmra.mxu0 %v992
    %v5808 = vpop.f32.mrf.mxu0
    %v5809 = vadd.f32 %v5768, %v5808
    %v5810 = vpop.f32.mrf.mxu0
    %v5811 = vadd.f32 %v5770, %v5810
    %v5812 = vpop.f32.mrf.mxu0
    %v5813 = vpop.f32.mrf.mxu0
    %5814 = vdwg.mxu0
    %5815 = vmatprep.subr.bf16.mxu0 %v3879
    %5816 = vmatpush1.bf16.msra.mxu0 %v3878
    %5817 = vmatprep.subr.bf16.mxu0 %v3875
    %5818 = vmatpush1.bf16.msra.mxu0 %v3874
    %5819 = vmatprep.subr.bf16.mxu0 %v3871
    %5820 = vmatpush1.bf16.msra.mxu0 %v3870
    %5821 = vmatprep.subr.bf16.mxu0 %v3867
    %5822 = vmatpush1.bf16.msra.mxu0 %v3866
    %5823 = vmatprep.subr.bf16.mxu0 %v3863
    %5824 = vmatpush1.bf16.msra.mxu0 %v3862
    %5825 = vmatprep.subr.bf16.mxu0 %v3859
    %5826 = vmatpush1.bf16.msra.mxu0 %v3858
    %5827 = vmatprep.subr.bf16.mxu0 %v3855
    %5828 = vmatpush1.bf16.msra.mxu0 %v3854
    %5829 = vmatprep.subr.bf16.mxu0 %v3851
    %5830 = vmatpush1.bf16.msra.mxu0 %v3850
    %5831 = vmatprep.subr.bf16.mxu0 %v3911
    %5832 = vmatpush2.bf16.msra.mxu0 %v3910
    %5833 = vmatprep.subr.bf16.mxu0 %v3907
    %5834 = vmatpush2.bf16.msra.mxu0 %v3906
    %5835 = vmatprep.subr.bf16.mxu0 %v3903
    %5836 = vmatpush2.bf16.msra.mxu0 %v3902
    %5837 = vmatprep.subr.bf16.mxu0 %v3899
    %5838 = vmatpush2.bf16.msra.mxu0 %v3898
    %5839 = vmatprep.subr.bf16.mxu0 %v3895
    %5840 = vmatpush2.bf16.msra.mxu0 %v3894
    %5841 = vmatprep.subr.bf16.mxu0 %v3891
    %5842 = vmatpush2.bf16.msra.mxu0 %v3890
    %5843 = vmatprep.subr.bf16.mxu0 %v3887
    %5844 = vmatpush2.bf16.msra.mxu0 %v3886
    %5845 = vmatprep.subr.bf16.mxu0 %v3883
    %5846 = vmatpush2.bf16.msra.mxu0 %v3882
    %5847 = vmatprep.mubr.bf16.mxu0 %v991
    %5848 = vmatmul.mubr.bf16.gmra.mxu0 %v977
    %v5849 = vpop.f32.mrf.mxu0
    %v5850 = vadd.f32 %v5809, %v5849
    %v5851 = vpop.f32.mrf.mxu0
    %v5852 = vadd.f32 %v5811, %v5851
    %v5853 = vpop.f32.mrf.mxu0
    %v5854 = vpop.f32.mrf.mxu0
    %5855 = vdwg.mxu0
    %5856 = vmatprep.subr.bf16.mxu0 %v3943
    %5857 = vmatpush1.bf16.msra.mxu0 %v3942
    %5858 = vmatprep.subr.bf16.mxu0 %v3939
    %5859 = vmatpush1.bf16.msra.mxu0 %v3938
    %5860 = vmatprep.subr.bf16.mxu0 %v3935
    %5861 = vmatpush1.bf16.msra.mxu0 %v3934
    %5862 = vmatprep.subr.bf16.mxu0 %v3931
    %5863 = vmatpush1.bf16.msra.mxu0 %v3930
    %5864 = vmatprep.subr.bf16.mxu0 %v3927
    %5865 = vmatpush1.bf16.msra.mxu0 %v3926
    %5866 = vmatprep.subr.bf16.mxu0 %v3923
    %5867 = vmatpush1.bf16.msra.mxu0 %v3922
    %5868 = vmatprep.subr.bf16.mxu0 %v3919
    %5869 = vmatpush1.bf16.msra.mxu0 %v3918
    %5870 = vmatprep.subr.bf16.mxu0 %v3915
    %5871 = vmatpush1.bf16.msra.mxu0 %v3914
    %5872 = vmatprep.subr.bf16.mxu0 %v3975
    %5873 = vmatpush2.bf16.msra.mxu0 %v3974
    %5874 = vmatprep.subr.bf16.mxu0 %v3971
    %5875 = vmatpush2.bf16.msra.mxu0 %v3970
    %5876 = vmatprep.subr.bf16.mxu0 %v3967
    %5877 = vmatpush2.bf16.msra.mxu0 %v3966
    %5878 = vmatprep.subr.bf16.mxu0 %v3963
    %5879 = vmatpush2.bf16.msra.mxu0 %v3962
    %5880 = vmatprep.subr.bf16.mxu0 %v3959
    %5881 = vmatpush2.bf16.msra.mxu0 %v3958
    %5882 = vmatprep.subr.bf16.mxu0 %v3955
    %5883 = vmatpush2.bf16.msra.mxu0 %v3954
    %5884 = vmatprep.subr.bf16.mxu0 %v3951
    %5885 = vmatpush2.bf16.msra.mxu0 %v3950
    %5886 = vmatprep.subr.bf16.mxu0 %v3947
    %5887 = vmatpush2.bf16.msra.mxu0 %v3946
    %5888 = vmatprep.mubr.bf16.mxu0 %v995
    %5889 = vmatmul.mubr.bf16.gmra.mxu0 %v993
    %v5890 = vpop.f32.mrf.mxu0
    %v5891 = vadd.f32 %v5850, %v5890
    %v5892 = vpop.f32.mrf.mxu0
    %v5893 = vadd.f32 %v5852, %v5892
    %v5894 = vpop.f32.mrf.mxu0
    %v5895 = vpop.f32.mrf.mxu0
    %5896 = vdwg.mxu0
    %5897 = vmatprep.subr.bf16.mxu0 %v4007
    %5898 = vmatpush1.bf16.msra.mxu0 %v4006
    %5899 = vmatprep.subr.bf16.mxu0 %v4003
    %5900 = vmatpush1.bf16.msra.mxu0 %v4002
    %5901 = vmatprep.subr.bf16.mxu0 %v3999
    %5902 = vmatpush1.bf16.msra.mxu0 %v3998
    %5903 = vmatprep.subr.bf16.mxu0 %v3995
    %5904 = vmatpush1.bf16.msra.mxu0 %v3994
    %5905 = vmatprep.subr.bf16.mxu0 %v3991
    %5906 = vmatpush1.bf16.msra.mxu0 %v3990
    %5907 = vmatprep.subr.bf16.mxu0 %v3987
    %5908 = vmatpush1.bf16.msra.mxu0 %v3986
    %5909 = vmatprep.subr.bf16.mxu0 %v3983
    %5910 = vmatpush1.bf16.msra.mxu0 %v3982
    %5911 = vmatprep.subr.bf16.mxu0 %v3979
    %5912 = vmatpush1.bf16.msra.mxu0 %v3978
    %5913 = vmatprep.subr.bf16.mxu0 %v4039
    %5914 = vmatpush2.bf16.msra.mxu0 %v4038
    %5915 = vmatprep.subr.bf16.mxu0 %v4035
    %5916 = vmatpush2.bf16.msra.mxu0 %v4034
    %5917 = vmatprep.subr.bf16.mxu0 %v4031
    %5918 = vmatpush2.bf16.msra.mxu0 %v4030
    %5919 = vmatprep.subr.bf16.mxu0 %v4027
    %5920 = vmatpush2.bf16.msra.mxu0 %v4026
    %5921 = vmatprep.subr.bf16.mxu0 %v4023
    %5922 = vmatpush2.bf16.msra.mxu0 %v4022
    %5923 = vmatprep.subr.bf16.mxu0 %v4019
    %5924 = vmatpush2.bf16.msra.mxu0 %v4018
    %5925 = vmatprep.subr.bf16.mxu0 %v4015
    %5926 = vmatpush2.bf16.msra.mxu0 %v4014
    %5927 = vmatprep.subr.bf16.mxu0 %v4011
    %5928 = vmatpush2.bf16.msra.mxu0 %v4010
    %5929 = vmatprep.mubr.bf16.mxu0 %v1052
    %5930 = vmatmul.mubr.bf16.gmra.mxu0 %v1038
    %v5931 = vpop.f32.mrf.mxu0
    %v5932 = vadd.f32 %v5891, %v5931
    %v5933 = vpop.f32.mrf.mxu0
    %v5934 = vadd.f32 %v5893, %v5933
    %v5935 = vpop.f32.mrf.mxu0
    %v5936 = vpop.f32.mrf.mxu0
    %5937 = vdwg.mxu0
    %5938 = vmatprep.subr.bf16.mxu0 %v4071
    %5939 = vmatpush1.bf16.msra.mxu0 %v4070
    %5940 = vmatprep.subr.bf16.mxu0 %v4067
    %5941 = vmatpush1.bf16.msra.mxu0 %v4066
    %5942 = vmatprep.subr.bf16.mxu0 %v4063
    %5943 = vmatpush1.bf16.msra.mxu0 %v4062
    %5944 = vmatprep.subr.bf16.mxu0 %v4059
    %5945 = vmatpush1.bf16.msra.mxu0 %v4058
    %5946 = vmatprep.subr.bf16.mxu0 %v4055
    %5947 = vmatpush1.bf16.msra.mxu0 %v4054
    %5948 = vmatprep.subr.bf16.mxu0 %v4051
    %5949 = vmatpush1.bf16.msra.mxu0 %v4050
    %5950 = vmatprep.subr.bf16.mxu0 %v4047
    %5951 = vmatpush1.bf16.msra.mxu0 %v4046
    %5952 = vmatprep.subr.bf16.mxu0 %v4043
    %5953 = vmatpush1.bf16.msra.mxu0 %v4042
    %5954 = vmatprep.subr.bf16.mxu0 %v4103
    %5955 = vmatpush2.bf16.msra.mxu0 %v4102
    %5956 = vmatprep.subr.bf16.mxu0 %v4099
    %5957 = vmatpush2.bf16.msra.mxu0 %v4098
    %5958 = vmatprep.subr.bf16.mxu0 %v4095
    %5959 = vmatpush2.bf16.msra.mxu0 %v4094
    %5960 = vmatprep.subr.bf16.mxu0 %v4091
    %5961 = vmatpush2.bf16.msra.mxu0 %v4090
    %5962 = vmatprep.subr.bf16.mxu0 %v4087
    %5963 = vmatpush2.bf16.msra.mxu0 %v4086
    %5964 = vmatprep.subr.bf16.mxu0 %v4083
    %5965 = vmatpush2.bf16.msra.mxu0 %v4082
    %5966 = vmatprep.subr.bf16.mxu0 %v4079
    %5967 = vmatpush2.bf16.msra.mxu0 %v4078
    %5968 = vmatprep.subr.bf16.mxu0 %v4075
    %5969 = vmatpush2.bf16.msra.mxu0 %v4074
    %5970 = vmatprep.mubr.bf16.mxu0 %v1062
    %5971 = vmatmul.mubr.bf16.gmra.mxu0 %v1060
    %v5972 = vpop.f32.mrf.mxu0
    %v5973 = vadd.f32 %v5932, %v5972
    %v5974 = vpop.f32.mrf.mxu0
    %v5975 = vadd.f32 %v5934, %v5974
    %v5976 = vpop.f32.mrf.mxu0
    %v5977 = vpop.f32.mrf.mxu0
    %5978 = vdwg.mxu0
    %5979 = vmatprep.subr.bf16.mxu0 %v4135
    %5980 = vmatpush1.bf16.msra.mxu0 %v4134
    %5981 = vmatprep.subr.bf16.mxu0 %v4131
    %5982 = vmatpush1.bf16.msra.mxu0 %v4130
    %5983 = vmatprep.subr.bf16.mxu0 %v4127
    %5984 = vmatpush1.bf16.msra.mxu0 %v4126
    %5985 = vmatprep.subr.bf16.mxu0 %v4123
    %5986 = vmatpush1.bf16.msra.mxu0 %v4122
    %5987 = vmatprep.subr.bf16.mxu0 %v4119
    %5988 = vmatpush1.bf16.msra.mxu0 %v4118
    %5989 = vmatprep.subr.bf16.mxu0 %v4115
    %5990 = vmatpush1.bf16.msra.mxu0 %v4114
    %5991 = vmatprep.subr.bf16.mxu0 %v4111
    %5992 = vmatpush1.bf16.msra.mxu0 %v4110
    %5993 = vmatprep.subr.bf16.mxu0 %v4107
    %5994 = vmatpush1.bf16.msra.mxu0 %v4106
    %5995 = vmatprep.subr.bf16.mxu0 %v4167
    %5996 = vmatpush2.bf16.msra.mxu0 %v4166
    %5997 = vmatprep.subr.bf16.mxu0 %v4163
    %5998 = vmatpush2.bf16.msra.mxu0 %v4162
    %5999 = vmatprep.subr.bf16.mxu0 %v4159
    %6000 = vmatpush2.bf16.msra.mxu0 %v4158
    %6001 = vmatprep.subr.bf16.mxu0 %v4155
    %6002 = vmatpush2.bf16.msra.mxu0 %v4154
    %6003 = vmatprep.subr.bf16.mxu0 %v4151
    %6004 = vmatpush2.bf16.msra.mxu0 %v4150
    %6005 = vmatprep.subr.bf16.mxu0 %v4147
    %6006 = vmatpush2.bf16.msra.mxu0 %v4146
    %6007 = vmatprep.subr.bf16.mxu0 %v4143
    %6008 = vmatpush2.bf16.msra.mxu0 %v4142
    %6009 = vmatprep.subr.bf16.mxu0 %v4139
    %6010 = vmatpush2.bf16.msra.mxu0 %v4138
    %6011 = vmatprep.mubr.bf16.mxu0 %v1059
    %6012 = vmatmul.mubr.bf16.gmra.mxu0 %v1045
    %v6013 = vpop.f32.mrf.mxu0
    %v6014 = vadd.f32 %v5973, %v6013
    %v6015 = vpop.f32.mrf.mxu0
    %v6016 = vadd.f32 %v5975, %v6015
    %v6017 = vpop.f32.mrf.mxu0
    %v6018 = vpop.f32.mrf.mxu0
    %6019 = vdwg.mxu0
    %6020 = vmatprep.subr.bf16.mxu0 %v4199
    %6021 = vmatpush1.bf16.msra.mxu0 %v4198
    %6022 = vmatprep.subr.bf16.mxu0 %v4195
    %6023 = vmatpush1.bf16.msra.mxu0 %v4194
    %6024 = vmatprep.subr.bf16.mxu0 %v4191
    %6025 = vmatpush1.bf16.msra.mxu0 %v4190
    %6026 = vmatprep.subr.bf16.mxu0 %v4187
    %6027 = vmatpush1.bf16.msra.mxu0 %v4186
    %6028 = vmatprep.subr.bf16.mxu0 %v4183
    %6029 = vmatpush1.bf16.msra.mxu0 %v4182
    %6030 = vmatprep.subr.bf16.mxu0 %v4179
    %6031 = vmatpush1.bf16.msra.mxu0 %v4178
    %6032 = vmatprep.subr.bf16.mxu0 %v4175
    %6033 = vmatpush1.bf16.msra.mxu0 %v4174
    %6034 = vmatprep.subr.bf16.mxu0 %v4171
    %6035 = vmatpush1.bf16.msra.mxu0 %v4170
    %6036 = vmatprep.subr.bf16.mxu0 %v4231
    %6037 = vmatpush2.bf16.msra.mxu0 %v4230
    %6038 = vmatprep.subr.bf16.mxu0 %v4227
    %6039 = vmatpush2.bf16.msra.mxu0 %v4226
    %6040 = vmatprep.subr.bf16.mxu0 %v4223
    %6041 = vmatpush2.bf16.msra.mxu0 %v4222
    %6042 = vmatprep.subr.bf16.mxu0 %v4219
    %6043 = vmatpush2.bf16.msra.mxu0 %v4218
    %6044 = vmatprep.subr.bf16.mxu0 %v4215
    %6045 = vmatpush2.bf16.msra.mxu0 %v4214
    %6046 = vmatprep.subr.bf16.mxu0 %v4211
    %6047 = vmatpush2.bf16.msra.mxu0 %v4210
    %6048 = vmatprep.subr.bf16.mxu0 %v4207
    %6049 = vmatpush2.bf16.msra.mxu0 %v4206
    %6050 = vmatprep.subr.bf16.mxu0 %v4203
    %6051 = vmatpush2.bf16.msra.mxu0 %v4202
    %6052 = vmatprep.mubr.bf16.mxu0 %v1063
    %6053 = vmatmul.mubr.bf16.gmra.mxu0 %v1061
    %v6054 = vpop.f32.mrf.mxu0
    %v6055 = vadd.f32 %v6014, %v6054
    %v6056 = vpop.f32.mrf.mxu0
    %v6057 = vadd.f32 %v6016, %v6056
    %v6058 = vpop.f32.mrf.mxu0
    %v6059 = vpop.f32.mrf.mxu0
    %6060 = vdwg.mxu0
    %6061 = vmatprep.subr.bf16.mxu0 0
    %6062 = vmatpush1.bf16.msra.mxu0 0
    %6063 = vmatprep.subr.bf16.mxu0 0
    %6064 = vmatpush1.bf16.msra.mxu0 0
    %6065 = vmatprep.subr.bf16.mxu0 0
    %6066 = vmatpush1.bf16.msra.mxu0 0
    %6067 = vmatprep.subr.bf16.mxu0 0
    %6068 = vmatpush1.bf16.msra.mxu0 0
    %6069 = vmatprep.subr.bf16.mxu0 %v4247
    %6070 = vmatpush1.bf16.msra.mxu0 %v4246
    %6071 = vmatprep.subr.bf16.mxu0 %v4243
    %6072 = vmatpush1.bf16.msra.mxu0 %v4242
    %6073 = vmatprep.subr.bf16.mxu0 %v4239
    %6074 = vmatpush1.bf16.msra.mxu0 %v4238
    %6075 = vmatprep.subr.bf16.mxu0 %v4235
    %6076 = vmatpush1.bf16.msra.mxu0 %v4234
    %6077 = vmatprep.subr.bf16.mxu0 0
    %6078 = vmatpush2.bf16.msra.mxu0 0
    %6079 = vmatprep.subr.bf16.mxu0 0
    %6080 = vmatpush2.bf16.msra.mxu0 0
    %6081 = vmatprep.subr.bf16.mxu0 0
    %6082 = vmatpush2.bf16.msra.mxu0 0
    %6083 = vmatprep.subr.bf16.mxu0 0
    %6084 = vmatpush2.bf16.msra.mxu0 0
    %6085 = vmatprep.subr.bf16.mxu0 0
    %6086 = vmatpush2.bf16.msra.mxu0 0
    %6087 = vmatprep.subr.bf16.mxu0 0
    %6088 = vmatpush2.bf16.msra.mxu0 0
    %6089 = vmatprep.subr.bf16.mxu0 0
    %6090 = vmatpush2.bf16.msra.mxu0 0
    %6091 = vmatprep.subr.bf16.mxu0 0
    %6092 = vmatpush2.bf16.msra.mxu0 0
    %6093 = vmatprep.mubr.bf16.mxu0 0
    %6094 = vmatmul.mubr.bf16.gmra.mxu0 %v5034
    %v6095 = vpop.f32.mrf.mxu0
    %v6096 = vadd.f32 %v6055, %v6095
    %v6097 = vpop.f32.mrf.mxu0
    %v6098 = vadd.f32 %v6057, %v6097
    %v6099 = vpop.f32.mrf.mxu0
    %v6100 = vpop.f32.mrf.mxu0
    %6101 = vdwg.mxu0
    %v6102 = vmax.f32 %v5563, 0.0
    %v6103 = vmax.f32 %v5565, 0.0
    %v6104 = vmax.f32 %v6096, 0.0
    %v6105 = vmax.f32 %v6098, 0.0
    %v6106 = vpack.c.bf16 %v6102, %v6102
    %v6107 = vpack.c.bf16 %v6103, %v6103
    %v6108 = vpack.c.bf16 %v6104, %v6104
    %v6109 = vpack.c.bf16 %v6105, %v6105
    %v6110 = vld [vmem:[%s3] sm:$0xf]
    %v6111 = vld [vmem:[%s3 + $0x4] sm:$0xf]
    %v6112 = vld [vmem:[%s3 + $0x8] sm:$0xf]
    %v6113 = vld [vmem:[%s3 + $0xc] sm:$0xf]
    %v6114 = vld [vmem:[%s3 + $0x10] sm:$0xf]
    %v6115 = vld [vmem:[%s3 + $0x14] sm:$0xf]
    %v6116 = vld [vmem:[%s3 + $0x18] sm:$0xf]
    %v6117 = vld [vmem:[%s3 + $0x1c] sm:$0xf]
    %v6118 = vld [vmem:[%s3 + $0x20] sm:$0xf]
    %v6119 = vld [vmem:[%s3 + $0x24] sm:$0xf]
    %v6120 = vld [vmem:[%s3 + $0x28] sm:$0xf]
    %v6121 = vld [vmem:[%s3 + $0x2c] sm:$0xf]
    %v6122 = vld [vmem:[%s3 + $0x30] sm:$0xf]
    %v6123 = vld [vmem:[%s3 + $0x34] sm:$0xf]
    %v6124 = vld [vmem:[%s3 + $0x38] sm:$0xf]
    %v6125 = vld [vmem:[%s3 + $0x3c] sm:$0xf]
    %v6126 = vld [vmem:[%s3 + $0x40] sm:$0xf]
    %v6127 = vld [vmem:[%s3 + $0x44] sm:$0xf]
    %v6128 = vld [vmem:[%s3 + $0x48] sm:$0xf]
    %v6129 = vld [vmem:[%s3 + $0x4c] sm:$0xf]
    %v6130 = vld [vmem:[%s3 + $0x50] sm:$0xf]
    %v6131 = vld [vmem:[%s3 + $0x54] sm:$0xf]
    %v6132 = vld [vmem:[%s3 + $0x58] sm:$0xf]
    %v6133 = vld [vmem:[%s3 + $0x5c] sm:$0xf]
    %v6134 = vld [vmem:[%s3 + $0x60] sm:$0xf]
    %v6135 = vld [vmem:[%s3 + $0x64] sm:$0xf]
    %v6136 = vld [vmem:[%s3 + $0x68] sm:$0xf]
    %v6137 = vld [vmem:[%s3 + $0x6c] sm:$0xf]
    %v6138 = vld [vmem:[%s3 + $0x70] sm:$0xf]
    %v6139 = vld [vmem:[%s3 + $0x74] sm:$0xf]
    %v6140 = vld [vmem:[%s3 + $0x78] sm:$0xf]
    %v6141 = vld [vmem:[%s3 + $0x7c] sm:$0xf]
    %v6142 = vld [vmem:[%s3 + $0x80] sm:$0xf]
    %v6143 = vld [vmem:[%s3 + $0x84] sm:$0xf]
    %v6144 = vld [vmem:[%s3 + $0x88] sm:$0xf]
    %v6145 = vld [vmem:[%s3 + $0x8c] sm:$0xf]
    %v6146 = vld [vmem:[%s3 + $0x90] sm:$0xf]
    %v6147 = vld [vmem:[%s3 + $0x94] sm:$0xf]
    %v6148 = vld [vmem:[%s3 + $0x98] sm:$0xf]
    %v6149 = vld [vmem:[%s3 + $0x9c] sm:$0xf]
    %v6150 = vld [vmem:[%s3 + $0xa0] sm:$0xf]
    %v6151 = vld [vmem:[%s3 + $0xa4] sm:$0xf]
    %v6152 = vld [vmem:[%s3 + $0xa8] sm:$0xf]
    %v6153 = vld [vmem:[%s3 + $0xac] sm:$0xf]
    %v6154 = vld [vmem:[%s3 + $0xb0] sm:$0xf]
    %v6155 = vld [vmem:[%s3 + $0xb4] sm:$0xf]
    %v6156 = vld [vmem:[%s3 + $0xb8] sm:$0xf]
    %v6157 = vld [vmem:[%s3 + $0xbc] sm:$0xf]
    %v6158 = vld [vmem:[%s3 + $0xc0] sm:$0xf]
    %v6159 = vld [vmem:[%s3 + $0xc4] sm:$0xf]
    %v6160 = vld [vmem:[%s3 + $0xc8] sm:$0xf]
    %v6161 = vld [vmem:[%s3 + $0xcc] sm:$0xf]
    %v6162 = vld [vmem:[%s3 + $0xd0] sm:$0xf]
    %v6163 = vld [vmem:[%s3 + $0xd4] sm:$0xf]
    %v6164 = vld [vmem:[%s3 + $0xd8] sm:$0xf]
    %v6165 = vld [vmem:[%s3 + $0xdc] sm:$0xf]
    %v6166 = vld [vmem:[%s3 + $0xe0] sm:$0xf]
    %v6167 = vld [vmem:[%s3 + $0xe4] sm:$0xf]
    %v6168 = vld [vmem:[%s3 + $0xe8] sm:$0xf]
    %v6169 = vld [vmem:[%s3 + $0xec] sm:$0xf]
    %v6170 = vld [vmem:[%s3 + $0xf0] sm:$0xf]
    %v6171 = vld [vmem:[%s3 + $0xf4] sm:$0xf]
    %v6172 = vld [vmem:[%s3 + $0xf8] sm:$0xf]
    %v6173 = vld [vmem:[%s3 + $0xfc] sm:$0xf]
    %v6174 = vld [vmem:[%s4] sm:$0x1]
    %v6176 = vlaneseq
    %v6177 = vshrl.u32 %v6176, 7
    %v6178 = vsub.s32 0, %v6177
    %v6179 = vrot.slane %v6174, %v6178
    %v6245 = vunpack.c.l.b16 %v6110
    %v6246 = vunpack.c.l.b16 %v6111
    %v6247 = vunpack.c.l.b16 %v6112
    %v6248 = vunpack.c.l.b16 %v6113
    %v6249 = vunpack.c.l.b16 %v6114
    %v6250 = vunpack.c.l.b16 %v6115
    %v6251 = vunpack.c.l.b16 %v6116
    %v6252 = vunpack.c.l.b16 %v6117
    %v6253 = vunpack.c.l.b16 %v6118
    %v6254 = vunpack.c.l.b16 %v6119
    %v6255 = vunpack.c.l.b16 %v6120
    %v6256 = vunpack.c.l.b16 %v6121
    %v6257 = vunpack.c.l.b16 %v6122
    %v6258 = vunpack.c.l.b16 %v6123
    %v6259 = vunpack.c.l.b16 %v6124
    %v6260 = vunpack.c.l.b16 %v6125
    %v6261 = vunpack.c.l.b16 %v6126
    %v6262 = vunpack.c.l.b16 %v6127
    %v6263 = vunpack.c.l.b16 %v6128
    %v6264 = vunpack.c.l.b16 %v6129
    %v6265 = vunpack.c.l.b16 %v6130
    %v6266 = vunpack.c.l.b16 %v6131
    %v6267 = vunpack.c.l.b16 %v6132
    %v6268 = vunpack.c.l.b16 %v6133
    %v6269 = vunpack.c.l.b16 %v6134
    %v6270 = vunpack.c.l.b16 %v6135
    %v6271 = vunpack.c.l.b16 %v6136
    %v6272 = vunpack.c.l.b16 %v6137
    %v6273 = vunpack.c.l.b16 %v6138
    %v6274 = vunpack.c.l.b16 %v6139
    %v6275 = vunpack.c.l.b16 %v6140
    %v6276 = vunpack.c.l.b16 %v6141
    %v6277 = vunpack.c.l.b16 %v6142
    %v6278 = vunpack.c.l.b16 %v6143
    %v6279 = vunpack.c.l.b16 %v6144
    %v6280 = vunpack.c.l.b16 %v6145
    %v6281 = vunpack.c.l.b16 %v6146
    %v6282 = vunpack.c.l.b16 %v6147
    %v6283 = vunpack.c.l.b16 %v6148
    %v6284 = vunpack.c.l.b16 %v6149
    %v6285 = vunpack.c.l.b16 %v6150
    %v6286 = vunpack.c.l.b16 %v6151
    %v6287 = vunpack.c.l.b16 %v6152
    %v6288 = vunpack.c.l.b16 %v6153
    %v6289 = vunpack.c.l.b16 %v6154
    %v6290 = vunpack.c.l.b16 %v6155
    %v6291 = vunpack.c.l.b16 %v6156
    %v6292 = vunpack.c.l.b16 %v6157
    %v6293 = vunpack.c.l.b16 %v6158
    %v6294 = vunpack.c.l.b16 %v6159
    %v6295 = vunpack.c.l.b16 %v6160
    %v6296 = vunpack.c.l.b16 %v6161
    %v6297 = vunpack.c.l.b16 %v6162
    %v6298 = vunpack.c.l.b16 %v6163
    %v6299 = vunpack.c.l.b16 %v6164
    %v6300 = vunpack.c.l.b16 %v6165
    %v6301 = vunpack.c.l.b16 %v6166
    %v6302 = vunpack.c.l.b16 %v6167
    %v6303 = vunpack.c.l.b16 %v6168
    %v6304 = vunpack.c.l.b16 %v6169
    %v6305 = vunpack.c.l.b16 %v6170
    %v6306 = vunpack.c.l.b16 %v6171
    %v6307 = vunpack.c.l.b16 %v6172
    %v6308 = vunpack.c.l.b16 %v6173
    %v6309 = vpack.c.b16 %v6246, %v6245
    %v6310 = vpack.c.b16 %v6248, %v6247
    %v6311 = vpack.c.b16 %v6250, %v6249
    %v6312 = vpack.c.b16 %v6252, %v6251
    %v6313 = vpack.c.b16 %v6254, %v6253
    %v6314 = vpack.c.b16 %v6256, %v6255
    %v6315 = vpack.c.b16 %v6258, %v6257
    %v6316 = vpack.c.b16 %v6260, %v6259
    %v6317 = vpack.c.b16 %v6262, %v6261
    %v6318 = vpack.c.b16 %v6264, %v6263
    %v6319 = vpack.c.b16 %v6266, %v6265
    %v6320 = vpack.c.b16 %v6268, %v6267
    %v6321 = vpack.c.b16 %v6270, %v6269
    %v6322 = vpack.c.b16 %v6272, %v6271
    %v6323 = vpack.c.b16 %v6274, %v6273
    %v6324 = vpack.c.b16 %v6276, %v6275
    %v6325 = vpack.c.b16 %v6278, %v6277
    %v6326 = vpack.c.b16 %v6280, %v6279
    %v6327 = vpack.c.b16 %v6282, %v6281
    %v6328 = vpack.c.b16 %v6284, %v6283
    %v6329 = vpack.c.b16 %v6286, %v6285
    %v6330 = vpack.c.b16 %v6288, %v6287
    %v6331 = vpack.c.b16 %v6290, %v6289
    %v6332 = vpack.c.b16 %v6292, %v6291
    %v6333 = vpack.c.b16 %v6294, %v6293
    %v6334 = vpack.c.b16 %v6296, %v6295
    %v6335 = vpack.c.b16 %v6298, %v6297
    %v6336 = vpack.c.b16 %v6300, %v6299
    %v6337 = vpack.c.b16 %v6302, %v6301
    %v6338 = vpack.c.b16 %v6304, %v6303
    %v6339 = vpack.c.b16 %v6306, %v6305
    %v6340 = vpack.c.b16 %v6308, %v6307
    %6373 = vmatprep.subr.bf16.mxu0 0
    %6374 = vmatpush1.bf16.msra.mxu0 %v6316
    %6375 = vmatprep.subr.bf16.mxu0 0
    %6376 = vmatpush1.bf16.msra.mxu0 %v6315
    %6377 = vmatprep.subr.bf16.mxu0 0
    %6378 = vmatpush1.bf16.msra.mxu0 %v6314
    %6379 = vmatprep.subr.bf16.mxu0 0
    %6380 = vmatpush1.bf16.msra.mxu0 %v6313
    %6381 = vmatprep.subr.bf16.mxu0 0
    %6382 = vmatpush1.bf16.msra.mxu0 %v6312
    %6383 = vmatprep.subr.bf16.mxu0 0
    %6384 = vmatpush1.bf16.msra.mxu0 %v6311
    %6385 = vmatprep.subr.bf16.mxu0 0
    %6386 = vmatpush1.bf16.msra.mxu0 %v6310
    %6387 = vmatprep.subr.bf16.mxu0 0
    %6388 = vmatpush1.bf16.msra.mxu0 %v6309
    %6389 = vmatprep.subr.bf16.mxu0 0
    %6390 = vmatpush2.bf16.msra.mxu0 %v6324
    %6391 = vmatprep.subr.bf16.mxu0 0
    %6392 = vmatpush2.bf16.msra.mxu0 %v6323
    %6393 = vmatprep.subr.bf16.mxu0 0
    %6394 = vmatpush2.bf16.msra.mxu0 %v6322
    %6395 = vmatprep.subr.bf16.mxu0 0
    %6396 = vmatpush2.bf16.msra.mxu0 %v6321
    %6397 = vmatprep.subr.bf16.mxu0 0
    %6398 = vmatpush2.bf16.msra.mxu0 %v6320
    %6399 = vmatprep.subr.bf16.mxu0 0
    %6400 = vmatpush2.bf16.msra.mxu0 %v6319
    %6401 = vmatprep.subr.bf16.mxu0 0
    %6402 = vmatpush2.bf16.msra.mxu0 %v6318
    %6403 = vmatprep.subr.bf16.mxu0 0
    %6404 = vmatpush2.bf16.msra.mxu0 %v6317
    %6405 = vmatprep.mubr.bf16.mxu0 %v6107
    %6406 = vmatmul.mubr.bf16.gmra.mxu0 %v6106
    %v6407 = vpop.f32.mrf.mxu0
    %v6408 = vadd.f32 %v6179, %v6407
    %v6409 = vpop.f32.mrf.mxu0
    %v6410 = vpop.f32.mrf.mxu0
    %v6411 = vpop.f32.mrf.mxu0
    %6412 = vdwg.mxu0
    %6413 = vmatprep.subr.bf16.mxu0 0
    %6414 = vmatpush1.bf16.msra.mxu0 %v6332
    %6415 = vmatprep.subr.bf16.mxu0 0
    %6416 = vmatpush1.bf16.msra.mxu0 %v6331
    %6417 = vmatprep.subr.bf16.mxu0 0
    %6418 = vmatpush1.bf16.msra.mxu0 %v6330
    %6419 = vmatprep.subr.bf16.mxu0 0
    %6420 = vmatpush1.bf16.msra.mxu0 %v6329
    %6421 = vmatprep.subr.bf16.mxu0 0
    %6422 = vmatpush1.bf16.msra.mxu0 %v6328
    %6423 = vmatprep.subr.bf16.mxu0 0
    %6424 = vmatpush1.bf16.msra.mxu0 %v6327
    %6425 = vmatprep.subr.bf16.mxu0 0
    %6426 = vmatpush1.bf16.msra.mxu0 %v6326
    %6427 = vmatprep.subr.bf16.mxu0 0
    %6428 = vmatpush1.bf16.msra.mxu0 %v6325
    %6429 = vmatprep.subr.bf16.mxu0 0
    %6430 = vmatpush2.bf16.msra.mxu0 %v6340
    %6431 = vmatprep.subr.bf16.mxu0 0
    %6432 = vmatpush2.bf16.msra.mxu0 %v6339
    %6433 = vmatprep.subr.bf16.mxu0 0
    %6434 = vmatpush2.bf16.msra.mxu0 %v6338
    %6435 = vmatprep.subr.bf16.mxu0 0
    %6436 = vmatpush2.bf16.msra.mxu0 %v6337
    %6437 = vmatprep.subr.bf16.mxu0 0
    %6438 = vmatpush2.bf16.msra.mxu0 %v6336
    %6439 = vmatprep.subr.bf16.mxu0 0
    %6440 = vmatpush2.bf16.msra.mxu0 %v6335
    %6441 = vmatprep.subr.bf16.mxu0 0
    %6442 = vmatpush2.bf16.msra.mxu0 %v6334
    %6443 = vmatprep.subr.bf16.mxu0 0
    %6444 = vmatpush2.bf16.msra.mxu0 %v6333
    %6445 = vmatprep.mubr.bf16.mxu0 %v6109
    %6446 = vmatmul.mubr.bf16.gmra.mxu0 %v6108
    %v6447 = vpop.f32.mrf.mxu0
    %v6448 = vadd.f32 %v6408, %v6447
    %v6449 = vpop.f32.mrf.mxu0
    %v6450 = vpop.f32.mrf.mxu0
    %v6451 = vpop.f32.mrf.mxu0
    %6452 = vdwg.mxu0
    %6453 = vst [vmem:[#allocation2] sm:$0xff] %v6448
    // Predicated region
    $region22: #{qnetwork_forward.7} parent=1 // pred_check
      _
    $region23: #{qnetwork_forward.7} parent=1 // pred_check_branch
      %6455 = sbr.rel (0) target = $region25
    $region24: #{qnetwork_forward.7} parent=1 // pred_region
      %s6457 = ssub.s32 128, 32
      %6458 = vsyncadd [#allocation3], %s6457
      %s6459 = sshll.u32 [#allocation2], 4
      %s6460 = int_to_ptr.vmem [resolvable:$true] %s6459
      %6465 = dma.vmem_to_hbm [thread:$0]  %s6460, 32, %s5, [#allocation3], 32, 32, 2
    $region25: #{qnetwork_forward.7} parent=1 // pred_fallthru
      _
    // Predicated region
    $region26: #{qnetwork_forward.7} parent=1 // pred_check
      _
    $region27: #{qnetwork_forward.7} parent=1 // pred_check_branch
      %6467 = sbr.rel (0) target = $region29
    $region28: #{qnetwork_forward.7} parent=1 // pred_region
      %6468 = dma.done [#allocation3], 128
    $region29: #{qnetwork_forward.7} parent=1 // pred_fallthru
      _
    %6469 = vsyncpa [#allocation3], 1

</llo_original>
